<compile_context>
chip_gen: v5e
topology: v5e:2x2
jax: 0.10.0
libtpu: 0.0.40
codegen_flags: <defaults>
</compile_context>

<pallas_src>
import jax
import jax.numpy as jnp
from jax.experimental import pallas as pl
from jax.experimental.pallas import tpu as pltpu

_BN_EPS = 1e-5


# ----------------------------------------------------------------------------
# Helpers: BN folding, row tiling, im2col
# ----------------------------------------------------------------------------
def _bn_scale(c):
    # Inference BatchNorm with default stats: y = x / sqrt(1 + eps); bias is zero.
    return jnp.full((c,), 1.0 / jnp.sqrt(1.0 + _BN_EPS), jnp.float32)


def _row_tile(r):
    """Single grid step for small row counts; only tile when per-step work is big."""
    if r <= 1024:
        return r
    for t in (1024, 512, 256, 128):
        if r % t == 0:
            return t
    return r


def _im2col(x):
    """x: (N,H,W,C) -> (N*H*W, 9*C) patches for a 3x3 / stride-1 / pad-1 conv."""
    N, H, W, C = x.shape
    xp = jnp.pad(x, ((0, 0), (1, 1), (1, 1), (0, 0)))
    cols = [xp[:, ky:ky + H, kx:kx + W, :] for ky in range(3) for kx in range(3)]
    return jnp.concatenate(cols, axis=-1).reshape(N * H * W, 9 * C)


# ----------------------------------------------------------------------------
# Pallas kernels (all bf16 MXU operands, f32 accumulation, cast at the store)
# ----------------------------------------------------------------------------
def _matmul_kernel(x_ref, w_ref, o_ref):
    acc = jnp.dot(x_ref[...], w_ref[...], preferred_element_type=jnp.float32)
    o_ref[...] = acc.astype(o_ref.dtype)


def _matmul_bias_kernel(x_ref, w_ref, b_ref, o_ref):
    acc = jnp.dot(x_ref[...], w_ref[...], preferred_element_type=jnp.float32)
    o_ref[...] = (acc + b_ref[...]).astype(o_ref.dtype)


def _dual_matmul_kernel(a_ref, wa_ref, b_ref, wb_ref, o_ref):
    acc = (jnp.dot(a_ref[...], wa_ref[...], preferred_element_type=jnp.float32)
           + jnp.dot(b_ref[...], wb_ref[...], preferred_element_type=jnp.float32))
    o_ref[...] = acc.astype(o_ref.dtype)


# ----------------------------------------------------------------------------
# Pallas wrappers
# ----------------------------------------------------------------------------
def pallas_matmul(x2d, w, out_dtype=jnp.float32):
    """y = x2d @ w.  x2d: (R,K), w: (K,Cout)."""
    R, K = x2d.shape
    Cout = w.shape[1]
    tr = _row_tile(R)
    return pl.pallas_call(
        _matmul_kernel,
        out_shape=jax.ShapeDtypeStruct((R, Cout), out_dtype),
        grid=(R // tr,),
        in_specs=[pl.BlockSpec((tr, K), lambda i: (i, 0)),
                  pl.BlockSpec((K, Cout), lambda i: (0, 0))],
        out_specs=pl.BlockSpec((tr, Cout), lambda i: (i, 0)),
        compiler_params=pltpu.CompilerParams(dimension_semantics=("parallel",)),
    )(x2d.astype(jnp.bfloat16), w.astype(jnp.bfloat16))


def pallas_matmul_bias(x2d, w, b, out_dtype=jnp.float32):
    """y = x2d @ w + b.  b: (1, Cout) f32."""
    R, K = x2d.shape
    Cout = w.shape[1]
    tr = _row_tile(R)
    return pl.pallas_call(
        _matmul_bias_kernel,
        out_shape=jax.ShapeDtypeStruct((R, Cout), out_dtype),
        grid=(R // tr,),
        in_specs=[pl.BlockSpec((tr, K), lambda i: (i, 0)),
                  pl.BlockSpec((K, Cout), lambda i: (0, 0)),
                  pl.BlockSpec((1, Cout), lambda i: (0, 0))],
        out_specs=pl.BlockSpec((tr, Cout), lambda i: (i, 0)),
        compiler_params=pltpu.CompilerParams(dimension_semantics=("parallel",)),
    )(x2d.astype(jnp.bfloat16), w.astype(jnp.bfloat16), b.astype(jnp.float32))


def pallas_dual_matmul_rows(a2d, wa, b2d, wb, out_dtype=jnp.float32):
    """y = a2d @ wa + b2d @ wb  ('concat along channels then conv' without the concat)."""
    R, Ka = a2d.shape
    Kb = b2d.shape[1]
    Cout = wa.shape[1]
    tr = _row_tile(R)
    return pl.pallas_call(
        _dual_matmul_kernel,
        out_shape=jax.ShapeDtypeStruct((R, Cout), out_dtype),
        grid=(R // tr,),
        in_specs=[pl.BlockSpec((tr, Ka), lambda i: (i, 0)),
                  pl.BlockSpec((Ka, Cout), lambda i: (0, 0)),
                  pl.BlockSpec((tr, Kb), lambda i: (i, 0)),
                  pl.BlockSpec((Kb, Cout), lambda i: (0, 0))],
        out_specs=pl.BlockSpec((tr, Cout), lambda i: (i, 0)),
        compiler_params=pltpu.CompilerParams(dimension_semantics=("parallel",)),
    )(a2d.astype(jnp.bfloat16), wa.astype(jnp.bfloat16),
      b2d.astype(jnp.bfloat16), wb.astype(jnp.bfloat16))


def pallas_dual_sample(mh, xh, ml, xl):
    """out[n] = mh[n] @ xh[n] + ml[n] @ xl[n]  (both CAB grid_samples + the add)."""
    N, O, I = mh.shape
    C = xh.shape[-1]
    return pl.pallas_call(
        _dual_matmul_kernel,
        out_shape=jax.ShapeDtypeStruct((N, O, C), jnp.bfloat16),
        grid=(N,),
        in_specs=[pl.BlockSpec((None, O, I), lambda n: (n, 0, 0)),
                  pl.BlockSpec((None, I, C), lambda n: (n, 0, 0)),
                  pl.BlockSpec((None, O, I), lambda n: (n, 0, 0)),
                  pl.BlockSpec((None, I, C), lambda n: (n, 0, 0))],
        out_specs=pl.BlockSpec((None, O, C), lambda n: (n, 0, 0)),
        compiler_params=pltpu.CompilerParams(dimension_semantics=("parallel",)),
    )(mh.astype(jnp.bfloat16), xh.astype(jnp.bfloat16),
      ml.astype(jnp.bfloat16), xl.astype(jnp.bfloat16))


# ----------------------------------------------------------------------------
# Resampling glue (plain JAX: static-index bilinear resize, interp-matrix build)
# ----------------------------------------------------------------------------
def resize_bilinear(x, out_h, out_w, align_corners):
    """x: (N,H,W,C) -> (N,out_h,out_w,C); matches F.interpolate(mode='bilinear')."""
    # TODO(synk): small static-index resize kept in XLA; could be two Pallas matmuls.
    N, H, W, C = x.shape
    if align_corners:
        ys = jnp.linspace(0.0, H - 1.0, out_h) if out_h > 1 else jnp.zeros((out_h,))
        xs = jnp.linspace(0.0, W - 1.0, out_w) if out_w > 1 else jnp.zeros((out_w,))
    else:
        ys = jnp.maximum((jnp.arange(out_h) + 0.5) * (H / out_h) - 0.5, 0.0)
        xs = jnp.maximum((jnp.arange(out_w) + 0.5) * (W / out_w) - 0.5, 0.0)
    y0 = jnp.floor(ys).astype(jnp.int32)
    y1 = jnp.minimum(y0 + 1, H - 1)
    wy = (ys - y0).astype(jnp.float32)
    x0 = jnp.floor(xs).astype(jnp.int32)
    x1 = jnp.minimum(x0 + 1, W - 1)
    wx = (xs - x0).astype(jnp.float32)
    top = x[:, y0]
    bot = x[:, y1]
    rows = top * (1.0 - wy)[None, :, None, None] + bot * wy[None, :, None, None]
    left = rows[:, :, x0]
    right = rows[:, :, x1]
    return left * (1.0 - wx)[None, None, :, None] + right * wx[None, None, :, None]


def _bilinear_sample_matrix(gx, gy, H, W):
    """bf16 interpolation matrix (N, out_h*out_w, H*W) for
    F.grid_sample(bilinear, padding_mode='zeros', align_corners=False)."""
    N = gx.shape[0]
    O = gx.shape[1] * gx.shape[2]
    ix = ((gx + 1.0) * W - 1.0) * 0.5
    iy = ((gy + 1.0) * H - 1.0) * 0.5
    ix = ix.reshape(N, O)
    iy = iy.reshape(N, O)
    x0 = jnp.floor(ix)
    y0 = jnp.floor(iy)
    x1 = x0 + 1.0
    y1 = y0 + 1.0
    wx1 = ix - x0
    wx0 = 1.0 - wx1
    wy1 = iy - y0
    wy0 = 1.0 - wy1
    cols = jnp.arange(H * W, dtype=jnp.int32)[None, None, :]          # (1,1,HW)

    def corner(yc, xc, wgt):
        valid = (xc >= 0) & (xc <= W - 1) & (yc >= 0) & (yc <= H - 1)
        xi = jnp.clip(xc, 0, W - 1).astype(jnp.int32)
        yi = jnp.clip(yc, 0, H - 1).astype(jnp.int32)
        idx = (yi * W + xi)[..., None]                                 # (N,O,1)
        onehot = (cols == idx).astype(jnp.bfloat16)                    # (N,O,HW)
        wbf = (wgt * valid.astype(jnp.float32)).astype(jnp.bfloat16)
        return onehot * wbf[..., None]

    return (corner(y0, x0, wy0 * wx0) + corner(y0, x1, wy0 * wx1)
            + corner(y1, x0, wy1 * wx0) + corner(y1, x1, wy1 * wx1))


# ----------------------------------------------------------------------------
# Weight composition (exact algebraic fusion: no ReLU, zero conv biases)
# ----------------------------------------------------------------------------
def _rrb_weff(p):
    """RRB collapses to one matmul: y = x @ (Wu @ (I + W1s @ W2s))."""
    cout, cin = p["unify_w"].shape[0], p["unify_w"].shape[1]
    s = _bn_scale(cout)
    wu = p["unify_w"].reshape(cout, cin).T                        # (cin, cout)
    w1 = p["c1_w"].reshape(cout, cout).T * s[None, :]
    w2 = p["c2_w"].reshape(cout, cout).T * s[None, :]
    weff = wu @ (jnp.eye(cout, dtype=jnp.float32) + w1 @ w2)
    return weff.astype(jnp.bfloat16)


def _cab_delta_weff(p):
    """delta_gen (1x1+BN then 3x3) composes into a single 3x3 over [low, high]:
    per-tap weight = (W1x1 * bn_scale) @ W3[tap].  Returns the low / high halves
    in im2col layout (9*64, 8) (cols 0:2 = delta1, 2:4 = delta2, rest zero-pad)."""
    C = 64
    s = _bn_scale(C)
    w1a = p["dg1_c1_w"].reshape(C, 2 * C).T * s[None, :]          # (128, 64)
    w1b = p["dg2_c1_w"].reshape(C, 2 * C).T * s[None, :]
    w3a = jnp.transpose(p["dg1_c2_w"], (2, 3, 1, 0))              # (3,3,64,2)
    w3b = jnp.transpose(p["dg2_c2_w"], (2, 3, 1, 0))
    lows, highs = [], []
    for ky in range(3):
        for kx in range(3):
            wt = jnp.concatenate([w1a @ w3a[ky, kx], w1b @ w3b[ky, kx]], axis=1)
            lows.append(wt[:C])                                   # (64, 4)
            highs.append(wt[C:])
    w_low = jnp.pad(jnp.concatenate(lows, axis=0), ((0, 0), (0, 4)))    # (576, 8)
    w_high = jnp.pad(jnp.concatenate(highs, axis=0), ((0, 0), (0, 4)))
    return w_low.astype(jnp.bfloat16), w_high.astype(jnp.bfloat16)


def _unetout_weff(p):
    """unetout1 collapses to one matmul: 3x3+BN then 1x1(+bias) with no ReLU."""
    s = _bn_scale(32)
    w1 = jnp.transpose(p["u1_w"], (2, 3, 1, 0)).reshape(9 * 64, 32) * s[None, :]
    w2 = p["u2_w"].reshape(1, 32).T                               # (32, 1)
    weff = jnp.pad(w1 @ w2, ((0, 0), (0, 7))).astype(jnp.bfloat16)        # (576, 8)
    b = jnp.pad(p["u2_b"].reshape(1, 1), ((0, 0), (0, 7))).astype(jnp.float32)
    return weff, b


# ----------------------------------------------------------------------------
# Sub-modules used by MyNet.forward
# ----------------------------------------------------------------------------
def rrb_apply(p, x):
    """RRB as a single pallas matmul (unify + residual 1x1+BN chain folded)."""
    N, H, W, C = x.shape
    cout = p["unify_w"].shape[0]
    y = pallas_matmul(x.reshape(-1, C), _rrb_weff(p), out_dtype=jnp.bfloat16)
    return y.reshape(N, H, W, cout)


def cab_apply(p, low, high):
    """CAB: upsample high (align_corners=True), composed delta conv (one dual matmul),
    fused dual grid_sample + add (one batched matmul kernel)."""
    N, h, w, C = low.shape
    high_up = resize_bilinear(high, h, w, align_corners=True).astype(jnp.bfloat16)
    low = low.astype(jnp.bfloat16)

    # ---- composed delta path: one pallas_call, no concat / f32 intermediate ----
    w_low, w_high = _cab_delta_weff(p)
    delta = pallas_dual_matmul_rows(_im2col(low), w_low,
                                    _im2col(high_up), w_high,
                                    out_dtype=jnp.float32)        # (R, 8), cols 0:4 real
    delta = delta.reshape(N, h, w, 8)
    delta1, delta2 = delta[..., 0:2], delta[..., 2:4]

    # ---- both grid_samples + final add in a single Pallas kernel ----
    xs = jnp.linspace(-1.0, 1.0, w, dtype=jnp.float32)
    ys = jnp.linspace(-1.0, 1.0, h, dtype=jnp.float32)
    bx = jnp.broadcast_to(xs[None, None, :], (N, h, w))
    by = jnp.broadcast_to(ys[None, :, None], (N, h, w))
    # Matches the PyTorch reference quirk: x-offset normalized by h, y-offset by w.
    gx1 = bx + delta1[..., 0] / jnp.float32(h)
    gy1 = by + delta1[..., 1] / jnp.float32(w)
    gx2 = bx + delta2[..., 0] / jnp.float32(h)
    gy2 = by + delta2[..., 1] / jnp.float32(w)
    mh = _bilinear_sample_matrix(gx1, gy1, h, w)       # samples high_up with delta1
    ml = _bilinear_sample_matrix(gx2, gy2, h, w)       # samples low     with delta2
    out = pallas_dual_sample(mh, high_up.reshape(N, h * w, C),
                             ml, low.reshape(N, h * w, C))
    return out.reshape(N, h, w, C)


def unetout1_apply(p, x):
    """unetout1 as a single pallas matmul+bias (3x3+BN folded into the 1x1)."""
    N, H, W, C = x.shape
    weff, b = _unetout_weff(p)
    patches = _im2col(x.astype(jnp.bfloat16))                      # (R, 576)
    y = pallas_matmul_bias(patches, weff, b, out_dtype=jnp.float32)  # (R, 8)
    return y[:, :1].reshape(N, H, W, 1)


def backbone_stub(p, x):
    """Deterministic stand-in for pvt_v2_b2: avg-pool strides 4/8/16/32 + 1x1 proj."""
    # TODO(synk): pretrained pvt_v2_b2 backbone not reproducible; projection with
    # Cin=3 is left to XLA (a Pallas matmul would waste 125/128 MXU lanes).
    N, H, W, C = x.shape
    feats = []
    for i, (s, cout) in enumerate([(4, 64), (8, 128), (16, 320), (32, 512)]):
        pooled = x.reshape(N, H // s, s, W // s, s, C).mean(axis=(2, 4))
        wp = p[f"proj{i}_w"].reshape(cout, C).T
        feats.append(jnp.einsum("nhwc,cd->nhwd", pooled, wp))
    return feats


# ----------------------------------------------------------------------------
# Parameter init (deterministic, synthetic)
# ----------------------------------------------------------------------------
def _conv_w(key, cout, cin, k):
    fan_in = cin * k * k
    return (jax.random.normal(key, (cout, cin, k, k), jnp.float32)
            * (1.0 / jnp.sqrt(jnp.float32(fan_in))))


def init_params(seed=42):
    key = jax.random.PRNGKey(seed)
    keys = iter(jax.random.split(key, 64))
    p = {}

    def rrb(prefix, cin, cout=64):
        p[prefix] = {
            "unify_w": _conv_w(next(keys), cout, cin, 1),
            "c1_w": _conv_w(next(keys), cout, cout, 1),
            "c2_w": _conv_w(next(keys), cout, cout, 1),
        }

    rrb("trans1", 64)
    rrb("trans2", 128)
    rrb("trans3", 320)
    rrb("trans4", 512)
    rrb("up4", 64)

    p["fluse3"] = {
        "dg1_c1_w": _conv_w(next(keys), 64, 128, 1),
        "dg1_c2_w": _conv_w(next(keys), 2, 64, 3),
        "dg2_c1_w": _conv_w(next(keys), 64, 128, 1),
        "dg2_c2_w": _conv_w(next(keys), 2, 64, 3),
    }
    p["unetout1"] = {
        "u1_w": _conv_w(next(keys), 32, 64, 3),
        "u2_w": _conv_w(next(keys), 1, 32, 1),
        "u2_b": jax.random.normal(next(keys), (1,), jnp.float32) * 0.01,
    }
    p["backbone"] = {
        "proj0_w": _conv_w(next(keys), 64, 3, 1),
        "proj1_w": _conv_w(next(keys), 128, 3, 1),
        "proj2_w": _conv_w(next(keys), 320, 3, 1),
        "proj3_w": _conv_w(next(keys), 512, 3, 1),
    }
    return p


# ----------------------------------------------------------------------------
# MyNet forward
# ----------------------------------------------------------------------------
def mynet_forward(params, x_nchw):
    x = jnp.transpose(x_nchw.astype(jnp.float32), (0, 2, 3, 1))   # NCHW -> NHWC
    x1, x2, x3, x4 = backbone_stub(params["backbone"], x)

    x1 = rrb_apply(params["trans1"], x1)
    x2 = rrb_apply(params["trans2"], x2)
    x3 = rrb_apply(params["trans3"], x3)
    x4 = rrb_apply(params["trans4"], x4)

    # The reference forward reuses fluse3 (same CAB parameters) for all 3 stages.
    ful3 = cab_apply(params["fluse3"], x3, rrb_apply(params["up4"], x4))
    ful2 = cab_apply(params["fluse3"], x2, rrb_apply(params["up4"], ful3))
    ful1 = cab_apply(params["fluse3"], x1, rrb_apply(params["up4"], ful2))

    pred1 = unetout1_apply(params["unetout1"], ful1)              # (N,h,w,1) f32
    N, h, w, _ = pred1.shape
    pred1 = resize_bilinear(pred1, 4 * h, 4 * w, align_corners=False)
    return jnp.transpose(pred1, (0, 3, 1, 2))                     # NHWC -> NCHW


if __name__ == "__main__":
    params = init_params(seed=42)
    x = jax.random.normal(jax.random.PRNGKey(0), (2, 3, 64, 64), jnp.float32)
    fwd = jax.jit(mynet_forward)
    out = fwd(params, x)
    out = jax.block_until_ready(out)
    assert out.shape == (2, 1, 64, 64), out.shape
    assert jnp.all(jnp.isfinite(out))
    print("KERNEL_OK")
</pallas_src>

<mosaic_0001>
module attributes {stable_mosaic.version = 11 : i64} {
  func.func @_matmul_kernel(%arg0: i32, %arg1: memref<512x64xbf16, #tpu.memory_space<vmem>>, %arg2: memref<64x64xbf16, #tpu.memory_space<vmem>>, %arg3: memref<512x64xbf16, #tpu.memory_space<vmem>>) attributes {dimension_semantics = [#tpu.dimension_semantics<parallel>], iteration_bounds = array<i64: 1>, scalar_prefetch = 0 : i64, scratch_operands = 0 : i64, tpu.core_type = #tpu.core_type<tc>, window_params = [{transform_indices = @transform_0, window_bounds = array<i64: 512, 64>}, {pipeline_mode = #tpu.pipeline_mode<synchronous>, transform_indices = @transform_1, window_bounds = array<i64: 64, 64>}, {transform_indices = @transform_2, window_bounds = array<i64: 512, 64>}]} {
    %c0 = arith.constant 0 : index
    %c0_0 = arith.constant 0 : index
    %0 = vector.load %arg1[%c0, %c0_0] : memref<512x64xbf16, #tpu.memory_space<vmem>>, vector<512x64xbf16>
    %c0_1 = arith.constant 0 : index
    %c0_2 = arith.constant 0 : index
    %1 = vector.load %arg2[%c0_1, %c0_2] : memref<64x64xbf16, #tpu.memory_space<vmem>>, vector<64x64xbf16>
    %cst = arith.constant dense<0.000000e+00> : vector<512x64xf32>
    %2 = tpu.matmul %0, %1, %cst {dimension_numbers = #tpu.dot_dimension_numbers<[1], [0], [0], [1], [0, 0, 1, 1], [], []>} : vector<512x64xbf16>, vector<64x64xbf16>, vector<512x64xf32> -> vector<512x64xf32>
    %3 = arith.truncf %2 : vector<512x64xf32> to vector<512x64xbf16>
    %c0_3 = arith.constant 0 : index
    %c0_4 = arith.constant 0 : index
    %4 = vector.load %arg3[%c0_3, %c0_4] : memref<512x64xbf16, #tpu.memory_space<vmem>>, vector<512x64xbf16>
    tpu.vector_store %arg3[%c0_3, %c0_4], %3 {strides = array<i32>} : memref<512x64xbf16, #tpu.memory_space<vmem>>, vector<512x64xbf16>,
    return
  }
  func.func @transform_0(%arg0: i32) -> (i32, i32) {
    %c0_i32 = arith.constant 0 : i32
    %c0_i32_0 = arith.constant 0 : i32
    return %arg0, %c0_i32 : i32, i32
  }
  func.func @transform_1(%arg0: i32) -> (i32, i32) {
    %c0_i32 = arith.constant 0 : i32
    %c0_i32_0 = arith.constant 0 : i32
    %c0_i32_1 = arith.constant 0 : i32
    return %c0_i32, %c0_i32_0 : i32, i32
  }
  func.func @transform_2(%arg0: i32) -> (i32, i32) {
    %c0_i32 = arith.constant 0 : i32
    %c0_i32_0 = arith.constant 0 : i32
    return %arg0, %c0_i32 : i32, i32
  }
}

module attributes {stable_mosaic.version = 11 : i64} {
  func.func @_matmul_kernel(%arg0: i32, %arg1: memref<128x128xbf16, #tpu.memory_space<vmem>>, %arg2: memref<128x64xbf16, #tpu.memory_space<vmem>>, %arg3: memref<128x64xbf16, #tpu.memory_space<vmem>>) attributes {dimension_semantics = [#tpu.dimension_semantics<parallel>], iteration_bounds = array<i64: 1>, scalar_prefetch = 0 : i64, scratch_operands = 0 : i64, tpu.core_type = #tpu.core_type<tc>, window_params = [{transform_indices = @transform_0, window_bounds = array<i64: 128, 128>}, {pipeline_mode = #tpu.pipeline_mode<synchronous>, transform_indices = @transform_1, window_bounds = array<i64: 128, 64>}, {transform_indices = @transform_2, window_bounds = array<i64: 128, 64>}]} {
    %c0 = arith.constant 0 : index
    %c0_0 = arith.constant 0 : index
    %0 = vector.load %arg1[%c0, %c0_0] : memref<128x128xbf16, #tpu.memory_space<vmem>>, vector<128x128xbf16>
    %c0_1 = arith.constant 0 : index
    %c0_2 = arith.constant 0 : index
    %1 = vector.load %arg2[%c0_1, %c0_2] : memref<128x64xbf16, #tpu.memory_space<vmem>>, vector<128x64xbf16>
    %cst = arith.constant dense<0.000000e+00> : vector<128x64xf32>
    %2 = tpu.matmul %0, %1, %cst {dimension_numbers = #tpu.dot_dimension_numbers<[1], [0], [0], [1], [0, 0, 1, 1], [], []>} : vector<128x128xbf16>, vector<128x64xbf16>, vector<128x64xf32> -> vector<128x64xf32>
    %3 = arith.truncf %2 : vector<128x64xf32> to vector<128x64xbf16>
    %c0_3 = arith.constant 0 : index
    %c0_4 = arith.constant 0 : index
    %4 = vector.load %arg3[%c0_3, %c0_4] : memref<128x64xbf16, #tpu.memory_space<vmem>>, vector<128x64xbf16>
    tpu.vector_store %arg3[%c0_3, %c0_4], %3 {strides = array<i32>} : memref<128x64xbf16, #tpu.memory_space<vmem>>, vector<128x64xbf16>,
    return
  }
  func.func @transform_0(%arg0: i32) -> (i32, i32) {
    %c0_i32 = arith.constant 0 : i32
    %c0_i32_0 = arith.constant 0 : i32
    return %arg0, %c0_i32 : i32, i32
  }
  func.func @transform_1(%arg0: i32) -> (i32, i32) {
    %c0_i32 = arith.constant 0 : i32
    %c0_i32_0 = arith.constant 0 : i32
    %c0_i32_1 = arith.constant 0 : i32
    return %c0_i32, %c0_i32_0 : i32, i32
  }
  func.func @transform_2(%arg0: i32) -> (i32, i32) {
    %c0_i32 = arith.constant 0 : i32
    %c0_i32_0 = arith.constant 0 : i32
    return %arg0, %c0_i32 : i32, i32
  }
}

module attributes {stable_mosaic.version = 11 : i64} {
  func.func @_matmul_kernel(%arg0: i32, %arg1: memref<32x320xbf16, #tpu.memory_space<vmem>>, %arg2: memref<320x64xbf16, #tpu.memory_space<vmem>>, %arg3: memref<32x64xbf16, #tpu.memory_space<vmem>>) attributes {dimension_semantics = [#tpu.dimension_semantics<parallel>], iteration_bounds = array<i64: 1>, scalar_prefetch = 0 : i64, scratch_operands = 0 : i64, tpu.core_type = #tpu.core_type<tc>, window_params = [{transform_indices = @transform_0, window_bounds = array<i64: 32, 320>}, {pipeline_mode = #tpu.pipeline_mode<synchronous>, transform_indices = @transform_1, window_bounds = array<i64: 320, 64>}, {transform_indices = @transform_2, window_bounds = array<i64: 32, 64>}]} {
    %c0 = arith.constant 0 : index
    %c0_0 = arith.constant 0 : index
    %0 = vector.load %arg1[%c0, %c0_0] : memref<32x320xbf16, #tpu.memory_space<vmem>>, vector<32x320xbf16>
    %c0_1 = arith.constant 0 : index
    %c0_2 = arith.constant 0 : index
    %1 = vector.load %arg2[%c0_1, %c0_2] : memref<320x64xbf16, #tpu.memory_space<vmem>>, vector<320x64xbf16>
    %cst = arith.constant dense<0.000000e+00> : vector<32x64xf32>
    %2 = tpu.matmul %0, %1, %cst {dimension_numbers = #tpu.dot_dimension_numbers<[1], [0], [0], [1], [0, 0, 1, 1], [], []>} : vector<32x320xbf16>, vector<320x64xbf16>, vector<32x64xf32> -> vector<32x64xf32>
    %3 = arith.truncf %2 : vector<32x64xf32> to vector<32x64xbf16>
    %c0_3 = arith.constant 0 : index
    %c0_4 = arith.constant 0 : index
    %4 = vector.load %arg3[%c0_3, %c0_4] : memref<32x64xbf16, #tpu.memory_space<vmem>>, vector<32x64xbf16>
    tpu.vector_store %arg3[%c0_3, %c0_4], %3 {strides = array<i32>} : memref<32x64xbf16, #tpu.memory_space<vmem>>, vector<32x64xbf16>,
    return
  }
  func.func @transform_0(%arg0: i32) -> (i32, i32) {
    %c0_i32 = arith.constant 0 : i32
    %c0_i32_0 = arith.constant 0 : i32
    return %arg0, %c0_i32 : i32, i32
  }
  func.func @transform_1(%arg0: i32) -> (i32, i32) {
    %c0_i32 = arith.constant 0 : i32
    %c0_i32_0 = arith.constant 0 : i32
    %c0_i32_1 = arith.constant 0 : i32
    return %c0_i32, %c0_i32_0 : i32, i32
  }
  func.func @transform_2(%arg0: i32) -> (i32, i32) {
    %c0_i32 = arith.constant 0 : i32
    %c0_i32_0 = arith.constant 0 : i32
    return %arg0, %c0_i32 : i32, i32
  }
}

module attributes {stable_mosaic.version = 11 : i64} {
  func.func @_matmul_kernel(%arg0: i32, %arg1: memref<8x64xbf16, #tpu.memory_space<vmem>>, %arg2: memref<64x64xbf16, #tpu.memory_space<vmem>>, %arg3: memref<8x64xbf16, #tpu.memory_space<vmem>>) attributes {dimension_semantics = [#tpu.dimension_semantics<parallel>], iteration_bounds = array<i64: 1>, scalar_prefetch = 0 : i64, scratch_operands = 0 : i64, tpu.core_type = #tpu.core_type<tc>, window_params = [{transform_indices = @transform_0, window_bounds = array<i64: 8, 64>}, {pipeline_mode = #tpu.pipeline_mode<synchronous>, transform_indices = @transform_1, window_bounds = array<i64: 64, 64>}, {transform_indices = @transform_2, window_bounds = array<i64: 8, 64>}]} {
    %c0 = arith.constant 0 : index
    %c0_0 = arith.constant 0 : index
    %0 = vector.load %arg1[%c0, %c0_0] : memref<8x64xbf16, #tpu.memory_space<vmem>>, vector<8x64xbf16>
    %c0_1 = arith.constant 0 : index
    %c0_2 = arith.constant 0 : index
    %1 = vector.load %arg2[%c0_1, %c0_2] : memref<64x64xbf16, #tpu.memory_space<vmem>>, vector<64x64xbf16>
    %cst = arith.constant dense<0.000000e+00> : vector<8x64xf32>
    %2 = tpu.matmul %0, %1, %cst {dimension_numbers = #tpu.dot_dimension_numbers<[1], [0], [0], [1], [0, 0, 1, 1], [], []>} : vector<8x64xbf16>, vector<64x64xbf16>, vector<8x64xf32> -> vector<8x64xf32>
    %3 = arith.truncf %2 : vector<8x64xf32> to vector<8x64xbf16>
    %c0_3 = arith.constant 0 : index
    %c0_4 = arith.constant 0 : index
    %4 = vector.load %arg3[%c0_3, %c0_4] : memref<8x64xbf16, #tpu.memory_space<vmem>>, vector<8x64xbf16>
    tpu.vector_store %arg3[%c0_3, %c0_4], %3 {strides = array<i32>} : memref<8x64xbf16, #tpu.memory_space<vmem>>, vector<8x64xbf16>,
    return
  }
  func.func @transform_0(%arg0: i32) -> (i32, i32) {
    %c0_i32 = arith.constant 0 : i32
    %c0_i32_0 = arith.constant 0 : i32
    return %arg0, %c0_i32 : i32, i32
  }
  func.func @transform_1(%arg0: i32) -> (i32, i32) {
    %c0_i32 = arith.constant 0 : i32
    %c0_i32_0 = arith.constant 0 : i32
    %c0_i32_1 = arith.constant 0 : i32
    return %c0_i32, %c0_i32_0 : i32, i32
  }
  func.func @transform_2(%arg0: i32) -> (i32, i32) {
    %c0_i32 = arith.constant 0 : i32
    %c0_i32_0 = arith.constant 0 : i32
    return %arg0, %c0_i32 : i32, i32
  }
}

module attributes {stable_mosaic.version = 11 : i64} {
  func.func @_matmul_kernel(%arg0: i32, %arg1: memref<8x512xbf16, #tpu.memory_space<vmem>>, %arg2: memref<512x64xbf16, #tpu.memory_space<vmem>>, %arg3: memref<8x64xbf16, #tpu.memory_space<vmem>>) attributes {dimension_semantics = [#tpu.dimension_semantics<parallel>], iteration_bounds = array<i64: 1>, scalar_prefetch = 0 : i64, scratch_operands = 0 : i64, tpu.core_type = #tpu.core_type<tc>, window_params = [{transform_indices = @transform_0, window_bounds = array<i64: 8, 512>}, {pipeline_mode = #tpu.pipeline_mode<synchronous>, transform_indices = @transform_1, window_bounds = array<i64: 512, 64>}, {transform_indices = @transform_2, window_bounds = array<i64: 8, 64>}]} {
    %c0 = arith.constant 0 : index
    %c0_0 = arith.constant 0 : index
    %0 = vector.load %arg1[%c0, %c0_0] : memref<8x512xbf16, #tpu.memory_space<vmem>>, vector<8x512xbf16>
    %c0_1 = arith.constant 0 : index
    %c0_2 = arith.constant 0 : index
    %1 = vector.load %arg2[%c0_1, %c0_2] : memref<512x64xbf16, #tpu.memory_space<vmem>>, vector<512x64xbf16>
    %cst = arith.constant dense<0.000000e+00> : vector<8x64xf32>
    %2 = tpu.matmul %0, %1, %cst {dimension_numbers = #tpu.dot_dimension_numbers<[1], [0], [0], [1], [0, 0, 1, 1], [], []>} : vector<8x512xbf16>, vector<512x64xbf16>, vector<8x64xf32> -> vector<8x64xf32>
    %3 = arith.truncf %2 : vector<8x64xf32> to vector<8x64xbf16>
    %c0_3 = arith.constant 0 : index
    %c0_4 = arith.constant 0 : index
    %4 = vector.load %arg3[%c0_3, %c0_4] : memref<8x64xbf16, #tpu.memory_space<vmem>>, vector<8x64xbf16>
    tpu.vector_store %arg3[%c0_3, %c0_4], %3 {strides = array<i32>} : memref<8x64xbf16, #tpu.memory_space<vmem>>, vector<8x64xbf16>,
    return
  }
  func.func @transform_0(%arg0: i32) -> (i32, i32) {
    %c0_i32 = arith.constant 0 : i32
    %c0_i32_0 = arith.constant 0 : i32
    return %arg0, %c0_i32 : i32, i32
  }
  func.func @transform_1(%arg0: i32) -> (i32, i32) {
    %c0_i32 = arith.constant 0 : i32
    %c0_i32_0 = arith.constant 0 : i32
    %c0_i32_1 = arith.constant 0 : i32
    return %c0_i32, %c0_i32_0 : i32, i32
  }
  func.func @transform_2(%arg0: i32) -> (i32, i32) {
    %c0_i32 = arith.constant 0 : i32
    %c0_i32_0 = arith.constant 0 : i32
    return %arg0, %c0_i32 : i32, i32
  }
}

module attributes {stable_mosaic.version = 11 : i64} {
  func.func @_dual_matmul_kernel(%arg0: i32, %arg1: memref<32x576xbf16, #tpu.memory_space<vmem>>, %arg2: memref<576x8xbf16, #tpu.memory_space<vmem>>, %arg3: memref<32x576xbf16, #tpu.memory_space<vmem>>, %arg4: memref<576x8xbf16, #tpu.memory_space<vmem>>, %arg5: memref<32x8xf32, #tpu.memory_space<vmem>>) attributes {dimension_semantics = [#tpu.dimension_semantics<parallel>], iteration_bounds = array<i64: 1>, scalar_prefetch = 0 : i64, scratch_operands = 0 : i64, tpu.core_type = #tpu.core_type<tc>, window_params = [{transform_indices = @transform_0, window_bounds = array<i64: 32, 576>}, {pipeline_mode = #tpu.pipeline_mode<synchronous>, transform_indices = @transform_1, window_bounds = array<i64: 576, 8>}, {transform_indices = @transform_2, window_bounds = array<i64: 32, 576>}, {pipeline_mode = #tpu.pipeline_mode<synchronous>, transform_indices = @transform_3, window_bounds = array<i64: 576, 8>}, {transform_indices = @transform_4, window_bounds = array<i64: 32, 8>}]} {
    %c0 = arith.constant 0 : index
    %c0_0 = arith.constant 0 : index
    %0 = vector.load %arg1[%c0, %c0_0] : memref<32x576xbf16, #tpu.memory_space<vmem>>, vector<32x576xbf16>
    %c0_1 = arith.constant 0 : index
    %c0_2 = arith.constant 0 : index
    %1 = vector.load %arg2[%c0_1, %c0_2] : memref<576x8xbf16, #tpu.memory_space<vmem>>, vector<576x8xbf16>
    %cst = arith.constant dense<0.000000e+00> : vector<32x8xf32>
    %2 = tpu.matmul %0, %1, %cst {dimension_numbers = #tpu.dot_dimension_numbers<[1], [0], [0], [1], [0, 0, 1, 1], [], []>} : vector<32x576xbf16>, vector<576x8xbf16>, vector<32x8xf32> -> vector<32x8xf32>
    %c0_3 = arith.constant 0 : index
    %c0_4 = arith.constant 0 : index
    %3 = vector.load %arg3[%c0_3, %c0_4] : memref<32x576xbf16, #tpu.memory_space<vmem>>, vector<32x576xbf16>
    %c0_5 = arith.constant 0 : index
    %c0_6 = arith.constant 0 : index
    %4 = vector.load %arg4[%c0_5, %c0_6] : memref<576x8xbf16, #tpu.memory_space<vmem>>, vector<576x8xbf16>
    %cst_7 = arith.constant dense<0.000000e+00> : vector<32x8xf32>
    %5 = tpu.matmul %3, %4, %cst_7 {dimension_numbers = #tpu.dot_dimension_numbers<[1], [0], [0], [1], [0, 0, 1, 1], [], []>} : vector<32x576xbf16>, vector<576x8xbf16>, vector<32x8xf32> -> vector<32x8xf32>
    %6 = arith.addf %2, %5 : vector<32x8xf32>
    %c0_8 = arith.constant 0 : index
    %c0_9 = arith.constant 0 : index
    %7 = vector.load %arg5[%c0_8, %c0_9] : memref<32x8xf32, #tpu.memory_space<vmem>>, vector<32x8xf32>
    tpu.vector_store %arg5[%c0_8, %c0_9], %6 {strides = array<i32>} : memref<32x8xf32, #tpu.memory_space<vmem>>, vector<32x8xf32>,
    return
  }
  func.func @transform_0(%arg0: i32) -> (i32, i32) {
    %c0_i32 = arith.constant 0 : i32
    %c0_i32_0 = arith.constant 0 : i32
    return %arg0, %c0_i32 : i32, i32
  }
  func.func @transform_1(%arg0: i32) -> (i32, i32) {
    %c0_i32 = arith.constant 0 : i32
    %c0_i32_0 = arith.constant 0 : i32
    %c0_i32_1 = arith.constant 0 : i32
    return %c0_i32, %c0_i32_0 : i32, i32
  }
  func.func @transform_2(%arg0: i32) -> (i32, i32) {
    %c0_i32 = arith.constant 0 : i32
    %c0_i32_0 = arith.constant 0 : i32
    return %arg0, %c0_i32 : i32, i32
  }
  func.func @transform_3(%arg0: i32) -> (i32, i32) {
    %c0_i32 = arith.constant 0 : i32
    %c0_i32_0 = arith.constant 0 : i32
    %c0_i32_1 = arith.constant 0 : i32
    return %c0_i32, %c0_i32_0 : i32, i32
  }
  func.func @transform_4(%arg0: i32) -> (i32, i32) {
    %c0_i32 = arith.constant 0 : i32
    %c0_i32_0 = arith.constant 0 : i32
    return %arg0, %c0_i32 : i32, i32
  }
}

module attributes {stable_mosaic.version = 11 : i64} {
  func.func @_matmul_kernel(%arg0: i32, %arg1: memref<32x64xbf16, #tpu.memory_space<vmem>>, %arg2: memref<64x64xbf16, #tpu.memory_space<vmem>>, %arg3: memref<32x64xbf16, #tpu.memory_space<vmem>>) attributes {dimension_semantics = [#tpu.dimension_semantics<parallel>], iteration_bounds = array<i64: 1>, scalar_prefetch = 0 : i64, scratch_operands = 0 : i64, tpu.core_type = #tpu.core_type<tc>, window_params = [{transform_indices = @transform_0, window_bounds = array<i64: 32, 64>}, {pipeline_mode = #tpu.pipeline_mode<synchronous>, transform_indices = @transform_1, window_bounds = array<i64: 64, 64>}, {transform_indices = @transform_2, window_bounds = array<i64: 32, 64>}]} {
    %c0 = arith.constant 0 : index
    %c0_0 = arith.constant 0 : index
    %0 = vector.load %arg1[%c0, %c0_0] : memref<32x64xbf16, #tpu.memory_space<vmem>>, vector<32x64xbf16>
    %c0_1 = arith.constant 0 : index
    %c0_2 = arith.constant 0 : index
    %1 = vector.load %arg2[%c0_1, %c0_2] : memref<64x64xbf16, #tpu.memory_space<vmem>>, vector<64x64xbf16>
    %cst = arith.constant dense<0.000000e+00> : vector<32x64xf32>
    %2 = tpu.matmul %0, %1, %cst {dimension_numbers = #tpu.dot_dimension_numbers<[1], [0], [0], [1], [0, 0, 1, 1], [], []>} : vector<32x64xbf16>, vector<64x64xbf16>, vector<32x64xf32> -> vector<32x64xf32>
    %3 = arith.truncf %2 : vector<32x64xf32> to vector<32x64xbf16>
    %c0_3 = arith.constant 0 : index
    %c0_4 = arith.constant 0 : index
    %4 = vector.load %arg3[%c0_3, %c0_4] : memref<32x64xbf16, #tpu.memory_space<vmem>>, vector<32x64xbf16>
    tpu.vector_store %arg3[%c0_3, %c0_4], %3 {strides = array<i32>} : memref<32x64xbf16, #tpu.memory_space<vmem>>, vector<32x64xbf16>,
    return
  }
  func.func @transform_0(%arg0: i32) -> (i32, i32) {
    %c0_i32 = arith.constant 0 : i32
    %c0_i32_0 = arith.constant 0 : i32
    return %arg0, %c0_i32 : i32, i32
  }
  func.func @transform_1(%arg0: i32) -> (i32, i32) {
    %c0_i32 = arith.constant 0 : i32
    %c0_i32_0 = arith.constant 0 : i32
    %c0_i32_1 = arith.constant 0 : i32
    return %c0_i32, %c0_i32_0 : i32, i32
  }
  func.func @transform_2(%arg0: i32) -> (i32, i32) {
    %c0_i32 = arith.constant 0 : i32
    %c0_i32_0 = arith.constant 0 : i32
    return %arg0, %c0_i32 : i32, i32
  }
}

module attributes {stable_mosaic.version = 11 : i64} {
  func.func @_dual_matmul_kernel(%arg0: i32, %arg1: memref<1x16x16xbf16, #tpu.memory_space<vmem>>, %arg2: memref<1x16x64xbf16, #tpu.memory_space<vmem>>, %arg3: memref<1x16x16xbf16, #tpu.memory_space<vmem>>, %arg4: memref<1x16x64xbf16, #tpu.memory_space<vmem>>, %arg5: memref<1x16x64xbf16, #tpu.memory_space<vmem>>) attributes {dimension_semantics = [#tpu.dimension_semantics<parallel>], iteration_bounds = array<i64: 2>, scalar_prefetch = 0 : i64, scratch_operands = 0 : i64, tpu.core_type = #tpu.core_type<tc>, window_params = [{transform_indices = @transform_0, window_bounds = array<i64: 1, 16, 16>}, {transform_indices = @transform_1, window_bounds = array<i64: 1, 16, 64>}, {transform_indices = @transform_2, window_bounds = array<i64: 1, 16, 16>}, {transform_indices = @transform_3, window_bounds = array<i64: 1, 16, 64>}, {transform_indices = @transform_4, window_bounds = array<i64: 1, 16, 64>}]} {
    %c0 = arith.constant 0 : index
    %c0_0 = arith.constant 0 : index
    %c0_1 = arith.constant 0 : index
    %0 = vector.load %arg1[%c0, %c0_0, %c0_1] : memref<1x16x16xbf16, #tpu.memory_space<vmem>>, vector<1x16x16xbf16>
    %1 = vector.shape_cast %0 : vector<1x16x16xbf16> to vector<16x16xbf16>
    %c0_2 = arith.constant 0 : index
    %c0_3 = arith.constant 0 : index
    %c0_4 = arith.constant 0 : index
    %2 = vector.load %arg2[%c0_2, %c0_3, %c0_4] : memref<1x16x64xbf16, #tpu.memory_space<vmem>>, vector<1x16x64xbf16>
    %3 = vector.shape_cast %2 : vector<1x16x64xbf16> to vector<16x64xbf16>
    %cst = arith.constant dense<0.000000e+00> : vector<16x64xf32>
    %4 = tpu.matmul %1, %3, %cst {dimension_numbers = #tpu.dot_dimension_numbers<[1], [0], [0], [1], [0, 0, 1, 1], [], []>} : vector<16x16xbf16>, vector<16x64xbf16>, vector<16x64xf32> -> vector<16x64xf32>
    %c0_5 = arith.constant 0 : index
    %c0_6 = arith.constant 0 : index
    %c0_7 = arith.constant 0 : index
    %5 = vector.load %arg3[%c0_5, %c0_6, %c0_7] : memref<1x16x16xbf16, #tpu.memory_space<vmem>>, vector<1x16x16xbf16>
    %6 = vector.shape_cast %5 : vector<1x16x16xbf16> to vector<16x16xbf16>
    %c0_8 = arith.constant 0 : index
    %c0_9 = arith.constant 0 : index
    %c0_10 = arith.constant 0 : index
    %7 = vector.load %arg4[%c0_8, %c0_9, %c0_10] : memref<1x16x64xbf16, #tpu.memory_space<vmem>>, vector<1x16x64xbf16>
    %8 = vector.shape_cast %7 : vector<1x16x64xbf16> to vector<16x64xbf16>
    %cst_11 = arith.constant dense<0.000000e+00> : vector<16x64xf32>
    %9 = tpu.matmul %6, %8, %cst_11 {dimension_numbers = #tpu.dot_dimension_numbers<[1], [0], [0], [1], [0, 0, 1, 1], [], []>} : vector<16x16xbf16>, vector<16x64xbf16>, vector<16x64xf32> -> vector<16x64xf32>
    %10 = arith.addf %4, %9 : vector<16x64xf32>
    %11 = arith.truncf %10 : vector<16x64xf32> to vector<16x64xbf16>
    %c0_12 = arith.constant 0 : index
    %c0_13 = arith.constant 0 : index
    %c0_14 = arith.constant 0 : index
    %12 = vector.load %arg5[%c0_12, %c0_13, %c0_14] : memref<1x16x64xbf16, #tpu.memory_space<vmem>>, vector<1x16x64xbf16>
    %13 = vector.shape_cast %12 : vector<1x16x64xbf16> to vector<16x64xbf16>
    %14 = vector.shape_cast %11 : vector<16x64xbf16> to vector<1x16x64xbf16>
    tpu.vector_store %arg5[%c0_12, %c0_13, %c0_14], %14 {strides = array<i32>} : memref<1x16x64xbf16, #tpu.memory_space<vmem>>, vector<1x16x64xbf16>,
    return
  }
  func.func @transform_0(%arg0: i32) -> (i32, i32, i32) {
    %c0_i32 = arith.constant 0 : i32
    %c0_i32_0 = arith.constant 0 : i32
    %c0_i32_1 = arith.constant 0 : i32
    return %arg0, %c0_i32, %c0_i32_0 : i32, i32, i32
  }
  func.func @transform_1(%arg0: i32) -> (i32, i32, i32) {
    %c0_i32 = arith.constant 0 : i32
    %c0_i32_0 = arith.constant 0 : i32
    %c0_i32_1 = arith.constant 0 : i32
    return %arg0, %c0_i32, %c0_i32_0 : i32, i32, i32
  }
  func.func @transform_2(%arg0: i32) -> (i32, i32, i32) {
    %c0_i32 = arith.constant 0 : i32
    %c0_i32_0 = arith.constant 0 : i32
    %c0_i32_1 = arith.constant 0 : i32
    return %arg0, %c0_i32, %c0_i32_0 : i32, i32, i32
  }
  func.func @transform_3(%arg0: i32) -> (i32, i32, i32) {
    %c0_i32 = arith.constant 0 : i32
    %c0_i32_0 = arith.constant 0 : i32
    %c0_i32_1 = arith.constant 0 : i32
    return %arg0, %c0_i32, %c0_i32_0 : i32, i32, i32
  }
  func.func @transform_4(%arg0: i32) -> (i32, i32, i32) {
    %c0_i32 = arith.constant 0 : i32
    %c0_i32_0 = arith.constant 0 : i32
    %c0_i32_1 = arith.constant 0 : i32
    return %arg0, %c0_i32, %c0_i32_0 : i32, i32, i32
  }
}

module attributes {stable_mosaic.version = 11 : i64} {
  func.func @_dual_matmul_kernel(%arg0: i32, %arg1: memref<128x576xbf16, #tpu.memory_space<vmem>>, %arg2: memref<576x8xbf16, #tpu.memory_space<vmem>>, %arg3: memref<128x576xbf16, #tpu.memory_space<vmem>>, %arg4: memref<576x8xbf16, #tpu.memory_space<vmem>>, %arg5: memref<128x8xf32, #tpu.memory_space<vmem>>) attributes {dimension_semantics = [#tpu.dimension_semantics<parallel>], iteration_bounds = array<i64: 1>, scalar_prefetch = 0 : i64, scratch_operands = 0 : i64, tpu.core_type = #tpu.core_type<tc>, window_params = [{transform_indices = @transform_0, window_bounds = array<i64: 128, 576>}, {pipeline_mode = #tpu.pipeline_mode<synchronous>, transform_indices = @transform_1, window_bounds = array<i64: 576, 8>}, {transform_indices = @transform_2, window_bounds = array<i64: 128, 576>}, {pipeline_mode = #tpu.pipeline_mode<synchronous>, transform_indices = @transform_3, window_bounds = array<i64: 576, 8>}, {transform_indices = @transform_4, window_bounds = array<i64: 128, 8>}]} {
    %c0 = arith.constant 0 : index
    %c0_0 = arith.constant 0 : index
    %0 = vector.load %arg1[%c0, %c0_0] : memref<128x576xbf16, #tpu.memory_space<vmem>>, vector<128x576xbf16>
    %c0_1 = arith.constant 0 : index
    %c0_2 = arith.constant 0 : index
    %1 = vector.load %arg2[%c0_1, %c0_2] : memref<576x8xbf16, #tpu.memory_space<vmem>>, vector<576x8xbf16>
    %cst = arith.constant dense<0.000000e+00> : vector<128x8xf32>
    %2 = tpu.matmul %0, %1, %cst {dimension_numbers = #tpu.dot_dimension_numbers<[1], [0], [0], [1], [0, 0, 1, 1], [], []>} : vector<128x576xbf16>, vector<576x8xbf16>, vector<128x8xf32> -> vector<128x8xf32>
    %c0_3 = arith.constant 0 : index
    %c0_4 = arith.constant 0 : index
    %3 = vector.load %arg3[%c0_3, %c0_4] : memref<128x576xbf16, #tpu.memory_space<vmem>>, vector<128x576xbf16>
    %c0_5 = arith.constant 0 : index
    %c0_6 = arith.constant 0 : index
    %4 = vector.load %arg4[%c0_5, %c0_6] : memref<576x8xbf16, #tpu.memory_space<vmem>>, vector<576x8xbf16>
    %cst_7 = arith.constant dense<0.000000e+00> : vector<128x8xf32>
    %5 = tpu.matmul %3, %4, %cst_7 {dimension_numbers = #tpu.dot_dimension_numbers<[1], [0], [0], [1], [0, 0, 1, 1], [], []>} : vector<128x576xbf16>, vector<576x8xbf16>, vector<128x8xf32> -> vector<128x8xf32>
    %6 = arith.addf %2, %5 : vector<128x8xf32>
    %c0_8 = arith.constant 0 : index
    %c0_9 = arith.constant 0 : index
    %7 = vector.load %arg5[%c0_8, %c0_9] : memref<128x8xf32, #tpu.memory_space<vmem>>, vector<128x8xf32>
    tpu.vector_store %arg5[%c0_8, %c0_9], %6 {strides = array<i32>} : memref<128x8xf32, #tpu.memory_space<vmem>>, vector<128x8xf32>,
    return
  }
  func.func @transform_0(%arg0: i32) -> (i32, i32) {
    %c0_i32 = arith.constant 0 : i32
    %c0_i32_0 = arith.constant 0 : i32
    return %arg0, %c0_i32 : i32, i32
  }
  func.func @transform_1(%arg0: i32) -> (i32, i32) {
    %c0_i32 = arith.constant 0 : i32
    %c0_i32_0 = arith.constant 0 : i32
    %c0_i32_1 = arith.constant 0 : i32
    return %c0_i32, %c0_i32_0 : i32, i32
  }
  func.func @transform_2(%arg0: i32) -> (i32, i32) {
    %c0_i32 = arith.constant 0 : i32
    %c0_i32_0 = arith.constant 0 : i32
    return %arg0, %c0_i32 : i32, i32
  }
  func.func @transform_3(%arg0: i32) -> (i32, i32) {
    %c0_i32 = arith.constant 0 : i32
    %c0_i32_0 = arith.constant 0 : i32
    %c0_i32_1 = arith.constant 0 : i32
    return %c0_i32, %c0_i32_0 : i32, i32
  }
  func.func @transform_4(%arg0: i32) -> (i32, i32) {
    %c0_i32 = arith.constant 0 : i32
    %c0_i32_0 = arith.constant 0 : i32
    return %arg0, %c0_i32 : i32, i32
  }
}

module attributes {stable_mosaic.version = 11 : i64} {
  func.func @_dual_matmul_kernel(%arg0: i32, %arg1: memref<1x64x64xbf16, #tpu.memory_space<vmem>>, %arg2: memref<1x64x64xbf16, #tpu.memory_space<vmem>>, %arg3: memref<1x64x64xbf16, #tpu.memory_space<vmem>>, %arg4: memref<1x64x64xbf16, #tpu.memory_space<vmem>>, %arg5: memref<1x64x64xbf16, #tpu.memory_space<vmem>>) attributes {dimension_semantics = [#tpu.dimension_semantics<parallel>], iteration_bounds = array<i64: 2>, scalar_prefetch = 0 : i64, scratch_operands = 0 : i64, tpu.core_type = #tpu.core_type<tc>, window_params = [{transform_indices = @transform_0, window_bounds = array<i64: 1, 64, 64>}, {transform_indices = @transform_1, window_bounds = array<i64: 1, 64, 64>}, {transform_indices = @transform_2, window_bounds = array<i64: 1, 64, 64>}, {transform_indices = @transform_3, window_bounds = array<i64: 1, 64, 64>}, {transform_indices = @transform_4, window_bounds = array<i64: 1, 64, 64>}]} {
    %c0 = arith.constant 0 : index
    %c0_0 = arith.constant 0 : index
    %c0_1 = arith.constant 0 : index
    %0 = vector.load %arg1[%c0, %c0_0, %c0_1] : memref<1x64x64xbf16, #tpu.memory_space<vmem>>, vector<1x64x64xbf16>
    %1 = vector.shape_cast %0 : vector<1x64x64xbf16> to vector<64x64xbf16>
    %c0_2 = arith.constant 0 : index
    %c0_3 = arith.constant 0 : index
    %c0_4 = arith.constant 0 : index
    %2 = vector.load %arg2[%c0_2, %c0_3, %c0_4] : memref<1x64x64xbf16, #tpu.memory_space<vmem>>, vector<1x64x64xbf16>
    %3 = vector.shape_cast %2 : vector<1x64x64xbf16> to vector<64x64xbf16>
    %cst = arith.constant dense<0.000000e+00> : vector<64x64xf32>
    %4 = tpu.matmul %1, %3, %cst {dimension_numbers = #tpu.dot_dimension_numbers<[1], [0], [0], [1], [0, 0, 1, 1], [], []>} : vector<64x64xbf16>, vector<64x64xbf16>, vector<64x64xf32> -> vector<64x64xf32>
    %c0_5 = arith.constant 0 : index
    %c0_6 = arith.constant 0 : index
    %c0_7 = arith.constant 0 : index
    %5 = vector.load %arg3[%c0_5, %c0_6, %c0_7] : memref<1x64x64xbf16, #tpu.memory_space<vmem>>, vector<1x64x64xbf16>
    %6 = vector.shape_cast %5 : vector<1x64x64xbf16> to vector<64x64xbf16>
    %c0_8 = arith.constant 0 : index
    %c0_9 = arith.constant 0 : index
    %c0_10 = arith.constant 0 : index
    %7 = vector.load %arg4[%c0_8, %c0_9, %c0_10] : memref<1x64x64xbf16, #tpu.memory_space<vmem>>, vector<1x64x64xbf16>
    %8 = vector.shape_cast %7 : vector<1x64x64xbf16> to vector<64x64xbf16>
    %cst_11 = arith.constant dense<0.000000e+00> : vector<64x64xf32>
    %9 = tpu.matmul %6, %8, %cst_11 {dimension_numbers = #tpu.dot_dimension_numbers<[1], [0], [0], [1], [0, 0, 1, 1], [], []>} : vector<64x64xbf16>, vector<64x64xbf16>, vector<64x64xf32> -> vector<64x64xf32>
    %10 = arith.addf %4, %9 : vector<64x64xf32>
    %11 = arith.truncf %10 : vector<64x64xf32> to vector<64x64xbf16>
    %c0_12 = arith.constant 0 : index
    %c0_13 = arith.constant 0 : index
    %c0_14 = arith.constant 0 : index
    %12 = vector.load %arg5[%c0_12, %c0_13, %c0_14] : memref<1x64x64xbf16, #tpu.memory_space<vmem>>, vector<1x64x64xbf16>
    %13 = vector.shape_cast %12 : vector<1x64x64xbf16> to vector<64x64xbf16>
    %14 = vector.shape_cast %11 : vector<64x64xbf16> to vector<1x64x64xbf16>
    tpu.vector_store %arg5[%c0_12, %c0_13, %c0_14], %14 {strides = array<i32>} : memref<1x64x64xbf16, #tpu.memory_space<vmem>>, vector<1x64x64xbf16>,
    return
  }
  func.func @transform_0(%arg0: i32) -> (i32, i32, i32) {
    %c0_i32 = arith.constant 0 : i32
    %c0_i32_0 = arith.constant 0 : i32
    %c0_i32_1 = arith.constant 0 : i32
    return %arg0, %c0_i32, %c0_i32_0 : i32, i32, i32
  }
  func.func @transform_1(%arg0: i32) -> (i32, i32, i32) {
    %c0_i32 = arith.constant 0 : i32
    %c0_i32_0 = arith.constant 0 : i32
    %c0_i32_1 = arith.constant 0 : i32
    return %arg0, %c0_i32, %c0_i32_0 : i32, i32, i32
  }
  func.func @transform_2(%arg0: i32) -> (i32, i32, i32) {
    %c0_i32 = arith.constant 0 : i32
    %c0_i32_0 = arith.constant 0 : i32
    %c0_i32_1 = arith.constant 0 : i32
    return %arg0, %c0_i32, %c0_i32_0 : i32, i32, i32
  }
  func.func @transform_3(%arg0: i32) -> (i32, i32, i32) {
    %c0_i32 = arith.constant 0 : i32
    %c0_i32_0 = arith.constant 0 : i32
    %c0_i32_1 = arith.constant 0 : i32
    return %arg0, %c0_i32, %c0_i32_0 : i32, i32, i32
  }
  func.func @transform_4(%arg0: i32) -> (i32, i32, i32) {
    %c0_i32 = arith.constant 0 : i32
    %c0_i32_0 = arith.constant 0 : i32
    %c0_i32_1 = arith.constant 0 : i32
    return %arg0, %c0_i32, %c0_i32_0 : i32, i32, i32
  }
}

module attributes {stable_mosaic.version = 11 : i64} {
  func.func @_matmul_kernel(%arg0: i32, %arg1: memref<128x64xbf16, #tpu.memory_space<vmem>>, %arg2: memref<64x64xbf16, #tpu.memory_space<vmem>>, %arg3: memref<128x64xbf16, #tpu.memory_space<vmem>>) attributes {dimension_semantics = [#tpu.dimension_semantics<parallel>], iteration_bounds = array<i64: 1>, scalar_prefetch = 0 : i64, scratch_operands = 0 : i64, tpu.core_type = #tpu.core_type<tc>, window_params = [{transform_indices = @transform_0, window_bounds = array<i64: 128, 64>}, {pipeline_mode = #tpu.pipeline_mode<synchronous>, transform_indices = @transform_1, window_bounds = array<i64: 64, 64>}, {transform_indices = @transform_2, window_bounds = array<i64: 128, 64>}]} {
    %c0 = arith.constant 0 : index
    %c0_0 = arith.constant 0 : index
    %0 = vector.load %arg1[%c0, %c0_0] : memref<128x64xbf16, #tpu.memory_space<vmem>>, vector<128x64xbf16>
    %c0_1 = arith.constant 0 : index
    %c0_2 = arith.constant 0 : index
    %1 = vector.load %arg2[%c0_1, %c0_2] : memref<64x64xbf16, #tpu.memory_space<vmem>>, vector<64x64xbf16>
    %cst = arith.constant dense<0.000000e+00> : vector<128x64xf32>
    %2 = tpu.matmul %0, %1, %cst {dimension_numbers = #tpu.dot_dimension_numbers<[1], [0], [0], [1], [0, 0, 1, 1], [], []>} : vector<128x64xbf16>, vector<64x64xbf16>, vector<128x64xf32> -> vector<128x64xf32>
    %3 = arith.truncf %2 : vector<128x64xf32> to vector<128x64xbf16>
    %c0_3 = arith.constant 0 : index
    %c0_4 = arith.constant 0 : index
    %4 = vector.load %arg3[%c0_3, %c0_4] : memref<128x64xbf16, #tpu.memory_space<vmem>>, vector<128x64xbf16>
    tpu.vector_store %arg3[%c0_3, %c0_4], %3 {strides = array<i32>} : memref<128x64xbf16, #tpu.memory_space<vmem>>, vector<128x64xbf16>,
    return
  }
  func.func @transform_0(%arg0: i32) -> (i32, i32) {
    %c0_i32 = arith.constant 0 : i32
    %c0_i32_0 = arith.constant 0 : i32
    return %arg0, %c0_i32 : i32, i32
  }
  func.func @transform_1(%arg0: i32) -> (i32, i32) {
    %c0_i32 = arith.constant 0 : i32
    %c0_i32_0 = arith.constant 0 : i32
    %c0_i32_1 = arith.constant 0 : i32
    return %c0_i32, %c0_i32_0 : i32, i32
  }
  func.func @transform_2(%arg0: i32) -> (i32, i32) {
    %c0_i32 = arith.constant 0 : i32
    %c0_i32_0 = arith.constant 0 : i32
    return %arg0, %c0_i32 : i32, i32
  }
}

module attributes {stable_mosaic.version = 11 : i64} {
  func.func @_dual_matmul_kernel(%arg0: i32, %arg1: memref<512x576xbf16, #tpu.memory_space<vmem>>, %arg2: memref<576x8xbf16, #tpu.memory_space<vmem>>, %arg3: memref<512x576xbf16, #tpu.memory_space<vmem>>, %arg4: memref<576x8xbf16, #tpu.memory_space<vmem>>, %arg5: memref<512x8xf32, #tpu.memory_space<vmem>>) attributes {dimension_semantics = [#tpu.dimension_semantics<parallel>], iteration_bounds = array<i64: 1>, scalar_prefetch = 0 : i64, scratch_operands = 0 : i64, tpu.core_type = #tpu.core_type<tc>, window_params = [{transform_indices = @transform_0, window_bounds = array<i64: 512, 576>}, {pipeline_mode = #tpu.pipeline_mode<synchronous>, transform_indices = @transform_1, window_bounds = array<i64: 576, 8>}, {transform_indices = @transform_2, window_bounds = array<i64: 512, 576>}, {pipeline_mode = #tpu.pipeline_mode<synchronous>, transform_indices = @transform_3, window_bounds = array<i64: 576, 8>}, {transform_indices = @transform_4, window_bounds = array<i64: 512, 8>}]} {
    %c0 = arith.constant 0 : index
    %c0_0 = arith.constant 0 : index
    %0 = vector.load %arg1[%c0, %c0_0] : memref<512x576xbf16, #tpu.memory_space<vmem>>, vector<512x576xbf16>
    %c0_1 = arith.constant 0 : index
    %c0_2 = arith.constant 0 : index
    %1 = vector.load %arg2[%c0_1, %c0_2] : memref<576x8xbf16, #tpu.memory_space<vmem>>, vector<576x8xbf16>
    %cst = arith.constant dense<0.000000e+00> : vector<512x8xf32>
    %2 = tpu.matmul %0, %1, %cst {dimension_numbers = #tpu.dot_dimension_numbers<[1], [0], [0], [1], [0, 0, 1, 1], [], []>} : vector<512x576xbf16>, vector<576x8xbf16>, vector<512x8xf32> -> vector<512x8xf32>
    %c0_3 = arith.constant 0 : index
    %c0_4 = arith.constant 0 : index
    %3 = vector.load %arg3[%c0_3, %c0_4] : memref<512x576xbf16, #tpu.memory_space<vmem>>, vector<512x576xbf16>
    %c0_5 = arith.constant 0 : index
    %c0_6 = arith.constant 0 : index
    %4 = vector.load %arg4[%c0_5, %c0_6] : memref<576x8xbf16, #tpu.memory_space<vmem>>, vector<576x8xbf16>
    %cst_7 = arith.constant dense<0.000000e+00> : vector<512x8xf32>
    %5 = tpu.matmul %3, %4, %cst_7 {dimension_numbers = #tpu.dot_dimension_numbers<[1], [0], [0], [1], [0, 0, 1, 1], [], []>} : vector<512x576xbf16>, vector<576x8xbf16>, vector<512x8xf32> -> vector<512x8xf32>
    %6 = arith.addf %2, %5 : vector<512x8xf32>
    %c0_8 = arith.constant 0 : index
    %c0_9 = arith.constant 0 : index
    %7 = vector.load %arg5[%c0_8, %c0_9] : memref<512x8xf32, #tpu.memory_space<vmem>>, vector<512x8xf32>
    tpu.vector_store %arg5[%c0_8, %c0_9], %6 {strides = array<i32>} : memref<512x8xf32, #tpu.memory_space<vmem>>, vector<512x8xf32>,
    return
  }
  func.func @transform_0(%arg0: i32) -> (i32, i32) {
    %c0_i32 = arith.constant 0 : i32
    %c0_i32_0 = arith.constant 0 : i32
    return %arg0, %c0_i32 : i32, i32
  }
  func.func @transform_1(%arg0: i32) -> (i32, i32) {
    %c0_i32 = arith.constant 0 : i32
    %c0_i32_0 = arith.constant 0 : i32
    %c0_i32_1 = arith.constant 0 : i32
    return %c0_i32, %c0_i32_0 : i32, i32
  }
  func.func @transform_2(%arg0: i32) -> (i32, i32) {
    %c0_i32 = arith.constant 0 : i32
    %c0_i32_0 = arith.constant 0 : i32
    return %arg0, %c0_i32 : i32, i32
  }
  func.func @transform_3(%arg0: i32) -> (i32, i32) {
    %c0_i32 = arith.constant 0 : i32
    %c0_i32_0 = arith.constant 0 : i32
    %c0_i32_1 = arith.constant 0 : i32
    return %c0_i32, %c0_i32_0 : i32, i32
  }
  func.func @transform_4(%arg0: i32) -> (i32, i32) {
    %c0_i32 = arith.constant 0 : i32
    %c0_i32_0 = arith.constant 0 : i32
    return %arg0, %c0_i32 : i32, i32
  }
}

module attributes {stable_mosaic.version = 11 : i64} {
  func.func @_dual_matmul_kernel(%arg0: i32, %arg1: memref<1x256x256xbf16, #tpu.memory_space<vmem>>, %arg2: memref<1x256x64xbf16, #tpu.memory_space<vmem>>, %arg3: memref<1x256x256xbf16, #tpu.memory_space<vmem>>, %arg4: memref<1x256x64xbf16, #tpu.memory_space<vmem>>, %arg5: memref<1x256x64xbf16, #tpu.memory_space<vmem>>) attributes {dimension_semantics = [#tpu.dimension_semantics<parallel>], iteration_bounds = array<i64: 2>, scalar_prefetch = 0 : i64, scratch_operands = 0 : i64, tpu.core_type = #tpu.core_type<tc>, window_params = [{transform_indices = @transform_0, window_bounds = array<i64: 1, 256, 256>}, {transform_indices = @transform_1, window_bounds = array<i64: 1, 256, 64>}, {transform_indices = @transform_2, window_bounds = array<i64: 1, 256, 256>}, {transform_indices = @transform_3, window_bounds = array<i64: 1, 256, 64>}, {transform_indices = @transform_4, window_bounds = array<i64: 1, 256, 64>}]} {
    %c0 = arith.constant 0 : index
    %c0_0 = arith.constant 0 : index
    %c0_1 = arith.constant 0 : index
    %0 = vector.load %arg1[%c0, %c0_0, %c0_1] : memref<1x256x256xbf16, #tpu.memory_space<vmem>>, vector<1x256x256xbf16>
    %1 = vector.shape_cast %0 : vector<1x256x256xbf16> to vector<256x256xbf16>
    %c0_2 = arith.constant 0 : index
    %c0_3 = arith.constant 0 : index
    %c0_4 = arith.constant 0 : index
    %2 = vector.load %arg2[%c0_2, %c0_3, %c0_4] : memref<1x256x64xbf16, #tpu.memory_space<vmem>>, vector<1x256x64xbf16>
    %3 = vector.shape_cast %2 : vector<1x256x64xbf16> to vector<256x64xbf16>
    %cst = arith.constant dense<0.000000e+00> : vector<256x64xf32>
    %4 = tpu.matmul %1, %3, %cst {dimension_numbers = #tpu.dot_dimension_numbers<[1], [0], [0], [1], [0, 0, 1, 1], [], []>} : vector<256x256xbf16>, vector<256x64xbf16>, vector<256x64xf32> -> vector<256x64xf32>
    %c0_5 = arith.constant 0 : index
    %c0_6 = arith.constant 0 : index
    %c0_7 = arith.constant 0 : index
    %5 = vector.load %arg3[%c0_5, %c0_6, %c0_7] : memref<1x256x256xbf16, #tpu.memory_space<vmem>>, vector<1x256x256xbf16>
    %6 = vector.shape_cast %5 : vector<1x256x256xbf16> to vector<256x256xbf16>
    %c0_8 = arith.constant 0 : index
    %c0_9 = arith.constant 0 : index
    %c0_10 = arith.constant 0 : index
    %7 = vector.load %arg4[%c0_8, %c0_9, %c0_10] : memref<1x256x64xbf16, #tpu.memory_space<vmem>>, vector<1x256x64xbf16>
    %8 = vector.shape_cast %7 : vector<1x256x64xbf16> to vector<256x64xbf16>
    %cst_11 = arith.constant dense<0.000000e+00> : vector<256x64xf32>
    %9 = tpu.matmul %6, %8, %cst_11 {dimension_numbers = #tpu.dot_dimension_numbers<[1], [0], [0], [1], [0, 0, 1, 1], [], []>} : vector<256x256xbf16>, vector<256x64xbf16>, vector<256x64xf32> -> vector<256x64xf32>
    %10 = arith.addf %4, %9 : vector<256x64xf32>
    %11 = arith.truncf %10 : vector<256x64xf32> to vector<256x64xbf16>
    %c0_12 = arith.constant 0 : index
    %c0_13 = arith.constant 0 : index
    %c0_14 = arith.constant 0 : index
    %12 = vector.load %arg5[%c0_12, %c0_13, %c0_14] : memref<1x256x64xbf16, #tpu.memory_space<vmem>>, vector<1x256x64xbf16>
    %13 = vector.shape_cast %12 : vector<1x256x64xbf16> to vector<256x64xbf16>
    %14 = vector.shape_cast %11 : vector<256x64xbf16> to vector<1x256x64xbf16>
    tpu.vector_store %arg5[%c0_12, %c0_13, %c0_14], %14 {strides = array<i32>} : memref<1x256x64xbf16, #tpu.memory_space<vmem>>, vector<1x256x64xbf16>,
    return
  }
  func.func @transform_0(%arg0: i32) -> (i32, i32, i32) {
    %c0_i32 = arith.constant 0 : i32
    %c0_i32_0 = arith.constant 0 : i32
    %c0_i32_1 = arith.constant 0 : i32
    return %arg0, %c0_i32, %c0_i32_0 : i32, i32, i32
  }
  func.func @transform_1(%arg0: i32) -> (i32, i32, i32) {
    %c0_i32 = arith.constant 0 : i32
    %c0_i32_0 = arith.constant 0 : i32
    %c0_i32_1 = arith.constant 0 : i32
    return %arg0, %c0_i32, %c0_i32_0 : i32, i32, i32
  }
  func.func @transform_2(%arg0: i32) -> (i32, i32, i32) {
    %c0_i32 = arith.constant 0 : i32
    %c0_i32_0 = arith.constant 0 : i32
    %c0_i32_1 = arith.constant 0 : i32
    return %arg0, %c0_i32, %c0_i32_0 : i32, i32, i32
  }
  func.func @transform_3(%arg0: i32) -> (i32, i32, i32) {
    %c0_i32 = arith.constant 0 : i32
    %c0_i32_0 = arith.constant 0 : i32
    %c0_i32_1 = arith.constant 0 : i32
    return %arg0, %c0_i32, %c0_i32_0 : i32, i32, i32
  }
  func.func @transform_4(%arg0: i32) -> (i32, i32, i32) {
    %c0_i32 = arith.constant 0 : i32
    %c0_i32_0 = arith.constant 0 : i32
    %c0_i32_1 = arith.constant 0 : i32
    return %arg0, %c0_i32, %c0_i32_0 : i32, i32, i32
  }
}

module attributes {stable_mosaic.version = 11 : i64} {
  func.func @_matmul_bias_kernel(%arg0: i32, %arg1: memref<512x576xbf16, #tpu.memory_space<vmem>>, %arg2: memref<576x8xbf16, #tpu.memory_space<vmem>>, %arg3: memref<1x8xf32, #tpu.memory_space<vmem>>, %arg4: memref<512x8xf32, #tpu.memory_space<vmem>>) attributes {dimension_semantics = [#tpu.dimension_semantics<parallel>], iteration_bounds = array<i64: 1>, scalar_prefetch = 0 : i64, scratch_operands = 0 : i64, tpu.core_type = #tpu.core_type<tc>, window_params = [{transform_indices = @transform_0, window_bounds = array<i64: 512, 576>}, {pipeline_mode = #tpu.pipeline_mode<synchronous>, transform_indices = @transform_1, window_bounds = array<i64: 576, 8>}, {pipeline_mode = #tpu.pipeline_mode<synchronous>, transform_indices = @transform_2, window_bounds = array<i64: 1, 8>}, {transform_indices = @transform_3, window_bounds = array<i64: 512, 8>}]} {
    %c0 = arith.constant 0 : index
    %c0_0 = arith.constant 0 : index
    %0 = vector.load %arg1[%c0, %c0_0] : memref<512x576xbf16, #tpu.memory_space<vmem>>, vector<512x576xbf16>
    %c0_1 = arith.constant 0 : index
    %c0_2 = arith.constant 0 : index
    %1 = vector.load %arg2[%c0_1, %c0_2] : memref<576x8xbf16, #tpu.memory_space<vmem>>, vector<576x8xbf16>
    %cst = arith.constant dense<0.000000e+00> : vector<512x8xf32>
    %2 = tpu.matmul %0, %1, %cst {dimension_numbers = #tpu.dot_dimension_numbers<[1], [0], [0], [1], [0, 0, 1, 1], [], []>} : vector<512x576xbf16>, vector<576x8xbf16>, vector<512x8xf32> -> vector<512x8xf32>
    %c0_3 = arith.constant 0 : index
    %c0_4 = arith.constant 0 : index
    %3 = vector.load %arg3[%c0_3, %c0_4] : memref<1x8xf32, #tpu.memory_space<vmem>>, vector<1x8xf32>
    %4 = vector.broadcast %3 : vector<1x8xf32> to vector<512x8xf32>
    %5 = arith.addf %2, %4 : vector<512x8xf32>
    %c0_5 = arith.constant 0 : index
    %c0_6 = arith.constant 0 : index
    %6 = vector.load %arg4[%c0_5, %c0_6] : memref<512x8xf32, #tpu.memory_space<vmem>>, vector<512x8xf32>
    tpu.vector_store %arg4[%c0_5, %c0_6], %5 {strides = array<i32>} : memref<512x8xf32, #tpu.memory_space<vmem>>, vector<512x8xf32>,
    return
  }
  func.func @transform_0(%arg0: i32) -> (i32, i32) {
    %c0_i32 = arith.constant 0 : i32
    %c0_i32_0 = arith.constant 0 : i32
    return %arg0, %c0_i32 : i32, i32
  }
  func.func @transform_1(%arg0: i32) -> (i32, i32) {
    %c0_i32 = arith.constant 0 : i32
    %c0_i32_0 = arith.constant 0 : i32
    %c0_i32_1 = arith.constant 0 : i32
    return %c0_i32, %c0_i32_0 : i32, i32
  }
  func.func @transform_2(%arg0: i32) -> (i32, i32) {
    %c0_i32 = arith.constant 0 : i32
    %c0_i32_0 = arith.constant 0 : i32
    %c0_i32_1 = arith.constant 0 : i32
    return %c0_i32, %c0_i32_0 : i32, i32
  }
  func.func @transform_3(%arg0: i32) -> (i32, i32) {
    %c0_i32 = arith.constant 0 : i32
    %c0_i32_0 = arith.constant 0 : i32
    return %arg0, %c0_i32 : i32, i32
  }
}

</mosaic_0001>

<llo_original>
// kernel: mynet_forward.14
$region0: #{mynet_forward.14}
  #allocation0 [shape = 'u32[]', space=smem, size = 0x4, offset = 0x4, fixed_abs, tag = 'smem constant byte address 0x4 - core index']
  #allocation1 [shape = 'u32[72,128]{1,0:T(1,128)}', space=vmem, size = 0x9000, scoped, tag = 'internal scratch']
  %s0 = inlined_call_operand.vmem [shape: bf16[512,64], index: 0, kind: input, shape index: {}]
  %s1 = inlined_call_operand.vmem [shape: bf16[64,64], index: 1, kind: input, shape index: {}]
  %s2 = inlined_call_operand.vmem [shape: bf16[512,64], index: 2, kind: output, shape index: {}]
  %s3 = sld [smem:[#allocation0]]
  $region18: #{mynet_forward.14} parent=0
    _
  %s5 = ssub.s32 1, %s3
  %s6 = scalar_select 0, %s5, %s3
  // Predicated region
  $region2: #{mynet_forward.14} parent=0 // pred_check
    _
  $region3: #{mynet_forward.14} parent=0 // pred_check_branch
    %8 = sbr.rel (0) target = $region5
  $region4: #{mynet_forward.14} parent=0 // pred_region
    _
  $region5: #{mynet_forward.14} parent=0 // pred_fallthru
    _
  // Predicated region
  $region6: #{mynet_forward.14} parent=0 // pred_check
    _
  $region7: #{mynet_forward.14} parent=0 // pred_check_branch
    %10 = sbr.rel (0) target = $region9
  $region8: #{mynet_forward.14} parent=0 // pred_region
    _
  $region9: #{mynet_forward.14} parent=0 // pred_fallthru
    _
  %v12 = vld [vmem:[%s0] sm:$0xf]
  %v13 = vld [vmem:[%s0 + $0x4] sm:$0xf]
  %v14 = vld [vmem:[%s0 + $0x8] sm:$0xf]
  %v15 = vld [vmem:[%s0 + $0xc] sm:$0xf]
  %v16 = vld [vmem:[%s0 + $0x10] sm:$0xf]
  %v17 = vld [vmem:[%s0 + $0x14] sm:$0xf]
  %v18 = vld [vmem:[%s0 + $0x18] sm:$0xf]
  %v19 = vld [vmem:[%s0 + $0x1c] sm:$0xf]
  %v20 = vld [vmem:[%s0 + $0x20] sm:$0xf]
  %v21 = vld [vmem:[%s0 + $0x24] sm:$0xf]
  %v22 = vld [vmem:[%s0 + $0x28] sm:$0xf]
  %v23 = vld [vmem:[%s0 + $0x2c] sm:$0xf]
  %v24 = vld [vmem:[%s0 + $0x30] sm:$0xf]
  %v25 = vld [vmem:[%s0 + $0x34] sm:$0xf]
  %v26 = vld [vmem:[%s0 + $0x38] sm:$0xf]
  %v27 = vld [vmem:[%s0 + $0x3c] sm:$0xf]
  %v28 = vld [vmem:[%s0 + $0x40] sm:$0xf]
  %v29 = vld [vmem:[%s0 + $0x44] sm:$0xf]
  %v30 = vld [vmem:[%s0 + $0x48] sm:$0xf]
  %v31 = vld [vmem:[%s0 + $0x4c] sm:$0xf]
  %v32 = vld [vmem:[%s0 + $0x50] sm:$0xf]
  %v33 = vld [vmem:[%s0 + $0x54] sm:$0xf]
  %v34 = vld [vmem:[%s0 + $0x58] sm:$0xf]
  %v35 = vld [vmem:[%s0 + $0x5c] sm:$0xf]
  %v36 = vld [vmem:[%s0 + $0x60] sm:$0xf]
  %v37 = vld [vmem:[%s0 + $0x64] sm:$0xf]
  %v38 = vld [vmem:[%s0 + $0x68] sm:$0xf]
  %v39 = vld [vmem:[%s0 + $0x6c] sm:$0xf]
  %v40 = vld [vmem:[%s0 + $0x70] sm:$0xf]
  %v41 = vld [vmem:[%s0 + $0x74] sm:$0xf]
  %v42 = vld [vmem:[%s0 + $0x78] sm:$0xf]
  %v43 = vld [vmem:[%s0 + $0x7c] sm:$0xf]
  %v44 = vld [vmem:[%s0 + $0x80] sm:$0xf]
  %v45 = vld [vmem:[%s0 + $0x84] sm:$0xf]
  %v46 = vld [vmem:[%s0 + $0x88] sm:$0xf]
  %v47 = vld [vmem:[%s0 + $0x8c] sm:$0xf]
  %v48 = vld [vmem:[%s0 + $0x90] sm:$0xf]
  %v49 = vld [vmem:[%s0 + $0x94] sm:$0xf]
  %v50 = vld [vmem:[%s0 + $0x98] sm:$0xf]
  %v51 = vld [vmem:[%s0 + $0x9c] sm:$0xf]
  %v52 = vld [vmem:[%s0 + $0xa0] sm:$0xf]
  %v53 = vld [vmem:[%s0 + $0xa4] sm:$0xf]
  %v54 = vld [vmem:[%s0 + $0xa8] sm:$0xf]
  %v55 = vld [vmem:[%s0 + $0xac] sm:$0xf]
  %v56 = vld [vmem:[%s0 + $0xb0] sm:$0xf]
  %v57 = vld [vmem:[%s0 + $0xb4] sm:$0xf]
  %v58 = vld [vmem:[%s0 + $0xb8] sm:$0xf]
  %v59 = vld [vmem:[%s0 + $0xbc] sm:$0xf]
  %v60 = vld [vmem:[%s0 + $0xc0] sm:$0xf]
  %v61 = vld [vmem:[%s0 + $0xc4] sm:$0xf]
  %v62 = vld [vmem:[%s0 + $0xc8] sm:$0xf]
  %v63 = vld [vmem:[%s0 + $0xcc] sm:$0xf]
  %v64 = vld [vmem:[%s0 + $0xd0] sm:$0xf]
  %v65 = vld [vmem:[%s0 + $0xd4] sm:$0xf]
  %v66 = vld [vmem:[%s0 + $0xd8] sm:$0xf]
  %v67 = vld [vmem:[%s0 + $0xdc] sm:$0xf]
  %v68 = vld [vmem:[%s0 + $0xe0] sm:$0xf]
  %v69 = vld [vmem:[%s0 + $0xe4] sm:$0xf]
  %v70 = vld [vmem:[%s0 + $0xe8] sm:$0xf]
  %v71 = vld [vmem:[%s0 + $0xec] sm:$0xf]
  %v72 = vld [vmem:[%s0 + $0xf0] sm:$0xf]
  %v73 = vld [vmem:[%s0 + $0xf4] sm:$0xf]
  %v74 = vld [vmem:[%s0 + $0xf8] sm:$0xf]
  %v75 = vld [vmem:[%s0 + $0xfc] sm:$0xf]
  %v76 = vld [vmem:[%s1] sm:$0xf]
  %v77 = vld [vmem:[%s1 + $0x4] sm:$0xf]
  %v78 = vld [vmem:[%s1 + $0x8] sm:$0xf]
  %v79 = vld [vmem:[%s1 + $0xc] sm:$0xf]
  %v80 = vld [vmem:[%s1 + $0x10] sm:$0xf]
  %v81 = vld [vmem:[%s1 + $0x14] sm:$0xf]
  %v82 = vld [vmem:[%s1 + $0x18] sm:$0xf]
  %v83 = vld [vmem:[%s1 + $0x1c] sm:$0xf]
  %v148 = vunpack.c.l.b16 %v12
  %v149 = vunpack.c.l.b16 %v13
  %v150 = vunpack.c.l.b16 %v14
  %v151 = vunpack.c.l.b16 %v15
  %v152 = vunpack.c.l.b16 %v16
  %v153 = vunpack.c.l.b16 %v17
  %v154 = vunpack.c.l.b16 %v18
  %v155 = vunpack.c.l.b16 %v19
  %v156 = vunpack.c.l.b16 %v20
  %v157 = vunpack.c.l.b16 %v21
  %v158 = vunpack.c.l.b16 %v22
  %v159 = vunpack.c.l.b16 %v23
  %v160 = vunpack.c.l.b16 %v24
  %v161 = vunpack.c.l.b16 %v25
  %v162 = vunpack.c.l.b16 %v26
  %v163 = vunpack.c.l.b16 %v27
  %v164 = vunpack.c.l.b16 %v28
  %v165 = vunpack.c.l.b16 %v29
  %v166 = vunpack.c.l.b16 %v30
  %v167 = vunpack.c.l.b16 %v31
  %v168 = vunpack.c.l.b16 %v32
  %v169 = vunpack.c.l.b16 %v33
  %v170 = vunpack.c.l.b16 %v34
  %v171 = vunpack.c.l.b16 %v35
  %v172 = vunpack.c.l.b16 %v36
  %v173 = vunpack.c.l.b16 %v37
  %v174 = vunpack.c.l.b16 %v38
  %v175 = vunpack.c.l.b16 %v39
  %v176 = vunpack.c.l.b16 %v40
  %v177 = vunpack.c.l.b16 %v41
  %v178 = vunpack.c.l.b16 %v42
  %v179 = vunpack.c.l.b16 %v43
  %v180 = vunpack.c.l.b16 %v44
  %v181 = vunpack.c.l.b16 %v45
  %v182 = vunpack.c.l.b16 %v46
  %v183 = vunpack.c.l.b16 %v47
  %v184 = vunpack.c.l.b16 %v48
  %v185 = vunpack.c.l.b16 %v49
  %v186 = vunpack.c.l.b16 %v50
  %v187 = vunpack.c.l.b16 %v51
  %v188 = vunpack.c.l.b16 %v52
  %v189 = vunpack.c.l.b16 %v53
  %v190 = vunpack.c.l.b16 %v54
  %v191 = vunpack.c.l.b16 %v55
  %v192 = vunpack.c.l.b16 %v56
  %v193 = vunpack.c.l.b16 %v57
  %v194 = vunpack.c.l.b16 %v58
  %v195 = vunpack.c.l.b16 %v59
  %v196 = vunpack.c.l.b16 %v60
  %v197 = vunpack.c.l.b16 %v61
  %v198 = vunpack.c.l.b16 %v62
  %v199 = vunpack.c.l.b16 %v63
  %v200 = vunpack.c.l.b16 %v64
  %v201 = vunpack.c.l.b16 %v65
  %v202 = vunpack.c.l.b16 %v66
  %v203 = vunpack.c.l.b16 %v67
  %v204 = vunpack.c.l.b16 %v68
  %v205 = vunpack.c.l.b16 %v69
  %v206 = vunpack.c.l.b16 %v70
  %v207 = vunpack.c.l.b16 %v71
  %v208 = vunpack.c.l.b16 %v72
  %v209 = vunpack.c.l.b16 %v73
  %v210 = vunpack.c.l.b16 %v74
  %v211 = vunpack.c.l.b16 %v75
  %v212 = vpack.c.b16 %v149, %v148
  %v213 = vpack.c.b16 %v151, %v150
  %v214 = vpack.c.b16 %v153, %v152
  %v215 = vpack.c.b16 %v155, %v154
  %v216 = vpack.c.b16 %v157, %v156
  %v217 = vpack.c.b16 %v159, %v158
  %v218 = vpack.c.b16 %v161, %v160
  %v219 = vpack.c.b16 %v163, %v162
  %v220 = vpack.c.b16 %v165, %v164
  %v221 = vpack.c.b16 %v167, %v166
  %v222 = vpack.c.b16 %v169, %v168
  %v223 = vpack.c.b16 %v171, %v170
  %v224 = vpack.c.b16 %v173, %v172
  %v225 = vpack.c.b16 %v175, %v174
  %v226 = vpack.c.b16 %v177, %v176
  %v227 = vpack.c.b16 %v179, %v178
  %v228 = vpack.c.b16 %v181, %v180
  %v229 = vpack.c.b16 %v183, %v182
  %v230 = vpack.c.b16 %v185, %v184
  %v231 = vpack.c.b16 %v187, %v186
  %v232 = vpack.c.b16 %v189, %v188
  %v233 = vpack.c.b16 %v191, %v190
  %v234 = vpack.c.b16 %v193, %v192
  %v235 = vpack.c.b16 %v195, %v194
  %v236 = vpack.c.b16 %v197, %v196
  %v237 = vpack.c.b16 %v199, %v198
  %v238 = vpack.c.b16 %v201, %v200
  %v239 = vpack.c.b16 %v203, %v202
  %v240 = vpack.c.b16 %v205, %v204
  %v241 = vpack.c.b16 %v207, %v206
  %v242 = vpack.c.b16 %v209, %v208
  %v243 = vpack.c.b16 %v211, %v210
  %v252 = vunpack.c.l.b16 %v76
  %v253 = vunpack.c.l.b16 %v77
  %v254 = vunpack.c.l.b16 %v78
  %v255 = vunpack.c.l.b16 %v79
  %v256 = vunpack.c.l.b16 %v80
  %v257 = vunpack.c.l.b16 %v81
  %v258 = vunpack.c.l.b16 %v82
  %v259 = vunpack.c.l.b16 %v83
  %v260 = vpack.c.b16 %v253, %v252
  %v261 = vpack.c.b16 %v255, %v254
  %v262 = vpack.c.b16 %v257, %v256
  %v263 = vpack.c.b16 %v259, %v258
  %vm268 = vcmask 523264
  %v270 = vsel %vm268, %v212, 0
  %v273 = vsel %vm268, %v213, 0
  %v276 = vsel %vm268, %v214, 0
  %v279 = vsel %vm268, %v215, 0
  %v282 = vsel %vm268, %v216, 0
  %v285 = vsel %vm268, %v217, 0
  %v288 = vsel %vm268, %v218, 0
  %v291 = vsel %vm268, %v219, 0
  %v294 = vsel %vm268, %v220, 0
  %v297 = vsel %vm268, %v221, 0
  %v300 = vsel %vm268, %v222, 0
  %v303 = vsel %vm268, %v223, 0
  %v306 = vsel %vm268, %v224, 0
  %v309 = vsel %vm268, %v225, 0
  %v312 = vsel %vm268, %v226, 0
  %v315 = vsel %vm268, %v227, 0
  %v318 = vsel %vm268, %v228, 0
  %v321 = vsel %vm268, %v229, 0
  %v324 = vsel %vm268, %v230, 0
  %v327 = vsel %vm268, %v231, 0
  %v330 = vsel %vm268, %v232, 0
  %v333 = vsel %vm268, %v233, 0
  %v336 = vsel %vm268, %v234, 0
  %v339 = vsel %vm268, %v235, 0
  %v342 = vsel %vm268, %v236, 0
  %v345 = vsel %vm268, %v237, 0
  %v348 = vsel %vm268, %v238, 0
  %v351 = vsel %vm268, %v239, 0
  %v354 = vsel %vm268, %v240, 0
  %v357 = vsel %vm268, %v241, 0
  %v360 = vsel %vm268, %v242, 0
  %v363 = vsel %vm268, %v243, 0
  %365 = vmatpush.bf16.msra.mxu0 0
  %366 = vmatpush.bf16.msra.mxu0 0
  %367 = vmatpush.bf16.msra.mxu0 0
  %368 = vmatpush.bf16.msra.mxu0 0
  %369 = vmatpush.bf16.msra.mxu0 %v263
  %370 = vmatpush.bf16.msra.mxu0 %v262
  %371 = vmatpush.bf16.msra.mxu0 %v261
  %372 = vmatpush.bf16.msra.mxu0 %v260
  %373 = vmatmul.bf16.gmra.mxu0 %v270
  %v374 = vpop.f32.mrf.mxu0
  %v375 = vadd.f32 0.0, %v374
  %v376 = vpop.f32.mrf.mxu0
  %v377 = vadd.f32 0.0, %v376
  %378 = vmatmul.bf16.gmra.mxu0 %v273
  %v379 = vpop.f32.mrf.mxu0
  %v380 = vadd.f32 0.0, %v379
  %v381 = vpop.f32.mrf.mxu0
  %v382 = vadd.f32 0.0, %v381
  %383 = vmatmul.bf16.gmra.mxu0 %v276
  %v384 = vpop.f32.mrf.mxu0
  %v385 = vadd.f32 0.0, %v384
  %v386 = vpop.f32.mrf.mxu0
  %v387 = vadd.f32 0.0, %v386
  %388 = vmatmul.bf16.gmra.mxu0 %v279
  %v389 = vpop.f32.mrf.mxu0
  %v390 = vadd.f32 0.0, %v389
  %v391 = vpop.f32.mrf.mxu0
  %v392 = vadd.f32 0.0, %v391
  %393 = vmatmul.bf16.gmra.mxu0 %v282
  %v394 = vpop.f32.mrf.mxu0
  %v395 = vadd.f32 0.0, %v394
  %v396 = vpop.f32.mrf.mxu0
  %v397 = vadd.f32 0.0, %v396
  %398 = vmatmul.bf16.gmra.mxu0 %v285
  %v399 = vpop.f32.mrf.mxu0
  %v400 = vadd.f32 0.0, %v399
  %v401 = vpop.f32.mrf.mxu0
  %v402 = vadd.f32 0.0, %v401
  %403 = vmatmul.bf16.gmra.mxu0 %v288
  %v404 = vpop.f32.mrf.mxu0
  %v405 = vadd.f32 0.0, %v404
  %v406 = vpop.f32.mrf.mxu0
  %v407 = vadd.f32 0.0, %v406
  %408 = vmatmul.bf16.gmra.mxu0 %v291
  %v409 = vpop.f32.mrf.mxu0
  %v410 = vadd.f32 0.0, %v409
  %v411 = vpop.f32.mrf.mxu0
  %v412 = vadd.f32 0.0, %v411
  %413 = vmatmul.bf16.gmra.mxu0 %v294
  %v414 = vpop.f32.mrf.mxu0
  %v415 = vadd.f32 0.0, %v414
  %v416 = vpop.f32.mrf.mxu0
  %v417 = vadd.f32 0.0, %v416
  %418 = vmatmul.bf16.gmra.mxu0 %v297
  %v419 = vpop.f32.mrf.mxu0
  %v420 = vadd.f32 0.0, %v419
  %v421 = vpop.f32.mrf.mxu0
  %v422 = vadd.f32 0.0, %v421
  %423 = vmatmul.bf16.gmra.mxu0 %v300
  %v424 = vpop.f32.mrf.mxu0
  %v425 = vadd.f32 0.0, %v424
  %v426 = vpop.f32.mrf.mxu0
  %v427 = vadd.f32 0.0, %v426
  %428 = vmatmul.bf16.gmra.mxu0 %v303
  %v429 = vpop.f32.mrf.mxu0
  %v430 = vadd.f32 0.0, %v429
  %v431 = vpop.f32.mrf.mxu0
  %v432 = vadd.f32 0.0, %v431
  %433 = vmatmul.bf16.gmra.mxu0 %v306
  %v434 = vpop.f32.mrf.mxu0
  %v435 = vadd.f32 0.0, %v434
  %v436 = vpop.f32.mrf.mxu0
  %v437 = vadd.f32 0.0, %v436
  %438 = vmatmul.bf16.gmra.mxu0 %v309
  %v439 = vpop.f32.mrf.mxu0
  %v440 = vadd.f32 0.0, %v439
  %v441 = vpop.f32.mrf.mxu0
  %v442 = vadd.f32 0.0, %v441
  %443 = vmatmul.bf16.gmra.mxu0 %v312
  %v444 = vpop.f32.mrf.mxu0
  %v445 = vadd.f32 0.0, %v444
  %v446 = vpop.f32.mrf.mxu0
  %v447 = vadd.f32 0.0, %v446
  %448 = vmatmul.bf16.gmra.mxu0 %v315
  %v449 = vpop.f32.mrf.mxu0
  %v450 = vadd.f32 0.0, %v449
  %v451 = vpop.f32.mrf.mxu0
  %v452 = vadd.f32 0.0, %v451
  %453 = vmatmul.bf16.gmra.mxu0 %v318
  %v454 = vpop.f32.mrf.mxu0
  %v455 = vadd.f32 0.0, %v454
  %v456 = vpop.f32.mrf.mxu0
  %v457 = vadd.f32 0.0, %v456
  %458 = vmatmul.bf16.gmra.mxu0 %v321
  %v459 = vpop.f32.mrf.mxu0
  %v460 = vadd.f32 0.0, %v459
  %v461 = vpop.f32.mrf.mxu0
  %v462 = vadd.f32 0.0, %v461
  %463 = vmatmul.bf16.gmra.mxu0 %v324
  %v464 = vpop.f32.mrf.mxu0
  %v465 = vadd.f32 0.0, %v464
  %v466 = vpop.f32.mrf.mxu0
  %v467 = vadd.f32 0.0, %v466
  %468 = vmatmul.bf16.gmra.mxu0 %v327
  %v469 = vpop.f32.mrf.mxu0
  %v470 = vadd.f32 0.0, %v469
  %v471 = vpop.f32.mrf.mxu0
  %v472 = vadd.f32 0.0, %v471
  %473 = vmatmul.bf16.gmra.mxu0 %v330
  %v474 = vpop.f32.mrf.mxu0
  %v475 = vadd.f32 0.0, %v474
  %v476 = vpop.f32.mrf.mxu0
  %v477 = vadd.f32 0.0, %v476
  %478 = vmatmul.bf16.gmra.mxu0 %v333
  %v479 = vpop.f32.mrf.mxu0
  %v480 = vadd.f32 0.0, %v479
  %v481 = vpop.f32.mrf.mxu0
  %v482 = vadd.f32 0.0, %v481
  %483 = vmatmul.bf16.gmra.mxu0 %v336
  %v484 = vpop.f32.mrf.mxu0
  %v485 = vadd.f32 0.0, %v484
  %v486 = vpop.f32.mrf.mxu0
  %v487 = vadd.f32 0.0, %v486
  %488 = vmatmul.bf16.gmra.mxu0 %v339
  %v489 = vpop.f32.mrf.mxu0
  %v490 = vadd.f32 0.0, %v489
  %v491 = vpop.f32.mrf.mxu0
  %v492 = vadd.f32 0.0, %v491
  %493 = vmatmul.bf16.gmra.mxu0 %v342
  %v494 = vpop.f32.mrf.mxu0
  %v495 = vadd.f32 0.0, %v494
  %v496 = vpop.f32.mrf.mxu0
  %v497 = vadd.f32 0.0, %v496
  %498 = vmatmul.bf16.gmra.mxu0 %v345
  %v499 = vpop.f32.mrf.mxu0
  %v500 = vadd.f32 0.0, %v499
  %v501 = vpop.f32.mrf.mxu0
  %v502 = vadd.f32 0.0, %v501
  %503 = vmatmul.bf16.gmra.mxu0 %v348
  %v504 = vpop.f32.mrf.mxu0
  %v505 = vadd.f32 0.0, %v504
  %v506 = vpop.f32.mrf.mxu0
  %v507 = vadd.f32 0.0, %v506
  %508 = vmatmul.bf16.gmra.mxu0 %v351
  %v509 = vpop.f32.mrf.mxu0
  %v510 = vadd.f32 0.0, %v509
  %v511 = vpop.f32.mrf.mxu0
  %v512 = vadd.f32 0.0, %v511
  %513 = vmatmul.bf16.gmra.mxu0 %v354
  %v514 = vpop.f32.mrf.mxu0
  %v515 = vadd.f32 0.0, %v514
  %v516 = vpop.f32.mrf.mxu0
  %v517 = vadd.f32 0.0, %v516
  %518 = vmatmul.bf16.gmra.mxu0 %v357
  %v519 = vpop.f32.mrf.mxu0
  %v520 = vadd.f32 0.0, %v519
  %v521 = vpop.f32.mrf.mxu0
  %v522 = vadd.f32 0.0, %v521
  %523 = vmatmul.bf16.gmra.mxu0 %v360
  %v524 = vpop.f32.mrf.mxu0
  %v525 = vadd.f32 0.0, %v524
  %v526 = vpop.f32.mrf.mxu0
  %v527 = vadd.f32 0.0, %v526
  %528 = vmatmul.bf16.gmra.mxu0 %v363
  %v529 = vpop.f32.mrf.mxu0
  %v530 = vadd.f32 0.0, %v529
  %v531 = vpop.f32.mrf.mxu0
  %v532 = vadd.f32 0.0, %v531
  %533 = vdwg.mxu0
  %v534 = vpack.c.bf16 %v375, %v375
  %v535 = vpack.c.bf16 %v377, %v377
  %v536 = vpack.c.bf16 %v380, %v380
  %v537 = vpack.c.bf16 %v382, %v382
  %v538 = vpack.c.bf16 %v385, %v385
  %v539 = vpack.c.bf16 %v387, %v387
  %v540 = vpack.c.bf16 %v390, %v390
  %v541 = vpack.c.bf16 %v392, %v392
  %v542 = vpack.c.bf16 %v395, %v395
  %v543 = vpack.c.bf16 %v397, %v397
  %v544 = vpack.c.bf16 %v400, %v400
  %v545 = vpack.c.bf16 %v402, %v402
  %v546 = vpack.c.bf16 %v405, %v405
  %v547 = vpack.c.bf16 %v407, %v407
  %v548 = vpack.c.bf16 %v410, %v410
  %v549 = vpack.c.bf16 %v412, %v412
  %v550 = vpack.c.bf16 %v415, %v415
  %v551 = vpack.c.bf16 %v417, %v417
  %v552 = vpack.c.bf16 %v420, %v420
  %v553 = vpack.c.bf16 %v422, %v422
  %v554 = vpack.c.bf16 %v425, %v425
  %v555 = vpack.c.bf16 %v427, %v427
  %v556 = vpack.c.bf16 %v430, %v430
  %v557 = vpack.c.bf16 %v432, %v432
  %v558 = vpack.c.bf16 %v435, %v435
  %v559 = vpack.c.bf16 %v437, %v437
  %v560 = vpack.c.bf16 %v440, %v440
  %v561 = vpack.c.bf16 %v442, %v442
  %v562 = vpack.c.bf16 %v445, %v445
  %v563 = vpack.c.bf16 %v447, %v447
  %v564 = vpack.c.bf16 %v450, %v450
  %v565 = vpack.c.bf16 %v452, %v452
  %v566 = vpack.c.bf16 %v455, %v455
  %v567 = vpack.c.bf16 %v457, %v457
  %v568 = vpack.c.bf16 %v460, %v460
  %v569 = vpack.c.bf16 %v462, %v462
  %v570 = vpack.c.bf16 %v465, %v465
  %v571 = vpack.c.bf16 %v467, %v467
  %v572 = vpack.c.bf16 %v470, %v470
  %v573 = vpack.c.bf16 %v472, %v472
  %v574 = vpack.c.bf16 %v475, %v475
  %v575 = vpack.c.bf16 %v477, %v477
  %v576 = vpack.c.bf16 %v480, %v480
  %v577 = vpack.c.bf16 %v482, %v482
  %v578 = vpack.c.bf16 %v485, %v485
  %v579 = vpack.c.bf16 %v487, %v487
  %v580 = vpack.c.bf16 %v490, %v490
  %v581 = vpack.c.bf16 %v492, %v492
  %v582 = vpack.c.bf16 %v495, %v495
  %v583 = vpack.c.bf16 %v497, %v497
  %v584 = vpack.c.bf16 %v500, %v500
  %v585 = vpack.c.bf16 %v502, %v502
  %v586 = vpack.c.bf16 %v505, %v505
  %v587 = vpack.c.bf16 %v507, %v507
  %v588 = vpack.c.bf16 %v510, %v510
  %v589 = vpack.c.bf16 %v512, %v512
  %v590 = vpack.c.bf16 %v515, %v515
  %v591 = vpack.c.bf16 %v517, %v517
  %v592 = vpack.c.bf16 %v520, %v520
  %v593 = vpack.c.bf16 %v522, %v522
  %v594 = vpack.c.bf16 %v525, %v525
  %v595 = vpack.c.bf16 %v527, %v527
  %v596 = vpack.c.bf16 %v530, %v530
  %v597 = vpack.c.bf16 %v532, %v532
  %vm598 = vcmask 519168
  %599 = vst.msk [vmem:[%s2] sm:$0xf] %vm598, %v534
  %600 = vst.msk [vmem:[%s2 + $0x4] sm:$0xf] %vm598, %v535
  %601 = vst.msk [vmem:[%s2 + $0x8] sm:$0xf] %vm598, %v536
  %602 = vst.msk [vmem:[%s2 + $0xc] sm:$0xf] %vm598, %v537
  %603 = vst.msk [vmem:[%s2 + $0x10] sm:$0xf] %vm598, %v538
  %604 = vst.msk [vmem:[%s2 + $0x14] sm:$0xf] %vm598, %v539
  %605 = vst.msk [vmem:[%s2 + $0x18] sm:$0xf] %vm598, %v540
  %606 = vst.msk [vmem:[%s2 + $0x1c] sm:$0xf] %vm598, %v541
  %607 = vst.msk [vmem:[%s2 + $0x20] sm:$0xf] %vm598, %v542
  %608 = vst.msk [vmem:[%s2 + $0x24] sm:$0xf] %vm598, %v543
  %609 = vst.msk [vmem:[%s2 + $0x28] sm:$0xf] %vm598, %v544
  %610 = vst.msk [vmem:[%s2 + $0x2c] sm:$0xf] %vm598, %v545
  %611 = vst.msk [vmem:[%s2 + $0x30] sm:$0xf] %vm598, %v546
  %612 = vst.msk [vmem:[%s2 + $0x34] sm:$0xf] %vm598, %v547
  %613 = vst.msk [vmem:[%s2 + $0x38] sm:$0xf] %vm598, %v548
  %614 = vst.msk [vmem:[%s2 + $0x3c] sm:$0xf] %vm598, %v549
  %615 = vst.msk [vmem:[%s2 + $0x40] sm:$0xf] %vm598, %v550
  %616 = vst.msk [vmem:[%s2 + $0x44] sm:$0xf] %vm598, %v551
  %617 = vst.msk [vmem:[%s2 + $0x48] sm:$0xf] %vm598, %v552
  %618 = vst.msk [vmem:[%s2 + $0x4c] sm:$0xf] %vm598, %v553
  %619 = vst.msk [vmem:[%s2 + $0x50] sm:$0xf] %vm598, %v554
  %620 = vst.msk [vmem:[%s2 + $0x54] sm:$0xf] %vm598, %v555
  %621 = vst.msk [vmem:[%s2 + $0x58] sm:$0xf] %vm598, %v556
  %622 = vst.msk [vmem:[%s2 + $0x5c] sm:$0xf] %vm598, %v557
  %623 = vst.msk [vmem:[%s2 + $0x60] sm:$0xf] %vm598, %v558
  %624 = vst.msk [vmem:[%s2 + $0x64] sm:$0xf] %vm598, %v559
  %625 = vst.msk [vmem:[%s2 + $0x68] sm:$0xf] %vm598, %v560
  %626 = vst.msk [vmem:[%s2 + $0x6c] sm:$0xf] %vm598, %v561
  %627 = vst.msk [vmem:[%s2 + $0x70] sm:$0xf] %vm598, %v562
  %628 = vst.msk [vmem:[%s2 + $0x74] sm:$0xf] %vm598, %v563
  %629 = vst.msk [vmem:[%s2 + $0x78] sm:$0xf] %vm598, %v564
  %630 = vst.msk [vmem:[%s2 + $0x7c] sm:$0xf] %vm598, %v565
  %631 = vst.msk [vmem:[%s2 + $0x80] sm:$0xf] %vm598, %v566
  %632 = vst.msk [vmem:[%s2 + $0x84] sm:$0xf] %vm598, %v567
  %633 = vst.msk [vmem:[%s2 + $0x88] sm:$0xf] %vm598, %v568
  %634 = vst.msk [vmem:[%s2 + $0x8c] sm:$0xf] %vm598, %v569
  %635 = vst.msk [vmem:[%s2 + $0x90] sm:$0xf] %vm598, %v570
  %636 = vst.msk [vmem:[%s2 + $0x94] sm:$0xf] %vm598, %v571
  %637 = vst.msk [vmem:[%s2 + $0x98] sm:$0xf] %vm598, %v572
  %638 = vst.msk [vmem:[%s2 + $0x9c] sm:$0xf] %vm598, %v573
  %639 = vst.msk [vmem:[%s2 + $0xa0] sm:$0xf] %vm598, %v574
  %640 = vst.msk [vmem:[%s2 + $0xa4] sm:$0xf] %vm598, %v575
  %641 = vst.msk [vmem:[%s2 + $0xa8] sm:$0xf] %vm598, %v576
  %642 = vst.msk [vmem:[%s2 + $0xac] sm:$0xf] %vm598, %v577
  %643 = vst.msk [vmem:[%s2 + $0xb0] sm:$0xf] %vm598, %v578
  %644 = vst.msk [vmem:[%s2 + $0xb4] sm:$0xf] %vm598, %v579
  %645 = vst.msk [vmem:[%s2 + $0xb8] sm:$0xf] %vm598, %v580
  %646 = vst.msk [vmem:[%s2 + $0xbc] sm:$0xf] %vm598, %v581
  %647 = vst.msk [vmem:[%s2 + $0xc0] sm:$0xf] %vm598, %v582
  %648 = vst.msk [vmem:[%s2 + $0xc4] sm:$0xf] %vm598, %v583
  %649 = vst.msk [vmem:[%s2 + $0xc8] sm:$0xf] %vm598, %v584
  %650 = vst.msk [vmem:[%s2 + $0xcc] sm:$0xf] %vm598, %v585
  %651 = vst.msk [vmem:[%s2 + $0xd0] sm:$0xf] %vm598, %v586
  %652 = vst.msk [vmem:[%s2 + $0xd4] sm:$0xf] %vm598, %v587
  %653 = vst.msk [vmem:[%s2 + $0xd8] sm:$0xf] %vm598, %v588
  %654 = vst.msk [vmem:[%s2 + $0xdc] sm:$0xf] %vm598, %v589
  %655 = vst.msk [vmem:[%s2 + $0xe0] sm:$0xf] %vm598, %v590
  %656 = vst.msk [vmem:[%s2 + $0xe4] sm:$0xf] %vm598, %v591
  %657 = vst.msk [vmem:[%s2 + $0xe8] sm:$0xf] %vm598, %v592
  %658 = vst.msk [vmem:[%s2 + $0xec] sm:$0xf] %vm598, %v593
  %659 = vst.msk [vmem:[%s2 + $0xf0] sm:$0xf] %vm598, %v594
  %660 = vst.msk [vmem:[%s2 + $0xf4] sm:$0xf] %vm598, %v595
  %661 = vst.msk [vmem:[%s2 + $0xf8] sm:$0xf] %vm598, %v596
  %662 = vst.msk [vmem:[%s2 + $0xfc] sm:$0xf] %vm598, %v597
  // Predicated region
  $region10: #{mynet_forward.14} parent=0 // pred_check
    _
  $region11: #{mynet_forward.14} parent=0 // pred_check_branch
    %664 = sbr.rel (0) target = $region13
  $region12: #{mynet_forward.14} parent=0 // pred_region
    _
  $region13: #{mynet_forward.14} parent=0 // pred_fallthru
    _
  // Predicated region
  $region14: #{mynet_forward.14} parent=0 // pred_check
    _
  $region15: #{mynet_forward.14} parent=0 // pred_check_branch
    %666 = sbr.rel (0) target = $region17
  $region16: #{mynet_forward.14} parent=0 // pred_region
    _
  $region17: #{mynet_forward.14} parent=0 // pred_fallthru
    _

// kernel: mynet_forward.15
$region0: #{mynet_forward.15}
  #allocation0 [shape = 'u32[]', space=smem, size = 0x4, offset = 0x4, fixed_abs, tag = 'smem constant byte address 0x4 - core index']
  #allocation1 [shape = 'u32[72,128]{1,0:T(1,128)}', space=vmem, size = 0x9000, scoped, tag = 'internal scratch']
  %s0 = inlined_call_operand.vmem [shape: bf16[128,128], index: 0, kind: input, shape index: {}]
  %s1 = inlined_call_operand.vmem [shape: bf16[128,64], index: 1, kind: input, shape index: {}]
  %s2 = inlined_call_operand.vmem [shape: bf16[128,64], index: 2, kind: output, shape index: {}]
  %s3 = sld [smem:[#allocation0]]
  $region18: #{mynet_forward.15} parent=0
    _
  %s5 = ssub.s32 1, %s3
  %s6 = scalar_select 0, %s5, %s3
  // Predicated region
  $region2: #{mynet_forward.15} parent=0 // pred_check
    _
  $region3: #{mynet_forward.15} parent=0 // pred_check_branch
    %8 = sbr.rel (0) target = $region5
  $region4: #{mynet_forward.15} parent=0 // pred_region
    _
  $region5: #{mynet_forward.15} parent=0 // pred_fallthru
    _
  // Predicated region
  $region6: #{mynet_forward.15} parent=0 // pred_check
    _
  $region7: #{mynet_forward.15} parent=0 // pred_check_branch
    %10 = sbr.rel (0) target = $region9
  $region8: #{mynet_forward.15} parent=0 // pred_region
    _
  $region9: #{mynet_forward.15} parent=0 // pred_fallthru
    _
  %v11 = vld [vmem:[%s0] sm:$0xf]
  %v12 = vld [vmem:[%s0 + $0x4] sm:$0xf]
  %v13 = vld [vmem:[%s0 + $0x8] sm:$0xf]
  %v14 = vld [vmem:[%s0 + $0xc] sm:$0xf]
  %v15 = vld [vmem:[%s0 + $0x10] sm:$0xf]
  %v16 = vld [vmem:[%s0 + $0x14] sm:$0xf]
  %v17 = vld [vmem:[%s0 + $0x18] sm:$0xf]
  %v18 = vld [vmem:[%s0 + $0x1c] sm:$0xf]
  %v19 = vld [vmem:[%s0 + $0x20] sm:$0xf]
  %v20 = vld [vmem:[%s0 + $0x24] sm:$0xf]
  %v21 = vld [vmem:[%s0 + $0x28] sm:$0xf]
  %v22 = vld [vmem:[%s0 + $0x2c] sm:$0xf]
  %v23 = vld [vmem:[%s0 + $0x30] sm:$0xf]
  %v24 = vld [vmem:[%s0 + $0x34] sm:$0xf]
  %v25 = vld [vmem:[%s0 + $0x38] sm:$0xf]
  %v26 = vld [vmem:[%s0 + $0x3c] sm:$0xf]
  %v27 = vld [vmem:[%s1] sm:$0xf]
  %v28 = vld [vmem:[%s1 + $0x4] sm:$0xf]
  %v29 = vld [vmem:[%s1 + $0x8] sm:$0xf]
  %v30 = vld [vmem:[%s1 + $0xc] sm:$0xf]
  %v31 = vld [vmem:[%s1 + $0x10] sm:$0xf]
  %v32 = vld [vmem:[%s1 + $0x14] sm:$0xf]
  %v33 = vld [vmem:[%s1 + $0x18] sm:$0xf]
  %v34 = vld [vmem:[%s1 + $0x1c] sm:$0xf]
  %v35 = vld [vmem:[%s1 + $0x20] sm:$0xf]
  %v36 = vld [vmem:[%s1 + $0x24] sm:$0xf]
  %v37 = vld [vmem:[%s1 + $0x28] sm:$0xf]
  %v38 = vld [vmem:[%s1 + $0x2c] sm:$0xf]
  %v39 = vld [vmem:[%s1 + $0x30] sm:$0xf]
  %v40 = vld [vmem:[%s1 + $0x34] sm:$0xf]
  %v41 = vld [vmem:[%s1 + $0x38] sm:$0xf]
  %v42 = vld [vmem:[%s1 + $0x3c] sm:$0xf]
  %v59 = vunpack.c.l.b16 %v11
  %v60 = vunpack.c.l.b16 %v12
  %v61 = vunpack.c.l.b16 %v13
  %v62 = vunpack.c.l.b16 %v14
  %v63 = vunpack.c.l.b16 %v15
  %v64 = vunpack.c.l.b16 %v16
  %v65 = vunpack.c.l.b16 %v17
  %v66 = vunpack.c.l.b16 %v18
  %v67 = vunpack.c.l.b16 %v19
  %v68 = vunpack.c.l.b16 %v20
  %v69 = vunpack.c.l.b16 %v21
  %v70 = vunpack.c.l.b16 %v22
  %v71 = vunpack.c.l.b16 %v23
  %v72 = vunpack.c.l.b16 %v24
  %v73 = vunpack.c.l.b16 %v25
  %v74 = vunpack.c.l.b16 %v26
  %v75 = vpack.c.b16 %v60, %v59
  %v76 = vpack.c.b16 %v62, %v61
  %v77 = vpack.c.b16 %v64, %v63
  %v78 = vpack.c.b16 %v66, %v65
  %v79 = vpack.c.b16 %v68, %v67
  %v80 = vpack.c.b16 %v70, %v69
  %v81 = vpack.c.b16 %v72, %v71
  %v82 = vpack.c.b16 %v74, %v73
  %v107 = vunpack.c.l.b16 %v27
  %v108 = vunpack.c.l.b16 %v28
  %v109 = vunpack.c.l.b16 %v29
  %v110 = vunpack.c.l.b16 %v30
  %v111 = vunpack.c.l.b16 %v31
  %v112 = vunpack.c.l.b16 %v32
  %v113 = vunpack.c.l.b16 %v33
  %v114 = vunpack.c.l.b16 %v34
  %v115 = vunpack.c.l.b16 %v35
  %v116 = vunpack.c.l.b16 %v36
  %v117 = vunpack.c.l.b16 %v37
  %v118 = vunpack.c.l.b16 %v38
  %v119 = vunpack.c.l.b16 %v39
  %v120 = vunpack.c.l.b16 %v40
  %v121 = vunpack.c.l.b16 %v41
  %v122 = vunpack.c.l.b16 %v42
  %v123 = vpack.c.b16 %v108, %v107
  %v124 = vpack.c.b16 %v110, %v109
  %v125 = vpack.c.b16 %v112, %v111
  %v126 = vpack.c.b16 %v114, %v113
  %v127 = vpack.c.b16 %v116, %v115
  %v128 = vpack.c.b16 %v118, %v117
  %v129 = vpack.c.b16 %v120, %v119
  %v130 = vpack.c.b16 %v122, %v121
  %139 = vmatpush.bf16.msra.mxu0 %v130
  %140 = vmatpush.bf16.msra.mxu0 %v129
  %141 = vmatpush.bf16.msra.mxu0 %v128
  %142 = vmatpush.bf16.msra.mxu0 %v127
  %143 = vmatpush.bf16.msra.mxu0 %v126
  %144 = vmatpush.bf16.msra.mxu0 %v125
  %145 = vmatpush.bf16.msra.mxu0 %v124
  %146 = vmatpush.bf16.msra.mxu0 %v123
  %147 = vmatmul.bf16.gmra.mxu0 %v75
  %v148 = vpop.f32.mrf.mxu0
  %v149 = vadd.f32 0.0, %v148
  %v150 = vpop.f32.mrf.mxu0
  %v151 = vadd.f32 0.0, %v150
  %152 = vmatmul.bf16.gmra.mxu0 %v76
  %v153 = vpop.f32.mrf.mxu0
  %v154 = vadd.f32 0.0, %v153
  %v155 = vpop.f32.mrf.mxu0
  %v156 = vadd.f32 0.0, %v155
  %157 = vmatmul.bf16.gmra.mxu0 %v77
  %v158 = vpop.f32.mrf.mxu0
  %v159 = vadd.f32 0.0, %v158
  %v160 = vpop.f32.mrf.mxu0
  %v161 = vadd.f32 0.0, %v160
  %162 = vmatmul.bf16.gmra.mxu0 %v78
  %v163 = vpop.f32.mrf.mxu0
  %v164 = vadd.f32 0.0, %v163
  %v165 = vpop.f32.mrf.mxu0
  %v166 = vadd.f32 0.0, %v165
  %167 = vmatmul.bf16.gmra.mxu0 %v79
  %v168 = vpop.f32.mrf.mxu0
  %v169 = vadd.f32 0.0, %v168
  %v170 = vpop.f32.mrf.mxu0
  %v171 = vadd.f32 0.0, %v170
  %172 = vmatmul.bf16.gmra.mxu0 %v80
  %v173 = vpop.f32.mrf.mxu0
  %v174 = vadd.f32 0.0, %v173
  %v175 = vpop.f32.mrf.mxu0
  %v176 = vadd.f32 0.0, %v175
  %177 = vmatmul.bf16.gmra.mxu0 %v81
  %v178 = vpop.f32.mrf.mxu0
  %v179 = vadd.f32 0.0, %v178
  %v180 = vpop.f32.mrf.mxu0
  %v181 = vadd.f32 0.0, %v180
  %182 = vmatmul.bf16.gmra.mxu0 %v82
  %v183 = vpop.f32.mrf.mxu0
  %v184 = vadd.f32 0.0, %v183
  %v185 = vpop.f32.mrf.mxu0
  %v186 = vadd.f32 0.0, %v185
  %187 = vdwg.mxu0
  %v188 = vpack.c.bf16 %v149, %v149
  %v189 = vpack.c.bf16 %v151, %v151
  %v190 = vpack.c.bf16 %v154, %v154
  %v191 = vpack.c.bf16 %v156, %v156
  %v192 = vpack.c.bf16 %v159, %v159
  %v193 = vpack.c.bf16 %v161, %v161
  %v194 = vpack.c.bf16 %v164, %v164
  %v195 = vpack.c.bf16 %v166, %v166
  %v196 = vpack.c.bf16 %v169, %v169
  %v197 = vpack.c.bf16 %v171, %v171
  %v198 = vpack.c.bf16 %v174, %v174
  %v199 = vpack.c.bf16 %v176, %v176
  %v200 = vpack.c.bf16 %v179, %v179
  %v201 = vpack.c.bf16 %v181, %v181
  %v202 = vpack.c.bf16 %v184, %v184
  %v203 = vpack.c.bf16 %v186, %v186
  %vm204 = vcmask 519168
  %205 = vst.msk [vmem:[%s2] sm:$0xf] %vm204, %v188
  %206 = vst.msk [vmem:[%s2 + $0x4] sm:$0xf] %vm204, %v189
  %207 = vst.msk [vmem:[%s2 + $0x8] sm:$0xf] %vm204, %v190
  %208 = vst.msk [vmem:[%s2 + $0xc] sm:$0xf] %vm204, %v191
  %209 = vst.msk [vmem:[%s2 + $0x10] sm:$0xf] %vm204, %v192
  %210 = vst.msk [vmem:[%s2 + $0x14] sm:$0xf] %vm204, %v193
  %211 = vst.msk [vmem:[%s2 + $0x18] sm:$0xf] %vm204, %v194
  %212 = vst.msk [vmem:[%s2 + $0x1c] sm:$0xf] %vm204, %v195
  %213 = vst.msk [vmem:[%s2 + $0x20] sm:$0xf] %vm204, %v196
  %214 = vst.msk [vmem:[%s2 + $0x24] sm:$0xf] %vm204, %v197
  %215 = vst.msk [vmem:[%s2 + $0x28] sm:$0xf] %vm204, %v198
  %216 = vst.msk [vmem:[%s2 + $0x2c] sm:$0xf] %vm204, %v199
  %217 = vst.msk [vmem:[%s2 + $0x30] sm:$0xf] %vm204, %v200
  %218 = vst.msk [vmem:[%s2 + $0x34] sm:$0xf] %vm204, %v201
  %219 = vst.msk [vmem:[%s2 + $0x38] sm:$0xf] %vm204, %v202
  %220 = vst.msk [vmem:[%s2 + $0x3c] sm:$0xf] %vm204, %v203
  // Predicated region
  $region10: #{mynet_forward.15} parent=0 // pred_check
    _
  $region11: #{mynet_forward.15} parent=0 // pred_check_branch
    %222 = sbr.rel (0) target = $region13
  $region12: #{mynet_forward.15} parent=0 // pred_region
    _
  $region13: #{mynet_forward.15} parent=0 // pred_fallthru
    _
  // Predicated region
  $region14: #{mynet_forward.15} parent=0 // pred_check
    _
  $region15: #{mynet_forward.15} parent=0 // pred_check_branch
    %224 = sbr.rel (0) target = $region17
  $region16: #{mynet_forward.15} parent=0 // pred_region
    _
  $region17: #{mynet_forward.15} parent=0 // pred_fallthru
    _

// kernel: mynet_forward.16
$region0: #{mynet_forward.16}
  #allocation0 [shape = 'u32[]', space=smem, size = 0x4, offset = 0x4, fixed_abs, tag = 'smem constant byte address 0x4 - core index']
  #allocation1 [shape = 'u32[72,128]{1,0:T(1,128)}', space=vmem, size = 0x9000, scoped, tag = 'internal scratch']
  %s0 = inlined_call_operand.vmem [shape: bf16[32,320], index: 0, kind: input, shape index: {}]
  %s1 = inlined_call_operand.vmem [shape: bf16[320,64], index: 1, kind: input, shape index: {}]
  %s2 = inlined_call_operand.vmem [shape: bf16[32,64], index: 2, kind: output, shape index: {}]
  %s3 = sld [smem:[#allocation0]]
  $region18: #{mynet_forward.16} parent=0
    _
  %s5 = ssub.s32 1, %s3
  %s6 = scalar_select 0, %s5, %s3
  // Predicated region
  $region2: #{mynet_forward.16} parent=0 // pred_check
    _
  $region3: #{mynet_forward.16} parent=0 // pred_check_branch
    %8 = sbr.rel (0) target = $region5
  $region4: #{mynet_forward.16} parent=0 // pred_region
    _
  $region5: #{mynet_forward.16} parent=0 // pred_fallthru
    _
  // Predicated region
  $region6: #{mynet_forward.16} parent=0 // pred_check
    _
  $region7: #{mynet_forward.16} parent=0 // pred_check_branch
    %10 = sbr.rel (0) target = $region9
  $region8: #{mynet_forward.16} parent=0 // pred_region
    _
  $region9: #{mynet_forward.16} parent=0 // pred_fallthru
    _
  %v12 = vld [vmem:[%s0] sm:$0xff]
  %v13 = vld [vmem:[%s0 + $0x8] sm:$0xf]
  %v14 = vld [vmem:[%s0 + $0xc] sm:$0xff]
  %v15 = vld [vmem:[%s0 + $0x14] sm:$0xf]
  %v16 = vld [vmem:[%s0 + $0x18] sm:$0xff]
  %v17 = vld [vmem:[%s0 + $0x20] sm:$0xf]
  %v18 = vld [vmem:[%s0 + $0x24] sm:$0xff]
  %v19 = vld [vmem:[%s0 + $0x2c] sm:$0xf]
  %v20 = vld [vmem:[%s1] sm:$0xf]
  %v21 = vld [vmem:[%s1 + $0x4] sm:$0xf]
  %v22 = vld [vmem:[%s1 + $0x8] sm:$0xf]
  %v23 = vld [vmem:[%s1 + $0xc] sm:$0xf]
  %v24 = vld [vmem:[%s1 + $0x10] sm:$0xf]
  %v25 = vld [vmem:[%s1 + $0x14] sm:$0xf]
  %v26 = vld [vmem:[%s1 + $0x18] sm:$0xf]
  %v27 = vld [vmem:[%s1 + $0x1c] sm:$0xf]
  %v28 = vld [vmem:[%s1 + $0x20] sm:$0xf]
  %v29 = vld [vmem:[%s1 + $0x24] sm:$0xf]
  %v30 = vld [vmem:[%s1 + $0x28] sm:$0xf]
  %v31 = vld [vmem:[%s1 + $0x2c] sm:$0xf]
  %v32 = vld [vmem:[%s1 + $0x30] sm:$0xf]
  %v33 = vld [vmem:[%s1 + $0x34] sm:$0xf]
  %v34 = vld [vmem:[%s1 + $0x38] sm:$0xf]
  %v35 = vld [vmem:[%s1 + $0x3c] sm:$0xf]
  %v36 = vld [vmem:[%s1 + $0x40] sm:$0xf]
  %v37 = vld [vmem:[%s1 + $0x44] sm:$0xf]
  %v38 = vld [vmem:[%s1 + $0x48] sm:$0xf]
  %v39 = vld [vmem:[%s1 + $0x4c] sm:$0xf]
  %v40 = vld [vmem:[%s1 + $0x50] sm:$0xf]
  %v41 = vld [vmem:[%s1 + $0x54] sm:$0xf]
  %v42 = vld [vmem:[%s1 + $0x58] sm:$0xf]
  %v43 = vld [vmem:[%s1 + $0x5c] sm:$0xf]
  %v44 = vld [vmem:[%s1 + $0x60] sm:$0xf]
  %v45 = vld [vmem:[%s1 + $0x64] sm:$0xf]
  %v46 = vld [vmem:[%s1 + $0x68] sm:$0xf]
  %v47 = vld [vmem:[%s1 + $0x6c] sm:$0xf]
  %v48 = vld [vmem:[%s1 + $0x70] sm:$0xf]
  %v49 = vld [vmem:[%s1 + $0x74] sm:$0xf]
  %v50 = vld [vmem:[%s1 + $0x78] sm:$0xf]
  %v51 = vld [vmem:[%s1 + $0x7c] sm:$0xf]
  %v52 = vld [vmem:[%s1 + $0x80] sm:$0xf]
  %v53 = vld [vmem:[%s1 + $0x84] sm:$0xf]
  %v54 = vld [vmem:[%s1 + $0x88] sm:$0xf]
  %v55 = vld [vmem:[%s1 + $0x8c] sm:$0xf]
  %v56 = vld [vmem:[%s1 + $0x90] sm:$0xf]
  %v57 = vld [vmem:[%s1 + $0x94] sm:$0xf]
  %v58 = vld [vmem:[%s1 + $0x98] sm:$0xf]
  %v59 = vld [vmem:[%s1 + $0x9c] sm:$0xf]
  %v68 = vunpack.c.l.b16 %v12
  %v69 = vunpack.c.h.b16 %v12
  %v70 = vunpack.c.l.b16 %v13
  %v71 = vunpack.c.l.b16 %v14
  %v72 = vunpack.c.h.b16 %v14
  %v73 = vunpack.c.l.b16 %v15
  %v74 = vunpack.c.l.b16 %v16
  %v75 = vunpack.c.h.b16 %v16
  %v76 = vunpack.c.l.b16 %v17
  %v77 = vunpack.c.l.b16 %v18
  %v78 = vunpack.c.h.b16 %v18
  %v79 = vunpack.c.l.b16 %v19
  %v80 = vpack.c.b16 %v71, %v68
  %v81 = vpack.c.b16 %v72, %v69
  %v82 = vpack.c.b16 %v73, %v70
  %v83 = vpack.c.b16 %v77, %v74
  %v84 = vpack.c.b16 %v78, %v75
  %v85 = vpack.c.b16 %v79, %v76
  %v130 = vunpack.c.l.b16 %v20
  %v131 = vunpack.c.l.b16 %v21
  %v132 = vunpack.c.l.b16 %v22
  %v133 = vunpack.c.l.b16 %v23
  %v134 = vunpack.c.l.b16 %v24
  %v135 = vunpack.c.l.b16 %v25
  %v136 = vunpack.c.l.b16 %v26
  %v137 = vunpack.c.l.b16 %v27
  %v138 = vunpack.c.l.b16 %v28
  %v139 = vunpack.c.l.b16 %v29
  %v140 = vunpack.c.l.b16 %v30
  %v141 = vunpack.c.l.b16 %v31
  %v142 = vunpack.c.l.b16 %v32
  %v143 = vunpack.c.l.b16 %v33
  %v144 = vunpack.c.l.b16 %v34
  %v145 = vunpack.c.l.b16 %v35
  %v146 = vunpack.c.l.b16 %v36
  %v147 = vunpack.c.l.b16 %v37
  %v148 = vunpack.c.l.b16 %v38
  %v149 = vunpack.c.l.b16 %v39
  %v150 = vunpack.c.l.b16 %v40
  %v151 = vunpack.c.l.b16 %v41
  %v152 = vunpack.c.l.b16 %v42
  %v153 = vunpack.c.l.b16 %v43
  %v154 = vunpack.c.l.b16 %v44
  %v155 = vunpack.c.l.b16 %v45
  %v156 = vunpack.c.l.b16 %v46
  %v157 = vunpack.c.l.b16 %v47
  %v158 = vunpack.c.l.b16 %v48
  %v159 = vunpack.c.l.b16 %v49
  %v160 = vunpack.c.l.b16 %v50
  %v161 = vunpack.c.l.b16 %v51
  %v162 = vunpack.c.l.b16 %v52
  %v163 = vunpack.c.l.b16 %v53
  %v164 = vunpack.c.l.b16 %v54
  %v165 = vunpack.c.l.b16 %v55
  %v166 = vunpack.c.l.b16 %v56
  %v167 = vunpack.c.l.b16 %v57
  %v168 = vunpack.c.l.b16 %v58
  %v169 = vunpack.c.l.b16 %v59
  %v170 = vpack.c.b16 %v131, %v130
  %v171 = vpack.c.b16 %v133, %v132
  %v172 = vpack.c.b16 %v135, %v134
  %v173 = vpack.c.b16 %v137, %v136
  %v174 = vpack.c.b16 %v139, %v138
  %v175 = vpack.c.b16 %v141, %v140
  %v176 = vpack.c.b16 %v143, %v142
  %v177 = vpack.c.b16 %v145, %v144
  %v178 = vpack.c.b16 %v147, %v146
  %v179 = vpack.c.b16 %v149, %v148
  %v180 = vpack.c.b16 %v151, %v150
  %v181 = vpack.c.b16 %v153, %v152
  %v182 = vpack.c.b16 %v155, %v154
  %v183 = vpack.c.b16 %v157, %v156
  %v184 = vpack.c.b16 %v159, %v158
  %v185 = vpack.c.b16 %v161, %v160
  %v186 = vpack.c.b16 %v163, %v162
  %v187 = vpack.c.b16 %v165, %v164
  %v188 = vpack.c.b16 %v167, %v166
  %v189 = vpack.c.b16 %v169, %v168
  %vm210 = vcmask 523264
  %v212 = vsel %vm210, %v82, 0
  %v215 = vsel %vm210, %v85, 0
  %217 = vmatpush.bf16.msra.mxu0 %v177
  %218 = vmatpush.bf16.msra.mxu0 %v176
  %219 = vmatpush.bf16.msra.mxu0 %v175
  %220 = vmatpush.bf16.msra.mxu0 %v174
  %221 = vmatpush.bf16.msra.mxu0 %v173
  %222 = vmatpush.bf16.msra.mxu0 %v172
  %223 = vmatpush.bf16.msra.mxu0 %v171
  %224 = vmatpush.bf16.msra.mxu0 %v170
  %225 = vmatmul.bf16.gmra.mxu0 %v80
  %v226 = vpop.f32.mrf.mxu0
  %v227 = vadd.f32 0.0, %v226
  %v228 = vpop.f32.mrf.mxu0
  %v229 = vadd.f32 0.0, %v228
  %230 = vmatmul.bf16.gmra.mxu0 %v83
  %v231 = vpop.f32.mrf.mxu0
  %v232 = vadd.f32 0.0, %v231
  %v233 = vpop.f32.mrf.mxu0
  %v234 = vadd.f32 0.0, %v233
  %235 = vdwg.mxu0
  %236 = vmatpush.bf16.msra.mxu0 %v185
  %237 = vmatpush.bf16.msra.mxu0 %v184
  %238 = vmatpush.bf16.msra.mxu0 %v183
  %239 = vmatpush.bf16.msra.mxu0 %v182
  %240 = vmatpush.bf16.msra.mxu0 %v181
  %241 = vmatpush.bf16.msra.mxu0 %v180
  %242 = vmatpush.bf16.msra.mxu0 %v179
  %243 = vmatpush.bf16.msra.mxu0 %v178
  %244 = vmatmul.bf16.gmra.mxu0 %v81
  %v245 = vpop.f32.mrf.mxu0
  %v246 = vadd.f32 %v227, %v245
  %v247 = vpop.f32.mrf.mxu0
  %v248 = vadd.f32 %v229, %v247
  %249 = vmatmul.bf16.gmra.mxu0 %v84
  %v250 = vpop.f32.mrf.mxu0
  %v251 = vadd.f32 %v232, %v250
  %v252 = vpop.f32.mrf.mxu0
  %v253 = vadd.f32 %v234, %v252
  %254 = vdwg.mxu0
  %255 = vmatpush.bf16.msra.mxu0 0
  %256 = vmatpush.bf16.msra.mxu0 0
  %257 = vmatpush.bf16.msra.mxu0 0
  %258 = vmatpush.bf16.msra.mxu0 0
  %259 = vmatpush.bf16.msra.mxu0 %v189
  %260 = vmatpush.bf16.msra.mxu0 %v188
  %261 = vmatpush.bf16.msra.mxu0 %v187
  %262 = vmatpush.bf16.msra.mxu0 %v186
  %263 = vmatmul.bf16.gmra.mxu0 %v212
  %v264 = vpop.f32.mrf.mxu0
  %v265 = vadd.f32 %v246, %v264
  %v266 = vpop.f32.mrf.mxu0
  %v267 = vadd.f32 %v248, %v266
  %268 = vmatmul.bf16.gmra.mxu0 %v215
  %v269 = vpop.f32.mrf.mxu0
  %v270 = vadd.f32 %v251, %v269
  %v271 = vpop.f32.mrf.mxu0
  %v272 = vadd.f32 %v253, %v271
  %273 = vdwg.mxu0
  %v274 = vpack.c.bf16 %v265, %v265
  %v275 = vpack.c.bf16 %v267, %v267
  %v276 = vpack.c.bf16 %v270, %v270
  %v277 = vpack.c.bf16 %v272, %v272
  %vm278 = vcmask 519168
  %279 = vst.msk [vmem:[%s2] sm:$0xf] %vm278, %v274
  %280 = vst.msk [vmem:[%s2 + $0x4] sm:$0xf] %vm278, %v275
  %281 = vst.msk [vmem:[%s2 + $0x8] sm:$0xf] %vm278, %v276
  %282 = vst.msk [vmem:[%s2 + $0xc] sm:$0xf] %vm278, %v277
  // Predicated region
  $region10: #{mynet_forward.16} parent=0 // pred_check
    _
  $region11: #{mynet_forward.16} parent=0 // pred_check_branch
    %284 = sbr.rel (0) target = $region13
  $region12: #{mynet_forward.16} parent=0 // pred_region
    _
  $region13: #{mynet_forward.16} parent=0 // pred_fallthru
    _
  // Predicated region
  $region14: #{mynet_forward.16} parent=0 // pred_check
    _
  $region15: #{mynet_forward.16} parent=0 // pred_check_branch
    %286 = sbr.rel (0) target = $region17
  $region16: #{mynet_forward.16} parent=0 // pred_region
    _
  $region17: #{mynet_forward.16} parent=0 // pred_fallthru
    _

// kernel: mynet_forward.18
$region0: #{mynet_forward.18}
  #allocation0 [shape = 'u32[]', space=smem, size = 0x4, offset = 0x4, fixed_abs, tag = 'smem constant byte address 0x4 - core index']
  #allocation1 [shape = 'u32[72,128]{1,0:T(1,128)}', space=vmem, size = 0x9000, scoped, tag = 'internal scratch']
  %s0 = inlined_call_operand.vmem [shape: bf16[8,64], index: 0, kind: input, shape index: {}]
  %s1 = inlined_call_operand.vmem [shape: bf16[64,64], index: 1, kind: input, shape index: {}]
  %s2 = inlined_call_operand.vmem [shape: bf16[8,64], index: 2, kind: output, shape index: {}]
  %s3 = sld [smem:[#allocation0]]
  $region18: #{mynet_forward.18} parent=0
    _
  %s5 = ssub.s32 1, %s3
  %s6 = scalar_select 0, %s5, %s3
  // Predicated region
  $region2: #{mynet_forward.18} parent=0 // pred_check
    _
  $region3: #{mynet_forward.18} parent=0 // pred_check_branch
    %8 = sbr.rel (0) target = $region5
  $region4: #{mynet_forward.18} parent=0 // pred_region
    _
  $region5: #{mynet_forward.18} parent=0 // pred_fallthru
    _
  // Predicated region
  $region6: #{mynet_forward.18} parent=0 // pred_check
    _
  $region7: #{mynet_forward.18} parent=0 // pred_check_branch
    %10 = sbr.rel (0) target = $region9
  $region8: #{mynet_forward.18} parent=0 // pred_region
    _
  $region9: #{mynet_forward.18} parent=0 // pred_fallthru
    _
  %v12 = vld [vmem:[%s0] sm:$0xf]
  %v13 = vld [vmem:[%s1] sm:$0xf]
  %v14 = vld [vmem:[%s1 + $0x4] sm:$0xf]
  %v15 = vld [vmem:[%s1 + $0x8] sm:$0xf]
  %v16 = vld [vmem:[%s1 + $0xc] sm:$0xf]
  %v17 = vld [vmem:[%s1 + $0x10] sm:$0xf]
  %v18 = vld [vmem:[%s1 + $0x14] sm:$0xf]
  %v19 = vld [vmem:[%s1 + $0x18] sm:$0xf]
  %v20 = vld [vmem:[%s1 + $0x1c] sm:$0xf]
  %v29 = vunpack.c.l.b16 %v13
  %v30 = vunpack.c.l.b16 %v14
  %v31 = vunpack.c.l.b16 %v15
  %v32 = vunpack.c.l.b16 %v16
  %v33 = vunpack.c.l.b16 %v17
  %v34 = vunpack.c.l.b16 %v18
  %v35 = vunpack.c.l.b16 %v19
  %v36 = vunpack.c.l.b16 %v20
  %v37 = vpack.c.b16 %v30, %v29
  %v38 = vpack.c.b16 %v32, %v31
  %v39 = vpack.c.b16 %v34, %v33
  %v40 = vpack.c.b16 %v36, %v35
  %vm45 = vcmask 523264
  %v47 = vsel %vm45, %v12, 0
  %49 = vmatpush.bf16.msra.mxu0 0
  %50 = vmatpush.bf16.msra.mxu0 0
  %51 = vmatpush.bf16.msra.mxu0 0
  %52 = vmatpush.bf16.msra.mxu0 0
  %53 = vmatpush.bf16.msra.mxu0 %v40
  %54 = vmatpush.bf16.msra.mxu0 %v39
  %55 = vmatpush.bf16.msra.mxu0 %v38
  %56 = vmatpush.bf16.msra.mxu0 %v37
  %57 = vmatmul.bf16.gmra.mxu0 %v47
  %v58 = vpop.f32.mrf.mxu0
  %v59 = vadd.f32 0.0, %v58
  %v60 = vpop.f32.mrf.mxu0
  %61 = vdwg.mxu0
  %v62 = vpack.c.bf16 %v59, %v59
  %vm63 = vcmask 519168
  %64 = vst.msk [vmem:[%s2] sm:$0xf] %vm63, %v62
  // Predicated region
  $region10: #{mynet_forward.18} parent=0 // pred_check
    _
  $region11: #{mynet_forward.18} parent=0 // pred_check_branch
    %66 = sbr.rel (0) target = $region13
  $region12: #{mynet_forward.18} parent=0 // pred_region
    _
  $region13: #{mynet_forward.18} parent=0 // pred_fallthru
    _
  // Predicated region
  $region14: #{mynet_forward.18} parent=0 // pred_check
    _
  $region15: #{mynet_forward.18} parent=0 // pred_check_branch
    %68 = sbr.rel (0) target = $region17
  $region16: #{mynet_forward.18} parent=0 // pred_region
    _
  $region17: #{mynet_forward.18} parent=0 // pred_fallthru
    _

// kernel: mynet_forward.17
$region0: #{mynet_forward.17}
  #allocation0 [shape = 'u32[]', space=smem, size = 0x4, offset = 0x4, fixed_abs, tag = 'smem constant byte address 0x4 - core index']
  #allocation1 [shape = 'u32[72,128]{1,0:T(1,128)}', space=vmem, size = 0x9000, scoped, tag = 'internal scratch']
  %s0 = inlined_call_operand.vmem [shape: bf16[8,512], index: 0, kind: input, shape index: {}]
  %s1 = inlined_call_operand.vmem [shape: bf16[512,64], index: 1, kind: input, shape index: {}]
  %s2 = inlined_call_operand.vmem [shape: bf16[8,64], index: 2, kind: output, shape index: {}]
  %s3 = sld [smem:[#allocation0]]
  $region18: #{mynet_forward.17} parent=0
    _
  %s5 = ssub.s32 1, %s3
  %s6 = scalar_select 0, %s5, %s3
  // Predicated region
  $region2: #{mynet_forward.17} parent=0 // pred_check
    _
  $region3: #{mynet_forward.17} parent=0 // pred_check_branch
    %8 = sbr.rel (0) target = $region5
  $region4: #{mynet_forward.17} parent=0 // pred_region
    _
  $region5: #{mynet_forward.17} parent=0 // pred_fallthru
    _
  // Predicated region
  $region6: #{mynet_forward.17} parent=0 // pred_check
    _
  $region7: #{mynet_forward.17} parent=0 // pred_check_branch
    %10 = sbr.rel (0) target = $region9
  $region8: #{mynet_forward.17} parent=0 // pred_region
    _
  $region9: #{mynet_forward.17} parent=0 // pred_fallthru
    _
  %v11 = vld [vmem:[%s0] sm:$0xff]
  %v12 = vld [vmem:[%s0 + $0x8] sm:$0xff]
  %v13 = vld [vmem:[%s1] sm:$0xf]
  %v14 = vld [vmem:[%s1 + $0x4] sm:$0xf]
  %v15 = vld [vmem:[%s1 + $0x8] sm:$0xf]
  %v16 = vld [vmem:[%s1 + $0xc] sm:$0xf]
  %v17 = vld [vmem:[%s1 + $0x10] sm:$0xf]
  %v18 = vld [vmem:[%s1 + $0x14] sm:$0xf]
  %v19 = vld [vmem:[%s1 + $0x18] sm:$0xf]
  %v20 = vld [vmem:[%s1 + $0x1c] sm:$0xf]
  %v21 = vld [vmem:[%s1 + $0x20] sm:$0xf]
  %v22 = vld [vmem:[%s1 + $0x24] sm:$0xf]
  %v23 = vld [vmem:[%s1 + $0x28] sm:$0xf]
  %v24 = vld [vmem:[%s1 + $0x2c] sm:$0xf]
  %v25 = vld [vmem:[%s1 + $0x30] sm:$0xf]
  %v26 = vld [vmem:[%s1 + $0x34] sm:$0xf]
  %v27 = vld [vmem:[%s1 + $0x38] sm:$0xf]
  %v28 = vld [vmem:[%s1 + $0x3c] sm:$0xf]
  %v29 = vld [vmem:[%s1 + $0x40] sm:$0xf]
  %v30 = vld [vmem:[%s1 + $0x44] sm:$0xf]
  %v31 = vld [vmem:[%s1 + $0x48] sm:$0xf]
  %v32 = vld [vmem:[%s1 + $0x4c] sm:$0xf]
  %v33 = vld [vmem:[%s1 + $0x50] sm:$0xf]
  %v34 = vld [vmem:[%s1 + $0x54] sm:$0xf]
  %v35 = vld [vmem:[%s1 + $0x58] sm:$0xf]
  %v36 = vld [vmem:[%s1 + $0x5c] sm:$0xf]
  %v37 = vld [vmem:[%s1 + $0x60] sm:$0xf]
  %v38 = vld [vmem:[%s1 + $0x64] sm:$0xf]
  %v39 = vld [vmem:[%s1 + $0x68] sm:$0xf]
  %v40 = vld [vmem:[%s1 + $0x6c] sm:$0xf]
  %v41 = vld [vmem:[%s1 + $0x70] sm:$0xf]
  %v42 = vld [vmem:[%s1 + $0x74] sm:$0xf]
  %v43 = vld [vmem:[%s1 + $0x78] sm:$0xf]
  %v44 = vld [vmem:[%s1 + $0x7c] sm:$0xf]
  %v45 = vld [vmem:[%s1 + $0x80] sm:$0xf]
  %v46 = vld [vmem:[%s1 + $0x84] sm:$0xf]
  %v47 = vld [vmem:[%s1 + $0x88] sm:$0xf]
  %v48 = vld [vmem:[%s1 + $0x8c] sm:$0xf]
  %v49 = vld [vmem:[%s1 + $0x90] sm:$0xf]
  %v50 = vld [vmem:[%s1 + $0x94] sm:$0xf]
  %v51 = vld [vmem:[%s1 + $0x98] sm:$0xf]
  %v52 = vld [vmem:[%s1 + $0x9c] sm:$0xf]
  %v53 = vld [vmem:[%s1 + $0xa0] sm:$0xf]
  %v54 = vld [vmem:[%s1 + $0xa4] sm:$0xf]
  %v55 = vld [vmem:[%s1 + $0xa8] sm:$0xf]
  %v56 = vld [vmem:[%s1 + $0xac] sm:$0xf]
  %v57 = vld [vmem:[%s1 + $0xb0] sm:$0xf]
  %v58 = vld [vmem:[%s1 + $0xb4] sm:$0xf]
  %v59 = vld [vmem:[%s1 + $0xb8] sm:$0xf]
  %v60 = vld [vmem:[%s1 + $0xbc] sm:$0xf]
  %v61 = vld [vmem:[%s1 + $0xc0] sm:$0xf]
  %v62 = vld [vmem:[%s1 + $0xc4] sm:$0xf]
  %v63 = vld [vmem:[%s1 + $0xc8] sm:$0xf]
  %v64 = vld [vmem:[%s1 + $0xcc] sm:$0xf]
  %v65 = vld [vmem:[%s1 + $0xd0] sm:$0xf]
  %v66 = vld [vmem:[%s1 + $0xd4] sm:$0xf]
  %v67 = vld [vmem:[%s1 + $0xd8] sm:$0xf]
  %v68 = vld [vmem:[%s1 + $0xdc] sm:$0xf]
  %v69 = vld [vmem:[%s1 + $0xe0] sm:$0xf]
  %v70 = vld [vmem:[%s1 + $0xe4] sm:$0xf]
  %v71 = vld [vmem:[%s1 + $0xe8] sm:$0xf]
  %v72 = vld [vmem:[%s1 + $0xec] sm:$0xf]
  %v73 = vld [vmem:[%s1 + $0xf0] sm:$0xf]
  %v74 = vld [vmem:[%s1 + $0xf4] sm:$0xf]
  %v75 = vld [vmem:[%s1 + $0xf8] sm:$0xf]
  %v76 = vld [vmem:[%s1 + $0xfc] sm:$0xf]
  %v79 = vunpack.c.l.b16 %v11
  %v80 = vunpack.c.h.b16 %v11
  %v81 = vunpack.c.l.b16 %v12
  %v82 = vunpack.c.h.b16 %v12
  %v83 = vpack.c.b16 %v79, %v79
  %v84 = vpack.c.b16 %v80, %v80
  %v85 = vpack.c.b16 %v81, %v81
  %v86 = vpack.c.b16 %v82, %v82
  %v155 = vunpack.c.l.b16 %v13
  %v156 = vunpack.c.l.b16 %v14
  %v157 = vunpack.c.l.b16 %v15
  %v158 = vunpack.c.l.b16 %v16
  %v159 = vunpack.c.l.b16 %v17
  %v160 = vunpack.c.l.b16 %v18
  %v161 = vunpack.c.l.b16 %v19
  %v162 = vunpack.c.l.b16 %v20
  %v163 = vunpack.c.l.b16 %v21
  %v164 = vunpack.c.l.b16 %v22
  %v165 = vunpack.c.l.b16 %v23
  %v166 = vunpack.c.l.b16 %v24
  %v167 = vunpack.c.l.b16 %v25
  %v168 = vunpack.c.l.b16 %v26
  %v169 = vunpack.c.l.b16 %v27
  %v170 = vunpack.c.l.b16 %v28
  %v171 = vunpack.c.l.b16 %v29
  %v172 = vunpack.c.l.b16 %v30
  %v173 = vunpack.c.l.b16 %v31
  %v174 = vunpack.c.l.b16 %v32
  %v175 = vunpack.c.l.b16 %v33
  %v176 = vunpack.c.l.b16 %v34
  %v177 = vunpack.c.l.b16 %v35
  %v178 = vunpack.c.l.b16 %v36
  %v179 = vunpack.c.l.b16 %v37
  %v180 = vunpack.c.l.b16 %v38
  %v181 = vunpack.c.l.b16 %v39
  %v182 = vunpack.c.l.b16 %v40
  %v183 = vunpack.c.l.b16 %v41
  %v184 = vunpack.c.l.b16 %v42
  %v185 = vunpack.c.l.b16 %v43
  %v186 = vunpack.c.l.b16 %v44
  %v187 = vunpack.c.l.b16 %v45
  %v188 = vunpack.c.l.b16 %v46
  %v189 = vunpack.c.l.b16 %v47
  %v190 = vunpack.c.l.b16 %v48
  %v191 = vunpack.c.l.b16 %v49
  %v192 = vunpack.c.l.b16 %v50
  %v193 = vunpack.c.l.b16 %v51
  %v194 = vunpack.c.l.b16 %v52
  %v195 = vunpack.c.l.b16 %v53
  %v196 = vunpack.c.l.b16 %v54
  %v197 = vunpack.c.l.b16 %v55
  %v198 = vunpack.c.l.b16 %v56
  %v199 = vunpack.c.l.b16 %v57
  %v200 = vunpack.c.l.b16 %v58
  %v201 = vunpack.c.l.b16 %v59
  %v202 = vunpack.c.l.b16 %v60
  %v203 = vunpack.c.l.b16 %v61
  %v204 = vunpack.c.l.b16 %v62
  %v205 = vunpack.c.l.b16 %v63
  %v206 = vunpack.c.l.b16 %v64
  %v207 = vunpack.c.l.b16 %v65
  %v208 = vunpack.c.l.b16 %v66
  %v209 = vunpack.c.l.b16 %v67
  %v210 = vunpack.c.l.b16 %v68
  %v211 = vunpack.c.l.b16 %v69
  %v212 = vunpack.c.l.b16 %v70
  %v213 = vunpack.c.l.b16 %v71
  %v214 = vunpack.c.l.b16 %v72
  %v215 = vunpack.c.l.b16 %v73
  %v216 = vunpack.c.l.b16 %v74
  %v217 = vunpack.c.l.b16 %v75
  %v218 = vunpack.c.l.b16 %v76
  %v219 = vpack.c.b16 %v156, %v155
  %v220 = vpack.c.b16 %v158, %v157
  %v221 = vpack.c.b16 %v160, %v159
  %v222 = vpack.c.b16 %v162, %v161
  %v223 = vpack.c.b16 %v164, %v163
  %v224 = vpack.c.b16 %v166, %v165
  %v225 = vpack.c.b16 %v168, %v167
  %v226 = vpack.c.b16 %v170, %v169
  %v227 = vpack.c.b16 %v172, %v171
  %v228 = vpack.c.b16 %v174, %v173
  %v229 = vpack.c.b16 %v176, %v175
  %v230 = vpack.c.b16 %v178, %v177
  %v231 = vpack.c.b16 %v180, %v179
  %v232 = vpack.c.b16 %v182, %v181
  %v233 = vpack.c.b16 %v184, %v183
  %v234 = vpack.c.b16 %v186, %v185
  %v235 = vpack.c.b16 %v188, %v187
  %v236 = vpack.c.b16 %v190, %v189
  %v237 = vpack.c.b16 %v192, %v191
  %v238 = vpack.c.b16 %v194, %v193
  %v239 = vpack.c.b16 %v196, %v195
  %v240 = vpack.c.b16 %v198, %v197
  %v241 = vpack.c.b16 %v200, %v199
  %v242 = vpack.c.b16 %v202, %v201
  %v243 = vpack.c.b16 %v204, %v203
  %v244 = vpack.c.b16 %v206, %v205
  %v245 = vpack.c.b16 %v208, %v207
  %v246 = vpack.c.b16 %v210, %v209
  %v247 = vpack.c.b16 %v212, %v211
  %v248 = vpack.c.b16 %v214, %v213
  %v249 = vpack.c.b16 %v216, %v215
  %v250 = vpack.c.b16 %v218, %v217
  %283 = vmatpush.bf16.msra.mxu0 %v226
  %284 = vmatpush.bf16.msra.mxu0 %v225
  %285 = vmatpush.bf16.msra.mxu0 %v224
  %286 = vmatpush.bf16.msra.mxu0 %v223
  %287 = vmatpush.bf16.msra.mxu0 %v222
  %288 = vmatpush.bf16.msra.mxu0 %v221
  %289 = vmatpush.bf16.msra.mxu0 %v220
  %290 = vmatpush.bf16.msra.mxu0 %v219
  %291 = vmatmul.bf16.gmra.mxu0 %v83
  %v292 = vpop.f32.mrf.mxu0
  %v293 = vadd.f32 0.0, %v292
  %v294 = vpop.f32.mrf.mxu0
  %295 = vdwg.mxu0
  %296 = vmatpush.bf16.msra.mxu0 %v234
  %297 = vmatpush.bf16.msra.mxu0 %v233
  %298 = vmatpush.bf16.msra.mxu0 %v232
  %299 = vmatpush.bf16.msra.mxu0 %v231
  %300 = vmatpush.bf16.msra.mxu0 %v230
  %301 = vmatpush.bf16.msra.mxu0 %v229
  %302 = vmatpush.bf16.msra.mxu0 %v228
  %303 = vmatpush.bf16.msra.mxu0 %v227
  %304 = vmatmul.bf16.gmra.mxu0 %v84
  %v305 = vpop.f32.mrf.mxu0
  %v306 = vadd.f32 %v293, %v305
  %v307 = vpop.f32.mrf.mxu0
  %308 = vdwg.mxu0
  %309 = vmatpush.bf16.msra.mxu0 %v242
  %310 = vmatpush.bf16.msra.mxu0 %v241
  %311 = vmatpush.bf16.msra.mxu0 %v240
  %312 = vmatpush.bf16.msra.mxu0 %v239
  %313 = vmatpush.bf16.msra.mxu0 %v238
  %314 = vmatpush.bf16.msra.mxu0 %v237
  %315 = vmatpush.bf16.msra.mxu0 %v236
  %316 = vmatpush.bf16.msra.mxu0 %v235
  %317 = vmatmul.bf16.gmra.mxu0 %v85
  %v318 = vpop.f32.mrf.mxu0
  %v319 = vadd.f32 %v306, %v318
  %v320 = vpop.f32.mrf.mxu0
  %321 = vdwg.mxu0
  %322 = vmatpush.bf16.msra.mxu0 %v250
  %323 = vmatpush.bf16.msra.mxu0 %v249
  %324 = vmatpush.bf16.msra.mxu0 %v248
  %325 = vmatpush.bf16.msra.mxu0 %v247
  %326 = vmatpush.bf16.msra.mxu0 %v246
  %327 = vmatpush.bf16.msra.mxu0 %v245
  %328 = vmatpush.bf16.msra.mxu0 %v244
  %329 = vmatpush.bf16.msra.mxu0 %v243
  %330 = vmatmul.bf16.gmra.mxu0 %v86
  %v331 = vpop.f32.mrf.mxu0
  %v332 = vadd.f32 %v319, %v331
  %v333 = vpop.f32.mrf.mxu0
  %334 = vdwg.mxu0
  %v335 = vpack.c.bf16 %v332, %v332
  %vm336 = vcmask 519168
  %337 = vst.msk [vmem:[%s2] sm:$0xf] %vm336, %v335
  // Predicated region
  $region10: #{mynet_forward.17} parent=0 // pred_check
    _
  $region11: #{mynet_forward.17} parent=0 // pred_check_branch
    %339 = sbr.rel (0) target = $region13
  $region12: #{mynet_forward.17} parent=0 // pred_region
    _
  $region13: #{mynet_forward.17} parent=0 // pred_fallthru
    _
  // Predicated region
  $region14: #{mynet_forward.17} parent=0 // pred_check
    _
  $region15: #{mynet_forward.17} parent=0 // pred_check_branch
    %341 = sbr.rel (0) target = $region17
  $region16: #{mynet_forward.17} parent=0 // pred_region
    _
  $region17: #{mynet_forward.17} parent=0 // pred_fallthru
    _

// kernel: mynet_forward.21
$region0: #{mynet_forward.21}
  #allocation0 [shape = 'u32[]', space=smem, size = 0x4, offset = 0x4, fixed_abs, tag = 'smem constant byte address 0x4 - core index']
  #allocation1 [shape = 'u32[72,128]{1,0:T(1,128)}', space=vmem, size = 0x9000, scoped, tag = 'internal scratch']
  %s0 = inlined_call_operand.vmem [shape: bf16[32,64], index: 0, kind: input, shape index: {}]
  %s1 = inlined_call_operand.vmem [shape: bf16[64,64], index: 1, kind: input, shape index: {}]
  %s2 = inlined_call_operand.vmem [shape: bf16[32,64], index: 2, kind: output, shape index: {}]
  %s3 = sld [smem:[#allocation0]]
  $region18: #{mynet_forward.21} parent=0
    _
  %s5 = ssub.s32 1, %s3
  %s6 = scalar_select 0, %s5, %s3
  // Predicated region
  $region2: #{mynet_forward.21} parent=0 // pred_check
    _
  $region3: #{mynet_forward.21} parent=0 // pred_check_branch
    %8 = sbr.rel (0) target = $region5
  $region4: #{mynet_forward.21} parent=0 // pred_region
    _
  $region5: #{mynet_forward.21} parent=0 // pred_fallthru
    _
  // Predicated region
  $region6: #{mynet_forward.21} parent=0 // pred_check
    _
  $region7: #{mynet_forward.21} parent=0 // pred_check_branch
    %10 = sbr.rel (0) target = $region9
  $region8: #{mynet_forward.21} parent=0 // pred_region
    _
  $region9: #{mynet_forward.21} parent=0 // pred_fallthru
    _
  %v12 = vld [vmem:[%s0] sm:$0xf]
  %v13 = vld [vmem:[%s0 + $0x4] sm:$0xf]
  %v14 = vld [vmem:[%s0 + $0x8] sm:$0xf]
  %v15 = vld [vmem:[%s0 + $0xc] sm:$0xf]
  %v16 = vld [vmem:[%s1] sm:$0xf]
  %v17 = vld [vmem:[%s1 + $0x4] sm:$0xf]
  %v18 = vld [vmem:[%s1 + $0x8] sm:$0xf]
  %v19 = vld [vmem:[%s1 + $0xc] sm:$0xf]
  %v20 = vld [vmem:[%s1 + $0x10] sm:$0xf]
  %v21 = vld [vmem:[%s1 + $0x14] sm:$0xf]
  %v22 = vld [vmem:[%s1 + $0x18] sm:$0xf]
  %v23 = vld [vmem:[%s1 + $0x1c] sm:$0xf]
  %v28 = vunpack.c.l.b16 %v12
  %v29 = vunpack.c.l.b16 %v13
  %v30 = vunpack.c.l.b16 %v14
  %v31 = vunpack.c.l.b16 %v15
  %v32 = vpack.c.b16 %v29, %v28
  %v33 = vpack.c.b16 %v31, %v30
  %v42 = vunpack.c.l.b16 %v16
  %v43 = vunpack.c.l.b16 %v17
  %v44 = vunpack.c.l.b16 %v18
  %v45 = vunpack.c.l.b16 %v19
  %v46 = vunpack.c.l.b16 %v20
  %v47 = vunpack.c.l.b16 %v21
  %v48 = vunpack.c.l.b16 %v22
  %v49 = vunpack.c.l.b16 %v23
  %v50 = vpack.c.b16 %v43, %v42
  %v51 = vpack.c.b16 %v45, %v44
  %v52 = vpack.c.b16 %v47, %v46
  %v53 = vpack.c.b16 %v49, %v48
  %vm58 = vcmask 523264
  %v60 = vsel %vm58, %v32, 0
  %v63 = vsel %vm58, %v33, 0
  %65 = vmatpush.bf16.msra.mxu0 0
  %66 = vmatpush.bf16.msra.mxu0 0
  %67 = vmatpush.bf16.msra.mxu0 0
  %68 = vmatpush.bf16.msra.mxu0 0
  %69 = vmatpush.bf16.msra.mxu0 %v53
  %70 = vmatpush.bf16.msra.mxu0 %v52
  %71 = vmatpush.bf16.msra.mxu0 %v51
  %72 = vmatpush.bf16.msra.mxu0 %v50
  %73 = vmatmul.bf16.gmra.mxu0 %v60
  %v74 = vpop.f32.mrf.mxu0
  %v75 = vadd.f32 0.0, %v74
  %v76 = vpop.f32.mrf.mxu0
  %v77 = vadd.f32 0.0, %v76
  %78 = vmatmul.bf16.gmra.mxu0 %v63
  %v79 = vpop.f32.mrf.mxu0
  %v80 = vadd.f32 0.0, %v79
  %v81 = vpop.f32.mrf.mxu0
  %v82 = vadd.f32 0.0, %v81
  %83 = vdwg.mxu0
  %v84 = vpack.c.bf16 %v75, %v75
  %v85 = vpack.c.bf16 %v77, %v77
  %v86 = vpack.c.bf16 %v80, %v80
  %v87 = vpack.c.bf16 %v82, %v82
  %vm88 = vcmask 519168
  %89 = vst.msk [vmem:[%s2] sm:$0xf] %vm88, %v84
  %90 = vst.msk [vmem:[%s2 + $0x4] sm:$0xf] %vm88, %v85
  %91 = vst.msk [vmem:[%s2 + $0x8] sm:$0xf] %vm88, %v86
  %92 = vst.msk [vmem:[%s2 + $0xc] sm:$0xf] %vm88, %v87
  // Predicated region
  $region10: #{mynet_forward.21} parent=0 // pred_check
    _
  $region11: #{mynet_forward.21} parent=0 // pred_check_branch
    %94 = sbr.rel (0) target = $region13
  $region12: #{mynet_forward.21} parent=0 // pred_region
    _
  $region13: #{mynet_forward.21} parent=0 // pred_fallthru
    _
  // Predicated region
  $region14: #{mynet_forward.21} parent=0 // pred_check
    _
  $region15: #{mynet_forward.21} parent=0 // pred_check_branch
    %96 = sbr.rel (0) target = $region17
  $region16: #{mynet_forward.21} parent=0 // pred_region
    _
  $region17: #{mynet_forward.21} parent=0 // pred_fallthru
    _

// kernel: mynet_forward.20
$region0: #{mynet_forward.20}
  #allocation0 [shape = 'u32[]', space=smem, size = 0x4, offset = 0x4, fixed_abs, tag = 'smem constant byte address 0x4 - core index']
  #allocation1 [shape = 'u32[72,128]{1,0:T(1,128)}', space=vmem, size = 0x9000, scoped, tag = 'internal scratch']
  %s0 = inlined_call_operand.vmem [shape: bf16[2,16,16], index: 0, kind: input, shape index: {}]
  %s1 = inlined_call_operand.vmem [shape: bf16[2,16,64], index: 1, kind: input, shape index: {}]
  %s2 = inlined_call_operand.vmem [shape: bf16[2,16,16], index: 2, kind: input, shape index: {}]
  %s3 = inlined_call_operand.vmem [shape: bf16[2,16,64], index: 3, kind: input, shape index: {}]
  %s4 = inlined_call_operand.vmem [shape: bf16[2,16,64], index: 4, kind: output, shape index: {}]
  %s5 = sld [smem:[#allocation0]]
  $region49: #{mynet_forward.20} parent=0
    _
  %s7 = ssub.s32 1, %s5
  %s8 = scalar_select 0, %s7, %s5
  loop: start=0, step=1, limit=4
  $region2: #{mynet_forward.20} parent=0 // loop_pre_header
    _
  $region3: #{mynet_forward.20} parent=0 // loop_header
    %s10 = sphi 0, %s14
    %p11 = scmp.ge.s32.totalorder %s10, 4
    %s20 = sphi 0, %s22
    %s23 = sphi 0, %s20
    %s24 = sphi 0, %s23
    %s40 = sphi 0, %s24
    %s46 = sphi 0, %s48
    %s49 = sphi 0, %s46
    %s50 = sphi 0, %s49
    %s66 = sphi 0, %s50
    %s72 = sphi 0, %s74
    %s75 = sphi 0, %s72
    %s76 = sphi 0, %s75
    %s92 = sphi 0, %s76
    %s98 = sphi 0, %s100
    %s101 = sphi 0, %s98
    %s102 = sphi 0, %s101
    %s118 = sphi 0, %s102
    %s124 = sphi 0, %s126
    %s127 = sphi 0, %s124
    %s128 = sphi 0, %s127
    %s144 = sphi 0, %s128
  $region4: #{mynet_forward.20} parent=0 // loop_header_branch
    %13 = sbr.rel (%p11) target = $region8
  $region5: #{mynet_forward.20} parent=0 // loop_body
    %s15 = ssub.s32 %s10, 1
    %s16 = ssub.s32 %s10, 2
    %s17 = sadd.s32 %s10, 1
    %s18 = ssub.s32 %s10, %s17
    %p19 = scmp.eq.s32.totalorder %s18, 0
    %s21 = sadd.s32 %s20, 1
    %s22 = scalar_select %p19, %s20, %s21
    %p25 = pneg %p19
    %p26 = scmp.eq.s32.totalorder %s10, 1
    %p27 = por %p25, %p26
    %p28 = scmp.ne.s32.totalorder %s20, %s23
    %p29 = scmp.eq.s32.totalorder %s10, 0
    %p30 = por %p28, %p29
    %p31 = scmp.ne.s32.totalorder %s20, %s23
    %p32 = scmp.eq.s32.totalorder %s15, 1
    %p33 = por %p31, %p32
    %p34 = scmp.ne.s32.totalorder %s23, %s24
    %p35 = scmp.eq.s32.totalorder %s15, 0
    %p36 = por %p34, %p35
    %p37 = scmp.ne.s32.totalorder %s23, %s24
    %p38 = scmp.eq.s32.totalorder %s16, 1
    %p39 = por %p37, %p38
    %p41 = scmp.ne.s32.totalorder %s24, %s40
    %p42 = scmp.eq.s32.totalorder %s16, 0
    %p43 = por %p41, %p42
    %s44 = ssub.s32 %s10, %s17
    %p45 = scmp.eq.s32.totalorder %s44, 0
    %s47 = sadd.s32 %s46, 1
    %s48 = scalar_select %p45, %s46, %s47
    %p51 = pneg %p45
    %p52 = scmp.eq.s32.totalorder %s10, 1
    %p53 = por %p51, %p52
    %p54 = scmp.ne.s32.totalorder %s46, %s49
    %p55 = scmp.eq.s32.totalorder %s10, 0
    %p56 = por %p54, %p55
    %p57 = scmp.ne.s32.totalorder %s46, %s49
    %p58 = scmp.eq.s32.totalorder %s15, 1
    %p59 = por %p57, %p58
    %p60 = scmp.ne.s32.totalorder %s49, %s50
    %p61 = scmp.eq.s32.totalorder %s15, 0
    %p62 = por %p60, %p61
    %p63 = scmp.ne.s32.totalorder %s49, %s50
    %p64 = scmp.eq.s32.totalorder %s16, 1
    %p65 = por %p63, %p64
    %p67 = scmp.ne.s32.totalorder %s50, %s66
    %p68 = scmp.eq.s32.totalorder %s16, 0
    %p69 = por %p67, %p68
    %s70 = ssub.s32 %s10, %s17
    %p71 = scmp.eq.s32.totalorder %s70, 0
    %s73 = sadd.s32 %s72, 1
    %s74 = scalar_select %p71, %s72, %s73
    %p77 = pneg %p71
    %p78 = scmp.eq.s32.totalorder %s10, 1
    %p79 = por %p77, %p78
    %p80 = scmp.ne.s32.totalorder %s72, %s75
    %p81 = scmp.eq.s32.totalorder %s10, 0
    %p82 = por %p80, %p81
    %p83 = scmp.ne.s32.totalorder %s72, %s75
    %p84 = scmp.eq.s32.totalorder %s15, 1
    %p85 = por %p83, %p84
    %p86 = scmp.ne.s32.totalorder %s75, %s76
    %p87 = scmp.eq.s32.totalorder %s15, 0
    %p88 = por %p86, %p87
    %p89 = scmp.ne.s32.totalorder %s75, %s76
    %p90 = scmp.eq.s32.totalorder %s16, 1
    %p91 = por %p89, %p90
    %p93 = scmp.ne.s32.totalorder %s76, %s92
    %p94 = scmp.eq.s32.totalorder %s16, 0
    %p95 = por %p93, %p94
    %s96 = ssub.s32 %s10, %s17
    %p97 = scmp.eq.s32.totalorder %s96, 0
    %s99 = sadd.s32 %s98, 1
    %s100 = scalar_select %p97, %s98, %s99
    %p103 = pneg %p97
    %p104 = scmp.eq.s32.totalorder %s10, 1
    %p105 = por %p103, %p104
    %p106 = scmp.ne.s32.totalorder %s98, %s101
    %p107 = scmp.eq.s32.totalorder %s10, 0
    %p108 = por %p106, %p107
    %p109 = scmp.ne.s32.totalorder %s98, %s101
    %p110 = scmp.eq.s32.totalorder %s15, 1
    %p111 = por %p109, %p110
    %p112 = scmp.ne.s32.totalorder %s101, %s102
    %p113 = scmp.eq.s32.totalorder %s15, 0
    %p114 = por %p112, %p113
    %p115 = scmp.ne.s32.totalorder %s101, %s102
    %p116 = scmp.eq.s32.totalorder %s16, 1
    %p117 = por %p115, %p116
    %p119 = scmp.ne.s32.totalorder %s102, %s118
    %p120 = scmp.eq.s32.totalorder %s16, 0
    %p121 = por %p119, %p120
    %s122 = ssub.s32 %s10, %s17
    %p123 = scmp.eq.s32.totalorder %s122, 0
    %s125 = sadd.s32 %s124, 1
    %s126 = scalar_select %p123, %s124, %s125
    %p129 = pneg %p123
    %p130 = scmp.eq.s32.totalorder %s10, 1
    %p131 = por %p129, %p130
    %p132 = scmp.ne.s32.totalorder %s124, %s127
    %p133 = scmp.eq.s32.totalorder %s10, 0
    %p134 = por %p132, %p133
    %p135 = scmp.ne.s32.totalorder %s124, %s127
    %p136 = scmp.eq.s32.totalorder %s15, 1
    %p137 = por %p135, %p136
    %p138 = scmp.ne.s32.totalorder %s127, %s128
    %p139 = scmp.eq.s32.totalorder %s15, 0
    %p140 = por %p138, %p139
    %p141 = scmp.ne.s32.totalorder %s127, %s128
    %p142 = scmp.eq.s32.totalorder %s16, 1
    %p143 = por %p141, %p142
    %p145 = scmp.ne.s32.totalorder %s128, %s144
    %p146 = scmp.eq.s32.totalorder %s16, 0
    %p147 = por %p145, %p146
    %p148 = scmp.le.s32.totalorder 1, %s10
    %p149 = scmp.lt.s32.totalorder %s10, 3
    %p150 = pnand %p148, %p149
    %p151 = pneg %p150
    // Predicated region
    $region9: #{mynet_forward.20} parent=5 // pred_check
      _
    $region10: #{mynet_forward.20} parent=5 // pred_check_branch
      %153 = sbr.rel (%p150) target = $region12
    $region11: #{mynet_forward.20} parent=5 // pred_region
      %s154 = ssub.s32 %s10, 1
    $region12: #{mynet_forward.20} parent=5 // pred_fallthru
      _
    %p155 = scmp.lt.s32.totalorder %s10, 2
    // Predicated region
    $region13: #{mynet_forward.20} parent=5 // pred_check
      %p156 = pneg %p155
    $region14: #{mynet_forward.20} parent=5 // pred_check_branch
      %158 = sbr.rel (%p156) target = $region16
    $region15: #{mynet_forward.20} parent=5 // pred_region
      // Predicated region
      $region17: #{mynet_forward.20} parent=15 // pred_check
        %p159 = pneg %p30
      $region18: #{mynet_forward.20} parent=15 // pred_check_branch
        %161 = sbr.rel (%p159) target = $region20
      $region19: #{mynet_forward.20} parent=15 // pred_region
        %p162 = scmp.lt.s32.totalorder %s10, 1
        %s163 = scalar_select %p162, %s10, 1
        %s164 = smul.addr %s163, 2
        %s165 = smul.addr %s164, 4
        %s166 = scalar_lea.vmem %s0, %s165
      $region20: #{mynet_forward.20} parent=15 // pred_fallthru
        _
      // Predicated region
      $region21: #{mynet_forward.20} parent=15 // pred_check
        %p167 = pneg %p56
      $region22: #{mynet_forward.20} parent=15 // pred_check_branch
        %169 = sbr.rel (%p167) target = $region24
      $region23: #{mynet_forward.20} parent=15 // pred_region
        %p170 = scmp.lt.s32.totalorder %s10, 1
        %s171 = scalar_select %p170, %s10, 1
        %s172 = smul.addr %s171, 2
        %s173 = smul.addr %s172, 4
        %s174 = scalar_lea.vmem %s1, %s173
      $region24: #{mynet_forward.20} parent=15 // pred_fallthru
        _
      // Predicated region
      $region25: #{mynet_forward.20} parent=15 // pred_check
        %p175 = pneg %p82
      $region26: #{mynet_forward.20} parent=15 // pred_check_branch
        %177 = sbr.rel (%p175) target = $region28
      $region27: #{mynet_forward.20} parent=15 // pred_region
        %p178 = scmp.lt.s32.totalorder %s10, 1
        %s179 = scalar_select %p178, %s10, 1
        %s180 = smul.addr %s179, 2
        %s181 = smul.addr %s180, 4
        %s182 = scalar_lea.vmem %s2, %s181
      $region28: #{mynet_forward.20} parent=15 // pred_fallthru
        _
      // Predicated region
      $region29: #{mynet_forward.20} parent=15 // pred_check
        %p183 = pneg %p108
      $region30: #{mynet_forward.20} parent=15 // pred_check_branch
        %185 = sbr.rel (%p183) target = $region32
      $region31: #{mynet_forward.20} parent=15 // pred_region
        %p186 = scmp.lt.s32.totalorder %s10, 1
        %s187 = scalar_select %p186, %s10, 1
        %s188 = smul.addr %s187, 2
        %s189 = smul.addr %s188, 4
        %s190 = scalar_lea.vmem %s3, %s189
      $region32: #{mynet_forward.20} parent=15 // pred_fallthru
        _
    $region16: #{mynet_forward.20} parent=5 // pred_fallthru
      _
    %p191 = scmp.le.s32.totalorder 1, %s10
    %p192 = scmp.lt.s32.totalorder %s10, 3
    %p193 = pnand %p191, %p192
    %p194 = pneg %p193
    // Predicated region
    $region33: #{mynet_forward.20} parent=5 // pred_check
      _
    $region34: #{mynet_forward.20} parent=5 // pred_check_branch
      %196 = sbr.rel (%p193) target = $region36
    $region35: #{mynet_forward.20} parent=5 // pred_region
      %s197 = ssub.s32 %s10, 1
      %p198 = scmp.lt.s32.totalorder %s15, 1
      %s199 = scalar_select %p198, %s15, 1
      %s200 = smul.addr %s199, 2
      %s201 = smul.addr %s200, 4
      %s202 = scalar_lea.vmem %s0, %s201
      %p203 = pneg %p36
      %p204 = pneg %p33
      %p205 = scmp.lt.s32.totalorder %s15, 1
      %s206 = scalar_select %p205, %s15, 1
      %s207 = smul.addr %s206, 2
      %s208 = smul.addr %s207, 4
      %s209 = scalar_lea.vmem %s1, %s208
      %p210 = pneg %p62
      %p211 = pneg %p59
      %p212 = scmp.lt.s32.totalorder %s15, 1
      %s213 = scalar_select %p212, %s15, 1
      %s214 = smul.addr %s213, 2
      %s215 = smul.addr %s214, 4
      %s216 = scalar_lea.vmem %s2, %s215
      %p217 = pneg %p88
      %p218 = pneg %p85
      %p219 = scmp.lt.s32.totalorder %s15, 1
      %s220 = scalar_select %p219, %s15, 1
      %s221 = smul.addr %s220, 2
      %s222 = smul.addr %s221, 4
      %s223 = scalar_lea.vmem %s3, %s222
      %p224 = pneg %p114
      %p225 = pneg %p111
      %p226 = pneg %p140
      %p227 = pneg %p137
      %p228 = scmp.lt.s32.totalorder %s15, 1
      %s229 = scalar_select %p228, %s15, 1
      %s230 = smul.addr %s229, 2
      %s231 = smul.addr %s230, 4
      %s232 = scalar_lea.vmem %s4, %s231
      %p233 = scmp.lt.s32.totalorder %s15, 1
      %s234 = scalar_select %p233, %s15, 1
      %s235 = smul.addr %s234, 2
      %s236 = smul.addr %s235, 4
      %s237 = scalar_lea.vmem %s0, %s236
      %p238 = scmp.lt.s32.totalorder %s15, 1
      %s239 = scalar_select %p238, %s15, 1
      %s240 = smul.addr %s239, 2
      %s241 = smul.addr %s240, 4
      %s242 = scalar_lea.vmem %s1, %s241
      %p243 = scmp.lt.s32.totalorder %s15, 1
      %s244 = scalar_select %p243, %s15, 1
      %s245 = smul.addr %s244, 2
      %s246 = smul.addr %s245, 4
      %s247 = scalar_lea.vmem %s2, %s246
      %p248 = scmp.lt.s32.totalorder %s15, 1
      %s249 = scalar_select %p248, %s15, 1
      %s250 = smul.addr %s249, 2
      %s251 = smul.addr %s250, 4
      %s252 = scalar_lea.vmem %s3, %s251
      %p253 = scmp.lt.s32.totalorder %s15, 1
      %s254 = scalar_select %p253, %s15, 1
      %s255 = smul.addr %s254, 2
      %s256 = smul.addr %s255, 4
      %s257 = scalar_lea.vmem %s4, %s256
      %v259 = vld [vmem:[%s237] sm:$0xf]
      %v260 = vld [vmem:[%s237 + $0x4] sm:$0xf]
      %v261 = vld [vmem:[%s242] sm:$0xf]
      %v262 = vld [vmem:[%s242 + $0x4] sm:$0xf]
      %v263 = vld [vmem:[%s247] sm:$0xf]
      %v264 = vld [vmem:[%s247 + $0x4] sm:$0xf]
      %v265 = vld [vmem:[%s252] sm:$0xf]
      %v266 = vld [vmem:[%s252 + $0x4] sm:$0xf]
      %v269 = vunpack.c.l.b16 %v263
      %v270 = vunpack.c.l.b16 %v264
      %v271 = vpack.c.b16 %v270, %v269
      %v274 = vunpack.c.l.b16 %v265
      %v275 = vunpack.c.l.b16 %v266
      %v276 = vpack.c.b16 %v275, %v274
      %vm278 = vcmask 130048
      %v280 = vsel %vm278, %v271, 0
      %282 = vmatpush.bf16.msra.mxu0 0
      %283 = vmatpush.bf16.msra.mxu0 0
      %284 = vmatpush.bf16.msra.mxu0 0
      %285 = vmatpush.bf16.msra.mxu0 0
      %286 = vmatpush.bf16.msra.mxu0 0
      %287 = vmatpush.bf16.msra.mxu0 0
      %288 = vmatpush.bf16.msra.mxu0 0
      %289 = vmatpush.bf16.msra.mxu0 %v276
      %290 = vmatmul.bf16.gmra.mxu0 %v280
      %v291 = vpop.f32.mrf.mxu0
      %v292 = vadd.f32 0.0, %v291
      %v293 = vpop.f32.mrf.mxu0
      %v294 = vadd.f32 0.0, %v293
      %295 = vdwg.mxu0
      %v298 = vunpack.c.l.b16 %v259
      %v299 = vunpack.c.l.b16 %v260
      %v300 = vpack.c.b16 %v299, %v298
      %v303 = vunpack.c.l.b16 %v261
      %v304 = vunpack.c.l.b16 %v262
      %v305 = vpack.c.b16 %v304, %v303
      %v308 = vsel %vm278, %v300, 0
      %310 = vmatpush.bf16.msra.mxu0 0
      %311 = vmatpush.bf16.msra.mxu0 0
      %312 = vmatpush.bf16.msra.mxu0 0
      %313 = vmatpush.bf16.msra.mxu0 0
      %314 = vmatpush.bf16.msra.mxu0 0
      %315 = vmatpush.bf16.msra.mxu0 0
      %316 = vmatpush.bf16.msra.mxu0 0
      %317 = vmatpush.bf16.msra.mxu0 %v305
      %318 = vmatmul.bf16.gmra.mxu0 %v308
      %v319 = vpop.f32.mrf.mxu0
      %v320 = vadd.f32 %v292, %v319
      %v321 = vpop.f32.mrf.mxu0
      %v322 = vadd.f32 %v294, %v321
      %323 = vdwg.mxu0
      %v324 = vpack.c.bf16 %v320, %v320
      %v325 = vpack.c.bf16 %v322, %v322
      %vm326 = vcmask 519168
      %327 = vst.msk [vmem:[%s257] sm:$0xf] %vm326, %v324
      %328 = vst.msk [vmem:[%s257 + $0x4] sm:$0xf] %vm326, %v325
      %p329 = scmp.lt.s32.totalorder %s15, 1
      %s330 = scalar_select %p329, %s15, 1
      %s331 = smul.addr %s330, 2
      %s332 = smul.addr %s331, 4
      %s333 = scalar_lea.vmem %s4, %s332
      // Predicated region
      $region37: #{mynet_forward.20} parent=35 // pred_check
        %p334 = pneg %p137
      $region38: #{mynet_forward.20} parent=35 // pred_check_branch
        %336 = sbr.rel (%p334) target = $region40
      $region39: #{mynet_forward.20} parent=35 // pred_region
        _
      $region40: #{mynet_forward.20} parent=35 // pred_fallthru
        _
    $region36: #{mynet_forward.20} parent=5 // pred_fallthru
      _
    %p337 = scmp.le.s32.totalorder 2, %s10
    // Predicated region
    $region41: #{mynet_forward.20} parent=5 // pred_check
      %p338 = pneg %p337
    $region42: #{mynet_forward.20} parent=5 // pred_check_branch
      %340 = sbr.rel (%p338) target = $region44
    $region43: #{mynet_forward.20} parent=5 // pred_region
      %s341 = ssub.s32 %s10, 2
      // Predicated region
      $region45: #{mynet_forward.20} parent=43 // pred_check
        %p342 = pneg %p143
      $region46: #{mynet_forward.20} parent=43 // pred_check_branch
        %344 = sbr.rel (%p342) target = $region48
      $region47: #{mynet_forward.20} parent=43 // pred_region
        %p345 = scmp.lt.s32.totalorder %s16, 1
        %s346 = scalar_select %p345, %s16, 1
        %s347 = smul.addr %s346, 2
        %s348 = smul.addr %s347, 4
        %s349 = scalar_lea.vmem %s4, %s348
      $region48: #{mynet_forward.20} parent=43 // pred_fallthru
        _
    $region44: #{mynet_forward.20} parent=5 // pred_fallthru
      _
  $region6: #{mynet_forward.20} parent=0 // loop_footer
    %s14 = sadd.s32 1, %s10
  $region7: #{mynet_forward.20} parent=0 // loop_footer_branch
    %9 = sbr.rel target = $region3
  $region8: #{mynet_forward.20} parent=0 // loop_exit
    _

// kernel: mynet_forward.19
$region0: #{mynet_forward.19}
  #allocation0 [shape = 'u32[]', space=smem, size = 0x4, offset = 0x4, fixed_abs, tag = 'smem constant byte address 0x4 - core index']
  #allocation1 [shape = 'u32[72,128]{1,0:T(1,128)}', space=vmem, size = 0x9000, scoped, tag = 'internal scratch']
  %s0 = inlined_call_operand.vmem [shape: bf16[32,576], index: 0, kind: input, shape index: {}]
  %s1 = inlined_call_operand.vmem [shape: bf16[576,8], index: 1, kind: input, shape index: {}]
  %s2 = inlined_call_operand.vmem [shape: bf16[32,576], index: 2, kind: input, shape index: {}]
  %s3 = inlined_call_operand.vmem [shape: bf16[576,8], index: 3, kind: input, shape index: {}]
  %s4 = inlined_call_operand.vmem [shape: f32[32,8], index: 4, kind: output, shape index: {}]
  %s5 = sld [smem:[#allocation0]]
  $region26: #{mynet_forward.19} parent=0
    _
  %s7 = ssub.s32 1, %s5
  %s8 = scalar_select 0, %s7, %s5
  // Predicated region
  $region2: #{mynet_forward.19} parent=0 // pred_check
    _
  $region3: #{mynet_forward.19} parent=0 // pred_check_branch
    %10 = sbr.rel (0) target = $region5
  $region4: #{mynet_forward.19} parent=0 // pred_region
    _
  $region5: #{mynet_forward.19} parent=0 // pred_fallthru
    _
  // Predicated region
  $region6: #{mynet_forward.19} parent=0 // pred_check
    _
  $region7: #{mynet_forward.19} parent=0 // pred_check_branch
    %12 = sbr.rel (0) target = $region9
  $region8: #{mynet_forward.19} parent=0 // pred_region
    _
  $region9: #{mynet_forward.19} parent=0 // pred_fallthru
    _
  // Predicated region
  $region10: #{mynet_forward.19} parent=0 // pred_check
    _
  $region11: #{mynet_forward.19} parent=0 // pred_check_branch
    %14 = sbr.rel (0) target = $region13
  $region12: #{mynet_forward.19} parent=0 // pred_region
    _
  $region13: #{mynet_forward.19} parent=0 // pred_fallthru
    _
  // Predicated region
  $region14: #{mynet_forward.19} parent=0 // pred_check
    _
  $region15: #{mynet_forward.19} parent=0 // pred_check_branch
    %16 = sbr.rel (0) target = $region17
  $region16: #{mynet_forward.19} parent=0 // pred_region
    _
  $region17: #{mynet_forward.19} parent=0 // pred_fallthru
    _
  %v18 = vld [vmem:[%s0] sm:$0xff]
  %v19 = vld [vmem:[%s0 + $0x8] sm:$0xff]
  %v20 = vld [vmem:[%s0 + $0x10] sm:$0xf]
  %v21 = vld [vmem:[%s0 + $0x14] sm:$0xff]
  %v22 = vld [vmem:[%s0 + $0x1c] sm:$0xff]
  %v23 = vld [vmem:[%s0 + $0x24] sm:$0xf]
  %v24 = vld [vmem:[%s0 + $0x28] sm:$0xff]
  %v25 = vld [vmem:[%s0 + $0x30] sm:$0xff]
  %v26 = vld [vmem:[%s0 + $0x38] sm:$0xf]
  %v27 = vld [vmem:[%s0 + $0x3c] sm:$0xff]
  %v28 = vld [vmem:[%s0 + $0x44] sm:$0xff]
  %v29 = vld [vmem:[%s0 + $0x4c] sm:$0xf]
  %v30 = vld [vmem:[%s1] sm:$0xf]
  %v31 = vld [vmem:[%s1 + $0x4] sm:$0xf]
  %v32 = vld [vmem:[%s1 + $0x8] sm:$0xf]
  %v33 = vld [vmem:[%s1 + $0xc] sm:$0xf]
  %v34 = vld [vmem:[%s1 + $0x10] sm:$0xf]
  %v35 = vld [vmem:[%s1 + $0x14] sm:$0xf]
  %v36 = vld [vmem:[%s1 + $0x18] sm:$0xf]
  %v37 = vld [vmem:[%s1 + $0x1c] sm:$0xf]
  %v38 = vld [vmem:[%s1 + $0x20] sm:$0xf]
  %v39 = vld [vmem:[%s1 + $0x24] sm:$0xf]
  %v40 = vld [vmem:[%s1 + $0x28] sm:$0xf]
  %v41 = vld [vmem:[%s1 + $0x2c] sm:$0xf]
  %v42 = vld [vmem:[%s1 + $0x30] sm:$0xf]
  %v43 = vld [vmem:[%s1 + $0x34] sm:$0xf]
  %v44 = vld [vmem:[%s1 + $0x38] sm:$0xf]
  %v45 = vld [vmem:[%s1 + $0x3c] sm:$0xf]
  %v46 = vld [vmem:[%s1 + $0x40] sm:$0xf]
  %v47 = vld [vmem:[%s1 + $0x44] sm:$0xf]
  %v48 = vld [vmem:[%s1 + $0x48] sm:$0xf]
  %v49 = vld [vmem:[%s1 + $0x4c] sm:$0xf]
  %v50 = vld [vmem:[%s1 + $0x50] sm:$0xf]
  %v51 = vld [vmem:[%s1 + $0x54] sm:$0xf]
  %v52 = vld [vmem:[%s1 + $0x58] sm:$0xf]
  %v53 = vld [vmem:[%s1 + $0x5c] sm:$0xf]
  %v54 = vld [vmem:[%s1 + $0x60] sm:$0xf]
  %v55 = vld [vmem:[%s1 + $0x64] sm:$0xf]
  %v56 = vld [vmem:[%s1 + $0x68] sm:$0xf]
  %v57 = vld [vmem:[%s1 + $0x6c] sm:$0xf]
  %v58 = vld [vmem:[%s1 + $0x70] sm:$0xf]
  %v59 = vld [vmem:[%s1 + $0x74] sm:$0xf]
  %v60 = vld [vmem:[%s1 + $0x78] sm:$0xf]
  %v61 = vld [vmem:[%s1 + $0x7c] sm:$0xf]
  %v62 = vld [vmem:[%s1 + $0x80] sm:$0xf]
  %v63 = vld [vmem:[%s1 + $0x84] sm:$0xf]
  %v64 = vld [vmem:[%s1 + $0x88] sm:$0xf]
  %v65 = vld [vmem:[%s1 + $0x8c] sm:$0xf]
  %v66 = vld [vmem:[%s1 + $0x90] sm:$0xf]
  %v67 = vld [vmem:[%s1 + $0x94] sm:$0xf]
  %v68 = vld [vmem:[%s1 + $0x98] sm:$0xf]
  %v69 = vld [vmem:[%s1 + $0x9c] sm:$0xf]
  %v70 = vld [vmem:[%s1 + $0xa0] sm:$0xf]
  %v71 = vld [vmem:[%s1 + $0xa4] sm:$0xf]
  %v72 = vld [vmem:[%s1 + $0xa8] sm:$0xf]
  %v73 = vld [vmem:[%s1 + $0xac] sm:$0xf]
  %v74 = vld [vmem:[%s1 + $0xb0] sm:$0xf]
  %v75 = vld [vmem:[%s1 + $0xb4] sm:$0xf]
  %v76 = vld [vmem:[%s1 + $0xb8] sm:$0xf]
  %v77 = vld [vmem:[%s1 + $0xbc] sm:$0xf]
  %v78 = vld [vmem:[%s1 + $0xc0] sm:$0xf]
  %v79 = vld [vmem:[%s1 + $0xc4] sm:$0xf]
  %v80 = vld [vmem:[%s1 + $0xc8] sm:$0xf]
  %v81 = vld [vmem:[%s1 + $0xcc] sm:$0xf]
  %v82 = vld [vmem:[%s1 + $0xd0] sm:$0xf]
  %v83 = vld [vmem:[%s1 + $0xd4] sm:$0xf]
  %v84 = vld [vmem:[%s1 + $0xd8] sm:$0xf]
  %v85 = vld [vmem:[%s1 + $0xdc] sm:$0xf]
  %v86 = vld [vmem:[%s1 + $0xe0] sm:$0xf]
  %v87 = vld [vmem:[%s1 + $0xe4] sm:$0xf]
  %v88 = vld [vmem:[%s1 + $0xe8] sm:$0xf]
  %v89 = vld [vmem:[%s1 + $0xec] sm:$0xf]
  %v90 = vld [vmem:[%s1 + $0xf0] sm:$0xf]
  %v91 = vld [vmem:[%s1 + $0xf4] sm:$0xf]
  %v92 = vld [vmem:[%s1 + $0xf8] sm:$0xf]
  %v93 = vld [vmem:[%s1 + $0xfc] sm:$0xf]
  %v94 = vld [vmem:[%s1 + $0x100] sm:$0xf]
  %v95 = vld [vmem:[%s1 + $0x104] sm:$0xf]
  %v96 = vld [vmem:[%s1 + $0x108] sm:$0xf]
  %v97 = vld [vmem:[%s1 + $0x10c] sm:$0xf]
  %v98 = vld [vmem:[%s1 + $0x110] sm:$0xf]
  %v99 = vld [vmem:[%s1 + $0x114] sm:$0xf]
  %v100 = vld [vmem:[%s1 + $0x118] sm:$0xf]
  %v101 = vld [vmem:[%s1 + $0x11c] sm:$0xf]
  %v102 = vld [vmem:[%s2] sm:$0xff]
  %v103 = vld [vmem:[%s2 + $0x8] sm:$0xff]
  %v104 = vld [vmem:[%s2 + $0x10] sm:$0xf]
  %v105 = vld [vmem:[%s2 + $0x14] sm:$0xff]
  %v106 = vld [vmem:[%s2 + $0x1c] sm:$0xff]
  %v107 = vld [vmem:[%s2 + $0x24] sm:$0xf]
  %v108 = vld [vmem:[%s2 + $0x28] sm:$0xff]
  %v109 = vld [vmem:[%s2 + $0x30] sm:$0xff]
  %v110 = vld [vmem:[%s2 + $0x38] sm:$0xf]
  %v111 = vld [vmem:[%s2 + $0x3c] sm:$0xff]
  %v112 = vld [vmem:[%s2 + $0x44] sm:$0xff]
  %v113 = vld [vmem:[%s2 + $0x4c] sm:$0xf]
  %v114 = vld [vmem:[%s3] sm:$0xf]
  %v115 = vld [vmem:[%s3 + $0x4] sm:$0xf]
  %v116 = vld [vmem:[%s3 + $0x8] sm:$0xf]
  %v117 = vld [vmem:[%s3 + $0xc] sm:$0xf]
  %v118 = vld [vmem:[%s3 + $0x10] sm:$0xf]
  %v119 = vld [vmem:[%s3 + $0x14] sm:$0xf]
  %v120 = vld [vmem:[%s3 + $0x18] sm:$0xf]
  %v121 = vld [vmem:[%s3 + $0x1c] sm:$0xf]
  %v122 = vld [vmem:[%s3 + $0x20] sm:$0xf]
  %v123 = vld [vmem:[%s3 + $0x24] sm:$0xf]
  %v124 = vld [vmem:[%s3 + $0x28] sm:$0xf]
  %v125 = vld [vmem:[%s3 + $0x2c] sm:$0xf]
  %v126 = vld [vmem:[%s3 + $0x30] sm:$0xf]
  %v127 = vld [vmem:[%s3 + $0x34] sm:$0xf]
  %v128 = vld [vmem:[%s3 + $0x38] sm:$0xf]
  %v129 = vld [vmem:[%s3 + $0x3c] sm:$0xf]
  %v130 = vld [vmem:[%s3 + $0x40] sm:$0xf]
  %v131 = vld [vmem:[%s3 + $0x44] sm:$0xf]
  %v132 = vld [vmem:[%s3 + $0x48] sm:$0xf]
  %v133 = vld [vmem:[%s3 + $0x4c] sm:$0xf]
  %v134 = vld [vmem:[%s3 + $0x50] sm:$0xf]
  %v135 = vld [vmem:[%s3 + $0x54] sm:$0xf]
  %v136 = vld [vmem:[%s3 + $0x58] sm:$0xf]
  %v137 = vld [vmem:[%s3 + $0x5c] sm:$0xf]
  %v138 = vld [vmem:[%s3 + $0x60] sm:$0xf]
  %v139 = vld [vmem:[%s3 + $0x64] sm:$0xf]
  %v140 = vld [vmem:[%s3 + $0x68] sm:$0xf]
  %v141 = vld [vmem:[%s3 + $0x6c] sm:$0xf]
  %v142 = vld [vmem:[%s3 + $0x70] sm:$0xf]
  %v143 = vld [vmem:[%s3 + $0x74] sm:$0xf]
  %v144 = vld [vmem:[%s3 + $0x78] sm:$0xf]
  %v145 = vld [vmem:[%s3 + $0x7c] sm:$0xf]
  %v146 = vld [vmem:[%s3 + $0x80] sm:$0xf]
  %v147 = vld [vmem:[%s3 + $0x84] sm:$0xf]
  %v148 = vld [vmem:[%s3 + $0x88] sm:$0xf]
  %v149 = vld [vmem:[%s3 + $0x8c] sm:$0xf]
  %v150 = vld [vmem:[%s3 + $0x90] sm:$0xf]
  %v151 = vld [vmem:[%s3 + $0x94] sm:$0xf]
  %v152 = vld [vmem:[%s3 + $0x98] sm:$0xf]
  %v153 = vld [vmem:[%s3 + $0x9c] sm:$0xf]
  %v154 = vld [vmem:[%s3 + $0xa0] sm:$0xf]
  %v155 = vld [vmem:[%s3 + $0xa4] sm:$0xf]
  %v156 = vld [vmem:[%s3 + $0xa8] sm:$0xf]
  %v157 = vld [vmem:[%s3 + $0xac] sm:$0xf]
  %v158 = vld [vmem:[%s3 + $0xb0] sm:$0xf]
  %v159 = vld [vmem:[%s3 + $0xb4] sm:$0xf]
  %v160 = vld [vmem:[%s3 + $0xb8] sm:$0xf]
  %v161 = vld [vmem:[%s3 + $0xbc] sm:$0xf]
  %v162 = vld [vmem:[%s3 + $0xc0] sm:$0xf]
  %v163 = vld [vmem:[%s3 + $0xc4] sm:$0xf]
  %v164 = vld [vmem:[%s3 + $0xc8] sm:$0xf]
  %v165 = vld [vmem:[%s3 + $0xcc] sm:$0xf]
  %v166 = vld [vmem:[%s3 + $0xd0] sm:$0xf]
  %v167 = vld [vmem:[%s3 + $0xd4] sm:$0xf]
  %v168 = vld [vmem:[%s3 + $0xd8] sm:$0xf]
  %v169 = vld [vmem:[%s3 + $0xdc] sm:$0xf]
  %v170 = vld [vmem:[%s3 + $0xe0] sm:$0xf]
  %v171 = vld [vmem:[%s3 + $0xe4] sm:$0xf]
  %v172 = vld [vmem:[%s3 + $0xe8] sm:$0xf]
  %v173 = vld [vmem:[%s3 + $0xec] sm:$0xf]
  %v174 = vld [vmem:[%s3 + $0xf0] sm:$0xf]
  %v175 = vld [vmem:[%s3 + $0xf4] sm:$0xf]
  %v176 = vld [vmem:[%s3 + $0xf8] sm:$0xf]
  %v177 = vld [vmem:[%s3 + $0xfc] sm:$0xf]
  %v178 = vld [vmem:[%s3 + $0x100] sm:$0xf]
  %v179 = vld [vmem:[%s3 + $0x104] sm:$0xf]
  %v180 = vld [vmem:[%s3 + $0x108] sm:$0xf]
  %v181 = vld [vmem:[%s3 + $0x10c] sm:$0xf]
  %v182 = vld [vmem:[%s3 + $0x110] sm:$0xf]
  %v183 = vld [vmem:[%s3 + $0x114] sm:$0xf]
  %v184 = vld [vmem:[%s3 + $0x118] sm:$0xf]
  %v185 = vld [vmem:[%s3 + $0x11c] sm:$0xf]
  %v198 = vunpack.c.l.b16 %v102
  %v199 = vunpack.c.h.b16 %v102
  %v200 = vunpack.c.l.b16 %v103
  %v201 = vunpack.c.h.b16 %v103
  %v202 = vunpack.c.l.b16 %v104
  %v203 = vunpack.c.l.b16 %v105
  %v204 = vunpack.c.h.b16 %v105
  %v205 = vunpack.c.l.b16 %v106
  %v206 = vunpack.c.h.b16 %v106
  %v207 = vunpack.c.l.b16 %v107
  %v208 = vunpack.c.l.b16 %v108
  %v209 = vunpack.c.h.b16 %v108
  %v210 = vunpack.c.l.b16 %v109
  %v211 = vunpack.c.h.b16 %v109
  %v212 = vunpack.c.l.b16 %v110
  %v213 = vunpack.c.l.b16 %v111
  %v214 = vunpack.c.h.b16 %v111
  %v215 = vunpack.c.l.b16 %v112
  %v216 = vunpack.c.h.b16 %v112
  %v217 = vunpack.c.l.b16 %v113
  %v218 = vpack.c.b16 %v203, %v198
  %v219 = vpack.c.b16 %v204, %v199
  %v220 = vpack.c.b16 %v205, %v200
  %v221 = vpack.c.b16 %v206, %v201
  %v222 = vpack.c.b16 %v207, %v202
  %v223 = vpack.c.b16 %v213, %v208
  %v224 = vpack.c.b16 %v214, %v209
  %v225 = vpack.c.b16 %v215, %v210
  %v226 = vpack.c.b16 %v216, %v211
  %v227 = vpack.c.b16 %v217, %v212
  %v308 = vunpack.c.l.b16 %v114
  %v309 = vunpack.c.l.b16 %v115
  %v310 = vunpack.c.l.b16 %v116
  %v311 = vunpack.c.l.b16 %v117
  %v312 = vunpack.c.l.b16 %v118
  %v313 = vunpack.c.l.b16 %v119
  %v314 = vunpack.c.l.b16 %v120
  %v315 = vunpack.c.l.b16 %v121
  %v316 = vunpack.c.l.b16 %v122
  %v317 = vunpack.c.l.b16 %v123
  %v318 = vunpack.c.l.b16 %v124
  %v319 = vunpack.c.l.b16 %v125
  %v320 = vunpack.c.l.b16 %v126
  %v321 = vunpack.c.l.b16 %v127
  %v322 = vunpack.c.l.b16 %v128
  %v323 = vunpack.c.l.b16 %v129
  %v324 = vunpack.c.l.b16 %v130
  %v325 = vunpack.c.l.b16 %v131
  %v326 = vunpack.c.l.b16 %v132
  %v327 = vunpack.c.l.b16 %v133
  %v328 = vunpack.c.l.b16 %v134
  %v329 = vunpack.c.l.b16 %v135
  %v330 = vunpack.c.l.b16 %v136
  %v331 = vunpack.c.l.b16 %v137
  %v332 = vunpack.c.l.b16 %v138
  %v333 = vunpack.c.l.b16 %v139
  %v334 = vunpack.c.l.b16 %v140
  %v335 = vunpack.c.l.b16 %v141
  %v336 = vunpack.c.l.b16 %v142
  %v337 = vunpack.c.l.b16 %v143
  %v338 = vunpack.c.l.b16 %v144
  %v339 = vunpack.c.l.b16 %v145
  %v340 = vunpack.c.l.b16 %v146
  %v341 = vunpack.c.l.b16 %v147
  %v342 = vunpack.c.l.b16 %v148
  %v343 = vunpack.c.l.b16 %v149
  %v344 = vunpack.c.l.b16 %v150
  %v345 = vunpack.c.l.b16 %v151
  %v346 = vunpack.c.l.b16 %v152
  %v347 = vunpack.c.l.b16 %v153
  %v348 = vunpack.c.l.b16 %v154
  %v349 = vunpack.c.l.b16 %v155
  %v350 = vunpack.c.l.b16 %v156
  %v351 = vunpack.c.l.b16 %v157
  %v352 = vunpack.c.l.b16 %v158
  %v353 = vunpack.c.l.b16 %v159
  %v354 = vunpack.c.l.b16 %v160
  %v355 = vunpack.c.l.b16 %v161
  %v356 = vunpack.c.l.b16 %v162
  %v357 = vunpack.c.l.b16 %v163
  %v358 = vunpack.c.l.b16 %v164
  %v359 = vunpack.c.l.b16 %v165
  %v360 = vunpack.c.l.b16 %v166
  %v361 = vunpack.c.l.b16 %v167
  %v362 = vunpack.c.l.b16 %v168
  %v363 = vunpack.c.l.b16 %v169
  %v364 = vunpack.c.l.b16 %v170
  %v365 = vunpack.c.l.b16 %v171
  %v366 = vunpack.c.l.b16 %v172
  %v367 = vunpack.c.l.b16 %v173
  %v368 = vunpack.c.l.b16 %v174
  %v369 = vunpack.c.l.b16 %v175
  %v370 = vunpack.c.l.b16 %v176
  %v371 = vunpack.c.l.b16 %v177
  %v372 = vunpack.c.l.b16 %v178
  %v373 = vunpack.c.l.b16 %v179
  %v374 = vunpack.c.l.b16 %v180
  %v375 = vunpack.c.l.b16 %v181
  %v376 = vunpack.c.l.b16 %v182
  %v377 = vunpack.c.l.b16 %v183
  %v378 = vunpack.c.l.b16 %v184
  %v379 = vunpack.c.l.b16 %v185
  %v380 = vpack.c.b16 %v309, %v308
  %v381 = vpack.c.b16 %v311, %v310
  %v382 = vpack.c.b16 %v313, %v312
  %v383 = vpack.c.b16 %v315, %v314
  %v384 = vpack.c.b16 %v317, %v316
  %v385 = vpack.c.b16 %v319, %v318
  %v386 = vpack.c.b16 %v321, %v320
  %v387 = vpack.c.b16 %v323, %v322
  %v388 = vpack.c.b16 %v325, %v324
  %v389 = vpack.c.b16 %v327, %v326
  %v390 = vpack.c.b16 %v329, %v328
  %v391 = vpack.c.b16 %v331, %v330
  %v392 = vpack.c.b16 %v333, %v332
  %v393 = vpack.c.b16 %v335, %v334
  %v394 = vpack.c.b16 %v337, %v336
  %v395 = vpack.c.b16 %v339, %v338
  %v396 = vpack.c.b16 %v341, %v340
  %v397 = vpack.c.b16 %v343, %v342
  %v398 = vpack.c.b16 %v345, %v344
  %v399 = vpack.c.b16 %v347, %v346
  %v400 = vpack.c.b16 %v349, %v348
  %v401 = vpack.c.b16 %v351, %v350
  %v402 = vpack.c.b16 %v353, %v352
  %v403 = vpack.c.b16 %v355, %v354
  %v404 = vpack.c.b16 %v357, %v356
  %v405 = vpack.c.b16 %v359, %v358
  %v406 = vpack.c.b16 %v361, %v360
  %v407 = vpack.c.b16 %v363, %v362
  %v408 = vpack.c.b16 %v365, %v364
  %v409 = vpack.c.b16 %v367, %v366
  %v410 = vpack.c.b16 %v369, %v368
  %v411 = vpack.c.b16 %v371, %v370
  %v412 = vpack.c.b16 %v373, %v372
  %v413 = vpack.c.b16 %v375, %v374
  %v414 = vpack.c.b16 %v377, %v376
  %v415 = vpack.c.b16 %v379, %v378
  %vm452 = vcmask 523264
  %v454 = vsel %vm452, %v222, 0
  %v457 = vsel %vm452, %v227, 0
  %459 = vmatpush.bf16.msra.mxu0 %v387
  %460 = vmatpush.bf16.msra.mxu0 %v386
  %461 = vmatpush.bf16.msra.mxu0 %v385
  %462 = vmatpush.bf16.msra.mxu0 %v384
  %463 = vmatpush.bf16.msra.mxu0 %v383
  %464 = vmatpush.bf16.msra.mxu0 %v382
  %465 = vmatpush.bf16.msra.mxu0 %v381
  %466 = vmatpush.bf16.msra.mxu0 %v380
  %467 = vmatmul.bf16.gmra.mxu0 %v218
  %v468 = vpop.f32.mrf.mxu0
  %v469 = vadd.f32 0.0, %v468
  %v470 = vpop.f32.mrf.mxu0
  %v471 = vadd.f32 0.0, %v470
  %472 = vmatmul.bf16.gmra.mxu0 %v223
  %v473 = vpop.f32.mrf.mxu0
  %v474 = vadd.f32 0.0, %v473
  %v475 = vpop.f32.mrf.mxu0
  %v476 = vadd.f32 0.0, %v475
  %477 = vdwg.mxu0
  %478 = vmatpush.bf16.msra.mxu0 %v395
  %479 = vmatpush.bf16.msra.mxu0 %v394
  %480 = vmatpush.bf16.msra.mxu0 %v393
  %481 = vmatpush.bf16.msra.mxu0 %v392
  %482 = vmatpush.bf16.msra.mxu0 %v391
  %483 = vmatpush.bf16.msra.mxu0 %v390
  %484 = vmatpush.bf16.msra.mxu0 %v389
  %485 = vmatpush.bf16.msra.mxu0 %v388
  %486 = vmatmul.bf16.gmra.mxu0 %v219
  %v487 = vpop.f32.mrf.mxu0
  %v488 = vadd.f32 %v469, %v487
  %v489 = vpop.f32.mrf.mxu0
  %v490 = vadd.f32 %v471, %v489
  %491 = vmatmul.bf16.gmra.mxu0 %v224
  %v492 = vpop.f32.mrf.mxu0
  %v493 = vadd.f32 %v474, %v492
  %v494 = vpop.f32.mrf.mxu0
  %v495 = vadd.f32 %v476, %v494
  %496 = vdwg.mxu0
  %497 = vmatpush.bf16.msra.mxu0 %v403
  %498 = vmatpush.bf16.msra.mxu0 %v402
  %499 = vmatpush.bf16.msra.mxu0 %v401
  %500 = vmatpush.bf16.msra.mxu0 %v400
  %501 = vmatpush.bf16.msra.mxu0 %v399
  %502 = vmatpush.bf16.msra.mxu0 %v398
  %503 = vmatpush.bf16.msra.mxu0 %v397
  %504 = vmatpush.bf16.msra.mxu0 %v396
  %505 = vmatmul.bf16.gmra.mxu0 %v220
  %v506 = vpop.f32.mrf.mxu0
  %v507 = vadd.f32 %v488, %v506
  %v508 = vpop.f32.mrf.mxu0
  %v509 = vadd.f32 %v490, %v508
  %510 = vmatmul.bf16.gmra.mxu0 %v225
  %v511 = vpop.f32.mrf.mxu0
  %v512 = vadd.f32 %v493, %v511
  %v513 = vpop.f32.mrf.mxu0
  %v514 = vadd.f32 %v495, %v513
  %515 = vdwg.mxu0
  %516 = vmatpush.bf16.msra.mxu0 %v411
  %517 = vmatpush.bf16.msra.mxu0 %v410
  %518 = vmatpush.bf16.msra.mxu0 %v409
  %519 = vmatpush.bf16.msra.mxu0 %v408
  %520 = vmatpush.bf16.msra.mxu0 %v407
  %521 = vmatpush.bf16.msra.mxu0 %v406
  %522 = vmatpush.bf16.msra.mxu0 %v405
  %523 = vmatpush.bf16.msra.mxu0 %v404
  %524 = vmatmul.bf16.gmra.mxu0 %v221
  %v525 = vpop.f32.mrf.mxu0
  %v526 = vadd.f32 %v507, %v525
  %v527 = vpop.f32.mrf.mxu0
  %v528 = vadd.f32 %v509, %v527
  %529 = vmatmul.bf16.gmra.mxu0 %v226
  %v530 = vpop.f32.mrf.mxu0
  %v531 = vadd.f32 %v512, %v530
  %v532 = vpop.f32.mrf.mxu0
  %v533 = vadd.f32 %v514, %v532
  %534 = vdwg.mxu0
  %535 = vmatpush.bf16.msra.mxu0 0
  %536 = vmatpush.bf16.msra.mxu0 0
  %537 = vmatpush.bf16.msra.mxu0 0
  %538 = vmatpush.bf16.msra.mxu0 0
  %539 = vmatpush.bf16.msra.mxu0 %v415
  %540 = vmatpush.bf16.msra.mxu0 %v414
  %541 = vmatpush.bf16.msra.mxu0 %v413
  %542 = vmatpush.bf16.msra.mxu0 %v412
  %543 = vmatmul.bf16.gmra.mxu0 %v454
  %v544 = vpop.f32.mrf.mxu0
  %v545 = vadd.f32 %v526, %v544
  %v546 = vpop.f32.mrf.mxu0
  %v547 = vadd.f32 %v528, %v546
  %548 = vmatmul.bf16.gmra.mxu0 %v457
  %v549 = vpop.f32.mrf.mxu0
  %v550 = vadd.f32 %v531, %v549
  %v551 = vpop.f32.mrf.mxu0
  %v552 = vadd.f32 %v533, %v551
  %553 = vdwg.mxu0
  %v566 = vunpack.c.l.b16 %v18
  %v567 = vunpack.c.h.b16 %v18
  %v568 = vunpack.c.l.b16 %v19
  %v569 = vunpack.c.h.b16 %v19
  %v570 = vunpack.c.l.b16 %v20
  %v571 = vunpack.c.l.b16 %v21
  %v572 = vunpack.c.h.b16 %v21
  %v573 = vunpack.c.l.b16 %v22
  %v574 = vunpack.c.h.b16 %v22
  %v575 = vunpack.c.l.b16 %v23
  %v576 = vunpack.c.l.b16 %v24
  %v577 = vunpack.c.h.b16 %v24
  %v578 = vunpack.c.l.b16 %v25
  %v579 = vunpack.c.h.b16 %v25
  %v580 = vunpack.c.l.b16 %v26
  %v581 = vunpack.c.l.b16 %v27
  %v582 = vunpack.c.h.b16 %v27
  %v583 = vunpack.c.l.b16 %v28
  %v584 = vunpack.c.h.b16 %v28
  %v585 = vunpack.c.l.b16 %v29
  %v586 = vpack.c.b16 %v571, %v566
  %v587 = vpack.c.b16 %v572, %v567
  %v588 = vpack.c.b16 %v573, %v568
  %v589 = vpack.c.b16 %v574, %v569
  %v590 = vpack.c.b16 %v575, %v570
  %v591 = vpack.c.b16 %v581, %v576
  %v592 = vpack.c.b16 %v582, %v577
  %v593 = vpack.c.b16 %v583, %v578
  %v594 = vpack.c.b16 %v584, %v579
  %v595 = vpack.c.b16 %v585, %v580
  %v676 = vunpack.c.l.b16 %v30
  %v677 = vunpack.c.l.b16 %v31
  %v678 = vunpack.c.l.b16 %v32
  %v679 = vunpack.c.l.b16 %v33
  %v680 = vunpack.c.l.b16 %v34
  %v681 = vunpack.c.l.b16 %v35
  %v682 = vunpack.c.l.b16 %v36
  %v683 = vunpack.c.l.b16 %v37
  %v684 = vunpack.c.l.b16 %v38
  %v685 = vunpack.c.l.b16 %v39
  %v686 = vunpack.c.l.b16 %v40
  %v687 = vunpack.c.l.b16 %v41
  %v688 = vunpack.c.l.b16 %v42
  %v689 = vunpack.c.l.b16 %v43
  %v690 = vunpack.c.l.b16 %v44
  %v691 = vunpack.c.l.b16 %v45
  %v692 = vunpack.c.l.b16 %v46
  %v693 = vunpack.c.l.b16 %v47
  %v694 = vunpack.c.l.b16 %v48
  %v695 = vunpack.c.l.b16 %v49
  %v696 = vunpack.c.l.b16 %v50
  %v697 = vunpack.c.l.b16 %v51
  %v698 = vunpack.c.l.b16 %v52
  %v699 = vunpack.c.l.b16 %v53
  %v700 = vunpack.c.l.b16 %v54
  %v701 = vunpack.c.l.b16 %v55
  %v702 = vunpack.c.l.b16 %v56
  %v703 = vunpack.c.l.b16 %v57
  %v704 = vunpack.c.l.b16 %v58
  %v705 = vunpack.c.l.b16 %v59
  %v706 = vunpack.c.l.b16 %v60
  %v707 = vunpack.c.l.b16 %v61
  %v708 = vunpack.c.l.b16 %v62
  %v709 = vunpack.c.l.b16 %v63
  %v710 = vunpack.c.l.b16 %v64
  %v711 = vunpack.c.l.b16 %v65
  %v712 = vunpack.c.l.b16 %v66
  %v713 = vunpack.c.l.b16 %v67
  %v714 = vunpack.c.l.b16 %v68
  %v715 = vunpack.c.l.b16 %v69
  %v716 = vunpack.c.l.b16 %v70
  %v717 = vunpack.c.l.b16 %v71
  %v718 = vunpack.c.l.b16 %v72
  %v719 = vunpack.c.l.b16 %v73
  %v720 = vunpack.c.l.b16 %v74
  %v721 = vunpack.c.l.b16 %v75
  %v722 = vunpack.c.l.b16 %v76
  %v723 = vunpack.c.l.b16 %v77
  %v724 = vunpack.c.l.b16 %v78
  %v725 = vunpack.c.l.b16 %v79
  %v726 = vunpack.c.l.b16 %v80
  %v727 = vunpack.c.l.b16 %v81
  %v728 = vunpack.c.l.b16 %v82
  %v729 = vunpack.c.l.b16 %v83
  %v730 = vunpack.c.l.b16 %v84
  %v731 = vunpack.c.l.b16 %v85
  %v732 = vunpack.c.l.b16 %v86
  %v733 = vunpack.c.l.b16 %v87
  %v734 = vunpack.c.l.b16 %v88
  %v735 = vunpack.c.l.b16 %v89
  %v736 = vunpack.c.l.b16 %v90
  %v737 = vunpack.c.l.b16 %v91
  %v738 = vunpack.c.l.b16 %v92
  %v739 = vunpack.c.l.b16 %v93
  %v740 = vunpack.c.l.b16 %v94
  %v741 = vunpack.c.l.b16 %v95
  %v742 = vunpack.c.l.b16 %v96
  %v743 = vunpack.c.l.b16 %v97
  %v744 = vunpack.c.l.b16 %v98
  %v745 = vunpack.c.l.b16 %v99
  %v746 = vunpack.c.l.b16 %v100
  %v747 = vunpack.c.l.b16 %v101
  %v748 = vpack.c.b16 %v677, %v676
  %v749 = vpack.c.b16 %v679, %v678
  %v750 = vpack.c.b16 %v681, %v680
  %v751 = vpack.c.b16 %v683, %v682
  %v752 = vpack.c.b16 %v685, %v684
  %v753 = vpack.c.b16 %v687, %v686
  %v754 = vpack.c.b16 %v689, %v688
  %v755 = vpack.c.b16 %v691, %v690
  %v756 = vpack.c.b16 %v693, %v692
  %v757 = vpack.c.b16 %v695, %v694
  %v758 = vpack.c.b16 %v697, %v696
  %v759 = vpack.c.b16 %v699, %v698
  %v760 = vpack.c.b16 %v701, %v700
  %v761 = vpack.c.b16 %v703, %v702
  %v762 = vpack.c.b16 %v705, %v704
  %v763 = vpack.c.b16 %v707, %v706
  %v764 = vpack.c.b16 %v709, %v708
  %v765 = vpack.c.b16 %v711, %v710
  %v766 = vpack.c.b16 %v713, %v712
  %v767 = vpack.c.b16 %v715, %v714
  %v768 = vpack.c.b16 %v717, %v716
  %v769 = vpack.c.b16 %v719, %v718
  %v770 = vpack.c.b16 %v721, %v720
  %v771 = vpack.c.b16 %v723, %v722
  %v772 = vpack.c.b16 %v725, %v724
  %v773 = vpack.c.b16 %v727, %v726
  %v774 = vpack.c.b16 %v729, %v728
  %v775 = vpack.c.b16 %v731, %v730
  %v776 = vpack.c.b16 %v733, %v732
  %v777 = vpack.c.b16 %v735, %v734
  %v778 = vpack.c.b16 %v737, %v736
  %v779 = vpack.c.b16 %v739, %v738
  %v780 = vpack.c.b16 %v741, %v740
  %v781 = vpack.c.b16 %v743, %v742
  %v782 = vpack.c.b16 %v745, %v744
  %v783 = vpack.c.b16 %v747, %v746
  %v821 = vsel %vm452, %v590, 0
  %v824 = vsel %vm452, %v595, 0
  %826 = vmatpush.bf16.msra.mxu0 %v755
  %827 = vmatpush.bf16.msra.mxu0 %v754
  %828 = vmatpush.bf16.msra.mxu0 %v753
  %829 = vmatpush.bf16.msra.mxu0 %v752
  %830 = vmatpush.bf16.msra.mxu0 %v751
  %831 = vmatpush.bf16.msra.mxu0 %v750
  %832 = vmatpush.bf16.msra.mxu0 %v749
  %833 = vmatpush.bf16.msra.mxu0 %v748
  %834 = vmatmul.bf16.gmra.mxu0 %v586
  %v835 = vpop.f32.mrf.mxu0
  %v836 = vadd.f32 %v545, %v835
  %v837 = vpop.f32.mrf.mxu0
  %v838 = vadd.f32 %v547, %v837
  %839 = vmatmul.bf16.gmra.mxu0 %v591
  %v840 = vpop.f32.mrf.mxu0
  %v841 = vadd.f32 %v550, %v840
  %v842 = vpop.f32.mrf.mxu0
  %v843 = vadd.f32 %v552, %v842
  %844 = vdwg.mxu0
  %845 = vmatpush.bf16.msra.mxu0 %v763
  %846 = vmatpush.bf16.msra.mxu0 %v762
  %847 = vmatpush.bf16.msra.mxu0 %v761
  %848 = vmatpush.bf16.msra.mxu0 %v760
  %849 = vmatpush.bf16.msra.mxu0 %v759
  %850 = vmatpush.bf16.msra.mxu0 %v758
  %851 = vmatpush.bf16.msra.mxu0 %v757
  %852 = vmatpush.bf16.msra.mxu0 %v756
  %853 = vmatmul.bf16.gmra.mxu0 %v587
  %v854 = vpop.f32.mrf.mxu0
  %v855 = vadd.f32 %v836, %v854
  %v856 = vpop.f32.mrf.mxu0
  %v857 = vadd.f32 %v838, %v856
  %858 = vmatmul.bf16.gmra.mxu0 %v592
  %v859 = vpop.f32.mrf.mxu0
  %v860 = vadd.f32 %v841, %v859
  %v861 = vpop.f32.mrf.mxu0
  %v862 = vadd.f32 %v843, %v861
  %863 = vdwg.mxu0
  %864 = vmatpush.bf16.msra.mxu0 %v771
  %865 = vmatpush.bf16.msra.mxu0 %v770
  %866 = vmatpush.bf16.msra.mxu0 %v769
  %867 = vmatpush.bf16.msra.mxu0 %v768
  %868 = vmatpush.bf16.msra.mxu0 %v767
  %869 = vmatpush.bf16.msra.mxu0 %v766
  %870 = vmatpush.bf16.msra.mxu0 %v765
  %871 = vmatpush.bf16.msra.mxu0 %v764
  %872 = vmatmul.bf16.gmra.mxu0 %v588
  %v873 = vpop.f32.mrf.mxu0
  %v874 = vadd.f32 %v855, %v873
  %v875 = vpop.f32.mrf.mxu0
  %v876 = vadd.f32 %v857, %v875
  %877 = vmatmul.bf16.gmra.mxu0 %v593
  %v878 = vpop.f32.mrf.mxu0
  %v879 = vadd.f32 %v860, %v878
  %v880 = vpop.f32.mrf.mxu0
  %v881 = vadd.f32 %v862, %v880
  %882 = vdwg.mxu0
  %883 = vmatpush.bf16.msra.mxu0 %v779
  %884 = vmatpush.bf16.msra.mxu0 %v778
  %885 = vmatpush.bf16.msra.mxu0 %v777
  %886 = vmatpush.bf16.msra.mxu0 %v776
  %887 = vmatpush.bf16.msra.mxu0 %v775
  %888 = vmatpush.bf16.msra.mxu0 %v774
  %889 = vmatpush.bf16.msra.mxu0 %v773
  %890 = vmatpush.bf16.msra.mxu0 %v772
  %891 = vmatmul.bf16.gmra.mxu0 %v589
  %v892 = vpop.f32.mrf.mxu0
  %v893 = vadd.f32 %v874, %v892
  %v894 = vpop.f32.mrf.mxu0
  %v895 = vadd.f32 %v876, %v894
  %896 = vmatmul.bf16.gmra.mxu0 %v594
  %v897 = vpop.f32.mrf.mxu0
  %v898 = vadd.f32 %v879, %v897
  %v899 = vpop.f32.mrf.mxu0
  %v900 = vadd.f32 %v881, %v899
  %901 = vdwg.mxu0
  %902 = vmatpush.bf16.msra.mxu0 0
  %903 = vmatpush.bf16.msra.mxu0 0
  %904 = vmatpush.bf16.msra.mxu0 0
  %905 = vmatpush.bf16.msra.mxu0 0
  %906 = vmatpush.bf16.msra.mxu0 %v783
  %907 = vmatpush.bf16.msra.mxu0 %v782
  %908 = vmatpush.bf16.msra.mxu0 %v781
  %909 = vmatpush.bf16.msra.mxu0 %v780
  %910 = vmatmul.bf16.gmra.mxu0 %v821
  %v911 = vpop.f32.mrf.mxu0
  %v912 = vadd.f32 %v893, %v911
  %v913 = vpop.f32.mrf.mxu0
  %v914 = vadd.f32 %v895, %v913
  %915 = vmatmul.bf16.gmra.mxu0 %v824
  %v916 = vpop.f32.mrf.mxu0
  %v917 = vadd.f32 %v898, %v916
  %v918 = vpop.f32.mrf.mxu0
  %v919 = vadd.f32 %v900, %v918
  %920 = vdwg.mxu0
  %vm921 = vcmask 64512
  %922 = vst.msk [vmem:[%s4] sm:$0xff] %vm921, %v912
  %923 = vst.msk [vmem:[%s4 + $0x8] sm:$0xff] %vm921, %v914
  %924 = vst.msk [vmem:[%s4 + $0x10] sm:$0xff] %vm921, %v917
  %925 = vst.msk [vmem:[%s4 + $0x18] sm:$0xff] %vm921, %v919
  // Predicated region
  $region18: #{mynet_forward.19} parent=0 // pred_check
    _
  $region19: #{mynet_forward.19} parent=0 // pred_check_branch
    %927 = sbr.rel (0) target = $region21
  $region20: #{mynet_forward.19} parent=0 // pred_region
    _
  $region21: #{mynet_forward.19} parent=0 // pred_fallthru
    _
  // Predicated region
  $region22: #{mynet_forward.19} parent=0 // pred_check
    _
  $region23: #{mynet_forward.19} parent=0 // pred_check_branch
    %929 = sbr.rel (0) target = $region25
  $region24: #{mynet_forward.19} parent=0 // pred_region
    _
  $region25: #{mynet_forward.19} parent=0 // pred_fallthru
    _

// kernel: mynet_forward.22
$region0: #{mynet_forward.22}
  #allocation0 [shape = 'u32[]', space=smem, size = 0x4, offset = 0x4, fixed_abs, tag = 'smem constant byte address 0x4 - core index']
  #allocation1 [shape = 'u32[72,128]{1,0:T(1,128)}', space=vmem, size = 0x9000, scoped, tag = 'internal scratch']
  %s0 = inlined_call_operand.vmem [shape: bf16[128,576], index: 0, kind: input, shape index: {}]
  %s1 = inlined_call_operand.vmem [shape: bf16[576,8], index: 1, kind: input, shape index: {}]
  %s2 = inlined_call_operand.vmem [shape: bf16[128,576], index: 2, kind: input, shape index: {}]
  %s3 = inlined_call_operand.vmem [shape: bf16[576,8], index: 3, kind: input, shape index: {}]
  %s4 = inlined_call_operand.vmem [shape: f32[128,8], index: 4, kind: output, shape index: {}]
  %s5 = sld [smem:[#allocation0]]
  $region26: #{mynet_forward.22} parent=0
    _
  %s7 = ssub.s32 1, %s5
  %s8 = scalar_select 0, %s7, %s5
  // Predicated region
  $region2: #{mynet_forward.22} parent=0 // pred_check
    _
  $region3: #{mynet_forward.22} parent=0 // pred_check_branch
    %10 = sbr.rel (0) target = $region5
  $region4: #{mynet_forward.22} parent=0 // pred_region
    _
  $region5: #{mynet_forward.22} parent=0 // pred_fallthru
    _
  // Predicated region
  $region6: #{mynet_forward.22} parent=0 // pred_check
    _
  $region7: #{mynet_forward.22} parent=0 // pred_check_branch
    %12 = sbr.rel (0) target = $region9
  $region8: #{mynet_forward.22} parent=0 // pred_region
    _
  $region9: #{mynet_forward.22} parent=0 // pred_fallthru
    _
  // Predicated region
  $region10: #{mynet_forward.22} parent=0 // pred_check
    _
  $region11: #{mynet_forward.22} parent=0 // pred_check_branch
    %14 = sbr.rel (0) target = $region13
  $region12: #{mynet_forward.22} parent=0 // pred_region
    _
  $region13: #{mynet_forward.22} parent=0 // pred_fallthru
    _
  // Predicated region
  $region14: #{mynet_forward.22} parent=0 // pred_check
    _
  $region15: #{mynet_forward.22} parent=0 // pred_check_branch
    %16 = sbr.rel (0) target = $region17
  $region16: #{mynet_forward.22} parent=0 // pred_region
    _
  $region17: #{mynet_forward.22} parent=0 // pred_fallthru
    _
  %v18 = vld [vmem:[%s0] sm:$0xff]
  %v19 = vld [vmem:[%s0 + $0x8] sm:$0xff]
  %v20 = vld [vmem:[%s0 + $0x10] sm:$0xf]
  %v21 = vld [vmem:[%s0 + $0x14] sm:$0xff]
  %v22 = vld [vmem:[%s0 + $0x1c] sm:$0xff]
  %v23 = vld [vmem:[%s0 + $0x24] sm:$0xf]
  %v24 = vld [vmem:[%s0 + $0x28] sm:$0xff]
  %v25 = vld [vmem:[%s0 + $0x30] sm:$0xff]
  %v26 = vld [vmem:[%s0 + $0x38] sm:$0xf]
  %v27 = vld [vmem:[%s0 + $0x3c] sm:$0xff]
  %v28 = vld [vmem:[%s0 + $0x44] sm:$0xff]
  %v29 = vld [vmem:[%s0 + $0x4c] sm:$0xf]
  %v30 = vld [vmem:[%s0 + $0x50] sm:$0xff]
  %v31 = vld [vmem:[%s0 + $0x58] sm:$0xff]
  %v32 = vld [vmem:[%s0 + $0x60] sm:$0xf]
  %v33 = vld [vmem:[%s0 + $0x64] sm:$0xff]
  %v34 = vld [vmem:[%s0 + $0x6c] sm:$0xff]
  %v35 = vld [vmem:[%s0 + $0x74] sm:$0xf]
  %v36 = vld [vmem:[%s0 + $0x78] sm:$0xff]
  %v37 = vld [vmem:[%s0 + $0x80] sm:$0xff]
  %v38 = vld [vmem:[%s0 + $0x88] sm:$0xf]
  %v39 = vld [vmem:[%s0 + $0x8c] sm:$0xff]
  %v40 = vld [vmem:[%s0 + $0x94] sm:$0xff]
  %v41 = vld [vmem:[%s0 + $0x9c] sm:$0xf]
  %v42 = vld [vmem:[%s0 + $0xa0] sm:$0xff]
  %v43 = vld [vmem:[%s0 + $0xa8] sm:$0xff]
  %v44 = vld [vmem:[%s0 + $0xb0] sm:$0xf]
  %v45 = vld [vmem:[%s0 + $0xb4] sm:$0xff]
  %v46 = vld [vmem:[%s0 + $0xbc] sm:$0xff]
  %v47 = vld [vmem:[%s0 + $0xc4] sm:$0xf]
  %v48 = vld [vmem:[%s0 + $0xc8] sm:$0xff]
  %v49 = vld [vmem:[%s0 + $0xd0] sm:$0xff]
  %v50 = vld [vmem:[%s0 + $0xd8] sm:$0xf]
  %v51 = vld [vmem:[%s0 + $0xdc] sm:$0xff]
  %v52 = vld [vmem:[%s0 + $0xe4] sm:$0xff]
  %v53 = vld [vmem:[%s0 + $0xec] sm:$0xf]
  %v54 = vld [vmem:[%s0 + $0xf0] sm:$0xff]
  %v55 = vld [vmem:[%s0 + $0xf8] sm:$0xff]
  %v56 = vld [vmem:[%s0 + $0x100] sm:$0xf]
  %v57 = vld [vmem:[%s0 + $0x104] sm:$0xff]
  %v58 = vld [vmem:[%s0 + $0x10c] sm:$0xff]
  %v59 = vld [vmem:[%s0 + $0x114] sm:$0xf]
  %v60 = vld [vmem:[%s0 + $0x118] sm:$0xff]
  %v61 = vld [vmem:[%s0 + $0x120] sm:$0xff]
  %v62 = vld [vmem:[%s0 + $0x128] sm:$0xf]
  %v63 = vld [vmem:[%s0 + $0x12c] sm:$0xff]
  %v64 = vld [vmem:[%s0 + $0x134] sm:$0xff]
  %v65 = vld [vmem:[%s0 + $0x13c] sm:$0xf]
  %v66 = vld [vmem:[%s1] sm:$0xf]
  %v67 = vld [vmem:[%s1 + $0x4] sm:$0xf]
  %v68 = vld [vmem:[%s1 + $0x8] sm:$0xf]
  %v69 = vld [vmem:[%s1 + $0xc] sm:$0xf]
  %v70 = vld [vmem:[%s1 + $0x10] sm:$0xf]
  %v71 = vld [vmem:[%s1 + $0x14] sm:$0xf]
  %v72 = vld [vmem:[%s1 + $0x18] sm:$0xf]
  %v73 = vld [vmem:[%s1 + $0x1c] sm:$0xf]
  %v74 = vld [vmem:[%s1 + $0x20] sm:$0xf]
  %v75 = vld [vmem:[%s1 + $0x24] sm:$0xf]
  %v76 = vld [vmem:[%s1 + $0x28] sm:$0xf]
  %v77 = vld [vmem:[%s1 + $0x2c] sm:$0xf]
  %v78 = vld [vmem:[%s1 + $0x30] sm:$0xf]
  %v79 = vld [vmem:[%s1 + $0x34] sm:$0xf]
  %v80 = vld [vmem:[%s1 + $0x38] sm:$0xf]
  %v81 = vld [vmem:[%s1 + $0x3c] sm:$0xf]
  %v82 = vld [vmem:[%s1 + $0x40] sm:$0xf]
  %v83 = vld [vmem:[%s1 + $0x44] sm:$0xf]
  %v84 = vld [vmem:[%s1 + $0x48] sm:$0xf]
  %v85 = vld [vmem:[%s1 + $0x4c] sm:$0xf]
  %v86 = vld [vmem:[%s1 + $0x50] sm:$0xf]
  %v87 = vld [vmem:[%s1 + $0x54] sm:$0xf]
  %v88 = vld [vmem:[%s1 + $0x58] sm:$0xf]
  %v89 = vld [vmem:[%s1 + $0x5c] sm:$0xf]
  %v90 = vld [vmem:[%s1 + $0x60] sm:$0xf]
  %v91 = vld [vmem:[%s1 + $0x64] sm:$0xf]
  %v92 = vld [vmem:[%s1 + $0x68] sm:$0xf]
  %v93 = vld [vmem:[%s1 + $0x6c] sm:$0xf]
  %v94 = vld [vmem:[%s1 + $0x70] sm:$0xf]
  %v95 = vld [vmem:[%s1 + $0x74] sm:$0xf]
  %v96 = vld [vmem:[%s1 + $0x78] sm:$0xf]
  %v97 = vld [vmem:[%s1 + $0x7c] sm:$0xf]
  %v98 = vld [vmem:[%s1 + $0x80] sm:$0xf]
  %v99 = vld [vmem:[%s1 + $0x84] sm:$0xf]
  %v100 = vld [vmem:[%s1 + $0x88] sm:$0xf]
  %v101 = vld [vmem:[%s1 + $0x8c] sm:$0xf]
  %v102 = vld [vmem:[%s1 + $0x90] sm:$0xf]
  %v103 = vld [vmem:[%s1 + $0x94] sm:$0xf]
  %v104 = vld [vmem:[%s1 + $0x98] sm:$0xf]
  %v105 = vld [vmem:[%s1 + $0x9c] sm:$0xf]
  %v106 = vld [vmem:[%s1 + $0xa0] sm:$0xf]
  %v107 = vld [vmem:[%s1 + $0xa4] sm:$0xf]
  %v108 = vld [vmem:[%s1 + $0xa8] sm:$0xf]
  %v109 = vld [vmem:[%s1 + $0xac] sm:$0xf]
  %v110 = vld [vmem:[%s1 + $0xb0] sm:$0xf]
  %v111 = vld [vmem:[%s1 + $0xb4] sm:$0xf]
  %v112 = vld [vmem:[%s1 + $0xb8] sm:$0xf]
  %v113 = vld [vmem:[%s1 + $0xbc] sm:$0xf]
  %v114 = vld [vmem:[%s1 + $0xc0] sm:$0xf]
  %v115 = vld [vmem:[%s1 + $0xc4] sm:$0xf]
  %v116 = vld [vmem:[%s1 + $0xc8] sm:$0xf]
  %v117 = vld [vmem:[%s1 + $0xcc] sm:$0xf]
  %v118 = vld [vmem:[%s1 + $0xd0] sm:$0xf]
  %v119 = vld [vmem:[%s1 + $0xd4] sm:$0xf]
  %v120 = vld [vmem:[%s1 + $0xd8] sm:$0xf]
  %v121 = vld [vmem:[%s1 + $0xdc] sm:$0xf]
  %v122 = vld [vmem:[%s1 + $0xe0] sm:$0xf]
  %v123 = vld [vmem:[%s1 + $0xe4] sm:$0xf]
  %v124 = vld [vmem:[%s1 + $0xe8] sm:$0xf]
  %v125 = vld [vmem:[%s1 + $0xec] sm:$0xf]
  %v126 = vld [vmem:[%s1 + $0xf0] sm:$0xf]
  %v127 = vld [vmem:[%s1 + $0xf4] sm:$0xf]
  %v128 = vld [vmem:[%s1 + $0xf8] sm:$0xf]
  %v129 = vld [vmem:[%s1 + $0xfc] sm:$0xf]
  %v130 = vld [vmem:[%s1 + $0x100] sm:$0xf]
  %v131 = vld [vmem:[%s1 + $0x104] sm:$0xf]
  %v132 = vld [vmem:[%s1 + $0x108] sm:$0xf]
  %v133 = vld [vmem:[%s1 + $0x10c] sm:$0xf]
  %v134 = vld [vmem:[%s1 + $0x110] sm:$0xf]
  %v135 = vld [vmem:[%s1 + $0x114] sm:$0xf]
  %v136 = vld [vmem:[%s1 + $0x118] sm:$0xf]
  %v137 = vld [vmem:[%s1 + $0x11c] sm:$0xf]
  %v138 = vld [vmem:[%s2] sm:$0xff]
  %v139 = vld [vmem:[%s2 + $0x8] sm:$0xff]
  %v140 = vld [vmem:[%s2 + $0x10] sm:$0xf]
  %v141 = vld [vmem:[%s2 + $0x14] sm:$0xff]
  %v142 = vld [vmem:[%s2 + $0x1c] sm:$0xff]
  %v143 = vld [vmem:[%s2 + $0x24] sm:$0xf]
  %v144 = vld [vmem:[%s2 + $0x28] sm:$0xff]
  %v145 = vld [vmem:[%s2 + $0x30] sm:$0xff]
  %v146 = vld [vmem:[%s2 + $0x38] sm:$0xf]
  %v147 = vld [vmem:[%s2 + $0x3c] sm:$0xff]
  %v148 = vld [vmem:[%s2 + $0x44] sm:$0xff]
  %v149 = vld [vmem:[%s2 + $0x4c] sm:$0xf]
  %v150 = vld [vmem:[%s2 + $0x50] sm:$0xff]
  %v151 = vld [vmem:[%s2 + $0x58] sm:$0xff]
  %v152 = vld [vmem:[%s2 + $0x60] sm:$0xf]
  %v153 = vld [vmem:[%s2 + $0x64] sm:$0xff]
  %v154 = vld [vmem:[%s2 + $0x6c] sm:$0xff]
  %v155 = vld [vmem:[%s2 + $0x74] sm:$0xf]
  %v156 = vld [vmem:[%s2 + $0x78] sm:$0xff]
  %v157 = vld [vmem:[%s2 + $0x80] sm:$0xff]
  %v158 = vld [vmem:[%s2 + $0x88] sm:$0xf]
  %v159 = vld [vmem:[%s2 + $0x8c] sm:$0xff]
  %v160 = vld [vmem:[%s2 + $0x94] sm:$0xff]
  %v161 = vld [vmem:[%s2 + $0x9c] sm:$0xf]
  %v162 = vld [vmem:[%s2 + $0xa0] sm:$0xff]
  %v163 = vld [vmem:[%s2 + $0xa8] sm:$0xff]
  %v164 = vld [vmem:[%s2 + $0xb0] sm:$0xf]
  %v165 = vld [vmem:[%s2 + $0xb4] sm:$0xff]
  %v166 = vld [vmem:[%s2 + $0xbc] sm:$0xff]
  %v167 = vld [vmem:[%s2 + $0xc4] sm:$0xf]
  %v168 = vld [vmem:[%s2 + $0xc8] sm:$0xff]
  %v169 = vld [vmem:[%s2 + $0xd0] sm:$0xff]
  %v170 = vld [vmem:[%s2 + $0xd8] sm:$0xf]
  %v171 = vld [vmem:[%s2 + $0xdc] sm:$0xff]
  %v172 = vld [vmem:[%s2 + $0xe4] sm:$0xff]
  %v173 = vld [vmem:[%s2 + $0xec] sm:$0xf]
  %v174 = vld [vmem:[%s2 + $0xf0] sm:$0xff]
  %v175 = vld [vmem:[%s2 + $0xf8] sm:$0xff]
  %v176 = vld [vmem:[%s2 + $0x100] sm:$0xf]
  %v177 = vld [vmem:[%s2 + $0x104] sm:$0xff]
  %v178 = vld [vmem:[%s2 + $0x10c] sm:$0xff]
  %v179 = vld [vmem:[%s2 + $0x114] sm:$0xf]
  %v180 = vld [vmem:[%s2 + $0x118] sm:$0xff]
  %v181 = vld [vmem:[%s2 + $0x120] sm:$0xff]
  %v182 = vld [vmem:[%s2 + $0x128] sm:$0xf]
  %v183 = vld [vmem:[%s2 + $0x12c] sm:$0xff]
  %v184 = vld [vmem:[%s2 + $0x134] sm:$0xff]
  %v185 = vld [vmem:[%s2 + $0x13c] sm:$0xf]
  %v186 = vld [vmem:[%s3] sm:$0xf]
  %v187 = vld [vmem:[%s3 + $0x4] sm:$0xf]
  %v188 = vld [vmem:[%s3 + $0x8] sm:$0xf]
  %v189 = vld [vmem:[%s3 + $0xc] sm:$0xf]
  %v190 = vld [vmem:[%s3 + $0x10] sm:$0xf]
  %v191 = vld [vmem:[%s3 + $0x14] sm:$0xf]
  %v192 = vld [vmem:[%s3 + $0x18] sm:$0xf]
  %v193 = vld [vmem:[%s3 + $0x1c] sm:$0xf]
  %v194 = vld [vmem:[%s3 + $0x20] sm:$0xf]
  %v195 = vld [vmem:[%s3 + $0x24] sm:$0xf]
  %v196 = vld [vmem:[%s3 + $0x28] sm:$0xf]
  %v197 = vld [vmem:[%s3 + $0x2c] sm:$0xf]
  %v198 = vld [vmem:[%s3 + $0x30] sm:$0xf]
  %v199 = vld [vmem:[%s3 + $0x34] sm:$0xf]
  %v200 = vld [vmem:[%s3 + $0x38] sm:$0xf]
  %v201 = vld [vmem:[%s3 + $0x3c] sm:$0xf]
  %v202 = vld [vmem:[%s3 + $0x40] sm:$0xf]
  %v203 = vld [vmem:[%s3 + $0x44] sm:$0xf]
  %v204 = vld [vmem:[%s3 + $0x48] sm:$0xf]
  %v205 = vld [vmem:[%s3 + $0x4c] sm:$0xf]
  %v206 = vld [vmem:[%s3 + $0x50] sm:$0xf]
  %v207 = vld [vmem:[%s3 + $0x54] sm:$0xf]
  %v208 = vld [vmem:[%s3 + $0x58] sm:$0xf]
  %v209 = vld [vmem:[%s3 + $0x5c] sm:$0xf]
  %v210 = vld [vmem:[%s3 + $0x60] sm:$0xf]
  %v211 = vld [vmem:[%s3 + $0x64] sm:$0xf]
  %v212 = vld [vmem:[%s3 + $0x68] sm:$0xf]
  %v213 = vld [vmem:[%s3 + $0x6c] sm:$0xf]
  %v214 = vld [vmem:[%s3 + $0x70] sm:$0xf]
  %v215 = vld [vmem:[%s3 + $0x74] sm:$0xf]
  %v216 = vld [vmem:[%s3 + $0x78] sm:$0xf]
  %v217 = vld [vmem:[%s3 + $0x7c] sm:$0xf]
  %v218 = vld [vmem:[%s3 + $0x80] sm:$0xf]
  %v219 = vld [vmem:[%s3 + $0x84] sm:$0xf]
  %v220 = vld [vmem:[%s3 + $0x88] sm:$0xf]
  %v221 = vld [vmem:[%s3 + $0x8c] sm:$0xf]
  %v222 = vld [vmem:[%s3 + $0x90] sm:$0xf]
  %v223 = vld [vmem:[%s3 + $0x94] sm:$0xf]
  %v224 = vld [vmem:[%s3 + $0x98] sm:$0xf]
  %v225 = vld [vmem:[%s3 + $0x9c] sm:$0xf]
  %v226 = vld [vmem:[%s3 + $0xa0] sm:$0xf]
  %v227 = vld [vmem:[%s3 + $0xa4] sm:$0xf]
  %v228 = vld [vmem:[%s3 + $0xa8] sm:$0xf]
  %v229 = vld [vmem:[%s3 + $0xac] sm:$0xf]
  %v230 = vld [vmem:[%s3 + $0xb0] sm:$0xf]
  %v231 = vld [vmem:[%s3 + $0xb4] sm:$0xf]
  %v232 = vld [vmem:[%s3 + $0xb8] sm:$0xf]
  %v233 = vld [vmem:[%s3 + $0xbc] sm:$0xf]
  %v234 = vld [vmem:[%s3 + $0xc0] sm:$0xf]
  %v235 = vld [vmem:[%s3 + $0xc4] sm:$0xf]
  %v236 = vld [vmem:[%s3 + $0xc8] sm:$0xf]
  %v237 = vld [vmem:[%s3 + $0xcc] sm:$0xf]
  %v238 = vld [vmem:[%s3 + $0xd0] sm:$0xf]
  %v239 = vld [vmem:[%s3 + $0xd4] sm:$0xf]
  %v240 = vld [vmem:[%s3 + $0xd8] sm:$0xf]
  %v241 = vld [vmem:[%s3 + $0xdc] sm:$0xf]
  %v242 = vld [vmem:[%s3 + $0xe0] sm:$0xf]
  %v243 = vld [vmem:[%s3 + $0xe4] sm:$0xf]
  %v244 = vld [vmem:[%s3 + $0xe8] sm:$0xf]
  %v245 = vld [vmem:[%s3 + $0xec] sm:$0xf]
  %v246 = vld [vmem:[%s3 + $0xf0] sm:$0xf]
  %v247 = vld [vmem:[%s3 + $0xf4] sm:$0xf]
  %v248 = vld [vmem:[%s3 + $0xf8] sm:$0xf]
  %v249 = vld [vmem:[%s3 + $0xfc] sm:$0xf]
  %v250 = vld [vmem:[%s3 + $0x100] sm:$0xf]
  %v251 = vld [vmem:[%s3 + $0x104] sm:$0xf]
  %v252 = vld [vmem:[%s3 + $0x108] sm:$0xf]
  %v253 = vld [vmem:[%s3 + $0x10c] sm:$0xf]
  %v254 = vld [vmem:[%s3 + $0x110] sm:$0xf]
  %v255 = vld [vmem:[%s3 + $0x114] sm:$0xf]
  %v256 = vld [vmem:[%s3 + $0x118] sm:$0xf]
  %v257 = vld [vmem:[%s3 + $0x11c] sm:$0xf]
  %v306 = vunpack.c.l.b16 %v138
  %v307 = vunpack.c.h.b16 %v138
  %v308 = vunpack.c.l.b16 %v139
  %v309 = vunpack.c.h.b16 %v139
  %v310 = vunpack.c.l.b16 %v140
  %v311 = vunpack.c.l.b16 %v141
  %v312 = vunpack.c.h.b16 %v141
  %v313 = vunpack.c.l.b16 %v142
  %v314 = vunpack.c.h.b16 %v142
  %v315 = vunpack.c.l.b16 %v143
  %v316 = vunpack.c.l.b16 %v144
  %v317 = vunpack.c.h.b16 %v144
  %v318 = vunpack.c.l.b16 %v145
  %v319 = vunpack.c.h.b16 %v145
  %v320 = vunpack.c.l.b16 %v146
  %v321 = vunpack.c.l.b16 %v147
  %v322 = vunpack.c.h.b16 %v147
  %v323 = vunpack.c.l.b16 %v148
  %v324 = vunpack.c.h.b16 %v148
  %v325 = vunpack.c.l.b16 %v149
  %v326 = vunpack.c.l.b16 %v150
  %v327 = vunpack.c.h.b16 %v150
  %v328 = vunpack.c.l.b16 %v151
  %v329 = vunpack.c.h.b16 %v151
  %v330 = vunpack.c.l.b16 %v152
  %v331 = vunpack.c.l.b16 %v153
  %v332 = vunpack.c.h.b16 %v153
  %v333 = vunpack.c.l.b16 %v154
  %v334 = vunpack.c.h.b16 %v154
  %v335 = vunpack.c.l.b16 %v155
  %v336 = vunpack.c.l.b16 %v156
  %v337 = vunpack.c.h.b16 %v156
  %v338 = vunpack.c.l.b16 %v157
  %v339 = vunpack.c.h.b16 %v157
  %v340 = vunpack.c.l.b16 %v158
  %v341 = vunpack.c.l.b16 %v159
  %v342 = vunpack.c.h.b16 %v159
  %v343 = vunpack.c.l.b16 %v160
  %v344 = vunpack.c.h.b16 %v160
  %v345 = vunpack.c.l.b16 %v161
  %v346 = vunpack.c.l.b16 %v162
  %v347 = vunpack.c.h.b16 %v162
  %v348 = vunpack.c.l.b16 %v163
  %v349 = vunpack.c.h.b16 %v163
  %v350 = vunpack.c.l.b16 %v164
  %v351 = vunpack.c.l.b16 %v165
  %v352 = vunpack.c.h.b16 %v165
  %v353 = vunpack.c.l.b16 %v166
  %v354 = vunpack.c.h.b16 %v166
  %v355 = vunpack.c.l.b16 %v167
  %v356 = vunpack.c.l.b16 %v168
  %v357 = vunpack.c.h.b16 %v168
  %v358 = vunpack.c.l.b16 %v169
  %v359 = vunpack.c.h.b16 %v169
  %v360 = vunpack.c.l.b16 %v170
  %v361 = vunpack.c.l.b16 %v171
  %v362 = vunpack.c.h.b16 %v171
  %v363 = vunpack.c.l.b16 %v172
  %v364 = vunpack.c.h.b16 %v172
  %v365 = vunpack.c.l.b16 %v173
  %v366 = vunpack.c.l.b16 %v174
  %v367 = vunpack.c.h.b16 %v174
  %v368 = vunpack.c.l.b16 %v175
  %v369 = vunpack.c.h.b16 %v175
  %v370 = vunpack.c.l.b16 %v176
  %v371 = vunpack.c.l.b16 %v177
  %v372 = vunpack.c.h.b16 %v177
  %v373 = vunpack.c.l.b16 %v178
  %v374 = vunpack.c.h.b16 %v178
  %v375 = vunpack.c.l.b16 %v179
  %v376 = vunpack.c.l.b16 %v180
  %v377 = vunpack.c.h.b16 %v180
  %v378 = vunpack.c.l.b16 %v181
  %v379 = vunpack.c.h.b16 %v181
  %v380 = vunpack.c.l.b16 %v182
  %v381 = vunpack.c.l.b16 %v183
  %v382 = vunpack.c.h.b16 %v183
  %v383 = vunpack.c.l.b16 %v184
  %v384 = vunpack.c.h.b16 %v184
  %v385 = vunpack.c.l.b16 %v185
  %v386 = vpack.c.b16 %v311, %v306
  %v387 = vpack.c.b16 %v312, %v307
  %v388 = vpack.c.b16 %v313, %v308
  %v389 = vpack.c.b16 %v314, %v309
  %v390 = vpack.c.b16 %v315, %v310
  %v391 = vpack.c.b16 %v321, %v316
  %v392 = vpack.c.b16 %v322, %v317
  %v393 = vpack.c.b16 %v323, %v318
  %v394 = vpack.c.b16 %v324, %v319
  %v395 = vpack.c.b16 %v325, %v320
  %v396 = vpack.c.b16 %v331, %v326
  %v397 = vpack.c.b16 %v332, %v327
  %v398 = vpack.c.b16 %v333, %v328
  %v399 = vpack.c.b16 %v334, %v329
  %v400 = vpack.c.b16 %v335, %v330
  %v401 = vpack.c.b16 %v341, %v336
  %v402 = vpack.c.b16 %v342, %v337
  %v403 = vpack.c.b16 %v343, %v338
  %v404 = vpack.c.b16 %v344, %v339
  %v405 = vpack.c.b16 %v345, %v340
  %v406 = vpack.c.b16 %v351, %v346
  %v407 = vpack.c.b16 %v352, %v347
  %v408 = vpack.c.b16 %v353, %v348
  %v409 = vpack.c.b16 %v354, %v349
  %v410 = vpack.c.b16 %v355, %v350
  %v411 = vpack.c.b16 %v361, %v356
  %v412 = vpack.c.b16 %v362, %v357
  %v413 = vpack.c.b16 %v363, %v358
  %v414 = vpack.c.b16 %v364, %v359
  %v415 = vpack.c.b16 %v365, %v360
  %v416 = vpack.c.b16 %v371, %v366
  %v417 = vpack.c.b16 %v372, %v367
  %v418 = vpack.c.b16 %v373, %v368
  %v419 = vpack.c.b16 %v374, %v369
  %v420 = vpack.c.b16 %v375, %v370
  %v421 = vpack.c.b16 %v381, %v376
  %v422 = vpack.c.b16 %v382, %v377
  %v423 = vpack.c.b16 %v383, %v378
  %v424 = vpack.c.b16 %v384, %v379
  %v425 = vpack.c.b16 %v385, %v380
  %v530 = vunpack.c.l.b16 %v186
  %v531 = vunpack.c.l.b16 %v187
  %v532 = vunpack.c.l.b16 %v188
  %v533 = vunpack.c.l.b16 %v189
  %v534 = vunpack.c.l.b16 %v190
  %v535 = vunpack.c.l.b16 %v191
  %v536 = vunpack.c.l.b16 %v192
  %v537 = vunpack.c.l.b16 %v193
  %v538 = vunpack.c.l.b16 %v194
  %v539 = vunpack.c.l.b16 %v195
  %v540 = vunpack.c.l.b16 %v196
  %v541 = vunpack.c.l.b16 %v197
  %v542 = vunpack.c.l.b16 %v198
  %v543 = vunpack.c.l.b16 %v199
  %v544 = vunpack.c.l.b16 %v200
  %v545 = vunpack.c.l.b16 %v201
  %v546 = vunpack.c.l.b16 %v202
  %v547 = vunpack.c.l.b16 %v203
  %v548 = vunpack.c.l.b16 %v204
  %v549 = vunpack.c.l.b16 %v205
  %v550 = vunpack.c.l.b16 %v206
  %v551 = vunpack.c.l.b16 %v207
  %v552 = vunpack.c.l.b16 %v208
  %v553 = vunpack.c.l.b16 %v209
  %v554 = vunpack.c.l.b16 %v210
  %v555 = vunpack.c.l.b16 %v211
  %v556 = vunpack.c.l.b16 %v212
  %v557 = vunpack.c.l.b16 %v213
  %v558 = vunpack.c.l.b16 %v214
  %v559 = vunpack.c.l.b16 %v215
  %v560 = vunpack.c.l.b16 %v216
  %v561 = vunpack.c.l.b16 %v217
  %v562 = vunpack.c.l.b16 %v218
  %v563 = vunpack.c.l.b16 %v219
  %v564 = vunpack.c.l.b16 %v220
  %v565 = vunpack.c.l.b16 %v221
  %v566 = vunpack.c.l.b16 %v222
  %v567 = vunpack.c.l.b16 %v223
  %v568 = vunpack.c.l.b16 %v224
  %v569 = vunpack.c.l.b16 %v225
  %v570 = vunpack.c.l.b16 %v226
  %v571 = vunpack.c.l.b16 %v227
  %v572 = vunpack.c.l.b16 %v228
  %v573 = vunpack.c.l.b16 %v229
  %v574 = vunpack.c.l.b16 %v230
  %v575 = vunpack.c.l.b16 %v231
  %v576 = vunpack.c.l.b16 %v232
  %v577 = vunpack.c.l.b16 %v233
  %v578 = vunpack.c.l.b16 %v234
  %v579 = vunpack.c.l.b16 %v235
  %v580 = vunpack.c.l.b16 %v236
  %v581 = vunpack.c.l.b16 %v237
  %v582 = vunpack.c.l.b16 %v238
  %v583 = vunpack.c.l.b16 %v239
  %v584 = vunpack.c.l.b16 %v240
  %v585 = vunpack.c.l.b16 %v241
  %v586 = vunpack.c.l.b16 %v242
  %v587 = vunpack.c.l.b16 %v243
  %v588 = vunpack.c.l.b16 %v244
  %v589 = vunpack.c.l.b16 %v245
  %v590 = vunpack.c.l.b16 %v246
  %v591 = vunpack.c.l.b16 %v247
  %v592 = vunpack.c.l.b16 %v248
  %v593 = vunpack.c.l.b16 %v249
  %v594 = vunpack.c.l.b16 %v250
  %v595 = vunpack.c.l.b16 %v251
  %v596 = vunpack.c.l.b16 %v252
  %v597 = vunpack.c.l.b16 %v253
  %v598 = vunpack.c.l.b16 %v254
  %v599 = vunpack.c.l.b16 %v255
  %v600 = vunpack.c.l.b16 %v256
  %v601 = vunpack.c.l.b16 %v257
  %v602 = vpack.c.b16 %v531, %v530
  %v603 = vpack.c.b16 %v533, %v532
  %v604 = vpack.c.b16 %v535, %v534
  %v605 = vpack.c.b16 %v537, %v536
  %v606 = vpack.c.b16 %v539, %v538
  %v607 = vpack.c.b16 %v541, %v540
  %v608 = vpack.c.b16 %v543, %v542
  %v609 = vpack.c.b16 %v545, %v544
  %v610 = vpack.c.b16 %v547, %v546
  %v611 = vpack.c.b16 %v549, %v548
  %v612 = vpack.c.b16 %v551, %v550
  %v613 = vpack.c.b16 %v553, %v552
  %v614 = vpack.c.b16 %v555, %v554
  %v615 = vpack.c.b16 %v557, %v556
  %v616 = vpack.c.b16 %v559, %v558
  %v617 = vpack.c.b16 %v561, %v560
  %v618 = vpack.c.b16 %v563, %v562
  %v619 = vpack.c.b16 %v565, %v564
  %v620 = vpack.c.b16 %v567, %v566
  %v621 = vpack.c.b16 %v569, %v568
  %v622 = vpack.c.b16 %v571, %v570
  %v623 = vpack.c.b16 %v573, %v572
  %v624 = vpack.c.b16 %v575, %v574
  %v625 = vpack.c.b16 %v577, %v576
  %v626 = vpack.c.b16 %v579, %v578
  %v627 = vpack.c.b16 %v581, %v580
  %v628 = vpack.c.b16 %v583, %v582
  %v629 = vpack.c.b16 %v585, %v584
  %v630 = vpack.c.b16 %v587, %v586
  %v631 = vpack.c.b16 %v589, %v588
  %v632 = vpack.c.b16 %v591, %v590
  %v633 = vpack.c.b16 %v593, %v592
  %v634 = vpack.c.b16 %v595, %v594
  %v635 = vpack.c.b16 %v597, %v596
  %v636 = vpack.c.b16 %v599, %v598
  %v637 = vpack.c.b16 %v601, %v600
  %vm674 = vcmask 523264
  %v676 = vsel %vm674, %v390, 0
  %v679 = vsel %vm674, %v395, 0
  %v682 = vsel %vm674, %v400, 0
  %v685 = vsel %vm674, %v405, 0
  %v688 = vsel %vm674, %v410, 0
  %v691 = vsel %vm674, %v415, 0
  %v694 = vsel %vm674, %v420, 0
  %v697 = vsel %vm674, %v425, 0
  %699 = vmatpush.bf16.msra.mxu0 %v609
  %700 = vmatpush.bf16.msra.mxu0 %v608
  %701 = vmatpush.bf16.msra.mxu0 %v607
  %702 = vmatpush.bf16.msra.mxu0 %v606
  %703 = vmatpush.bf16.msra.mxu0 %v605
  %704 = vmatpush.bf16.msra.mxu0 %v604
  %705 = vmatpush.bf16.msra.mxu0 %v603
  %706 = vmatpush.bf16.msra.mxu0 %v602
  %707 = vmatmul.bf16.gmra.mxu0 %v386
  %v708 = vpop.f32.mrf.mxu0
  %v709 = vadd.f32 0.0, %v708
  %v710 = vpop.f32.mrf.mxu0
  %v711 = vadd.f32 0.0, %v710
  %712 = vmatmul.bf16.gmra.mxu0 %v391
  %v713 = vpop.f32.mrf.mxu0
  %v714 = vadd.f32 0.0, %v713
  %v715 = vpop.f32.mrf.mxu0
  %v716 = vadd.f32 0.0, %v715
  %717 = vmatmul.bf16.gmra.mxu0 %v396
  %v718 = vpop.f32.mrf.mxu0
  %v719 = vadd.f32 0.0, %v718
  %v720 = vpop.f32.mrf.mxu0
  %v721 = vadd.f32 0.0, %v720
  %722 = vmatmul.bf16.gmra.mxu0 %v401
  %v723 = vpop.f32.mrf.mxu0
  %v724 = vadd.f32 0.0, %v723
  %v725 = vpop.f32.mrf.mxu0
  %v726 = vadd.f32 0.0, %v725
  %727 = vmatmul.bf16.gmra.mxu0 %v406
  %v728 = vpop.f32.mrf.mxu0
  %v729 = vadd.f32 0.0, %v728
  %v730 = vpop.f32.mrf.mxu0
  %v731 = vadd.f32 0.0, %v730
  %732 = vmatmul.bf16.gmra.mxu0 %v411
  %v733 = vpop.f32.mrf.mxu0
  %v734 = vadd.f32 0.0, %v733
  %v735 = vpop.f32.mrf.mxu0
  %v736 = vadd.f32 0.0, %v735
  %737 = vmatmul.bf16.gmra.mxu0 %v416
  %v738 = vpop.f32.mrf.mxu0
  %v739 = vadd.f32 0.0, %v738
  %v740 = vpop.f32.mrf.mxu0
  %v741 = vadd.f32 0.0, %v740
  %742 = vmatmul.bf16.gmra.mxu0 %v421
  %v743 = vpop.f32.mrf.mxu0
  %v744 = vadd.f32 0.0, %v743
  %v745 = vpop.f32.mrf.mxu0
  %v746 = vadd.f32 0.0, %v745
  %747 = vdwg.mxu0
  %748 = vmatpush.bf16.msra.mxu0 %v617
  %749 = vmatpush.bf16.msra.mxu0 %v616
  %750 = vmatpush.bf16.msra.mxu0 %v615
  %751 = vmatpush.bf16.msra.mxu0 %v614
  %752 = vmatpush.bf16.msra.mxu0 %v613
  %753 = vmatpush.bf16.msra.mxu0 %v612
  %754 = vmatpush.bf16.msra.mxu0 %v611
  %755 = vmatpush.bf16.msra.mxu0 %v610
  %756 = vmatmul.bf16.gmra.mxu0 %v387
  %v757 = vpop.f32.mrf.mxu0
  %v758 = vadd.f32 %v709, %v757
  %v759 = vpop.f32.mrf.mxu0
  %v760 = vadd.f32 %v711, %v759
  %761 = vmatmul.bf16.gmra.mxu0 %v392
  %v762 = vpop.f32.mrf.mxu0
  %v763 = vadd.f32 %v714, %v762
  %v764 = vpop.f32.mrf.mxu0
  %v765 = vadd.f32 %v716, %v764
  %766 = vmatmul.bf16.gmra.mxu0 %v397
  %v767 = vpop.f32.mrf.mxu0
  %v768 = vadd.f32 %v719, %v767
  %v769 = vpop.f32.mrf.mxu0
  %v770 = vadd.f32 %v721, %v769
  %771 = vmatmul.bf16.gmra.mxu0 %v402
  %v772 = vpop.f32.mrf.mxu0
  %v773 = vadd.f32 %v724, %v772
  %v774 = vpop.f32.mrf.mxu0
  %v775 = vadd.f32 %v726, %v774
  %776 = vmatmul.bf16.gmra.mxu0 %v407
  %v777 = vpop.f32.mrf.mxu0
  %v778 = vadd.f32 %v729, %v777
  %v779 = vpop.f32.mrf.mxu0
  %v780 = vadd.f32 %v731, %v779
  %781 = vmatmul.bf16.gmra.mxu0 %v412
  %v782 = vpop.f32.mrf.mxu0
  %v783 = vadd.f32 %v734, %v782
  %v784 = vpop.f32.mrf.mxu0
  %v785 = vadd.f32 %v736, %v784
  %786 = vmatmul.bf16.gmra.mxu0 %v417
  %v787 = vpop.f32.mrf.mxu0
  %v788 = vadd.f32 %v739, %v787
  %v789 = vpop.f32.mrf.mxu0
  %v790 = vadd.f32 %v741, %v789
  %791 = vmatmul.bf16.gmra.mxu0 %v422
  %v792 = vpop.f32.mrf.mxu0
  %v793 = vadd.f32 %v744, %v792
  %v794 = vpop.f32.mrf.mxu0
  %v795 = vadd.f32 %v746, %v794
  %796 = vdwg.mxu0
  %797 = vmatpush.bf16.msra.mxu0 %v625
  %798 = vmatpush.bf16.msra.mxu0 %v624
  %799 = vmatpush.bf16.msra.mxu0 %v623
  %800 = vmatpush.bf16.msra.mxu0 %v622
  %801 = vmatpush.bf16.msra.mxu0 %v621
  %802 = vmatpush.bf16.msra.mxu0 %v620
  %803 = vmatpush.bf16.msra.mxu0 %v619
  %804 = vmatpush.bf16.msra.mxu0 %v618
  %805 = vmatmul.bf16.gmra.mxu0 %v388
  %v806 = vpop.f32.mrf.mxu0
  %v807 = vadd.f32 %v758, %v806
  %v808 = vpop.f32.mrf.mxu0
  %v809 = vadd.f32 %v760, %v808
  %810 = vmatmul.bf16.gmra.mxu0 %v393
  %v811 = vpop.f32.mrf.mxu0
  %v812 = vadd.f32 %v763, %v811
  %v813 = vpop.f32.mrf.mxu0
  %v814 = vadd.f32 %v765, %v813
  %815 = vmatmul.bf16.gmra.mxu0 %v398
  %v816 = vpop.f32.mrf.mxu0
  %v817 = vadd.f32 %v768, %v816
  %v818 = vpop.f32.mrf.mxu0
  %v819 = vadd.f32 %v770, %v818
  %820 = vmatmul.bf16.gmra.mxu0 %v403
  %v821 = vpop.f32.mrf.mxu0
  %v822 = vadd.f32 %v773, %v821
  %v823 = vpop.f32.mrf.mxu0
  %v824 = vadd.f32 %v775, %v823
  %825 = vmatmul.bf16.gmra.mxu0 %v408
  %v826 = vpop.f32.mrf.mxu0
  %v827 = vadd.f32 %v778, %v826
  %v828 = vpop.f32.mrf.mxu0
  %v829 = vadd.f32 %v780, %v828
  %830 = vmatmul.bf16.gmra.mxu0 %v413
  %v831 = vpop.f32.mrf.mxu0
  %v832 = vadd.f32 %v783, %v831
  %v833 = vpop.f32.mrf.mxu0
  %v834 = vadd.f32 %v785, %v833
  %835 = vmatmul.bf16.gmra.mxu0 %v418
  %v836 = vpop.f32.mrf.mxu0
  %v837 = vadd.f32 %v788, %v836
  %v838 = vpop.f32.mrf.mxu0
  %v839 = vadd.f32 %v790, %v838
  %840 = vmatmul.bf16.gmra.mxu0 %v423
  %v841 = vpop.f32.mrf.mxu0
  %v842 = vadd.f32 %v793, %v841
  %v843 = vpop.f32.mrf.mxu0
  %v844 = vadd.f32 %v795, %v843
  %845 = vdwg.mxu0
  %846 = vmatpush.bf16.msra.mxu0 %v633
  %847 = vmatpush.bf16.msra.mxu0 %v632
  %848 = vmatpush.bf16.msra.mxu0 %v631
  %849 = vmatpush.bf16.msra.mxu0 %v630
  %850 = vmatpush.bf16.msra.mxu0 %v629
  %851 = vmatpush.bf16.msra.mxu0 %v628
  %852 = vmatpush.bf16.msra.mxu0 %v627
  %853 = vmatpush.bf16.msra.mxu0 %v626
  %854 = vmatmul.bf16.gmra.mxu0 %v389
  %v855 = vpop.f32.mrf.mxu0
  %v856 = vadd.f32 %v807, %v855
  %v857 = vpop.f32.mrf.mxu0
  %v858 = vadd.f32 %v809, %v857
  %859 = vmatmul.bf16.gmra.mxu0 %v394
  %v860 = vpop.f32.mrf.mxu0
  %v861 = vadd.f32 %v812, %v860
  %v862 = vpop.f32.mrf.mxu0
  %v863 = vadd.f32 %v814, %v862
  %864 = vmatmul.bf16.gmra.mxu0 %v399
  %v865 = vpop.f32.mrf.mxu0
  %v866 = vadd.f32 %v817, %v865
  %v867 = vpop.f32.mrf.mxu0
  %v868 = vadd.f32 %v819, %v867
  %869 = vmatmul.bf16.gmra.mxu0 %v404
  %v870 = vpop.f32.mrf.mxu0
  %v871 = vadd.f32 %v822, %v870
  %v872 = vpop.f32.mrf.mxu0
  %v873 = vadd.f32 %v824, %v872
  %874 = vmatmul.bf16.gmra.mxu0 %v409
  %v875 = vpop.f32.mrf.mxu0
  %v876 = vadd.f32 %v827, %v875
  %v877 = vpop.f32.mrf.mxu0
  %v878 = vadd.f32 %v829, %v877
  %879 = vmatmul.bf16.gmra.mxu0 %v414
  %v880 = vpop.f32.mrf.mxu0
  %v881 = vadd.f32 %v832, %v880
  %v882 = vpop.f32.mrf.mxu0
  %v883 = vadd.f32 %v834, %v882
  %884 = vmatmul.bf16.gmra.mxu0 %v419
  %v885 = vpop.f32.mrf.mxu0
  %v886 = vadd.f32 %v837, %v885
  %v887 = vpop.f32.mrf.mxu0
  %v888 = vadd.f32 %v839, %v887
  %889 = vmatmul.bf16.gmra.mxu0 %v424
  %v890 = vpop.f32.mrf.mxu0
  %v891 = vadd.f32 %v842, %v890
  %v892 = vpop.f32.mrf.mxu0
  %v893 = vadd.f32 %v844, %v892
  %894 = vdwg.mxu0
  %895 = vmatpush.bf16.msra.mxu0 0
  %896 = vmatpush.bf16.msra.mxu0 0
  %897 = vmatpush.bf16.msra.mxu0 0
  %898 = vmatpush.bf16.msra.mxu0 0
  %899 = vmatpush.bf16.msra.mxu0 %v637
  %900 = vmatpush.bf16.msra.mxu0 %v636
  %901 = vmatpush.bf16.msra.mxu0 %v635
  %902 = vmatpush.bf16.msra.mxu0 %v634
  %903 = vmatmul.bf16.gmra.mxu0 %v676
  %v904 = vpop.f32.mrf.mxu0
  %v905 = vadd.f32 %v856, %v904
  %v906 = vpop.f32.mrf.mxu0
  %v907 = vadd.f32 %v858, %v906
  %908 = vmatmul.bf16.gmra.mxu0 %v679
  %v909 = vpop.f32.mrf.mxu0
  %v910 = vadd.f32 %v861, %v909
  %v911 = vpop.f32.mrf.mxu0
  %v912 = vadd.f32 %v863, %v911
  %913 = vmatmul.bf16.gmra.mxu0 %v682
  %v914 = vpop.f32.mrf.mxu0
  %v915 = vadd.f32 %v866, %v914
  %v916 = vpop.f32.mrf.mxu0
  %v917 = vadd.f32 %v868, %v916
  %918 = vmatmul.bf16.gmra.mxu0 %v685
  %v919 = vpop.f32.mrf.mxu0
  %v920 = vadd.f32 %v871, %v919
  %v921 = vpop.f32.mrf.mxu0
  %v922 = vadd.f32 %v873, %v921
  %923 = vmatmul.bf16.gmra.mxu0 %v688
  %v924 = vpop.f32.mrf.mxu0
  %v925 = vadd.f32 %v876, %v924
  %v926 = vpop.f32.mrf.mxu0
  %v927 = vadd.f32 %v878, %v926
  %928 = vmatmul.bf16.gmra.mxu0 %v691
  %v929 = vpop.f32.mrf.mxu0
  %v930 = vadd.f32 %v881, %v929
  %v931 = vpop.f32.mrf.mxu0
  %v932 = vadd.f32 %v883, %v931
  %933 = vmatmul.bf16.gmra.mxu0 %v694
  %v934 = vpop.f32.mrf.mxu0
  %v935 = vadd.f32 %v886, %v934
  %v936 = vpop.f32.mrf.mxu0
  %v937 = vadd.f32 %v888, %v936
  %938 = vmatmul.bf16.gmra.mxu0 %v697
  %v939 = vpop.f32.mrf.mxu0
  %v940 = vadd.f32 %v891, %v939
  %v941 = vpop.f32.mrf.mxu0
  %v942 = vadd.f32 %v893, %v941
  %943 = vdwg.mxu0
  %v992 = vunpack.c.l.b16 %v18
  %v993 = vunpack.c.h.b16 %v18
  %v994 = vunpack.c.l.b16 %v19
  %v995 = vunpack.c.h.b16 %v19
  %v996 = vunpack.c.l.b16 %v20
  %v997 = vunpack.c.l.b16 %v21
  %v998 = vunpack.c.h.b16 %v21
  %v999 = vunpack.c.l.b16 %v22
  %v1000 = vunpack.c.h.b16 %v22
  %v1001 = vunpack.c.l.b16 %v23
  %v1002 = vunpack.c.l.b16 %v24
  %v1003 = vunpack.c.h.b16 %v24
  %v1004 = vunpack.c.l.b16 %v25
  %v1005 = vunpack.c.h.b16 %v25
  %v1006 = vunpack.c.l.b16 %v26
  %v1007 = vunpack.c.l.b16 %v27
  %v1008 = vunpack.c.h.b16 %v27
  %v1009 = vunpack.c.l.b16 %v28
  %v1010 = vunpack.c.h.b16 %v28
  %v1011 = vunpack.c.l.b16 %v29
  %v1012 = vunpack.c.l.b16 %v30
  %v1013 = vunpack.c.h.b16 %v30
  %v1014 = vunpack.c.l.b16 %v31
  %v1015 = vunpack.c.h.b16 %v31
  %v1016 = vunpack.c.l.b16 %v32
  %v1017 = vunpack.c.l.b16 %v33
  %v1018 = vunpack.c.h.b16 %v33
  %v1019 = vunpack.c.l.b16 %v34
  %v1020 = vunpack.c.h.b16 %v34
  %v1021 = vunpack.c.l.b16 %v35
  %v1022 = vunpack.c.l.b16 %v36
  %v1023 = vunpack.c.h.b16 %v36
  %v1024 = vunpack.c.l.b16 %v37
  %v1025 = vunpack.c.h.b16 %v37
  %v1026 = vunpack.c.l.b16 %v38
  %v1027 = vunpack.c.l.b16 %v39
  %v1028 = vunpack.c.h.b16 %v39
  %v1029 = vunpack.c.l.b16 %v40
  %v1030 = vunpack.c.h.b16 %v40
  %v1031 = vunpack.c.l.b16 %v41
  %v1032 = vunpack.c.l.b16 %v42
  %v1033 = vunpack.c.h.b16 %v42
  %v1034 = vunpack.c.l.b16 %v43
  %v1035 = vunpack.c.h.b16 %v43
  %v1036 = vunpack.c.l.b16 %v44
  %v1037 = vunpack.c.l.b16 %v45
  %v1038 = vunpack.c.h.b16 %v45
  %v1039 = vunpack.c.l.b16 %v46
  %v1040 = vunpack.c.h.b16 %v46
  %v1041 = vunpack.c.l.b16 %v47
  %v1042 = vunpack.c.l.b16 %v48
  %v1043 = vunpack.c.h.b16 %v48
  %v1044 = vunpack.c.l.b16 %v49
  %v1045 = vunpack.c.h.b16 %v49
  %v1046 = vunpack.c.l.b16 %v50
  %v1047 = vunpack.c.l.b16 %v51
  %v1048 = vunpack.c.h.b16 %v51
  %v1049 = vunpack.c.l.b16 %v52
  %v1050 = vunpack.c.h.b16 %v52
  %v1051 = vunpack.c.l.b16 %v53
  %v1052 = vunpack.c.l.b16 %v54
  %v1053 = vunpack.c.h.b16 %v54
  %v1054 = vunpack.c.l.b16 %v55
  %v1055 = vunpack.c.h.b16 %v55
  %v1056 = vunpack.c.l.b16 %v56
  %v1057 = vunpack.c.l.b16 %v57
  %v1058 = vunpack.c.h.b16 %v57
  %v1059 = vunpack.c.l.b16 %v58
  %v1060 = vunpack.c.h.b16 %v58
  %v1061 = vunpack.c.l.b16 %v59
  %v1062 = vunpack.c.l.b16 %v60
  %v1063 = vunpack.c.h.b16 %v60
  %v1064 = vunpack.c.l.b16 %v61
  %v1065 = vunpack.c.h.b16 %v61
  %v1066 = vunpack.c.l.b16 %v62
  %v1067 = vunpack.c.l.b16 %v63
  %v1068 = vunpack.c.h.b16 %v63
  %v1069 = vunpack.c.l.b16 %v64
  %v1070 = vunpack.c.h.b16 %v64
  %v1071 = vunpack.c.l.b16 %v65
  %v1072 = vpack.c.b16 %v997, %v992
  %v1073 = vpack.c.b16 %v998, %v993
  %v1074 = vpack.c.b16 %v999, %v994
  %v1075 = vpack.c.b16 %v1000, %v995
  %v1076 = vpack.c.b16 %v1001, %v996
  %v1077 = vpack.c.b16 %v1007, %v1002
  %v1078 = vpack.c.b16 %v1008, %v1003
  %v1079 = vpack.c.b16 %v1009, %v1004
  %v1080 = vpack.c.b16 %v1010, %v1005
  %v1081 = vpack.c.b16 %v1011, %v1006
  %v1082 = vpack.c.b16 %v1017, %v1012
  %v1083 = vpack.c.b16 %v1018, %v1013
  %v1084 = vpack.c.b16 %v1019, %v1014
  %v1085 = vpack.c.b16 %v1020, %v1015
  %v1086 = vpack.c.b16 %v1021, %v1016
  %v1087 = vpack.c.b16 %v1027, %v1022
  %v1088 = vpack.c.b16 %v1028, %v1023
  %v1089 = vpack.c.b16 %v1029, %v1024
  %v1090 = vpack.c.b16 %v1030, %v1025
  %v1091 = vpack.c.b16 %v1031, %v1026
  %v1092 = vpack.c.b16 %v1037, %v1032
  %v1093 = vpack.c.b16 %v1038, %v1033
  %v1094 = vpack.c.b16 %v1039, %v1034
  %v1095 = vpack.c.b16 %v1040, %v1035
  %v1096 = vpack.c.b16 %v1041, %v1036
  %v1097 = vpack.c.b16 %v1047, %v1042
  %v1098 = vpack.c.b16 %v1048, %v1043
  %v1099 = vpack.c.b16 %v1049, %v1044
  %v1100 = vpack.c.b16 %v1050, %v1045
  %v1101 = vpack.c.b16 %v1051, %v1046
  %v1102 = vpack.c.b16 %v1057, %v1052
  %v1103 = vpack.c.b16 %v1058, %v1053
  %v1104 = vpack.c.b16 %v1059, %v1054
  %v1105 = vpack.c.b16 %v1060, %v1055
  %v1106 = vpack.c.b16 %v1061, %v1056
  %v1107 = vpack.c.b16 %v1067, %v1062
  %v1108 = vpack.c.b16 %v1068, %v1063
  %v1109 = vpack.c.b16 %v1069, %v1064
  %v1110 = vpack.c.b16 %v1070, %v1065
  %v1111 = vpack.c.b16 %v1071, %v1066
  %v1216 = vunpack.c.l.b16 %v66
  %v1217 = vunpack.c.l.b16 %v67
  %v1218 = vunpack.c.l.b16 %v68
  %v1219 = vunpack.c.l.b16 %v69
  %v1220 = vunpack.c.l.b16 %v70
  %v1221 = vunpack.c.l.b16 %v71
  %v1222 = vunpack.c.l.b16 %v72
  %v1223 = vunpack.c.l.b16 %v73
  %v1224 = vunpack.c.l.b16 %v74
  %v1225 = vunpack.c.l.b16 %v75
  %v1226 = vunpack.c.l.b16 %v76
  %v1227 = vunpack.c.l.b16 %v77
  %v1228 = vunpack.c.l.b16 %v78
  %v1229 = vunpack.c.l.b16 %v79
  %v1230 = vunpack.c.l.b16 %v80
  %v1231 = vunpack.c.l.b16 %v81
  %v1232 = vunpack.c.l.b16 %v82
  %v1233 = vunpack.c.l.b16 %v83
  %v1234 = vunpack.c.l.b16 %v84
  %v1235 = vunpack.c.l.b16 %v85
  %v1236 = vunpack.c.l.b16 %v86
  %v1237 = vunpack.c.l.b16 %v87
  %v1238 = vunpack.c.l.b16 %v88
  %v1239 = vunpack.c.l.b16 %v89
  %v1240 = vunpack.c.l.b16 %v90
  %v1241 = vunpack.c.l.b16 %v91
  %v1242 = vunpack.c.l.b16 %v92
  %v1243 = vunpack.c.l.b16 %v93
  %v1244 = vunpack.c.l.b16 %v94
  %v1245 = vunpack.c.l.b16 %v95
  %v1246 = vunpack.c.l.b16 %v96
  %v1247 = vunpack.c.l.b16 %v97
  %v1248 = vunpack.c.l.b16 %v98
  %v1249 = vunpack.c.l.b16 %v99
  %v1250 = vunpack.c.l.b16 %v100
  %v1251 = vunpack.c.l.b16 %v101
  %v1252 = vunpack.c.l.b16 %v102
  %v1253 = vunpack.c.l.b16 %v103
  %v1254 = vunpack.c.l.b16 %v104
  %v1255 = vunpack.c.l.b16 %v105
  %v1256 = vunpack.c.l.b16 %v106
  %v1257 = vunpack.c.l.b16 %v107
  %v1258 = vunpack.c.l.b16 %v108
  %v1259 = vunpack.c.l.b16 %v109
  %v1260 = vunpack.c.l.b16 %v110
  %v1261 = vunpack.c.l.b16 %v111
  %v1262 = vunpack.c.l.b16 %v112
  %v1263 = vunpack.c.l.b16 %v113
  %v1264 = vunpack.c.l.b16 %v114
  %v1265 = vunpack.c.l.b16 %v115
  %v1266 = vunpack.c.l.b16 %v116
  %v1267 = vunpack.c.l.b16 %v117
  %v1268 = vunpack.c.l.b16 %v118
  %v1269 = vunpack.c.l.b16 %v119
  %v1270 = vunpack.c.l.b16 %v120
  %v1271 = vunpack.c.l.b16 %v121
  %v1272 = vunpack.c.l.b16 %v122
  %v1273 = vunpack.c.l.b16 %v123
  %v1274 = vunpack.c.l.b16 %v124
  %v1275 = vunpack.c.l.b16 %v125
  %v1276 = vunpack.c.l.b16 %v126
  %v1277 = vunpack.c.l.b16 %v127
  %v1278 = vunpack.c.l.b16 %v128
  %v1279 = vunpack.c.l.b16 %v129
  %v1280 = vunpack.c.l.b16 %v130
  %v1281 = vunpack.c.l.b16 %v131
  %v1282 = vunpack.c.l.b16 %v132
  %v1283 = vunpack.c.l.b16 %v133
  %v1284 = vunpack.c.l.b16 %v134
  %v1285 = vunpack.c.l.b16 %v135
  %v1286 = vunpack.c.l.b16 %v136
  %v1287 = vunpack.c.l.b16 %v137
  %v1288 = vpack.c.b16 %v1217, %v1216
  %v1289 = vpack.c.b16 %v1219, %v1218
  %v1290 = vpack.c.b16 %v1221, %v1220
  %v1291 = vpack.c.b16 %v1223, %v1222
  %v1292 = vpack.c.b16 %v1225, %v1224
  %v1293 = vpack.c.b16 %v1227, %v1226
  %v1294 = vpack.c.b16 %v1229, %v1228
  %v1295 = vpack.c.b16 %v1231, %v1230
  %v1296 = vpack.c.b16 %v1233, %v1232
  %v1297 = vpack.c.b16 %v1235, %v1234
  %v1298 = vpack.c.b16 %v1237, %v1236
  %v1299 = vpack.c.b16 %v1239, %v1238
  %v1300 = vpack.c.b16 %v1241, %v1240
  %v1301 = vpack.c.b16 %v1243, %v1242
  %v1302 = vpack.c.b16 %v1245, %v1244
  %v1303 = vpack.c.b16 %v1247, %v1246
  %v1304 = vpack.c.b16 %v1249, %v1248
  %v1305 = vpack.c.b16 %v1251, %v1250
  %v1306 = vpack.c.b16 %v1253, %v1252
  %v1307 = vpack.c.b16 %v1255, %v1254
  %v1308 = vpack.c.b16 %v1257, %v1256
  %v1309 = vpack.c.b16 %v1259, %v1258
  %v1310 = vpack.c.b16 %v1261, %v1260
  %v1311 = vpack.c.b16 %v1263, %v1262
  %v1312 = vpack.c.b16 %v1265, %v1264
  %v1313 = vpack.c.b16 %v1267, %v1266
  %v1314 = vpack.c.b16 %v1269, %v1268
  %v1315 = vpack.c.b16 %v1271, %v1270
  %v1316 = vpack.c.b16 %v1273, %v1272
  %v1317 = vpack.c.b16 %v1275, %v1274
  %v1318 = vpack.c.b16 %v1277, %v1276
  %v1319 = vpack.c.b16 %v1279, %v1278
  %v1320 = vpack.c.b16 %v1281, %v1280
  %v1321 = vpack.c.b16 %v1283, %v1282
  %v1322 = vpack.c.b16 %v1285, %v1284
  %v1323 = vpack.c.b16 %v1287, %v1286
  %v1361 = vsel %vm674, %v1076, 0
  %v1364 = vsel %vm674, %v1081, 0
  %v1367 = vsel %vm674, %v1086, 0
  %v1370 = vsel %vm674, %v1091, 0
  %v1373 = vsel %vm674, %v1096, 0
  %v1376 = vsel %vm674, %v1101, 0
  %v1379 = vsel %vm674, %v1106, 0
  %v1382 = vsel %vm674, %v1111, 0
  %1384 = vmatpush.bf16.msra.mxu0 %v1295
  %1385 = vmatpush.bf16.msra.mxu0 %v1294
  %1386 = vmatpush.bf16.msra.mxu0 %v1293
  %1387 = vmatpush.bf16.msra.mxu0 %v1292
  %1388 = vmatpush.bf16.msra.mxu0 %v1291
  %1389 = vmatpush.bf16.msra.mxu0 %v1290
  %1390 = vmatpush.bf16.msra.mxu0 %v1289
  %1391 = vmatpush.bf16.msra.mxu0 %v1288
  %1392 = vmatmul.bf16.gmra.mxu0 %v1072
  %v1393 = vpop.f32.mrf.mxu0
  %v1394 = vadd.f32 %v905, %v1393
  %v1395 = vpop.f32.mrf.mxu0
  %v1396 = vadd.f32 %v907, %v1395
  %1397 = vmatmul.bf16.gmra.mxu0 %v1077
  %v1398 = vpop.f32.mrf.mxu0
  %v1399 = vadd.f32 %v910, %v1398
  %v1400 = vpop.f32.mrf.mxu0
  %v1401 = vadd.f32 %v912, %v1400
  %1402 = vmatmul.bf16.gmra.mxu0 %v1082
  %v1403 = vpop.f32.mrf.mxu0
  %v1404 = vadd.f32 %v915, %v1403
  %v1405 = vpop.f32.mrf.mxu0
  %v1406 = vadd.f32 %v917, %v1405
  %1407 = vmatmul.bf16.gmra.mxu0 %v1087
  %v1408 = vpop.f32.mrf.mxu0
  %v1409 = vadd.f32 %v920, %v1408
  %v1410 = vpop.f32.mrf.mxu0
  %v1411 = vadd.f32 %v922, %v1410
  %1412 = vmatmul.bf16.gmra.mxu0 %v1092
  %v1413 = vpop.f32.mrf.mxu0
  %v1414 = vadd.f32 %v925, %v1413
  %v1415 = vpop.f32.mrf.mxu0
  %v1416 = vadd.f32 %v927, %v1415
  %1417 = vmatmul.bf16.gmra.mxu0 %v1097
  %v1418 = vpop.f32.mrf.mxu0
  %v1419 = vadd.f32 %v930, %v1418
  %v1420 = vpop.f32.mrf.mxu0
  %v1421 = vadd.f32 %v932, %v1420
  %1422 = vmatmul.bf16.gmra.mxu0 %v1102
  %v1423 = vpop.f32.mrf.mxu0
  %v1424 = vadd.f32 %v935, %v1423
  %v1425 = vpop.f32.mrf.mxu0
  %v1426 = vadd.f32 %v937, %v1425
  %1427 = vmatmul.bf16.gmra.mxu0 %v1107
  %v1428 = vpop.f32.mrf.mxu0
  %v1429 = vadd.f32 %v940, %v1428
  %v1430 = vpop.f32.mrf.mxu0
  %v1431 = vadd.f32 %v942, %v1430
  %1432 = vdwg.mxu0
  %1433 = vmatpush.bf16.msra.mxu0 %v1303
  %1434 = vmatpush.bf16.msra.mxu0 %v1302
  %1435 = vmatpush.bf16.msra.mxu0 %v1301
  %1436 = vmatpush.bf16.msra.mxu0 %v1300
  %1437 = vmatpush.bf16.msra.mxu0 %v1299
  %1438 = vmatpush.bf16.msra.mxu0 %v1298
  %1439 = vmatpush.bf16.msra.mxu0 %v1297
  %1440 = vmatpush.bf16.msra.mxu0 %v1296
  %1441 = vmatmul.bf16.gmra.mxu0 %v1073
  %v1442 = vpop.f32.mrf.mxu0
  %v1443 = vadd.f32 %v1394, %v1442
  %v1444 = vpop.f32.mrf.mxu0
  %v1445 = vadd.f32 %v1396, %v1444
  %1446 = vmatmul.bf16.gmra.mxu0 %v1078
  %v1447 = vpop.f32.mrf.mxu0
  %v1448 = vadd.f32 %v1399, %v1447
  %v1449 = vpop.f32.mrf.mxu0
  %v1450 = vadd.f32 %v1401, %v1449
  %1451 = vmatmul.bf16.gmra.mxu0 %v1083
  %v1452 = vpop.f32.mrf.mxu0
  %v1453 = vadd.f32 %v1404, %v1452
  %v1454 = vpop.f32.mrf.mxu0
  %v1455 = vadd.f32 %v1406, %v1454
  %1456 = vmatmul.bf16.gmra.mxu0 %v1088
  %v1457 = vpop.f32.mrf.mxu0
  %v1458 = vadd.f32 %v1409, %v1457
  %v1459 = vpop.f32.mrf.mxu0
  %v1460 = vadd.f32 %v1411, %v1459
  %1461 = vmatmul.bf16.gmra.mxu0 %v1093
  %v1462 = vpop.f32.mrf.mxu0
  %v1463 = vadd.f32 %v1414, %v1462
  %v1464 = vpop.f32.mrf.mxu0
  %v1465 = vadd.f32 %v1416, %v1464
  %1466 = vmatmul.bf16.gmra.mxu0 %v1098
  %v1467 = vpop.f32.mrf.mxu0
  %v1468 = vadd.f32 %v1419, %v1467
  %v1469 = vpop.f32.mrf.mxu0
  %v1470 = vadd.f32 %v1421, %v1469
  %1471 = vmatmul.bf16.gmra.mxu0 %v1103
  %v1472 = vpop.f32.mrf.mxu0
  %v1473 = vadd.f32 %v1424, %v1472
  %v1474 = vpop.f32.mrf.mxu0
  %v1475 = vadd.f32 %v1426, %v1474
  %1476 = vmatmul.bf16.gmra.mxu0 %v1108
  %v1477 = vpop.f32.mrf.mxu0
  %v1478 = vadd.f32 %v1429, %v1477
  %v1479 = vpop.f32.mrf.mxu0
  %v1480 = vadd.f32 %v1431, %v1479
  %1481 = vdwg.mxu0
  %1482 = vmatpush.bf16.msra.mxu0 %v1311
  %1483 = vmatpush.bf16.msra.mxu0 %v1310
  %1484 = vmatpush.bf16.msra.mxu0 %v1309
  %1485 = vmatpush.bf16.msra.mxu0 %v1308
  %1486 = vmatpush.bf16.msra.mxu0 %v1307
  %1487 = vmatpush.bf16.msra.mxu0 %v1306
  %1488 = vmatpush.bf16.msra.mxu0 %v1305
  %1489 = vmatpush.bf16.msra.mxu0 %v1304
  %1490 = vmatmul.bf16.gmra.mxu0 %v1074
  %v1491 = vpop.f32.mrf.mxu0
  %v1492 = vadd.f32 %v1443, %v1491
  %v1493 = vpop.f32.mrf.mxu0
  %v1494 = vadd.f32 %v1445, %v1493
  %1495 = vmatmul.bf16.gmra.mxu0 %v1079
  %v1496 = vpop.f32.mrf.mxu0
  %v1497 = vadd.f32 %v1448, %v1496
  %v1498 = vpop.f32.mrf.mxu0
  %v1499 = vadd.f32 %v1450, %v1498
  %1500 = vmatmul.bf16.gmra.mxu0 %v1084
  %v1501 = vpop.f32.mrf.mxu0
  %v1502 = vadd.f32 %v1453, %v1501
  %v1503 = vpop.f32.mrf.mxu0
  %v1504 = vadd.f32 %v1455, %v1503
  %1505 = vmatmul.bf16.gmra.mxu0 %v1089
  %v1506 = vpop.f32.mrf.mxu0
  %v1507 = vadd.f32 %v1458, %v1506
  %v1508 = vpop.f32.mrf.mxu0
  %v1509 = vadd.f32 %v1460, %v1508
  %1510 = vmatmul.bf16.gmra.mxu0 %v1094
  %v1511 = vpop.f32.mrf.mxu0
  %v1512 = vadd.f32 %v1463, %v1511
  %v1513 = vpop.f32.mrf.mxu0
  %v1514 = vadd.f32 %v1465, %v1513
  %1515 = vmatmul.bf16.gmra.mxu0 %v1099
  %v1516 = vpop.f32.mrf.mxu0
  %v1517 = vadd.f32 %v1468, %v1516
  %v1518 = vpop.f32.mrf.mxu0
  %v1519 = vadd.f32 %v1470, %v1518
  %1520 = vmatmul.bf16.gmra.mxu0 %v1104
  %v1521 = vpop.f32.mrf.mxu0
  %v1522 = vadd.f32 %v1473, %v1521
  %v1523 = vpop.f32.mrf.mxu0
  %v1524 = vadd.f32 %v1475, %v1523
  %1525 = vmatmul.bf16.gmra.mxu0 %v1109
  %v1526 = vpop.f32.mrf.mxu0
  %v1527 = vadd.f32 %v1478, %v1526
  %v1528 = vpop.f32.mrf.mxu0
  %v1529 = vadd.f32 %v1480, %v1528
  %1530 = vdwg.mxu0
  %1531 = vmatpush.bf16.msra.mxu0 %v1319
  %1532 = vmatpush.bf16.msra.mxu0 %v1318
  %1533 = vmatpush.bf16.msra.mxu0 %v1317
  %1534 = vmatpush.bf16.msra.mxu0 %v1316
  %1535 = vmatpush.bf16.msra.mxu0 %v1315
  %1536 = vmatpush.bf16.msra.mxu0 %v1314
  %1537 = vmatpush.bf16.msra.mxu0 %v1313
  %1538 = vmatpush.bf16.msra.mxu0 %v1312
  %1539 = vmatmul.bf16.gmra.mxu0 %v1075
  %v1540 = vpop.f32.mrf.mxu0
  %v1541 = vadd.f32 %v1492, %v1540
  %v1542 = vpop.f32.mrf.mxu0
  %v1543 = vadd.f32 %v1494, %v1542
  %1544 = vmatmul.bf16.gmra.mxu0 %v1080
  %v1545 = vpop.f32.mrf.mxu0
  %v1546 = vadd.f32 %v1497, %v1545
  %v1547 = vpop.f32.mrf.mxu0
  %v1548 = vadd.f32 %v1499, %v1547
  %1549 = vmatmul.bf16.gmra.mxu0 %v1085
  %v1550 = vpop.f32.mrf.mxu0
  %v1551 = vadd.f32 %v1502, %v1550
  %v1552 = vpop.f32.mrf.mxu0
  %v1553 = vadd.f32 %v1504, %v1552
  %1554 = vmatmul.bf16.gmra.mxu0 %v1090
  %v1555 = vpop.f32.mrf.mxu0
  %v1556 = vadd.f32 %v1507, %v1555
  %v1557 = vpop.f32.mrf.mxu0
  %v1558 = vadd.f32 %v1509, %v1557
  %1559 = vmatmul.bf16.gmra.mxu0 %v1095
  %v1560 = vpop.f32.mrf.mxu0
  %v1561 = vadd.f32 %v1512, %v1560
  %v1562 = vpop.f32.mrf.mxu0
  %v1563 = vadd.f32 %v1514, %v1562
  %1564 = vmatmul.bf16.gmra.mxu0 %v1100
  %v1565 = vpop.f32.mrf.mxu0
  %v1566 = vadd.f32 %v1517, %v1565
  %v1567 = vpop.f32.mrf.mxu0
  %v1568 = vadd.f32 %v1519, %v1567
  %1569 = vmatmul.bf16.gmra.mxu0 %v1105
  %v1570 = vpop.f32.mrf.mxu0
  %v1571 = vadd.f32 %v1522, %v1570
  %v1572 = vpop.f32.mrf.mxu0
  %v1573 = vadd.f32 %v1524, %v1572
  %1574 = vmatmul.bf16.gmra.mxu0 %v1110
  %v1575 = vpop.f32.mrf.mxu0
  %v1576 = vadd.f32 %v1527, %v1575
  %v1577 = vpop.f32.mrf.mxu0
  %v1578 = vadd.f32 %v1529, %v1577
  %1579 = vdwg.mxu0
  %1580 = vmatpush.bf16.msra.mxu0 0
  %1581 = vmatpush.bf16.msra.mxu0 0
  %1582 = vmatpush.bf16.msra.mxu0 0
  %1583 = vmatpush.bf16.msra.mxu0 0
  %1584 = vmatpush.bf16.msra.mxu0 %v1323
  %1585 = vmatpush.bf16.msra.mxu0 %v1322
  %1586 = vmatpush.bf16.msra.mxu0 %v1321
  %1587 = vmatpush.bf16.msra.mxu0 %v1320
  %1588 = vmatmul.bf16.gmra.mxu0 %v1361
  %v1589 = vpop.f32.mrf.mxu0
  %v1590 = vadd.f32 %v1541, %v1589
  %v1591 = vpop.f32.mrf.mxu0
  %v1592 = vadd.f32 %v1543, %v1591
  %1593 = vmatmul.bf16.gmra.mxu0 %v1364
  %v1594 = vpop.f32.mrf.mxu0
  %v1595 = vadd.f32 %v1546, %v1594
  %v1596 = vpop.f32.mrf.mxu0
  %v1597 = vadd.f32 %v1548, %v1596
  %1598 = vmatmul.bf16.gmra.mxu0 %v1367
  %v1599 = vpop.f32.mrf.mxu0
  %v1600 = vadd.f32 %v1551, %v1599
  %v1601 = vpop.f32.mrf.mxu0
  %v1602 = vadd.f32 %v1553, %v1601
  %1603 = vmatmul.bf16.gmra.mxu0 %v1370
  %v1604 = vpop.f32.mrf.mxu0
  %v1605 = vadd.f32 %v1556, %v1604
  %v1606 = vpop.f32.mrf.mxu0
  %v1607 = vadd.f32 %v1558, %v1606
  %1608 = vmatmul.bf16.gmra.mxu0 %v1373
  %v1609 = vpop.f32.mrf.mxu0
  %v1610 = vadd.f32 %v1561, %v1609
  %v1611 = vpop.f32.mrf.mxu0
  %v1612 = vadd.f32 %v1563, %v1611
  %1613 = vmatmul.bf16.gmra.mxu0 %v1376
  %v1614 = vpop.f32.mrf.mxu0
  %v1615 = vadd.f32 %v1566, %v1614
  %v1616 = vpop.f32.mrf.mxu0
  %v1617 = vadd.f32 %v1568, %v1616
  %1618 = vmatmul.bf16.gmra.mxu0 %v1379
  %v1619 = vpop.f32.mrf.mxu0
  %v1620 = vadd.f32 %v1571, %v1619
  %v1621 = vpop.f32.mrf.mxu0
  %v1622 = vadd.f32 %v1573, %v1621
  %1623 = vmatmul.bf16.gmra.mxu0 %v1382
  %v1624 = vpop.f32.mrf.mxu0
  %v1625 = vadd.f32 %v1576, %v1624
  %v1626 = vpop.f32.mrf.mxu0
  %v1627 = vadd.f32 %v1578, %v1626
  %1628 = vdwg.mxu0
  %vm1629 = vcmask 64512
  %1630 = vst.msk [vmem:[%s4] sm:$0xff] %vm1629, %v1590
  %1631 = vst.msk [vmem:[%s4 + $0x8] sm:$0xff] %vm1629, %v1592
  %1632 = vst.msk [vmem:[%s4 + $0x10] sm:$0xff] %vm1629, %v1595
  %1633 = vst.msk [vmem:[%s4 + $0x18] sm:$0xff] %vm1629, %v1597
  %1634 = vst.msk [vmem:[%s4 + $0x20] sm:$0xff] %vm1629, %v1600
  %1635 = vst.msk [vmem:[%s4 + $0x28] sm:$0xff] %vm1629, %v1602
  %1636 = vst.msk [vmem:[%s4 + $0x30] sm:$0xff] %vm1629, %v1605
  %1637 = vst.msk [vmem:[%s4 + $0x38] sm:$0xff] %vm1629, %v1607
  %1638 = vst.msk [vmem:[%s4 + $0x40] sm:$0xff] %vm1629, %v1610
  %1639 = vst.msk [vmem:[%s4 + $0x48] sm:$0xff] %vm1629, %v1612
  %1640 = vst.msk [vmem:[%s4 + $0x50] sm:$0xff] %vm1629, %v1615
  %1641 = vst.msk [vmem:[%s4 + $0x58] sm:$0xff] %vm1629, %v1617
  %1642 = vst.msk [vmem:[%s4 + $0x60] sm:$0xff] %vm1629, %v1620
  %1643 = vst.msk [vmem:[%s4 + $0x68] sm:$0xff] %vm1629, %v1622
  %1644 = vst.msk [vmem:[%s4 + $0x70] sm:$0xff] %vm1629, %v1625
  %1645 = vst.msk [vmem:[%s4 + $0x78] sm:$0xff] %vm1629, %v1627
  // Predicated region
  $region18: #{mynet_forward.22} parent=0 // pred_check
    _
  $region19: #{mynet_forward.22} parent=0 // pred_check_branch
    %1647 = sbr.rel (0) target = $region21
  $region20: #{mynet_forward.22} parent=0 // pred_region
    _
  $region21: #{mynet_forward.22} parent=0 // pred_fallthru
    _
  // Predicated region
  $region22: #{mynet_forward.22} parent=0 // pred_check
    _
  $region23: #{mynet_forward.22} parent=0 // pred_check_branch
    %1649 = sbr.rel (0) target = $region25
  $region24: #{mynet_forward.22} parent=0 // pred_region
    _
  $region25: #{mynet_forward.22} parent=0 // pred_fallthru
    _

// kernel: mynet_forward.23
$region0: #{mynet_forward.23}
  #allocation0 [shape = 'u32[]', space=smem, size = 0x4, offset = 0x4, fixed_abs, tag = 'smem constant byte address 0x4 - core index']
  #allocation1 [shape = 'u32[72,128]{1,0:T(1,128)}', space=vmem, size = 0x9000, scoped, tag = 'internal scratch']
  %s0 = inlined_call_operand.vmem [shape: bf16[2,64,64], index: 0, kind: input, shape index: {}]
  %s1 = inlined_call_operand.vmem [shape: bf16[2,64,64], index: 1, kind: input, shape index: {}]
  %s2 = inlined_call_operand.vmem [shape: bf16[2,64,64], index: 2, kind: input, shape index: {}]
  %s3 = inlined_call_operand.vmem [shape: bf16[2,64,64], index: 3, kind: input, shape index: {}]
  %s4 = inlined_call_operand.vmem [shape: bf16[2,64,64], index: 4, kind: output, shape index: {}]
  %s5 = sld [smem:[#allocation0]]
  $region49: #{mynet_forward.23} parent=0
    _
  %s7 = ssub.s32 1, %s5
  %s8 = scalar_select 0, %s7, %s5
  loop: start=0, step=1, limit=4
  $region2: #{mynet_forward.23} parent=0 // loop_pre_header
    _
  $region3: #{mynet_forward.23} parent=0 // loop_header
    %s10 = sphi 0, %s14
    %p11 = scmp.ge.s32.totalorder %s10, 4
    %s20 = sphi 0, %s22
    %s23 = sphi 0, %s20
    %s24 = sphi 0, %s23
    %s40 = sphi 0, %s24
    %s46 = sphi 0, %s48
    %s49 = sphi 0, %s46
    %s50 = sphi 0, %s49
    %s66 = sphi 0, %s50
    %s72 = sphi 0, %s74
    %s75 = sphi 0, %s72
    %s76 = sphi 0, %s75
    %s92 = sphi 0, %s76
    %s98 = sphi 0, %s100
    %s101 = sphi 0, %s98
    %s102 = sphi 0, %s101
    %s118 = sphi 0, %s102
    %s124 = sphi 0, %s126
    %s127 = sphi 0, %s124
    %s128 = sphi 0, %s127
    %s144 = sphi 0, %s128
  $region4: #{mynet_forward.23} parent=0 // loop_header_branch
    %13 = sbr.rel (%p11) target = $region8
  $region5: #{mynet_forward.23} parent=0 // loop_body
    %s15 = ssub.s32 %s10, 1
    %s16 = ssub.s32 %s10, 2
    %s17 = sadd.s32 %s10, 1
    %s18 = ssub.s32 %s10, %s17
    %p19 = scmp.eq.s32.totalorder %s18, 0
    %s21 = sadd.s32 %s20, 1
    %s22 = scalar_select %p19, %s20, %s21
    %p25 = pneg %p19
    %p26 = scmp.eq.s32.totalorder %s10, 1
    %p27 = por %p25, %p26
    %p28 = scmp.ne.s32.totalorder %s20, %s23
    %p29 = scmp.eq.s32.totalorder %s10, 0
    %p30 = por %p28, %p29
    %p31 = scmp.ne.s32.totalorder %s20, %s23
    %p32 = scmp.eq.s32.totalorder %s15, 1
    %p33 = por %p31, %p32
    %p34 = scmp.ne.s32.totalorder %s23, %s24
    %p35 = scmp.eq.s32.totalorder %s15, 0
    %p36 = por %p34, %p35
    %p37 = scmp.ne.s32.totalorder %s23, %s24
    %p38 = scmp.eq.s32.totalorder %s16, 1
    %p39 = por %p37, %p38
    %p41 = scmp.ne.s32.totalorder %s24, %s40
    %p42 = scmp.eq.s32.totalorder %s16, 0
    %p43 = por %p41, %p42
    %s44 = ssub.s32 %s10, %s17
    %p45 = scmp.eq.s32.totalorder %s44, 0
    %s47 = sadd.s32 %s46, 1
    %s48 = scalar_select %p45, %s46, %s47
    %p51 = pneg %p45
    %p52 = scmp.eq.s32.totalorder %s10, 1
    %p53 = por %p51, %p52
    %p54 = scmp.ne.s32.totalorder %s46, %s49
    %p55 = scmp.eq.s32.totalorder %s10, 0
    %p56 = por %p54, %p55
    %p57 = scmp.ne.s32.totalorder %s46, %s49
    %p58 = scmp.eq.s32.totalorder %s15, 1
    %p59 = por %p57, %p58
    %p60 = scmp.ne.s32.totalorder %s49, %s50
    %p61 = scmp.eq.s32.totalorder %s15, 0
    %p62 = por %p60, %p61
    %p63 = scmp.ne.s32.totalorder %s49, %s50
    %p64 = scmp.eq.s32.totalorder %s16, 1
    %p65 = por %p63, %p64
    %p67 = scmp.ne.s32.totalorder %s50, %s66
    %p68 = scmp.eq.s32.totalorder %s16, 0
    %p69 = por %p67, %p68
    %s70 = ssub.s32 %s10, %s17
    %p71 = scmp.eq.s32.totalorder %s70, 0
    %s73 = sadd.s32 %s72, 1
    %s74 = scalar_select %p71, %s72, %s73
    %p77 = pneg %p71
    %p78 = scmp.eq.s32.totalorder %s10, 1
    %p79 = por %p77, %p78
    %p80 = scmp.ne.s32.totalorder %s72, %s75
    %p81 = scmp.eq.s32.totalorder %s10, 0
    %p82 = por %p80, %p81
    %p83 = scmp.ne.s32.totalorder %s72, %s75
    %p84 = scmp.eq.s32.totalorder %s15, 1
    %p85 = por %p83, %p84
    %p86 = scmp.ne.s32.totalorder %s75, %s76
    %p87 = scmp.eq.s32.totalorder %s15, 0
    %p88 = por %p86, %p87
    %p89 = scmp.ne.s32.totalorder %s75, %s76
    %p90 = scmp.eq.s32.totalorder %s16, 1
    %p91 = por %p89, %p90
    %p93 = scmp.ne.s32.totalorder %s76, %s92
    %p94 = scmp.eq.s32.totalorder %s16, 0
    %p95 = por %p93, %p94
    %s96 = ssub.s32 %s10, %s17
    %p97 = scmp.eq.s32.totalorder %s96, 0
    %s99 = sadd.s32 %s98, 1
    %s100 = scalar_select %p97, %s98, %s99
    %p103 = pneg %p97
    %p104 = scmp.eq.s32.totalorder %s10, 1
    %p105 = por %p103, %p104
    %p106 = scmp.ne.s32.totalorder %s98, %s101
    %p107 = scmp.eq.s32.totalorder %s10, 0
    %p108 = por %p106, %p107
    %p109 = scmp.ne.s32.totalorder %s98, %s101
    %p110 = scmp.eq.s32.totalorder %s15, 1
    %p111 = por %p109, %p110
    %p112 = scmp.ne.s32.totalorder %s101, %s102
    %p113 = scmp.eq.s32.totalorder %s15, 0
    %p114 = por %p112, %p113
    %p115 = scmp.ne.s32.totalorder %s101, %s102
    %p116 = scmp.eq.s32.totalorder %s16, 1
    %p117 = por %p115, %p116
    %p119 = scmp.ne.s32.totalorder %s102, %s118
    %p120 = scmp.eq.s32.totalorder %s16, 0
    %p121 = por %p119, %p120
    %s122 = ssub.s32 %s10, %s17
    %p123 = scmp.eq.s32.totalorder %s122, 0
    %s125 = sadd.s32 %s124, 1
    %s126 = scalar_select %p123, %s124, %s125
    %p129 = pneg %p123
    %p130 = scmp.eq.s32.totalorder %s10, 1
    %p131 = por %p129, %p130
    %p132 = scmp.ne.s32.totalorder %s124, %s127
    %p133 = scmp.eq.s32.totalorder %s10, 0
    %p134 = por %p132, %p133
    %p135 = scmp.ne.s32.totalorder %s124, %s127
    %p136 = scmp.eq.s32.totalorder %s15, 1
    %p137 = por %p135, %p136
    %p138 = scmp.ne.s32.totalorder %s127, %s128
    %p139 = scmp.eq.s32.totalorder %s15, 0
    %p140 = por %p138, %p139
    %p141 = scmp.ne.s32.totalorder %s127, %s128
    %p142 = scmp.eq.s32.totalorder %s16, 1
    %p143 = por %p141, %p142
    %p145 = scmp.ne.s32.totalorder %s128, %s144
    %p146 = scmp.eq.s32.totalorder %s16, 0
    %p147 = por %p145, %p146
    %p148 = scmp.le.s32.totalorder 1, %s10
    %p149 = scmp.lt.s32.totalorder %s10, 3
    %p150 = pnand %p148, %p149
    %p151 = pneg %p150
    // Predicated region
    $region9: #{mynet_forward.23} parent=5 // pred_check
      _
    $region10: #{mynet_forward.23} parent=5 // pred_check_branch
      %153 = sbr.rel (%p150) target = $region12
    $region11: #{mynet_forward.23} parent=5 // pred_region
      %s154 = ssub.s32 %s10, 1
    $region12: #{mynet_forward.23} parent=5 // pred_fallthru
      _
    %p155 = scmp.lt.s32.totalorder %s10, 2
    // Predicated region
    $region13: #{mynet_forward.23} parent=5 // pred_check
      %p156 = pneg %p155
    $region14: #{mynet_forward.23} parent=5 // pred_check_branch
      %158 = sbr.rel (%p156) target = $region16
    $region15: #{mynet_forward.23} parent=5 // pred_region
      // Predicated region
      $region17: #{mynet_forward.23} parent=15 // pred_check
        %p159 = pneg %p30
      $region18: #{mynet_forward.23} parent=15 // pred_check_branch
        %161 = sbr.rel (%p159) target = $region20
      $region19: #{mynet_forward.23} parent=15 // pred_region
        %p162 = scmp.lt.s32.totalorder %s10, 1
        %s163 = scalar_select %p162, %s10, 1
        %s164 = smul.addr %s163, 8
        %s165 = smul.addr %s164, 4
        %s166 = scalar_lea.vmem %s0, %s165
      $region20: #{mynet_forward.23} parent=15 // pred_fallthru
        _
      // Predicated region
      $region21: #{mynet_forward.23} parent=15 // pred_check
        %p167 = pneg %p56
      $region22: #{mynet_forward.23} parent=15 // pred_check_branch
        %169 = sbr.rel (%p167) target = $region24
      $region23: #{mynet_forward.23} parent=15 // pred_region
        %p170 = scmp.lt.s32.totalorder %s10, 1
        %s171 = scalar_select %p170, %s10, 1
        %s172 = smul.addr %s171, 8
        %s173 = smul.addr %s172, 4
        %s174 = scalar_lea.vmem %s1, %s173
      $region24: #{mynet_forward.23} parent=15 // pred_fallthru
        _
      // Predicated region
      $region25: #{mynet_forward.23} parent=15 // pred_check
        %p175 = pneg %p82
      $region26: #{mynet_forward.23} parent=15 // pred_check_branch
        %177 = sbr.rel (%p175) target = $region28
      $region27: #{mynet_forward.23} parent=15 // pred_region
        %p178 = scmp.lt.s32.totalorder %s10, 1
        %s179 = scalar_select %p178, %s10, 1
        %s180 = smul.addr %s179, 8
        %s181 = smul.addr %s180, 4
        %s182 = scalar_lea.vmem %s2, %s181
      $region28: #{mynet_forward.23} parent=15 // pred_fallthru
        _
      // Predicated region
      $region29: #{mynet_forward.23} parent=15 // pred_check
        %p183 = pneg %p108
      $region30: #{mynet_forward.23} parent=15 // pred_check_branch
        %185 = sbr.rel (%p183) target = $region32
      $region31: #{mynet_forward.23} parent=15 // pred_region
        %p186 = scmp.lt.s32.totalorder %s10, 1
        %s187 = scalar_select %p186, %s10, 1
        %s188 = smul.addr %s187, 8
        %s189 = smul.addr %s188, 4
        %s190 = scalar_lea.vmem %s3, %s189
      $region32: #{mynet_forward.23} parent=15 // pred_fallthru
        _
    $region16: #{mynet_forward.23} parent=5 // pred_fallthru
      _
    %p191 = scmp.le.s32.totalorder 1, %s10
    %p192 = scmp.lt.s32.totalorder %s10, 3
    %p193 = pnand %p191, %p192
    %p194 = pneg %p193
    // Predicated region
    $region33: #{mynet_forward.23} parent=5 // pred_check
      _
    $region34: #{mynet_forward.23} parent=5 // pred_check_branch
      %196 = sbr.rel (%p193) target = $region36
    $region35: #{mynet_forward.23} parent=5 // pred_region
      %s197 = ssub.s32 %s10, 1
      %p198 = scmp.lt.s32.totalorder %s15, 1
      %s199 = scalar_select %p198, %s15, 1
      %s200 = smul.addr %s199, 8
      %s201 = smul.addr %s200, 4
      %s202 = scalar_lea.vmem %s0, %s201
      %p203 = pneg %p36
      %p204 = pneg %p33
      %p205 = scmp.lt.s32.totalorder %s15, 1
      %s206 = scalar_select %p205, %s15, 1
      %s207 = smul.addr %s206, 8
      %s208 = smul.addr %s207, 4
      %s209 = scalar_lea.vmem %s1, %s208
      %p210 = pneg %p62
      %p211 = pneg %p59
      %p212 = scmp.lt.s32.totalorder %s15, 1
      %s213 = scalar_select %p212, %s15, 1
      %s214 = smul.addr %s213, 8
      %s215 = smul.addr %s214, 4
      %s216 = scalar_lea.vmem %s2, %s215
      %p217 = pneg %p88
      %p218 = pneg %p85
      %p219 = scmp.lt.s32.totalorder %s15, 1
      %s220 = scalar_select %p219, %s15, 1
      %s221 = smul.addr %s220, 8
      %s222 = smul.addr %s221, 4
      %s223 = scalar_lea.vmem %s3, %s222
      %p224 = pneg %p114
      %p225 = pneg %p111
      %p226 = pneg %p140
      %p227 = pneg %p137
      %p228 = scmp.lt.s32.totalorder %s15, 1
      %s229 = scalar_select %p228, %s15, 1
      %s230 = smul.addr %s229, 8
      %s231 = smul.addr %s230, 4
      %s232 = scalar_lea.vmem %s4, %s231
      %p233 = scmp.lt.s32.totalorder %s15, 1
      %s234 = scalar_select %p233, %s15, 1
      %s235 = smul.addr %s234, 8
      %s236 = smul.addr %s235, 4
      %s237 = scalar_lea.vmem %s0, %s236
      %p238 = scmp.lt.s32.totalorder %s15, 1
      %s239 = scalar_select %p238, %s15, 1
      %s240 = smul.addr %s239, 8
      %s241 = smul.addr %s240, 4
      %s242 = scalar_lea.vmem %s1, %s241
      %p243 = scmp.lt.s32.totalorder %s15, 1
      %s244 = scalar_select %p243, %s15, 1
      %s245 = smul.addr %s244, 8
      %s246 = smul.addr %s245, 4
      %s247 = scalar_lea.vmem %s2, %s246
      %p248 = scmp.lt.s32.totalorder %s15, 1
      %s249 = scalar_select %p248, %s15, 1
      %s250 = smul.addr %s249, 8
      %s251 = smul.addr %s250, 4
      %s252 = scalar_lea.vmem %s3, %s251
      %p253 = scmp.lt.s32.totalorder %s15, 1
      %s254 = scalar_select %p253, %s15, 1
      %s255 = smul.addr %s254, 8
      %s256 = smul.addr %s255, 4
      %s257 = scalar_lea.vmem %s4, %s256
      %v259 = vld [vmem:[%s237] sm:$0xf]
      %v260 = vld [vmem:[%s237 + $0x4] sm:$0xf]
      %v261 = vld [vmem:[%s237 + $0x8] sm:$0xf]
      %v262 = vld [vmem:[%s237 + $0xc] sm:$0xf]
      %v263 = vld [vmem:[%s237 + $0x10] sm:$0xf]
      %v264 = vld [vmem:[%s237 + $0x14] sm:$0xf]
      %v265 = vld [vmem:[%s237 + $0x18] sm:$0xf]
      %v266 = vld [vmem:[%s237 + $0x1c] sm:$0xf]
      %v267 = vld [vmem:[%s242] sm:$0xf]
      %v268 = vld [vmem:[%s242 + $0x4] sm:$0xf]
      %v269 = vld [vmem:[%s242 + $0x8] sm:$0xf]
      %v270 = vld [vmem:[%s242 + $0xc] sm:$0xf]
      %v271 = vld [vmem:[%s242 + $0x10] sm:$0xf]
      %v272 = vld [vmem:[%s242 + $0x14] sm:$0xf]
      %v273 = vld [vmem:[%s242 + $0x18] sm:$0xf]
      %v274 = vld [vmem:[%s242 + $0x1c] sm:$0xf]
      %v275 = vld [vmem:[%s247] sm:$0xf]
      %v276 = vld [vmem:[%s247 + $0x4] sm:$0xf]
      %v277 = vld [vmem:[%s247 + $0x8] sm:$0xf]
      %v278 = vld [vmem:[%s247 + $0xc] sm:$0xf]
      %v279 = vld [vmem:[%s247 + $0x10] sm:$0xf]
      %v280 = vld [vmem:[%s247 + $0x14] sm:$0xf]
      %v281 = vld [vmem:[%s247 + $0x18] sm:$0xf]
      %v282 = vld [vmem:[%s247 + $0x1c] sm:$0xf]
      %v283 = vld [vmem:[%s252] sm:$0xf]
      %v284 = vld [vmem:[%s252 + $0x4] sm:$0xf]
      %v285 = vld [vmem:[%s252 + $0x8] sm:$0xf]
      %v286 = vld [vmem:[%s252 + $0xc] sm:$0xf]
      %v287 = vld [vmem:[%s252 + $0x10] sm:$0xf]
      %v288 = vld [vmem:[%s252 + $0x14] sm:$0xf]
      %v289 = vld [vmem:[%s252 + $0x18] sm:$0xf]
      %v290 = vld [vmem:[%s252 + $0x1c] sm:$0xf]
      %v299 = vunpack.c.l.b16 %v275
      %v300 = vunpack.c.l.b16 %v276
      %v301 = vunpack.c.l.b16 %v277
      %v302 = vunpack.c.l.b16 %v278
      %v303 = vunpack.c.l.b16 %v279
      %v304 = vunpack.c.l.b16 %v280
      %v305 = vunpack.c.l.b16 %v281
      %v306 = vunpack.c.l.b16 %v282
      %v307 = vpack.c.b16 %v300, %v299
      %v308 = vpack.c.b16 %v302, %v301
      %v309 = vpack.c.b16 %v304, %v303
      %v310 = vpack.c.b16 %v306, %v305
      %v319 = vunpack.c.l.b16 %v283
      %v320 = vunpack.c.l.b16 %v284
      %v321 = vunpack.c.l.b16 %v285
      %v322 = vunpack.c.l.b16 %v286
      %v323 = vunpack.c.l.b16 %v287
      %v324 = vunpack.c.l.b16 %v288
      %v325 = vunpack.c.l.b16 %v289
      %v326 = vunpack.c.l.b16 %v290
      %v327 = vpack.c.b16 %v320, %v319
      %v328 = vpack.c.b16 %v322, %v321
      %v329 = vpack.c.b16 %v324, %v323
      %v330 = vpack.c.b16 %v326, %v325
      %vm335 = vcmask 523264
      %v337 = vsel %vm335, %v307, 0
      %v340 = vsel %vm335, %v308, 0
      %v343 = vsel %vm335, %v309, 0
      %v346 = vsel %vm335, %v310, 0
      %348 = vmatpush.bf16.msra.mxu0 0
      %349 = vmatpush.bf16.msra.mxu0 0
      %350 = vmatpush.bf16.msra.mxu0 0
      %351 = vmatpush.bf16.msra.mxu0 0
      %352 = vmatpush.bf16.msra.mxu0 %v330
      %353 = vmatpush.bf16.msra.mxu0 %v329
      %354 = vmatpush.bf16.msra.mxu0 %v328
      %355 = vmatpush.bf16.msra.mxu0 %v327
      %356 = vmatmul.bf16.gmra.mxu0 %v337
      %v357 = vpop.f32.mrf.mxu0
      %v358 = vadd.f32 0.0, %v357
      %v359 = vpop.f32.mrf.mxu0
      %v360 = vadd.f32 0.0, %v359
      %361 = vmatmul.bf16.gmra.mxu0 %v340
      %v362 = vpop.f32.mrf.mxu0
      %v363 = vadd.f32 0.0, %v362
      %v364 = vpop.f32.mrf.mxu0
      %v365 = vadd.f32 0.0, %v364
      %366 = vmatmul.bf16.gmra.mxu0 %v343
      %v367 = vpop.f32.mrf.mxu0
      %v368 = vadd.f32 0.0, %v367
      %v369 = vpop.f32.mrf.mxu0
      %v370 = vadd.f32 0.0, %v369
      %371 = vmatmul.bf16.gmra.mxu0 %v346
      %v372 = vpop.f32.mrf.mxu0
      %v373 = vadd.f32 0.0, %v372
      %v374 = vpop.f32.mrf.mxu0
      %v375 = vadd.f32 0.0, %v374
      %376 = vdwg.mxu0
      %v385 = vunpack.c.l.b16 %v259
      %v386 = vunpack.c.l.b16 %v260
      %v387 = vunpack.c.l.b16 %v261
      %v388 = vunpack.c.l.b16 %v262
      %v389 = vunpack.c.l.b16 %v263
      %v390 = vunpack.c.l.b16 %v264
      %v391 = vunpack.c.l.b16 %v265
      %v392 = vunpack.c.l.b16 %v266
      %v393 = vpack.c.b16 %v386, %v385
      %v394 = vpack.c.b16 %v388, %v387
      %v395 = vpack.c.b16 %v390, %v389
      %v396 = vpack.c.b16 %v392, %v391
      %v405 = vunpack.c.l.b16 %v267
      %v406 = vunpack.c.l.b16 %v268
      %v407 = vunpack.c.l.b16 %v269
      %v408 = vunpack.c.l.b16 %v270
      %v409 = vunpack.c.l.b16 %v271
      %v410 = vunpack.c.l.b16 %v272
      %v411 = vunpack.c.l.b16 %v273
      %v412 = vunpack.c.l.b16 %v274
      %v413 = vpack.c.b16 %v406, %v405
      %v414 = vpack.c.b16 %v408, %v407
      %v415 = vpack.c.b16 %v410, %v409
      %v416 = vpack.c.b16 %v412, %v411
      %v422 = vsel %vm335, %v393, 0
      %v425 = vsel %vm335, %v394, 0
      %v428 = vsel %vm335, %v395, 0
      %v431 = vsel %vm335, %v396, 0
      %433 = vmatpush.bf16.msra.mxu0 0
      %434 = vmatpush.bf16.msra.mxu0 0
      %435 = vmatpush.bf16.msra.mxu0 0
      %436 = vmatpush.bf16.msra.mxu0 0
      %437 = vmatpush.bf16.msra.mxu0 %v416
      %438 = vmatpush.bf16.msra.mxu0 %v415
      %439 = vmatpush.bf16.msra.mxu0 %v414
      %440 = vmatpush.bf16.msra.mxu0 %v413
      %441 = vmatmul.bf16.gmra.mxu0 %v422
      %v442 = vpop.f32.mrf.mxu0
      %v443 = vadd.f32 %v358, %v442
      %v444 = vpop.f32.mrf.mxu0
      %v445 = vadd.f32 %v360, %v444
      %446 = vmatmul.bf16.gmra.mxu0 %v425
      %v447 = vpop.f32.mrf.mxu0
      %v448 = vadd.f32 %v363, %v447
      %v449 = vpop.f32.mrf.mxu0
      %v450 = vadd.f32 %v365, %v449
      %451 = vmatmul.bf16.gmra.mxu0 %v428
      %v452 = vpop.f32.mrf.mxu0
      %v453 = vadd.f32 %v368, %v452
      %v454 = vpop.f32.mrf.mxu0
      %v455 = vadd.f32 %v370, %v454
      %456 = vmatmul.bf16.gmra.mxu0 %v431
      %v457 = vpop.f32.mrf.mxu0
      %v458 = vadd.f32 %v373, %v457
      %v459 = vpop.f32.mrf.mxu0
      %v460 = vadd.f32 %v375, %v459
      %461 = vdwg.mxu0
      %v462 = vpack.c.bf16 %v443, %v443
      %v463 = vpack.c.bf16 %v445, %v445
      %v464 = vpack.c.bf16 %v448, %v448
      %v465 = vpack.c.bf16 %v450, %v450
      %v466 = vpack.c.bf16 %v453, %v453
      %v467 = vpack.c.bf16 %v455, %v455
      %v468 = vpack.c.bf16 %v458, %v458
      %v469 = vpack.c.bf16 %v460, %v460
      %vm470 = vcmask 519168
      %471 = vst.msk [vmem:[%s257] sm:$0xf] %vm470, %v462
      %472 = vst.msk [vmem:[%s257 + $0x4] sm:$0xf] %vm470, %v463
      %473 = vst.msk [vmem:[%s257 + $0x8] sm:$0xf] %vm470, %v464
      %474 = vst.msk [vmem:[%s257 + $0xc] sm:$0xf] %vm470, %v465
      %475 = vst.msk [vmem:[%s257 + $0x10] sm:$0xf] %vm470, %v466
      %476 = vst.msk [vmem:[%s257 + $0x14] sm:$0xf] %vm470, %v467
      %477 = vst.msk [vmem:[%s257 + $0x18] sm:$0xf] %vm470, %v468
      %478 = vst.msk [vmem:[%s257 + $0x1c] sm:$0xf] %vm470, %v469
      %p479 = scmp.lt.s32.totalorder %s15, 1
      %s480 = scalar_select %p479, %s15, 1
      %s481 = smul.addr %s480, 8
      %s482 = smul.addr %s481, 4
      %s483 = scalar_lea.vmem %s4, %s482
      // Predicated region
      $region37: #{mynet_forward.23} parent=35 // pred_check
        %p484 = pneg %p137
      $region38: #{mynet_forward.23} parent=35 // pred_check_branch
        %486 = sbr.rel (%p484) target = $region40
      $region39: #{mynet_forward.23} parent=35 // pred_region
        _
      $region40: #{mynet_forward.23} parent=35 // pred_fallthru
        _
    $region36: #{mynet_forward.23} parent=5 // pred_fallthru
      _
    %p487 = scmp.le.s32.totalorder 2, %s10
    // Predicated region
    $region41: #{mynet_forward.23} parent=5 // pred_check
      %p488 = pneg %p487
    $region42: #{mynet_forward.23} parent=5 // pred_check_branch
      %490 = sbr.rel (%p488) target = $region44
    $region43: #{mynet_forward.23} parent=5 // pred_region
      %s491 = ssub.s32 %s10, 2
      // Predicated region
      $region45: #{mynet_forward.23} parent=43 // pred_check
        %p492 = pneg %p143
      $region46: #{mynet_forward.23} parent=43 // pred_check_branch
        %494 = sbr.rel (%p492) target = $region48
      $region47: #{mynet_forward.23} parent=43 // pred_region
        %p495 = scmp.lt.s32.totalorder %s16, 1
        %s496 = scalar_select %p495, %s16, 1
        %s497 = smul.addr %s496, 8
        %s498 = smul.addr %s497, 4
        %s499 = scalar_lea.vmem %s4, %s498
      $region48: #{mynet_forward.23} parent=43 // pred_fallthru
        _
    $region44: #{mynet_forward.23} parent=5 // pred_fallthru
      _
  $region6: #{mynet_forward.23} parent=0 // loop_footer
    %s14 = sadd.s32 1, %s10
  $region7: #{mynet_forward.23} parent=0 // loop_footer_branch
    %9 = sbr.rel target = $region3
  $region8: #{mynet_forward.23} parent=0 // loop_exit
    _

// kernel: mynet_forward.24
$region0: #{mynet_forward.24}
  #allocation0 [shape = 'u32[]', space=smem, size = 0x4, offset = 0x4, fixed_abs, tag = 'smem constant byte address 0x4 - core index']
  #allocation1 [shape = 'u32[72,128]{1,0:T(1,128)}', space=vmem, size = 0x9000, scoped, tag = 'internal scratch']
  %s0 = inlined_call_operand.vmem [shape: bf16[128,64], index: 0, kind: input, shape index: {}]
  %s1 = inlined_call_operand.vmem [shape: bf16[64,64], index: 1, kind: input, shape index: {}]
  %s2 = inlined_call_operand.vmem [shape: bf16[128,64], index: 2, kind: output, shape index: {}]
  %s3 = sld [smem:[#allocation0]]
  $region18: #{mynet_forward.24} parent=0
    _
  %s5 = ssub.s32 1, %s3
  %s6 = scalar_select 0, %s5, %s3
  // Predicated region
  $region2: #{mynet_forward.24} parent=0 // pred_check
    _
  $region3: #{mynet_forward.24} parent=0 // pred_check_branch
    %8 = sbr.rel (0) target = $region5
  $region4: #{mynet_forward.24} parent=0 // pred_region
    _
  $region5: #{mynet_forward.24} parent=0 // pred_fallthru
    _
  // Predicated region
  $region6: #{mynet_forward.24} parent=0 // pred_check
    _
  $region7: #{mynet_forward.24} parent=0 // pred_check_branch
    %10 = sbr.rel (0) target = $region9
  $region8: #{mynet_forward.24} parent=0 // pred_region
    _
  $region9: #{mynet_forward.24} parent=0 // pred_fallthru
    _
  %v12 = vld [vmem:[%s0] sm:$0xf]
  %v13 = vld [vmem:[%s0 + $0x4] sm:$0xf]
  %v14 = vld [vmem:[%s0 + $0x8] sm:$0xf]
  %v15 = vld [vmem:[%s0 + $0xc] sm:$0xf]
  %v16 = vld [vmem:[%s0 + $0x10] sm:$0xf]
  %v17 = vld [vmem:[%s0 + $0x14] sm:$0xf]
  %v18 = vld [vmem:[%s0 + $0x18] sm:$0xf]
  %v19 = vld [vmem:[%s0 + $0x1c] sm:$0xf]
  %v20 = vld [vmem:[%s0 + $0x20] sm:$0xf]
  %v21 = vld [vmem:[%s0 + $0x24] sm:$0xf]
  %v22 = vld [vmem:[%s0 + $0x28] sm:$0xf]
  %v23 = vld [vmem:[%s0 + $0x2c] sm:$0xf]
  %v24 = vld [vmem:[%s0 + $0x30] sm:$0xf]
  %v25 = vld [vmem:[%s0 + $0x34] sm:$0xf]
  %v26 = vld [vmem:[%s0 + $0x38] sm:$0xf]
  %v27 = vld [vmem:[%s0 + $0x3c] sm:$0xf]
  %v28 = vld [vmem:[%s1] sm:$0xf]
  %v29 = vld [vmem:[%s1 + $0x4] sm:$0xf]
  %v30 = vld [vmem:[%s1 + $0x8] sm:$0xf]
  %v31 = vld [vmem:[%s1 + $0xc] sm:$0xf]
  %v32 = vld [vmem:[%s1 + $0x10] sm:$0xf]
  %v33 = vld [vmem:[%s1 + $0x14] sm:$0xf]
  %v34 = vld [vmem:[%s1 + $0x18] sm:$0xf]
  %v35 = vld [vmem:[%s1 + $0x1c] sm:$0xf]
  %v52 = vunpack.c.l.b16 %v12
  %v53 = vunpack.c.l.b16 %v13
  %v54 = vunpack.c.l.b16 %v14
  %v55 = vunpack.c.l.b16 %v15
  %v56 = vunpack.c.l.b16 %v16
  %v57 = vunpack.c.l.b16 %v17
  %v58 = vunpack.c.l.b16 %v18
  %v59 = vunpack.c.l.b16 %v19
  %v60 = vunpack.c.l.b16 %v20
  %v61 = vunpack.c.l.b16 %v21
  %v62 = vunpack.c.l.b16 %v22
  %v63 = vunpack.c.l.b16 %v23
  %v64 = vunpack.c.l.b16 %v24
  %v65 = vunpack.c.l.b16 %v25
  %v66 = vunpack.c.l.b16 %v26
  %v67 = vunpack.c.l.b16 %v27
  %v68 = vpack.c.b16 %v53, %v52
  %v69 = vpack.c.b16 %v55, %v54
  %v70 = vpack.c.b16 %v57, %v56
  %v71 = vpack.c.b16 %v59, %v58
  %v72 = vpack.c.b16 %v61, %v60
  %v73 = vpack.c.b16 %v63, %v62
  %v74 = vpack.c.b16 %v65, %v64
  %v75 = vpack.c.b16 %v67, %v66
  %v84 = vunpack.c.l.b16 %v28
  %v85 = vunpack.c.l.b16 %v29
  %v86 = vunpack.c.l.b16 %v30
  %v87 = vunpack.c.l.b16 %v31
  %v88 = vunpack.c.l.b16 %v32
  %v89 = vunpack.c.l.b16 %v33
  %v90 = vunpack.c.l.b16 %v34
  %v91 = vunpack.c.l.b16 %v35
  %v92 = vpack.c.b16 %v85, %v84
  %v93 = vpack.c.b16 %v87, %v86
  %v94 = vpack.c.b16 %v89, %v88
  %v95 = vpack.c.b16 %v91, %v90
  %vm100 = vcmask 523264
  %v102 = vsel %vm100, %v68, 0
  %v105 = vsel %vm100, %v69, 0
  %v108 = vsel %vm100, %v70, 0
  %v111 = vsel %vm100, %v71, 0
  %v114 = vsel %vm100, %v72, 0
  %v117 = vsel %vm100, %v73, 0
  %v120 = vsel %vm100, %v74, 0
  %v123 = vsel %vm100, %v75, 0
  %125 = vmatpush.bf16.msra.mxu0 0
  %126 = vmatpush.bf16.msra.mxu0 0
  %127 = vmatpush.bf16.msra.mxu0 0
  %128 = vmatpush.bf16.msra.mxu0 0
  %129 = vmatpush.bf16.msra.mxu0 %v95
  %130 = vmatpush.bf16.msra.mxu0 %v94
  %131 = vmatpush.bf16.msra.mxu0 %v93
  %132 = vmatpush.bf16.msra.mxu0 %v92
  %133 = vmatmul.bf16.gmra.mxu0 %v102
  %v134 = vpop.f32.mrf.mxu0
  %v135 = vadd.f32 0.0, %v134
  %v136 = vpop.f32.mrf.mxu0
  %v137 = vadd.f32 0.0, %v136
  %138 = vmatmul.bf16.gmra.mxu0 %v105
  %v139 = vpop.f32.mrf.mxu0
  %v140 = vadd.f32 0.0, %v139
  %v141 = vpop.f32.mrf.mxu0
  %v142 = vadd.f32 0.0, %v141
  %143 = vmatmul.bf16.gmra.mxu0 %v108
  %v144 = vpop.f32.mrf.mxu0
  %v145 = vadd.f32 0.0, %v144
  %v146 = vpop.f32.mrf.mxu0
  %v147 = vadd.f32 0.0, %v146
  %148 = vmatmul.bf16.gmra.mxu0 %v111
  %v149 = vpop.f32.mrf.mxu0
  %v150 = vadd.f32 0.0, %v149
  %v151 = vpop.f32.mrf.mxu0
  %v152 = vadd.f32 0.0, %v151
  %153 = vmatmul.bf16.gmra.mxu0 %v114
  %v154 = vpop.f32.mrf.mxu0
  %v155 = vadd.f32 0.0, %v154
  %v156 = vpop.f32.mrf.mxu0
  %v157 = vadd.f32 0.0, %v156
  %158 = vmatmul.bf16.gmra.mxu0 %v117
  %v159 = vpop.f32.mrf.mxu0
  %v160 = vadd.f32 0.0, %v159
  %v161 = vpop.f32.mrf.mxu0
  %v162 = vadd.f32 0.0, %v161
  %163 = vmatmul.bf16.gmra.mxu0 %v120
  %v164 = vpop.f32.mrf.mxu0
  %v165 = vadd.f32 0.0, %v164
  %v166 = vpop.f32.mrf.mxu0
  %v167 = vadd.f32 0.0, %v166
  %168 = vmatmul.bf16.gmra.mxu0 %v123
  %v169 = vpop.f32.mrf.mxu0
  %v170 = vadd.f32 0.0, %v169
  %v171 = vpop.f32.mrf.mxu0
  %v172 = vadd.f32 0.0, %v171
  %173 = vdwg.mxu0
  %v174 = vpack.c.bf16 %v135, %v135
  %v175 = vpack.c.bf16 %v137, %v137
  %v176 = vpack.c.bf16 %v140, %v140
  %v177 = vpack.c.bf16 %v142, %v142
  %v178 = vpack.c.bf16 %v145, %v145
  %v179 = vpack.c.bf16 %v147, %v147
  %v180 = vpack.c.bf16 %v150, %v150
  %v181 = vpack.c.bf16 %v152, %v152
  %v182 = vpack.c.bf16 %v155, %v155
  %v183 = vpack.c.bf16 %v157, %v157
  %v184 = vpack.c.bf16 %v160, %v160
  %v185 = vpack.c.bf16 %v162, %v162
  %v186 = vpack.c.bf16 %v165, %v165
  %v187 = vpack.c.bf16 %v167, %v167
  %v188 = vpack.c.bf16 %v170, %v170
  %v189 = vpack.c.bf16 %v172, %v172
  %vm190 = vcmask 519168
  %191 = vst.msk [vmem:[%s2] sm:$0xf] %vm190, %v174
  %192 = vst.msk [vmem:[%s2 + $0x4] sm:$0xf] %vm190, %v175
  %193 = vst.msk [vmem:[%s2 + $0x8] sm:$0xf] %vm190, %v176
  %194 = vst.msk [vmem:[%s2 + $0xc] sm:$0xf] %vm190, %v177
  %195 = vst.msk [vmem:[%s2 + $0x10] sm:$0xf] %vm190, %v178
  %196 = vst.msk [vmem:[%s2 + $0x14] sm:$0xf] %vm190, %v179
  %197 = vst.msk [vmem:[%s2 + $0x18] sm:$0xf] %vm190, %v180
  %198 = vst.msk [vmem:[%s2 + $0x1c] sm:$0xf] %vm190, %v181
  %199 = vst.msk [vmem:[%s2 + $0x20] sm:$0xf] %vm190, %v182
  %200 = vst.msk [vmem:[%s2 + $0x24] sm:$0xf] %vm190, %v183
  %201 = vst.msk [vmem:[%s2 + $0x28] sm:$0xf] %vm190, %v184
  %202 = vst.msk [vmem:[%s2 + $0x2c] sm:$0xf] %vm190, %v185
  %203 = vst.msk [vmem:[%s2 + $0x30] sm:$0xf] %vm190, %v186
  %204 = vst.msk [vmem:[%s2 + $0x34] sm:$0xf] %vm190, %v187
  %205 = vst.msk [vmem:[%s2 + $0x38] sm:$0xf] %vm190, %v188
  %206 = vst.msk [vmem:[%s2 + $0x3c] sm:$0xf] %vm190, %v189
  // Predicated region
  $region10: #{mynet_forward.24} parent=0 // pred_check
    _
  $region11: #{mynet_forward.24} parent=0 // pred_check_branch
    %208 = sbr.rel (0) target = $region13
  $region12: #{mynet_forward.24} parent=0 // pred_region
    _
  $region13: #{mynet_forward.24} parent=0 // pred_fallthru
    _
  // Predicated region
  $region14: #{mynet_forward.24} parent=0 // pred_check
    _
  $region15: #{mynet_forward.24} parent=0 // pred_check_branch
    %210 = sbr.rel (0) target = $region17
  $region16: #{mynet_forward.24} parent=0 // pred_region
    _
  $region17: #{mynet_forward.24} parent=0 // pred_fallthru
    _

// kernel: mynet_forward.25
$region0: #{mynet_forward.25}
  #allocation0 [shape = 'u32[]', space=smem, size = 0x4, offset = 0x4, fixed_abs, tag = 'smem constant byte address 0x4 - core index']
  #allocation1 [shape = 'u32[72,128]{1,0:T(1,128)}', space=vmem, size = 0x9000, scoped, tag = 'internal scratch']
  %s0 = inlined_call_operand.vmem [shape: bf16[512,576], index: 0, kind: input, shape index: {}]
  %s1 = inlined_call_operand.vmem [shape: bf16[576,8], index: 1, kind: input, shape index: {}]
  %s2 = inlined_call_operand.vmem [shape: bf16[512,576], index: 2, kind: input, shape index: {}]
  %s3 = inlined_call_operand.vmem [shape: bf16[576,8], index: 3, kind: input, shape index: {}]
  %s4 = inlined_call_operand.vmem [shape: f32[512,8], index: 4, kind: output, shape index: {}]
  %s5 = sld [smem:[#allocation0]]
  $region26: #{mynet_forward.25} parent=0
    _
  %s7 = ssub.s32 1, %s5
  %s8 = scalar_select 0, %s7, %s5
  // Predicated region
  $region2: #{mynet_forward.25} parent=0 // pred_check
    _
  $region3: #{mynet_forward.25} parent=0 // pred_check_branch
    %10 = sbr.rel (0) target = $region5
  $region4: #{mynet_forward.25} parent=0 // pred_region
    _
  $region5: #{mynet_forward.25} parent=0 // pred_fallthru
    _
  // Predicated region
  $region6: #{mynet_forward.25} parent=0 // pred_check
    _
  $region7: #{mynet_forward.25} parent=0 // pred_check_branch
    %12 = sbr.rel (0) target = $region9
  $region8: #{mynet_forward.25} parent=0 // pred_region
    _
  $region9: #{mynet_forward.25} parent=0 // pred_fallthru
    _
  // Predicated region
  $region10: #{mynet_forward.25} parent=0 // pred_check
    _
  $region11: #{mynet_forward.25} parent=0 // pred_check_branch
    %14 = sbr.rel (0) target = $region13
  $region12: #{mynet_forward.25} parent=0 // pred_region
    _
  $region13: #{mynet_forward.25} parent=0 // pred_fallthru
    _
  // Predicated region
  $region14: #{mynet_forward.25} parent=0 // pred_check
    _
  $region15: #{mynet_forward.25} parent=0 // pred_check_branch
    %16 = sbr.rel (0) target = $region17
  $region16: #{mynet_forward.25} parent=0 // pred_region
    _
  $region17: #{mynet_forward.25} parent=0 // pred_fallthru
    _
  %v18 = vld [vmem:[%s0] sm:$0xff]
  %v19 = vld [vmem:[%s0 + $0x8] sm:$0xff]
  %v20 = vld [vmem:[%s0 + $0x10] sm:$0xf]
  %v21 = vld [vmem:[%s0 + $0x14] sm:$0xff]
  %v22 = vld [vmem:[%s0 + $0x1c] sm:$0xff]
  %v23 = vld [vmem:[%s0 + $0x24] sm:$0xf]
  %v24 = vld [vmem:[%s0 + $0x28] sm:$0xff]
  %v25 = vld [vmem:[%s0 + $0x30] sm:$0xff]
  %v26 = vld [vmem:[%s0 + $0x38] sm:$0xf]
  %v27 = vld [vmem:[%s0 + $0x3c] sm:$0xff]
  %v28 = vld [vmem:[%s0 + $0x44] sm:$0xff]
  %v29 = vld [vmem:[%s0 + $0x4c] sm:$0xf]
  %v30 = vld [vmem:[%s0 + $0x50] sm:$0xff]
  %v31 = vld [vmem:[%s0 + $0x58] sm:$0xff]
  %v32 = vld [vmem:[%s0 + $0x60] sm:$0xf]
  %v33 = vld [vmem:[%s0 + $0x64] sm:$0xff]
  %v34 = vld [vmem:[%s0 + $0x6c] sm:$0xff]
  %v35 = vld [vmem:[%s0 + $0x74] sm:$0xf]
  %v36 = vld [vmem:[%s0 + $0x78] sm:$0xff]
  %v37 = vld [vmem:[%s0 + $0x80] sm:$0xff]
  %v38 = vld [vmem:[%s0 + $0x88] sm:$0xf]
  %v39 = vld [vmem:[%s0 + $0x8c] sm:$0xff]
  %v40 = vld [vmem:[%s0 + $0x94] sm:$0xff]
  %v41 = vld [vmem:[%s0 + $0x9c] sm:$0xf]
  %v42 = vld [vmem:[%s0 + $0xa0] sm:$0xff]
  %v43 = vld [vmem:[%s0 + $0xa8] sm:$0xff]
  %v44 = vld [vmem:[%s0 + $0xb0] sm:$0xf]
  %v45 = vld [vmem:[%s0 + $0xb4] sm:$0xff]
  %v46 = vld [vmem:[%s0 + $0xbc] sm:$0xff]
  %v47 = vld [vmem:[%s0 + $0xc4] sm:$0xf]
  %v48 = vld [vmem:[%s0 + $0xc8] sm:$0xff]
  %v49 = vld [vmem:[%s0 + $0xd0] sm:$0xff]
  %v50 = vld [vmem:[%s0 + $0xd8] sm:$0xf]
  %v51 = vld [vmem:[%s0 + $0xdc] sm:$0xff]
  %v52 = vld [vmem:[%s0 + $0xe4] sm:$0xff]
  %v53 = vld [vmem:[%s0 + $0xec] sm:$0xf]
  %v54 = vld [vmem:[%s0 + $0xf0] sm:$0xff]
  %v55 = vld [vmem:[%s0 + $0xf8] sm:$0xff]
  %v56 = vld [vmem:[%s0 + $0x100] sm:$0xf]
  %v57 = vld [vmem:[%s0 + $0x104] sm:$0xff]
  %v58 = vld [vmem:[%s0 + $0x10c] sm:$0xff]
  %v59 = vld [vmem:[%s0 + $0x114] sm:$0xf]
  %v60 = vld [vmem:[%s0 + $0x118] sm:$0xff]
  %v61 = vld [vmem:[%s0 + $0x120] sm:$0xff]
  %v62 = vld [vmem:[%s0 + $0x128] sm:$0xf]
  %v63 = vld [vmem:[%s0 + $0x12c] sm:$0xff]
  %v64 = vld [vmem:[%s0 + $0x134] sm:$0xff]
  %v65 = vld [vmem:[%s0 + $0x13c] sm:$0xf]
  %v66 = vld [vmem:[%s0 + $0x140] sm:$0xff]
  %v67 = vld [vmem:[%s0 + $0x148] sm:$0xff]
  %v68 = vld [vmem:[%s0 + $0x150] sm:$0xf]
  %v69 = vld [vmem:[%s0 + $0x154] sm:$0xff]
  %v70 = vld [vmem:[%s0 + $0x15c] sm:$0xff]
  %v71 = vld [vmem:[%s0 + $0x164] sm:$0xf]
  %v72 = vld [vmem:[%s0 + $0x168] sm:$0xff]
  %v73 = vld [vmem:[%s0 + $0x170] sm:$0xff]
  %v74 = vld [vmem:[%s0 + $0x178] sm:$0xf]
  %v75 = vld [vmem:[%s0 + $0x17c] sm:$0xff]
  %v76 = vld [vmem:[%s0 + $0x184] sm:$0xff]
  %v77 = vld [vmem:[%s0 + $0x18c] sm:$0xf]
  %v78 = vld [vmem:[%s0 + $0x190] sm:$0xff]
  %v79 = vld [vmem:[%s0 + $0x198] sm:$0xff]
  %v80 = vld [vmem:[%s0 + $0x1a0] sm:$0xf]
  %v81 = vld [vmem:[%s0 + $0x1a4] sm:$0xff]
  %v82 = vld [vmem:[%s0 + $0x1ac] sm:$0xff]
  %v83 = vld [vmem:[%s0 + $0x1b4] sm:$0xf]
  %v84 = vld [vmem:[%s0 + $0x1b8] sm:$0xff]
  %v85 = vld [vmem:[%s0 + $0x1c0] sm:$0xff]
  %v86 = vld [vmem:[%s0 + $0x1c8] sm:$0xf]
  %v87 = vld [vmem:[%s0 + $0x1cc] sm:$0xff]
  %v88 = vld [vmem:[%s0 + $0x1d4] sm:$0xff]
  %v89 = vld [vmem:[%s0 + $0x1dc] sm:$0xf]
  %v90 = vld [vmem:[%s0 + $0x1e0] sm:$0xff]
  %v91 = vld [vmem:[%s0 + $0x1e8] sm:$0xff]
  %v92 = vld [vmem:[%s0 + $0x1f0] sm:$0xf]
  %v93 = vld [vmem:[%s0 + $0x1f4] sm:$0xff]
  %v94 = vld [vmem:[%s0 + $0x1fc] sm:$0xff]
  %v95 = vld [vmem:[%s0 + $0x204] sm:$0xf]
  %v96 = vld [vmem:[%s0 + $0x208] sm:$0xff]
  %v97 = vld [vmem:[%s0 + $0x210] sm:$0xff]
  %v98 = vld [vmem:[%s0 + $0x218] sm:$0xf]
  %v99 = vld [vmem:[%s0 + $0x21c] sm:$0xff]
  %v100 = vld [vmem:[%s0 + $0x224] sm:$0xff]
  %v101 = vld [vmem:[%s0 + $0x22c] sm:$0xf]
  %v102 = vld [vmem:[%s0 + $0x230] sm:$0xff]
  %v103 = vld [vmem:[%s0 + $0x238] sm:$0xff]
  %v104 = vld [vmem:[%s0 + $0x240] sm:$0xf]
  %v105 = vld [vmem:[%s0 + $0x244] sm:$0xff]
  %v106 = vld [vmem:[%s0 + $0x24c] sm:$0xff]
  %v107 = vld [vmem:[%s0 + $0x254] sm:$0xf]
  %v108 = vld [vmem:[%s0 + $0x258] sm:$0xff]
  %v109 = vld [vmem:[%s0 + $0x260] sm:$0xff]
  %v110 = vld [vmem:[%s0 + $0x268] sm:$0xf]
  %v111 = vld [vmem:[%s0 + $0x26c] sm:$0xff]
  %v112 = vld [vmem:[%s0 + $0x274] sm:$0xff]
  %v113 = vld [vmem:[%s0 + $0x27c] sm:$0xf]
  %v114 = vld [vmem:[%s0 + $0x280] sm:$0xff]
  %v115 = vld [vmem:[%s0 + $0x288] sm:$0xff]
  %v116 = vld [vmem:[%s0 + $0x290] sm:$0xf]
  %v117 = vld [vmem:[%s0 + $0x294] sm:$0xff]
  %v118 = vld [vmem:[%s0 + $0x29c] sm:$0xff]
  %v119 = vld [vmem:[%s0 + $0x2a4] sm:$0xf]
  %v120 = vld [vmem:[%s0 + $0x2a8] sm:$0xff]
  %v121 = vld [vmem:[%s0 + $0x2b0] sm:$0xff]
  %v122 = vld [vmem:[%s0 + $0x2b8] sm:$0xf]
  %v123 = vld [vmem:[%s0 + $0x2bc] sm:$0xff]
  %v124 = vld [vmem:[%s0 + $0x2c4] sm:$0xff]
  %v125 = vld [vmem:[%s0 + $0x2cc] sm:$0xf]
  %v126 = vld [vmem:[%s0 + $0x2d0] sm:$0xff]
  %v127 = vld [vmem:[%s0 + $0x2d8] sm:$0xff]
  %v128 = vld [vmem:[%s0 + $0x2e0] sm:$0xf]
  %v129 = vld [vmem:[%s0 + $0x2e4] sm:$0xff]
  %v130 = vld [vmem:[%s0 + $0x2ec] sm:$0xff]
  %v131 = vld [vmem:[%s0 + $0x2f4] sm:$0xf]
  %v132 = vld [vmem:[%s0 + $0x2f8] sm:$0xff]
  %v133 = vld [vmem:[%s0 + $0x300] sm:$0xff]
  %v134 = vld [vmem:[%s0 + $0x308] sm:$0xf]
  %v135 = vld [vmem:[%s0 + $0x30c] sm:$0xff]
  %v136 = vld [vmem:[%s0 + $0x314] sm:$0xff]
  %v137 = vld [vmem:[%s0 + $0x31c] sm:$0xf]
  %v138 = vld [vmem:[%s0 + $0x320] sm:$0xff]
  %v139 = vld [vmem:[%s0 + $0x328] sm:$0xff]
  %v140 = vld [vmem:[%s0 + $0x330] sm:$0xf]
  %v141 = vld [vmem:[%s0 + $0x334] sm:$0xff]
  %v142 = vld [vmem:[%s0 + $0x33c] sm:$0xff]
  %v143 = vld [vmem:[%s0 + $0x344] sm:$0xf]
  %v144 = vld [vmem:[%s0 + $0x348] sm:$0xff]
  %v145 = vld [vmem:[%s0 + $0x350] sm:$0xff]
  %v146 = vld [vmem:[%s0 + $0x358] sm:$0xf]
  %v147 = vld [vmem:[%s0 + $0x35c] sm:$0xff]
  %v148 = vld [vmem:[%s0 + $0x364] sm:$0xff]
  %v149 = vld [vmem:[%s0 + $0x36c] sm:$0xf]
  %v150 = vld [vmem:[%s0 + $0x370] sm:$0xff]
  %v151 = vld [vmem:[%s0 + $0x378] sm:$0xff]
  %v152 = vld [vmem:[%s0 + $0x380] sm:$0xf]
  %v153 = vld [vmem:[%s0 + $0x384] sm:$0xff]
  %v154 = vld [vmem:[%s0 + $0x38c] sm:$0xff]
  %v155 = vld [vmem:[%s0 + $0x394] sm:$0xf]
  %v156 = vld [vmem:[%s0 + $0x398] sm:$0xff]
  %v157 = vld [vmem:[%s0 + $0x3a0] sm:$0xff]
  %v158 = vld [vmem:[%s0 + $0x3a8] sm:$0xf]
  %v159 = vld [vmem:[%s0 + $0x3ac] sm:$0xff]
  %v160 = vld [vmem:[%s0 + $0x3b4] sm:$0xff]
  %v161 = vld [vmem:[%s0 + $0x3bc] sm:$0xf]
  %v162 = vld [vmem:[%s0 + $0x3c0] sm:$0xff]
  %v163 = vld [vmem:[%s0 + $0x3c8] sm:$0xff]
  %v164 = vld [vmem:[%s0 + $0x3d0] sm:$0xf]
  %v165 = vld [vmem:[%s0 + $0x3d4] sm:$0xff]
  %v166 = vld [vmem:[%s0 + $0x3dc] sm:$0xff]
  %v167 = vld [vmem:[%s0 + $0x3e4] sm:$0xf]
  %v168 = vld [vmem:[%s0 + $0x3e8] sm:$0xff]
  %v169 = vld [vmem:[%s0 + $0x3f0] sm:$0xff]
  %v170 = vld [vmem:[%s0 + $0x3f8] sm:$0xf]
  %v171 = vld [vmem:[%s0 + $0x3fc] sm:$0xff]
  %v172 = vld [vmem:[%s0 + $0x404] sm:$0xff]
  %v173 = vld [vmem:[%s0 + $0x40c] sm:$0xf]
  %v174 = vld [vmem:[%s0 + $0x410] sm:$0xff]
  %v175 = vld [vmem:[%s0 + $0x418] sm:$0xff]
  %v176 = vld [vmem:[%s0 + $0x420] sm:$0xf]
  %v177 = vld [vmem:[%s0 + $0x424] sm:$0xff]
  %v178 = vld [vmem:[%s0 + $0x42c] sm:$0xff]
  %v179 = vld [vmem:[%s0 + $0x434] sm:$0xf]
  %v180 = vld [vmem:[%s0 + $0x438] sm:$0xff]
  %v181 = vld [vmem:[%s0 + $0x440] sm:$0xff]
  %v182 = vld [vmem:[%s0 + $0x448] sm:$0xf]
  %v183 = vld [vmem:[%s0 + $0x44c] sm:$0xff]
  %v184 = vld [vmem:[%s0 + $0x454] sm:$0xff]
  %v185 = vld [vmem:[%s0 + $0x45c] sm:$0xf]
  %v186 = vld [vmem:[%s0 + $0x460] sm:$0xff]
  %v187 = vld [vmem:[%s0 + $0x468] sm:$0xff]
  %v188 = vld [vmem:[%s0 + $0x470] sm:$0xf]
  %v189 = vld [vmem:[%s0 + $0x474] sm:$0xff]
  %v190 = vld [vmem:[%s0 + $0x47c] sm:$0xff]
  %v191 = vld [vmem:[%s0 + $0x484] sm:$0xf]
  %v192 = vld [vmem:[%s0 + $0x488] sm:$0xff]
  %v193 = vld [vmem:[%s0 + $0x490] sm:$0xff]
  %v194 = vld [vmem:[%s0 + $0x498] sm:$0xf]
  %v195 = vld [vmem:[%s0 + $0x49c] sm:$0xff]
  %v196 = vld [vmem:[%s0 + $0x4a4] sm:$0xff]
  %v197 = vld [vmem:[%s0 + $0x4ac] sm:$0xf]
  %v198 = vld [vmem:[%s0 + $0x4b0] sm:$0xff]
  %v199 = vld [vmem:[%s0 + $0x4b8] sm:$0xff]
  %v200 = vld [vmem:[%s0 + $0x4c0] sm:$0xf]
  %v201 = vld [vmem:[%s0 + $0x4c4] sm:$0xff]
  %v202 = vld [vmem:[%s0 + $0x4cc] sm:$0xff]
  %v203 = vld [vmem:[%s0 + $0x4d4] sm:$0xf]
  %v204 = vld [vmem:[%s0 + $0x4d8] sm:$0xff]
  %v205 = vld [vmem:[%s0 + $0x4e0] sm:$0xff]
  %v206 = vld [vmem:[%s0 + $0x4e8] sm:$0xf]
  %v207 = vld [vmem:[%s0 + $0x4ec] sm:$0xff]
  %v208 = vld [vmem:[%s0 + $0x4f4] sm:$0xff]
  %v209 = vld [vmem:[%s0 + $0x4fc] sm:$0xf]
  %v210 = vld [vmem:[%s1] sm:$0xf]
  %v211 = vld [vmem:[%s1 + $0x4] sm:$0xf]
  %v212 = vld [vmem:[%s1 + $0x8] sm:$0xf]
  %v213 = vld [vmem:[%s1 + $0xc] sm:$0xf]
  %v214 = vld [vmem:[%s1 + $0x10] sm:$0xf]
  %v215 = vld [vmem:[%s1 + $0x14] sm:$0xf]
  %v216 = vld [vmem:[%s1 + $0x18] sm:$0xf]
  %v217 = vld [vmem:[%s1 + $0x1c] sm:$0xf]
  %v218 = vld [vmem:[%s1 + $0x20] sm:$0xf]
  %v219 = vld [vmem:[%s1 + $0x24] sm:$0xf]
  %v220 = vld [vmem:[%s1 + $0x28] sm:$0xf]
  %v221 = vld [vmem:[%s1 + $0x2c] sm:$0xf]
  %v222 = vld [vmem:[%s1 + $0x30] sm:$0xf]
  %v223 = vld [vmem:[%s1 + $0x34] sm:$0xf]
  %v224 = vld [vmem:[%s1 + $0x38] sm:$0xf]
  %v225 = vld [vmem:[%s1 + $0x3c] sm:$0xf]
  %v226 = vld [vmem:[%s1 + $0x40] sm:$0xf]
  %v227 = vld [vmem:[%s1 + $0x44] sm:$0xf]
  %v228 = vld [vmem:[%s1 + $0x48] sm:$0xf]
  %v229 = vld [vmem:[%s1 + $0x4c] sm:$0xf]
  %v230 = vld [vmem:[%s1 + $0x50] sm:$0xf]
  %v231 = vld [vmem:[%s1 + $0x54] sm:$0xf]
  %v232 = vld [vmem:[%s1 + $0x58] sm:$0xf]
  %v233 = vld [vmem:[%s1 + $0x5c] sm:$0xf]
  %v234 = vld [vmem:[%s1 + $0x60] sm:$0xf]
  %v235 = vld [vmem:[%s1 + $0x64] sm:$0xf]
  %v236 = vld [vmem:[%s1 + $0x68] sm:$0xf]
  %v237 = vld [vmem:[%s1 + $0x6c] sm:$0xf]
  %v238 = vld [vmem:[%s1 + $0x70] sm:$0xf]
  %v239 = vld [vmem:[%s1 + $0x74] sm:$0xf]
  %v240 = vld [vmem:[%s1 + $0x78] sm:$0xf]
  %v241 = vld [vmem:[%s1 + $0x7c] sm:$0xf]
  %v242 = vld [vmem:[%s1 + $0x80] sm:$0xf]
  %v243 = vld [vmem:[%s1 + $0x84] sm:$0xf]
  %v244 = vld [vmem:[%s1 + $0x88] sm:$0xf]
  %v245 = vld [vmem:[%s1 + $0x8c] sm:$0xf]
  %v246 = vld [vmem:[%s1 + $0x90] sm:$0xf]
  %v247 = vld [vmem:[%s1 + $0x94] sm:$0xf]
  %v248 = vld [vmem:[%s1 + $0x98] sm:$0xf]
  %v249 = vld [vmem:[%s1 + $0x9c] sm:$0xf]
  %v250 = vld [vmem:[%s1 + $0xa0] sm:$0xf]
  %v251 = vld [vmem:[%s1 + $0xa4] sm:$0xf]
  %v252 = vld [vmem:[%s1 + $0xa8] sm:$0xf]
  %v253 = vld [vmem:[%s1 + $0xac] sm:$0xf]
  %v254 = vld [vmem:[%s1 + $0xb0] sm:$0xf]
  %v255 = vld [vmem:[%s1 + $0xb4] sm:$0xf]
  %v256 = vld [vmem:[%s1 + $0xb8] sm:$0xf]
  %v257 = vld [vmem:[%s1 + $0xbc] sm:$0xf]
  %v258 = vld [vmem:[%s1 + $0xc0] sm:$0xf]
  %v259 = vld [vmem:[%s1 + $0xc4] sm:$0xf]
  %v260 = vld [vmem:[%s1 + $0xc8] sm:$0xf]
  %v261 = vld [vmem:[%s1 + $0xcc] sm:$0xf]
  %v262 = vld [vmem:[%s1 + $0xd0] sm:$0xf]
  %v263 = vld [vmem:[%s1 + $0xd4] sm:$0xf]
  %v264 = vld [vmem:[%s1 + $0xd8] sm:$0xf]
  %v265 = vld [vmem:[%s1 + $0xdc] sm:$0xf]
  %v266 = vld [vmem:[%s1 + $0xe0] sm:$0xf]
  %v267 = vld [vmem:[%s1 + $0xe4] sm:$0xf]
  %v268 = vld [vmem:[%s1 + $0xe8] sm:$0xf]
  %v269 = vld [vmem:[%s1 + $0xec] sm:$0xf]
  %v270 = vld [vmem:[%s1 + $0xf0] sm:$0xf]
  %v271 = vld [vmem:[%s1 + $0xf4] sm:$0xf]
  %v272 = vld [vmem:[%s1 + $0xf8] sm:$0xf]
  %v273 = vld [vmem:[%s1 + $0xfc] sm:$0xf]
  %v274 = vld [vmem:[%s1 + $0x100] sm:$0xf]
  %v275 = vld [vmem:[%s1 + $0x104] sm:$0xf]
  %v276 = vld [vmem:[%s1 + $0x108] sm:$0xf]
  %v277 = vld [vmem:[%s1 + $0x10c] sm:$0xf]
  %v278 = vld [vmem:[%s1 + $0x110] sm:$0xf]
  %v279 = vld [vmem:[%s1 + $0x114] sm:$0xf]
  %v280 = vld [vmem:[%s1 + $0x118] sm:$0xf]
  %v281 = vld [vmem:[%s1 + $0x11c] sm:$0xf]
  %v282 = vld [vmem:[%s2] sm:$0xff]
  %v283 = vld [vmem:[%s2 + $0x8] sm:$0xff]
  %v284 = vld [vmem:[%s2 + $0x10] sm:$0xf]
  %v285 = vld [vmem:[%s2 + $0x14] sm:$0xff]
  %v286 = vld [vmem:[%s2 + $0x1c] sm:$0xff]
  %v287 = vld [vmem:[%s2 + $0x24] sm:$0xf]
  %v288 = vld [vmem:[%s2 + $0x28] sm:$0xff]
  %v289 = vld [vmem:[%s2 + $0x30] sm:$0xff]
  %v290 = vld [vmem:[%s2 + $0x38] sm:$0xf]
  %v291 = vld [vmem:[%s2 + $0x3c] sm:$0xff]
  %v292 = vld [vmem:[%s2 + $0x44] sm:$0xff]
  %v293 = vld [vmem:[%s2 + $0x4c] sm:$0xf]
  %v294 = vld [vmem:[%s2 + $0x50] sm:$0xff]
  %v295 = vld [vmem:[%s2 + $0x58] sm:$0xff]
  %v296 = vld [vmem:[%s2 + $0x60] sm:$0xf]
  %v297 = vld [vmem:[%s2 + $0x64] sm:$0xff]
  %v298 = vld [vmem:[%s2 + $0x6c] sm:$0xff]
  %v299 = vld [vmem:[%s2 + $0x74] sm:$0xf]
  %v300 = vld [vmem:[%s2 + $0x78] sm:$0xff]
  %v301 = vld [vmem:[%s2 + $0x80] sm:$0xff]
  %v302 = vld [vmem:[%s2 + $0x88] sm:$0xf]
  %v303 = vld [vmem:[%s2 + $0x8c] sm:$0xff]
  %v304 = vld [vmem:[%s2 + $0x94] sm:$0xff]
  %v305 = vld [vmem:[%s2 + $0x9c] sm:$0xf]
  %v306 = vld [vmem:[%s2 + $0xa0] sm:$0xff]
  %v307 = vld [vmem:[%s2 + $0xa8] sm:$0xff]
  %v308 = vld [vmem:[%s2 + $0xb0] sm:$0xf]
  %v309 = vld [vmem:[%s2 + $0xb4] sm:$0xff]
  %v310 = vld [vmem:[%s2 + $0xbc] sm:$0xff]
  %v311 = vld [vmem:[%s2 + $0xc4] sm:$0xf]
  %v312 = vld [vmem:[%s2 + $0xc8] sm:$0xff]
  %v313 = vld [vmem:[%s2 + $0xd0] sm:$0xff]
  %v314 = vld [vmem:[%s2 + $0xd8] sm:$0xf]
  %v315 = vld [vmem:[%s2 + $0xdc] sm:$0xff]
  %v316 = vld [vmem:[%s2 + $0xe4] sm:$0xff]
  %v317 = vld [vmem:[%s2 + $0xec] sm:$0xf]
  %v318 = vld [vmem:[%s2 + $0xf0] sm:$0xff]
  %v319 = vld [vmem:[%s2 + $0xf8] sm:$0xff]
  %v320 = vld [vmem:[%s2 + $0x100] sm:$0xf]
  %v321 = vld [vmem:[%s2 + $0x104] sm:$0xff]
  %v322 = vld [vmem:[%s2 + $0x10c] sm:$0xff]
  %v323 = vld [vmem:[%s2 + $0x114] sm:$0xf]
  %v324 = vld [vmem:[%s2 + $0x118] sm:$0xff]
  %v325 = vld [vmem:[%s2 + $0x120] sm:$0xff]
  %v326 = vld [vmem:[%s2 + $0x128] sm:$0xf]
  %v327 = vld [vmem:[%s2 + $0x12c] sm:$0xff]
  %v328 = vld [vmem:[%s2 + $0x134] sm:$0xff]
  %v329 = vld [vmem:[%s2 + $0x13c] sm:$0xf]
  %v330 = vld [vmem:[%s2 + $0x140] sm:$0xff]
  %v331 = vld [vmem:[%s2 + $0x148] sm:$0xff]
  %v332 = vld [vmem:[%s2 + $0x150] sm:$0xf]
  %v333 = vld [vmem:[%s2 + $0x154] sm:$0xff]
  %v334 = vld [vmem:[%s2 + $0x15c] sm:$0xff]
  %v335 = vld [vmem:[%s2 + $0x164] sm:$0xf]
  %v336 = vld [vmem:[%s2 + $0x168] sm:$0xff]
  %v337 = vld [vmem:[%s2 + $0x170] sm:$0xff]
  %v338 = vld [vmem:[%s2 + $0x178] sm:$0xf]
  %v339 = vld [vmem:[%s2 + $0x17c] sm:$0xff]
  %v340 = vld [vmem:[%s2 + $0x184] sm:$0xff]
  %v341 = vld [vmem:[%s2 + $0x18c] sm:$0xf]
  %v342 = vld [vmem:[%s2 + $0x190] sm:$0xff]
  %v343 = vld [vmem:[%s2 + $0x198] sm:$0xff]
  %v344 = vld [vmem:[%s2 + $0x1a0] sm:$0xf]
  %v345 = vld [vmem:[%s2 + $0x1a4] sm:$0xff]
  %v346 = vld [vmem:[%s2 + $0x1ac] sm:$0xff]
  %v347 = vld [vmem:[%s2 + $0x1b4] sm:$0xf]
  %v348 = vld [vmem:[%s2 + $0x1b8] sm:$0xff]
  %v349 = vld [vmem:[%s2 + $0x1c0] sm:$0xff]
  %v350 = vld [vmem:[%s2 + $0x1c8] sm:$0xf]
  %v351 = vld [vmem:[%s2 + $0x1cc] sm:$0xff]
  %v352 = vld [vmem:[%s2 + $0x1d4] sm:$0xff]
  %v353 = vld [vmem:[%s2 + $0x1dc] sm:$0xf]
  %v354 = vld [vmem:[%s2 + $0x1e0] sm:$0xff]
  %v355 = vld [vmem:[%s2 + $0x1e8] sm:$0xff]
  %v356 = vld [vmem:[%s2 + $0x1f0] sm:$0xf]
  %v357 = vld [vmem:[%s2 + $0x1f4] sm:$0xff]
  %v358 = vld [vmem:[%s2 + $0x1fc] sm:$0xff]
  %v359 = vld [vmem:[%s2 + $0x204] sm:$0xf]
  %v360 = vld [vmem:[%s2 + $0x208] sm:$0xff]
  %v361 = vld [vmem:[%s2 + $0x210] sm:$0xff]
  %v362 = vld [vmem:[%s2 + $0x218] sm:$0xf]
  %v363 = vld [vmem:[%s2 + $0x21c] sm:$0xff]
  %v364 = vld [vmem:[%s2 + $0x224] sm:$0xff]
  %v365 = vld [vmem:[%s2 + $0x22c] sm:$0xf]
  %v366 = vld [vmem:[%s2 + $0x230] sm:$0xff]
  %v367 = vld [vmem:[%s2 + $0x238] sm:$0xff]
  %v368 = vld [vmem:[%s2 + $0x240] sm:$0xf]
  %v369 = vld [vmem:[%s2 + $0x244] sm:$0xff]
  %v370 = vld [vmem:[%s2 + $0x24c] sm:$0xff]
  %v371 = vld [vmem:[%s2 + $0x254] sm:$0xf]
  %v372 = vld [vmem:[%s2 + $0x258] sm:$0xff]
  %v373 = vld [vmem:[%s2 + $0x260] sm:$0xff]
  %v374 = vld [vmem:[%s2 + $0x268] sm:$0xf]
  %v375 = vld [vmem:[%s2 + $0x26c] sm:$0xff]
  %v376 = vld [vmem:[%s2 + $0x274] sm:$0xff]
  %v377 = vld [vmem:[%s2 + $0x27c] sm:$0xf]
  %v378 = vld [vmem:[%s2 + $0x280] sm:$0xff]
  %v379 = vld [vmem:[%s2 + $0x288] sm:$0xff]
  %v380 = vld [vmem:[%s2 + $0x290] sm:$0xf]
  %v381 = vld [vmem:[%s2 + $0x294] sm:$0xff]
  %v382 = vld [vmem:[%s2 + $0x29c] sm:$0xff]
  %v383 = vld [vmem:[%s2 + $0x2a4] sm:$0xf]
  %v384 = vld [vmem:[%s2 + $0x2a8] sm:$0xff]
  %v385 = vld [vmem:[%s2 + $0x2b0] sm:$0xff]
  %v386 = vld [vmem:[%s2 + $0x2b8] sm:$0xf]
  %v387 = vld [vmem:[%s2 + $0x2bc] sm:$0xff]
  %v388 = vld [vmem:[%s2 + $0x2c4] sm:$0xff]
  %v389 = vld [vmem:[%s2 + $0x2cc] sm:$0xf]
  %v390 = vld [vmem:[%s2 + $0x2d0] sm:$0xff]
  %v391 = vld [vmem:[%s2 + $0x2d8] sm:$0xff]
  %v392 = vld [vmem:[%s2 + $0x2e0] sm:$0xf]
  %v393 = vld [vmem:[%s2 + $0x2e4] sm:$0xff]
  %v394 = vld [vmem:[%s2 + $0x2ec] sm:$0xff]
  %v395 = vld [vmem:[%s2 + $0x2f4] sm:$0xf]
  %v396 = vld [vmem:[%s2 + $0x2f8] sm:$0xff]
  %v397 = vld [vmem:[%s2 + $0x300] sm:$0xff]
  %v398 = vld [vmem:[%s2 + $0x308] sm:$0xf]
  %v399 = vld [vmem:[%s2 + $0x30c] sm:$0xff]
  %v400 = vld [vmem:[%s2 + $0x314] sm:$0xff]
  %v401 = vld [vmem:[%s2 + $0x31c] sm:$0xf]
  %v402 = vld [vmem:[%s2 + $0x320] sm:$0xff]
  %v403 = vld [vmem:[%s2 + $0x328] sm:$0xff]
  %v404 = vld [vmem:[%s2 + $0x330] sm:$0xf]
  %v405 = vld [vmem:[%s2 + $0x334] sm:$0xff]
  %v406 = vld [vmem:[%s2 + $0x33c] sm:$0xff]
  %v407 = vld [vmem:[%s2 + $0x344] sm:$0xf]
  %v408 = vld [vmem:[%s2 + $0x348] sm:$0xff]
  %v409 = vld [vmem:[%s2 + $0x350] sm:$0xff]
  %v410 = vld [vmem:[%s2 + $0x358] sm:$0xf]
  %v411 = vld [vmem:[%s2 + $0x35c] sm:$0xff]
  %v412 = vld [vmem:[%s2 + $0x364] sm:$0xff]
  %v413 = vld [vmem:[%s2 + $0x36c] sm:$0xf]
  %v414 = vld [vmem:[%s2 + $0x370] sm:$0xff]
  %v415 = vld [vmem:[%s2 + $0x378] sm:$0xff]
  %v416 = vld [vmem:[%s2 + $0x380] sm:$0xf]
  %v417 = vld [vmem:[%s2 + $0x384] sm:$0xff]
  %v418 = vld [vmem:[%s2 + $0x38c] sm:$0xff]
  %v419 = vld [vmem:[%s2 + $0x394] sm:$0xf]
  %v420 = vld [vmem:[%s2 + $0x398] sm:$0xff]
  %v421 = vld [vmem:[%s2 + $0x3a0] sm:$0xff]
  %v422 = vld [vmem:[%s2 + $0x3a8] sm:$0xf]
  %v423 = vld [vmem:[%s2 + $0x3ac] sm:$0xff]
  %v424 = vld [vmem:[%s2 + $0x3b4] sm:$0xff]
  %v425 = vld [vmem:[%s2 + $0x3bc] sm:$0xf]
  %v426 = vld [vmem:[%s2 + $0x3c0] sm:$0xff]
  %v427 = vld [vmem:[%s2 + $0x3c8] sm:$0xff]
  %v428 = vld [vmem:[%s2 + $0x3d0] sm:$0xf]
  %v429 = vld [vmem:[%s2 + $0x3d4] sm:$0xff]
  %v430 = vld [vmem:[%s2 + $0x3dc] sm:$0xff]
  %v431 = vld [vmem:[%s2 + $0x3e4] sm:$0xf]
  %v432 = vld [vmem:[%s2 + $0x3e8] sm:$0xff]
  %v433 = vld [vmem:[%s2 + $0x3f0] sm:$0xff]
  %v434 = vld [vmem:[%s2 + $0x3f8] sm:$0xf]
  %v435 = vld [vmem:[%s2 + $0x3fc] sm:$0xff]
  %v436 = vld [vmem:[%s2 + $0x404] sm:$0xff]
  %v437 = vld [vmem:[%s2 + $0x40c] sm:$0xf]
  %v438 = vld [vmem:[%s2 + $0x410] sm:$0xff]
  %v439 = vld [vmem:[%s2 + $0x418] sm:$0xff]
  %v440 = vld [vmem:[%s2 + $0x420] sm:$0xf]
  %v441 = vld [vmem:[%s2 + $0x424] sm:$0xff]
  %v442 = vld [vmem:[%s2 + $0x42c] sm:$0xff]
  %v443 = vld [vmem:[%s2 + $0x434] sm:$0xf]
  %v444 = vld [vmem:[%s2 + $0x438] sm:$0xff]
  %v445 = vld [vmem:[%s2 + $0x440] sm:$0xff]
  %v446 = vld [vmem:[%s2 + $0x448] sm:$0xf]
  %v447 = vld [vmem:[%s2 + $0x44c] sm:$0xff]
  %v448 = vld [vmem:[%s2 + $0x454] sm:$0xff]
  %v449 = vld [vmem:[%s2 + $0x45c] sm:$0xf]
  %v450 = vld [vmem:[%s2 + $0x460] sm:$0xff]
  %v451 = vld [vmem:[%s2 + $0x468] sm:$0xff]
  %v452 = vld [vmem:[%s2 + $0x470] sm:$0xf]
  %v453 = vld [vmem:[%s2 + $0x474] sm:$0xff]
  %v454 = vld [vmem:[%s2 + $0x47c] sm:$0xff]
  %v455 = vld [vmem:[%s2 + $0x484] sm:$0xf]
  %v456 = vld [vmem:[%s2 + $0x488] sm:$0xff]
  %v457 = vld [vmem:[%s2 + $0x490] sm:$0xff]
  %v458 = vld [vmem:[%s2 + $0x498] sm:$0xf]
  %v459 = vld [vmem:[%s2 + $0x49c] sm:$0xff]
  %v460 = vld [vmem:[%s2 + $0x4a4] sm:$0xff]
  %v461 = vld [vmem:[%s2 + $0x4ac] sm:$0xf]
  %v462 = vld [vmem:[%s2 + $0x4b0] sm:$0xff]
  %v463 = vld [vmem:[%s2 + $0x4b8] sm:$0xff]
  %v464 = vld [vmem:[%s2 + $0x4c0] sm:$0xf]
  %v465 = vld [vmem:[%s2 + $0x4c4] sm:$0xff]
  %v466 = vld [vmem:[%s2 + $0x4cc] sm:$0xff]
  %v467 = vld [vmem:[%s2 + $0x4d4] sm:$0xf]
  %v468 = vld [vmem:[%s2 + $0x4d8] sm:$0xff]
  %v469 = vld [vmem:[%s2 + $0x4e0] sm:$0xff]
  %v470 = vld [vmem:[%s2 + $0x4e8] sm:$0xf]
  %v471 = vld [vmem:[%s2 + $0x4ec] sm:$0xff]
  %v472 = vld [vmem:[%s2 + $0x4f4] sm:$0xff]
  %v473 = vld [vmem:[%s2 + $0x4fc] sm:$0xf]
  %v474 = vld [vmem:[%s3] sm:$0xf]
  %v475 = vld [vmem:[%s3 + $0x4] sm:$0xf]
  %v476 = vld [vmem:[%s3 + $0x8] sm:$0xf]
  %v477 = vld [vmem:[%s3 + $0xc] sm:$0xf]
  %v478 = vld [vmem:[%s3 + $0x10] sm:$0xf]
  %v479 = vld [vmem:[%s3 + $0x14] sm:$0xf]
  %v480 = vld [vmem:[%s3 + $0x18] sm:$0xf]
  %v481 = vld [vmem:[%s3 + $0x1c] sm:$0xf]
  %v482 = vld [vmem:[%s3 + $0x20] sm:$0xf]
  %v483 = vld [vmem:[%s3 + $0x24] sm:$0xf]
  %v484 = vld [vmem:[%s3 + $0x28] sm:$0xf]
  %v485 = vld [vmem:[%s3 + $0x2c] sm:$0xf]
  %v486 = vld [vmem:[%s3 + $0x30] sm:$0xf]
  %v487 = vld [vmem:[%s3 + $0x34] sm:$0xf]
  %v488 = vld [vmem:[%s3 + $0x38] sm:$0xf]
  %v489 = vld [vmem:[%s3 + $0x3c] sm:$0xf]
  %v490 = vld [vmem:[%s3 + $0x40] sm:$0xf]
  %v491 = vld [vmem:[%s3 + $0x44] sm:$0xf]
  %v492 = vld [vmem:[%s3 + $0x48] sm:$0xf]
  %v493 = vld [vmem:[%s3 + $0x4c] sm:$0xf]
  %v494 = vld [vmem:[%s3 + $0x50] sm:$0xf]
  %v495 = vld [vmem:[%s3 + $0x54] sm:$0xf]
  %v496 = vld [vmem:[%s3 + $0x58] sm:$0xf]
  %v497 = vld [vmem:[%s3 + $0x5c] sm:$0xf]
  %v498 = vld [vmem:[%s3 + $0x60] sm:$0xf]
  %v499 = vld [vmem:[%s3 + $0x64] sm:$0xf]
  %v500 = vld [vmem:[%s3 + $0x68] sm:$0xf]
  %v501 = vld [vmem:[%s3 + $0x6c] sm:$0xf]
  %v502 = vld [vmem:[%s3 + $0x70] sm:$0xf]
  %v503 = vld [vmem:[%s3 + $0x74] sm:$0xf]
  %v504 = vld [vmem:[%s3 + $0x78] sm:$0xf]
  %v505 = vld [vmem:[%s3 + $0x7c] sm:$0xf]
  %v506 = vld [vmem:[%s3 + $0x80] sm:$0xf]
  %v507 = vld [vmem:[%s3 + $0x84] sm:$0xf]
  %v508 = vld [vmem:[%s3 + $0x88] sm:$0xf]
  %v509 = vld [vmem:[%s3 + $0x8c] sm:$0xf]
  %v510 = vld [vmem:[%s3 + $0x90] sm:$0xf]
  %v511 = vld [vmem:[%s3 + $0x94] sm:$0xf]
  %v512 = vld [vmem:[%s3 + $0x98] sm:$0xf]
  %v513 = vld [vmem:[%s3 + $0x9c] sm:$0xf]
  %v514 = vld [vmem:[%s3 + $0xa0] sm:$0xf]
  %v515 = vld [vmem:[%s3 + $0xa4] sm:$0xf]
  %v516 = vld [vmem:[%s3 + $0xa8] sm:$0xf]
  %v517 = vld [vmem:[%s3 + $0xac] sm:$0xf]
  %v518 = vld [vmem:[%s3 + $0xb0] sm:$0xf]
  %v519 = vld [vmem:[%s3 + $0xb4] sm:$0xf]
  %v520 = vld [vmem:[%s3 + $0xb8] sm:$0xf]
  %v521 = vld [vmem:[%s3 + $0xbc] sm:$0xf]
  %v522 = vld [vmem:[%s3 + $0xc0] sm:$0xf]
  %v523 = vld [vmem:[%s3 + $0xc4] sm:$0xf]
  %v524 = vld [vmem:[%s3 + $0xc8] sm:$0xf]
  %v525 = vld [vmem:[%s3 + $0xcc] sm:$0xf]
  %v526 = vld [vmem:[%s3 + $0xd0] sm:$0xf]
  %v527 = vld [vmem:[%s3 + $0xd4] sm:$0xf]
  %v528 = vld [vmem:[%s3 + $0xd8] sm:$0xf]
  %v529 = vld [vmem:[%s3 + $0xdc] sm:$0xf]
  %v530 = vld [vmem:[%s3 + $0xe0] sm:$0xf]
  %v531 = vld [vmem:[%s3 + $0xe4] sm:$0xf]
  %v532 = vld [vmem:[%s3 + $0xe8] sm:$0xf]
  %v533 = vld [vmem:[%s3 + $0xec] sm:$0xf]
  %v534 = vld [vmem:[%s3 + $0xf0] sm:$0xf]
  %v535 = vld [vmem:[%s3 + $0xf4] sm:$0xf]
  %v536 = vld [vmem:[%s3 + $0xf8] sm:$0xf]
  %v537 = vld [vmem:[%s3 + $0xfc] sm:$0xf]
  %v538 = vld [vmem:[%s3 + $0x100] sm:$0xf]
  %v539 = vld [vmem:[%s3 + $0x104] sm:$0xf]
  %v540 = vld [vmem:[%s3 + $0x108] sm:$0xf]
  %v541 = vld [vmem:[%s3 + $0x10c] sm:$0xf]
  %v542 = vld [vmem:[%s3 + $0x110] sm:$0xf]
  %v543 = vld [vmem:[%s3 + $0x114] sm:$0xf]
  %v544 = vld [vmem:[%s3 + $0x118] sm:$0xf]
  %v545 = vld [vmem:[%s3 + $0x11c] sm:$0xf]
  %v738 = vunpack.c.l.b16 %v282
  %v739 = vunpack.c.h.b16 %v282
  %v740 = vunpack.c.l.b16 %v283
  %v741 = vunpack.c.h.b16 %v283
  %v742 = vunpack.c.l.b16 %v284
  %v743 = vunpack.c.l.b16 %v285
  %v744 = vunpack.c.h.b16 %v285
  %v745 = vunpack.c.l.b16 %v286
  %v746 = vunpack.c.h.b16 %v286
  %v747 = vunpack.c.l.b16 %v287
  %v748 = vunpack.c.l.b16 %v288
  %v749 = vunpack.c.h.b16 %v288
  %v750 = vunpack.c.l.b16 %v289
  %v751 = vunpack.c.h.b16 %v289
  %v752 = vunpack.c.l.b16 %v290
  %v753 = vunpack.c.l.b16 %v291
  %v754 = vunpack.c.h.b16 %v291
  %v755 = vunpack.c.l.b16 %v292
  %v756 = vunpack.c.h.b16 %v292
  %v757 = vunpack.c.l.b16 %v293
  %v758 = vunpack.c.l.b16 %v294
  %v759 = vunpack.c.h.b16 %v294
  %v760 = vunpack.c.l.b16 %v295
  %v761 = vunpack.c.h.b16 %v295
  %v762 = vunpack.c.l.b16 %v296
  %v763 = vunpack.c.l.b16 %v297
  %v764 = vunpack.c.h.b16 %v297
  %v765 = vunpack.c.l.b16 %v298
  %v766 = vunpack.c.h.b16 %v298
  %v767 = vunpack.c.l.b16 %v299
  %v768 = vunpack.c.l.b16 %v300
  %v769 = vunpack.c.h.b16 %v300
  %v770 = vunpack.c.l.b16 %v301
  %v771 = vunpack.c.h.b16 %v301
  %v772 = vunpack.c.l.b16 %v302
  %v773 = vunpack.c.l.b16 %v303
  %v774 = vunpack.c.h.b16 %v303
  %v775 = vunpack.c.l.b16 %v304
  %v776 = vunpack.c.h.b16 %v304
  %v777 = vunpack.c.l.b16 %v305
  %v778 = vunpack.c.l.b16 %v306
  %v779 = vunpack.c.h.b16 %v306
  %v780 = vunpack.c.l.b16 %v307
  %v781 = vunpack.c.h.b16 %v307
  %v782 = vunpack.c.l.b16 %v308
  %v783 = vunpack.c.l.b16 %v309
  %v784 = vunpack.c.h.b16 %v309
  %v785 = vunpack.c.l.b16 %v310
  %v786 = vunpack.c.h.b16 %v310
  %v787 = vunpack.c.l.b16 %v311
  %v788 = vunpack.c.l.b16 %v312
  %v789 = vunpack.c.h.b16 %v312
  %v790 = vunpack.c.l.b16 %v313
  %v791 = vunpack.c.h.b16 %v313
  %v792 = vunpack.c.l.b16 %v314
  %v793 = vunpack.c.l.b16 %v315
  %v794 = vunpack.c.h.b16 %v315
  %v795 = vunpack.c.l.b16 %v316
  %v796 = vunpack.c.h.b16 %v316
  %v797 = vunpack.c.l.b16 %v317
  %v798 = vunpack.c.l.b16 %v318
  %v799 = vunpack.c.h.b16 %v318
  %v800 = vunpack.c.l.b16 %v319
  %v801 = vunpack.c.h.b16 %v319
  %v802 = vunpack.c.l.b16 %v320
  %v803 = vunpack.c.l.b16 %v321
  %v804 = vunpack.c.h.b16 %v321
  %v805 = vunpack.c.l.b16 %v322
  %v806 = vunpack.c.h.b16 %v322
  %v807 = vunpack.c.l.b16 %v323
  %v808 = vunpack.c.l.b16 %v324
  %v809 = vunpack.c.h.b16 %v324
  %v810 = vunpack.c.l.b16 %v325
  %v811 = vunpack.c.h.b16 %v325
  %v812 = vunpack.c.l.b16 %v326
  %v813 = vunpack.c.l.b16 %v327
  %v814 = vunpack.c.h.b16 %v327
  %v815 = vunpack.c.l.b16 %v328
  %v816 = vunpack.c.h.b16 %v328
  %v817 = vunpack.c.l.b16 %v329
  %v818 = vunpack.c.l.b16 %v330
  %v819 = vunpack.c.h.b16 %v330
  %v820 = vunpack.c.l.b16 %v331
  %v821 = vunpack.c.h.b16 %v331
  %v822 = vunpack.c.l.b16 %v332
  %v823 = vunpack.c.l.b16 %v333
  %v824 = vunpack.c.h.b16 %v333
  %v825 = vunpack.c.l.b16 %v334
  %v826 = vunpack.c.h.b16 %v334
  %v827 = vunpack.c.l.b16 %v335
  %v828 = vunpack.c.l.b16 %v336
  %v829 = vunpack.c.h.b16 %v336
  %v830 = vunpack.c.l.b16 %v337
  %v831 = vunpack.c.h.b16 %v337
  %v832 = vunpack.c.l.b16 %v338
  %v833 = vunpack.c.l.b16 %v339
  %v834 = vunpack.c.h.b16 %v339
  %v835 = vunpack.c.l.b16 %v340
  %v836 = vunpack.c.h.b16 %v340
  %v837 = vunpack.c.l.b16 %v341
  %v838 = vunpack.c.l.b16 %v342
  %v839 = vunpack.c.h.b16 %v342
  %v840 = vunpack.c.l.b16 %v343
  %v841 = vunpack.c.h.b16 %v343
  %v842 = vunpack.c.l.b16 %v344
  %v843 = vunpack.c.l.b16 %v345
  %v844 = vunpack.c.h.b16 %v345
  %v845 = vunpack.c.l.b16 %v346
  %v846 = vunpack.c.h.b16 %v346
  %v847 = vunpack.c.l.b16 %v347
  %v848 = vunpack.c.l.b16 %v348
  %v849 = vunpack.c.h.b16 %v348
  %v850 = vunpack.c.l.b16 %v349
  %v851 = vunpack.c.h.b16 %v349
  %v852 = vunpack.c.l.b16 %v350
  %v853 = vunpack.c.l.b16 %v351
  %v854 = vunpack.c.h.b16 %v351
  %v855 = vunpack.c.l.b16 %v352
  %v856 = vunpack.c.h.b16 %v352
  %v857 = vunpack.c.l.b16 %v353
  %v858 = vunpack.c.l.b16 %v354
  %v859 = vunpack.c.h.b16 %v354
  %v860 = vunpack.c.l.b16 %v355
  %v861 = vunpack.c.h.b16 %v355
  %v862 = vunpack.c.l.b16 %v356
  %v863 = vunpack.c.l.b16 %v357
  %v864 = vunpack.c.h.b16 %v357
  %v865 = vunpack.c.l.b16 %v358
  %v866 = vunpack.c.h.b16 %v358
  %v867 = vunpack.c.l.b16 %v359
  %v868 = vunpack.c.l.b16 %v360
  %v869 = vunpack.c.h.b16 %v360
  %v870 = vunpack.c.l.b16 %v361
  %v871 = vunpack.c.h.b16 %v361
  %v872 = vunpack.c.l.b16 %v362
  %v873 = vunpack.c.l.b16 %v363
  %v874 = vunpack.c.h.b16 %v363
  %v875 = vunpack.c.l.b16 %v364
  %v876 = vunpack.c.h.b16 %v364
  %v877 = vunpack.c.l.b16 %v365
  %v878 = vunpack.c.l.b16 %v366
  %v879 = vunpack.c.h.b16 %v366
  %v880 = vunpack.c.l.b16 %v367
  %v881 = vunpack.c.h.b16 %v367
  %v882 = vunpack.c.l.b16 %v368
  %v883 = vunpack.c.l.b16 %v369
  %v884 = vunpack.c.h.b16 %v369
  %v885 = vunpack.c.l.b16 %v370
  %v886 = vunpack.c.h.b16 %v370
  %v887 = vunpack.c.l.b16 %v371
  %v888 = vunpack.c.l.b16 %v372
  %v889 = vunpack.c.h.b16 %v372
  %v890 = vunpack.c.l.b16 %v373
  %v891 = vunpack.c.h.b16 %v373
  %v892 = vunpack.c.l.b16 %v374
  %v893 = vunpack.c.l.b16 %v375
  %v894 = vunpack.c.h.b16 %v375
  %v895 = vunpack.c.l.b16 %v376
  %v896 = vunpack.c.h.b16 %v376
  %v897 = vunpack.c.l.b16 %v377
  %v898 = vunpack.c.l.b16 %v378
  %v899 = vunpack.c.h.b16 %v378
  %v900 = vunpack.c.l.b16 %v379
  %v901 = vunpack.c.h.b16 %v379
  %v902 = vunpack.c.l.b16 %v380
  %v903 = vunpack.c.l.b16 %v381
  %v904 = vunpack.c.h.b16 %v381
  %v905 = vunpack.c.l.b16 %v382
  %v906 = vunpack.c.h.b16 %v382
  %v907 = vunpack.c.l.b16 %v383
  %v908 = vunpack.c.l.b16 %v384
  %v909 = vunpack.c.h.b16 %v384
  %v910 = vunpack.c.l.b16 %v385
  %v911 = vunpack.c.h.b16 %v385
  %v912 = vunpack.c.l.b16 %v386
  %v913 = vunpack.c.l.b16 %v387
  %v914 = vunpack.c.h.b16 %v387
  %v915 = vunpack.c.l.b16 %v388
  %v916 = vunpack.c.h.b16 %v388
  %v917 = vunpack.c.l.b16 %v389
  %v918 = vunpack.c.l.b16 %v390
  %v919 = vunpack.c.h.b16 %v390
  %v920 = vunpack.c.l.b16 %v391
  %v921 = vunpack.c.h.b16 %v391
  %v922 = vunpack.c.l.b16 %v392
  %v923 = vunpack.c.l.b16 %v393
  %v924 = vunpack.c.h.b16 %v393
  %v925 = vunpack.c.l.b16 %v394
  %v926 = vunpack.c.h.b16 %v394
  %v927 = vunpack.c.l.b16 %v395
  %v928 = vunpack.c.l.b16 %v396
  %v929 = vunpack.c.h.b16 %v396
  %v930 = vunpack.c.l.b16 %v397
  %v931 = vunpack.c.h.b16 %v397
  %v932 = vunpack.c.l.b16 %v398
  %v933 = vunpack.c.l.b16 %v399
  %v934 = vunpack.c.h.b16 %v399
  %v935 = vunpack.c.l.b16 %v400
  %v936 = vunpack.c.h.b16 %v400
  %v937 = vunpack.c.l.b16 %v401
  %v938 = vunpack.c.l.b16 %v402
  %v939 = vunpack.c.h.b16 %v402
  %v940 = vunpack.c.l.b16 %v403
  %v941 = vunpack.c.h.b16 %v403
  %v942 = vunpack.c.l.b16 %v404
  %v943 = vunpack.c.l.b16 %v405
  %v944 = vunpack.c.h.b16 %v405
  %v945 = vunpack.c.l.b16 %v406
  %v946 = vunpack.c.h.b16 %v406
  %v947 = vunpack.c.l.b16 %v407
  %v948 = vunpack.c.l.b16 %v408
  %v949 = vunpack.c.h.b16 %v408
  %v950 = vunpack.c.l.b16 %v409
  %v951 = vunpack.c.h.b16 %v409
  %v952 = vunpack.c.l.b16 %v410
  %v953 = vunpack.c.l.b16 %v411
  %v954 = vunpack.c.h.b16 %v411
  %v955 = vunpack.c.l.b16 %v412
  %v956 = vunpack.c.h.b16 %v412
  %v957 = vunpack.c.l.b16 %v413
  %v958 = vunpack.c.l.b16 %v414
  %v959 = vunpack.c.h.b16 %v414
  %v960 = vunpack.c.l.b16 %v415
  %v961 = vunpack.c.h.b16 %v415
  %v962 = vunpack.c.l.b16 %v416
  %v963 = vunpack.c.l.b16 %v417
  %v964 = vunpack.c.h.b16 %v417
  %v965 = vunpack.c.l.b16 %v418
  %v966 = vunpack.c.h.b16 %v418
  %v967 = vunpack.c.l.b16 %v419
  %v968 = vunpack.c.l.b16 %v420
  %v969 = vunpack.c.h.b16 %v420
  %v970 = vunpack.c.l.b16 %v421
  %v971 = vunpack.c.h.b16 %v421
  %v972 = vunpack.c.l.b16 %v422
  %v973 = vunpack.c.l.b16 %v423
  %v974 = vunpack.c.h.b16 %v423
  %v975 = vunpack.c.l.b16 %v424
  %v976 = vunpack.c.h.b16 %v424
  %v977 = vunpack.c.l.b16 %v425
  %v978 = vunpack.c.l.b16 %v426
  %v979 = vunpack.c.h.b16 %v426
  %v980 = vunpack.c.l.b16 %v427
  %v981 = vunpack.c.h.b16 %v427
  %v982 = vunpack.c.l.b16 %v428
  %v983 = vunpack.c.l.b16 %v429
  %v984 = vunpack.c.h.b16 %v429
  %v985 = vunpack.c.l.b16 %v430
  %v986 = vunpack.c.h.b16 %v430
  %v987 = vunpack.c.l.b16 %v431
  %v988 = vunpack.c.l.b16 %v432
  %v989 = vunpack.c.h.b16 %v432
  %v990 = vunpack.c.l.b16 %v433
  %v991 = vunpack.c.h.b16 %v433
  %v992 = vunpack.c.l.b16 %v434
  %v993 = vunpack.c.l.b16 %v435
  %v994 = vunpack.c.h.b16 %v435
  %v995 = vunpack.c.l.b16 %v436
  %v996 = vunpack.c.h.b16 %v436
  %v997 = vunpack.c.l.b16 %v437
  %v998 = vunpack.c.l.b16 %v438
  %v999 = vunpack.c.h.b16 %v438
  %v1000 = vunpack.c.l.b16 %v439
  %v1001 = vunpack.c.h.b16 %v439
  %v1002 = vunpack.c.l.b16 %v440
  %v1003 = vunpack.c.l.b16 %v441
  %v1004 = vunpack.c.h.b16 %v441
  %v1005 = vunpack.c.l.b16 %v442
  %v1006 = vunpack.c.h.b16 %v442
  %v1007 = vunpack.c.l.b16 %v443
  %v1008 = vunpack.c.l.b16 %v444
  %v1009 = vunpack.c.h.b16 %v444
  %v1010 = vunpack.c.l.b16 %v445
  %v1011 = vunpack.c.h.b16 %v445
  %v1012 = vunpack.c.l.b16 %v446
  %v1013 = vunpack.c.l.b16 %v447
  %v1014 = vunpack.c.h.b16 %v447
  %v1015 = vunpack.c.l.b16 %v448
  %v1016 = vunpack.c.h.b16 %v448
  %v1017 = vunpack.c.l.b16 %v449
  %v1018 = vunpack.c.l.b16 %v450
  %v1019 = vunpack.c.h.b16 %v450
  %v1020 = vunpack.c.l.b16 %v451
  %v1021 = vunpack.c.h.b16 %v451
  %v1022 = vunpack.c.l.b16 %v452
  %v1023 = vunpack.c.l.b16 %v453
  %v1024 = vunpack.c.h.b16 %v453
  %v1025 = vunpack.c.l.b16 %v454
  %v1026 = vunpack.c.h.b16 %v454
  %v1027 = vunpack.c.l.b16 %v455
  %v1028 = vunpack.c.l.b16 %v456
  %v1029 = vunpack.c.h.b16 %v456
  %v1030 = vunpack.c.l.b16 %v457
  %v1031 = vunpack.c.h.b16 %v457
  %v1032 = vunpack.c.l.b16 %v458
  %v1033 = vunpack.c.l.b16 %v459
  %v1034 = vunpack.c.h.b16 %v459
  %v1035 = vunpack.c.l.b16 %v460
  %v1036 = vunpack.c.h.b16 %v460
  %v1037 = vunpack.c.l.b16 %v461
  %v1038 = vunpack.c.l.b16 %v462
  %v1039 = vunpack.c.h.b16 %v462
  %v1040 = vunpack.c.l.b16 %v463
  %v1041 = vunpack.c.h.b16 %v463
  %v1042 = vunpack.c.l.b16 %v464
  %v1043 = vunpack.c.l.b16 %v465
  %v1044 = vunpack.c.h.b16 %v465
  %v1045 = vunpack.c.l.b16 %v466
  %v1046 = vunpack.c.h.b16 %v466
  %v1047 = vunpack.c.l.b16 %v467
  %v1048 = vunpack.c.l.b16 %v468
  %v1049 = vunpack.c.h.b16 %v468
  %v1050 = vunpack.c.l.b16 %v469
  %v1051 = vunpack.c.h.b16 %v469
  %v1052 = vunpack.c.l.b16 %v470
  %v1053 = vunpack.c.l.b16 %v471
  %v1054 = vunpack.c.h.b16 %v471
  %v1055 = vunpack.c.l.b16 %v472
  %v1056 = vunpack.c.h.b16 %v472
  %v1057 = vunpack.c.l.b16 %v473
  %v1058 = vpack.c.b16 %v743, %v738
  %v1059 = vpack.c.b16 %v744, %v739
  %v1060 = vpack.c.b16 %v745, %v740
  %v1061 = vpack.c.b16 %v746, %v741
  %v1062 = vpack.c.b16 %v747, %v742
  %v1063 = vpack.c.b16 %v753, %v748
  %v1064 = vpack.c.b16 %v754, %v749
  %v1065 = vpack.c.b16 %v755, %v750
  %v1066 = vpack.c.b16 %v756, %v751
  %v1067 = vpack.c.b16 %v757, %v752
  %v1068 = vpack.c.b16 %v763, %v758
  %v1069 = vpack.c.b16 %v764, %v759
  %v1070 = vpack.c.b16 %v765, %v760
  %v1071 = vpack.c.b16 %v766, %v761
  %v1072 = vpack.c.b16 %v767, %v762
  %v1073 = vpack.c.b16 %v773, %v768
  %v1074 = vpack.c.b16 %v774, %v769
  %v1075 = vpack.c.b16 %v775, %v770
  %v1076 = vpack.c.b16 %v776, %v771
  %v1077 = vpack.c.b16 %v777, %v772
  %v1078 = vpack.c.b16 %v783, %v778
  %v1079 = vpack.c.b16 %v784, %v779
  %v1080 = vpack.c.b16 %v785, %v780
  %v1081 = vpack.c.b16 %v786, %v781
  %v1082 = vpack.c.b16 %v787, %v782
  %v1083 = vpack.c.b16 %v793, %v788
  %v1084 = vpack.c.b16 %v794, %v789
  %v1085 = vpack.c.b16 %v795, %v790
  %v1086 = vpack.c.b16 %v796, %v791
  %v1087 = vpack.c.b16 %v797, %v792
  %v1088 = vpack.c.b16 %v803, %v798
  %v1089 = vpack.c.b16 %v804, %v799
  %v1090 = vpack.c.b16 %v805, %v800
  %v1091 = vpack.c.b16 %v806, %v801
  %v1092 = vpack.c.b16 %v807, %v802
  %v1093 = vpack.c.b16 %v813, %v808
  %v1094 = vpack.c.b16 %v814, %v809
  %v1095 = vpack.c.b16 %v815, %v810
  %v1096 = vpack.c.b16 %v816, %v811
  %v1097 = vpack.c.b16 %v817, %v812
  %v1098 = vpack.c.b16 %v823, %v818
  %v1099 = vpack.c.b16 %v824, %v819
  %v1100 = vpack.c.b16 %v825, %v820
  %v1101 = vpack.c.b16 %v826, %v821
  %v1102 = vpack.c.b16 %v827, %v822
  %v1103 = vpack.c.b16 %v833, %v828
  %v1104 = vpack.c.b16 %v834, %v829
  %v1105 = vpack.c.b16 %v835, %v830
  %v1106 = vpack.c.b16 %v836, %v831
  %v1107 = vpack.c.b16 %v837, %v832
  %v1108 = vpack.c.b16 %v843, %v838
  %v1109 = vpack.c.b16 %v844, %v839
  %v1110 = vpack.c.b16 %v845, %v840
  %v1111 = vpack.c.b16 %v846, %v841
  %v1112 = vpack.c.b16 %v847, %v842
  %v1113 = vpack.c.b16 %v853, %v848
  %v1114 = vpack.c.b16 %v854, %v849
  %v1115 = vpack.c.b16 %v855, %v850
  %v1116 = vpack.c.b16 %v856, %v851
  %v1117 = vpack.c.b16 %v857, %v852
  %v1118 = vpack.c.b16 %v863, %v858
  %v1119 = vpack.c.b16 %v864, %v859
  %v1120 = vpack.c.b16 %v865, %v860
  %v1121 = vpack.c.b16 %v866, %v861
  %v1122 = vpack.c.b16 %v867, %v862
  %v1123 = vpack.c.b16 %v873, %v868
  %v1124 = vpack.c.b16 %v874, %v869
  %v1125 = vpack.c.b16 %v875, %v870
  %v1126 = vpack.c.b16 %v876, %v871
  %v1127 = vpack.c.b16 %v877, %v872
  %v1128 = vpack.c.b16 %v883, %v878
  %v1129 = vpack.c.b16 %v884, %v879
  %v1130 = vpack.c.b16 %v885, %v880
  %v1131 = vpack.c.b16 %v886, %v881
  %v1132 = vpack.c.b16 %v887, %v882
  %v1133 = vpack.c.b16 %v893, %v888
  %v1134 = vpack.c.b16 %v894, %v889
  %v1135 = vpack.c.b16 %v895, %v890
  %v1136 = vpack.c.b16 %v896, %v891
  %v1137 = vpack.c.b16 %v897, %v892
  %v1138 = vpack.c.b16 %v903, %v898
  %v1139 = vpack.c.b16 %v904, %v899
  %v1140 = vpack.c.b16 %v905, %v900
  %v1141 = vpack.c.b16 %v906, %v901
  %v1142 = vpack.c.b16 %v907, %v902
  %v1143 = vpack.c.b16 %v913, %v908
  %v1144 = vpack.c.b16 %v914, %v909
  %v1145 = vpack.c.b16 %v915, %v910
  %v1146 = vpack.c.b16 %v916, %v911
  %v1147 = vpack.c.b16 %v917, %v912
  %v1148 = vpack.c.b16 %v923, %v918
  %v1149 = vpack.c.b16 %v924, %v919
  %v1150 = vpack.c.b16 %v925, %v920
  %v1151 = vpack.c.b16 %v926, %v921
  %v1152 = vpack.c.b16 %v927, %v922
  %v1153 = vpack.c.b16 %v933, %v928
  %v1154 = vpack.c.b16 %v934, %v929
  %v1155 = vpack.c.b16 %v935, %v930
  %v1156 = vpack.c.b16 %v936, %v931
  %v1157 = vpack.c.b16 %v937, %v932
  %v1158 = vpack.c.b16 %v943, %v938
  %v1159 = vpack.c.b16 %v944, %v939
  %v1160 = vpack.c.b16 %v945, %v940
  %v1161 = vpack.c.b16 %v946, %v941
  %v1162 = vpack.c.b16 %v947, %v942
  %v1163 = vpack.c.b16 %v953, %v948
  %v1164 = vpack.c.b16 %v954, %v949
  %v1165 = vpack.c.b16 %v955, %v950
  %v1166 = vpack.c.b16 %v956, %v951
  %v1167 = vpack.c.b16 %v957, %v952
  %v1168 = vpack.c.b16 %v963, %v958
  %v1169 = vpack.c.b16 %v964, %v959
  %v1170 = vpack.c.b16 %v965, %v960
  %v1171 = vpack.c.b16 %v966, %v961
  %v1172 = vpack.c.b16 %v967, %v962
  %v1173 = vpack.c.b16 %v973, %v968
  %v1174 = vpack.c.b16 %v974, %v969
  %v1175 = vpack.c.b16 %v975, %v970
  %v1176 = vpack.c.b16 %v976, %v971
  %v1177 = vpack.c.b16 %v977, %v972
  %v1178 = vpack.c.b16 %v983, %v978
  %v1179 = vpack.c.b16 %v984, %v979
  %v1180 = vpack.c.b16 %v985, %v980
  %v1181 = vpack.c.b16 %v986, %v981
  %v1182 = vpack.c.b16 %v987, %v982
  %v1183 = vpack.c.b16 %v993, %v988
  %v1184 = vpack.c.b16 %v994, %v989
  %v1185 = vpack.c.b16 %v995, %v990
  %v1186 = vpack.c.b16 %v996, %v991
  %v1187 = vpack.c.b16 %v997, %v992
  %v1188 = vpack.c.b16 %v1003, %v998
  %v1189 = vpack.c.b16 %v1004, %v999
  %v1190 = vpack.c.b16 %v1005, %v1000
  %v1191 = vpack.c.b16 %v1006, %v1001
  %v1192 = vpack.c.b16 %v1007, %v1002
  %v1193 = vpack.c.b16 %v1013, %v1008
  %v1194 = vpack.c.b16 %v1014, %v1009
  %v1195 = vpack.c.b16 %v1015, %v1010
  %v1196 = vpack.c.b16 %v1016, %v1011
  %v1197 = vpack.c.b16 %v1017, %v1012
  %v1198 = vpack.c.b16 %v1023, %v1018
  %v1199 = vpack.c.b16 %v1024, %v1019
  %v1200 = vpack.c.b16 %v1025, %v1020
  %v1201 = vpack.c.b16 %v1026, %v1021
  %v1202 = vpack.c.b16 %v1027, %v1022
  %v1203 = vpack.c.b16 %v1033, %v1028
  %v1204 = vpack.c.b16 %v1034, %v1029
  %v1205 = vpack.c.b16 %v1035, %v1030
  %v1206 = vpack.c.b16 %v1036, %v1031
  %v1207 = vpack.c.b16 %v1037, %v1032
  %v1208 = vpack.c.b16 %v1043, %v1038
  %v1209 = vpack.c.b16 %v1044, %v1039
  %v1210 = vpack.c.b16 %v1045, %v1040
  %v1211 = vpack.c.b16 %v1046, %v1041
  %v1212 = vpack.c.b16 %v1047, %v1042
  %v1213 = vpack.c.b16 %v1053, %v1048
  %v1214 = vpack.c.b16 %v1054, %v1049
  %v1215 = vpack.c.b16 %v1055, %v1050
  %v1216 = vpack.c.b16 %v1056, %v1051
  %v1217 = vpack.c.b16 %v1057, %v1052
  %v1418 = vunpack.c.l.b16 %v474
  %v1419 = vunpack.c.l.b16 %v475
  %v1420 = vunpack.c.l.b16 %v476
  %v1421 = vunpack.c.l.b16 %v477
  %v1422 = vunpack.c.l.b16 %v478
  %v1423 = vunpack.c.l.b16 %v479
  %v1424 = vunpack.c.l.b16 %v480
  %v1425 = vunpack.c.l.b16 %v481
  %v1426 = vunpack.c.l.b16 %v482
  %v1427 = vunpack.c.l.b16 %v483
  %v1428 = vunpack.c.l.b16 %v484
  %v1429 = vunpack.c.l.b16 %v485
  %v1430 = vunpack.c.l.b16 %v486
  %v1431 = vunpack.c.l.b16 %v487
  %v1432 = vunpack.c.l.b16 %v488
  %v1433 = vunpack.c.l.b16 %v489
  %v1434 = vunpack.c.l.b16 %v490
  %v1435 = vunpack.c.l.b16 %v491
  %v1436 = vunpack.c.l.b16 %v492
  %v1437 = vunpack.c.l.b16 %v493
  %v1438 = vunpack.c.l.b16 %v494
  %v1439 = vunpack.c.l.b16 %v495
  %v1440 = vunpack.c.l.b16 %v496
  %v1441 = vunpack.c.l.b16 %v497
  %v1442 = vunpack.c.l.b16 %v498
  %v1443 = vunpack.c.l.b16 %v499
  %v1444 = vunpack.c.l.b16 %v500
  %v1445 = vunpack.c.l.b16 %v501
  %v1446 = vunpack.c.l.b16 %v502
  %v1447 = vunpack.c.l.b16 %v503
  %v1448 = vunpack.c.l.b16 %v504
  %v1449 = vunpack.c.l.b16 %v505
  %v1450 = vunpack.c.l.b16 %v506
  %v1451 = vunpack.c.l.b16 %v507
  %v1452 = vunpack.c.l.b16 %v508
  %v1453 = vunpack.c.l.b16 %v509
  %v1454 = vunpack.c.l.b16 %v510
  %v1455 = vunpack.c.l.b16 %v511
  %v1456 = vunpack.c.l.b16 %v512
  %v1457 = vunpack.c.l.b16 %v513
  %v1458 = vunpack.c.l.b16 %v514
  %v1459 = vunpack.c.l.b16 %v515
  %v1460 = vunpack.c.l.b16 %v516
  %v1461 = vunpack.c.l.b16 %v517
  %v1462 = vunpack.c.l.b16 %v518
  %v1463 = vunpack.c.l.b16 %v519
  %v1464 = vunpack.c.l.b16 %v520
  %v1465 = vunpack.c.l.b16 %v521
  %v1466 = vunpack.c.l.b16 %v522
  %v1467 = vunpack.c.l.b16 %v523
  %v1468 = vunpack.c.l.b16 %v524
  %v1469 = vunpack.c.l.b16 %v525
  %v1470 = vunpack.c.l.b16 %v526
  %v1471 = vunpack.c.l.b16 %v527
  %v1472 = vunpack.c.l.b16 %v528
  %v1473 = vunpack.c.l.b16 %v529
  %v1474 = vunpack.c.l.b16 %v530
  %v1475 = vunpack.c.l.b16 %v531
  %v1476 = vunpack.c.l.b16 %v532
  %v1477 = vunpack.c.l.b16 %v533
  %v1478 = vunpack.c.l.b16 %v534
  %v1479 = vunpack.c.l.b16 %v535
  %v1480 = vunpack.c.l.b16 %v536
  %v1481 = vunpack.c.l.b16 %v537
  %v1482 = vunpack.c.l.b16 %v538
  %v1483 = vunpack.c.l.b16 %v539
  %v1484 = vunpack.c.l.b16 %v540
  %v1485 = vunpack.c.l.b16 %v541
  %v1486 = vunpack.c.l.b16 %v542
  %v1487 = vunpack.c.l.b16 %v543
  %v1488 = vunpack.c.l.b16 %v544
  %v1489 = vunpack.c.l.b16 %v545
  %v1490 = vpack.c.b16 %v1419, %v1418
  %v1491 = vpack.c.b16 %v1421, %v1420
  %v1492 = vpack.c.b16 %v1423, %v1422
  %v1493 = vpack.c.b16 %v1425, %v1424
  %v1494 = vpack.c.b16 %v1427, %v1426
  %v1495 = vpack.c.b16 %v1429, %v1428
  %v1496 = vpack.c.b16 %v1431, %v1430
  %v1497 = vpack.c.b16 %v1433, %v1432
  %v1498 = vpack.c.b16 %v1435, %v1434
  %v1499 = vpack.c.b16 %v1437, %v1436
  %v1500 = vpack.c.b16 %v1439, %v1438
  %v1501 = vpack.c.b16 %v1441, %v1440
  %v1502 = vpack.c.b16 %v1443, %v1442
  %v1503 = vpack.c.b16 %v1445, %v1444
  %v1504 = vpack.c.b16 %v1447, %v1446
  %v1505 = vpack.c.b16 %v1449, %v1448
  %v1506 = vpack.c.b16 %v1451, %v1450
  %v1507 = vpack.c.b16 %v1453, %v1452
  %v1508 = vpack.c.b16 %v1455, %v1454
  %v1509 = vpack.c.b16 %v1457, %v1456
  %v1510 = vpack.c.b16 %v1459, %v1458
  %v1511 = vpack.c.b16 %v1461, %v1460
  %v1512 = vpack.c.b16 %v1463, %v1462
  %v1513 = vpack.c.b16 %v1465, %v1464
  %v1514 = vpack.c.b16 %v1467, %v1466
  %v1515 = vpack.c.b16 %v1469, %v1468
  %v1516 = vpack.c.b16 %v1471, %v1470
  %v1517 = vpack.c.b16 %v1473, %v1472
  %v1518 = vpack.c.b16 %v1475, %v1474
  %v1519 = vpack.c.b16 %v1477, %v1476
  %v1520 = vpack.c.b16 %v1479, %v1478
  %v1521 = vpack.c.b16 %v1481, %v1480
  %v1522 = vpack.c.b16 %v1483, %v1482
  %v1523 = vpack.c.b16 %v1485, %v1484
  %v1524 = vpack.c.b16 %v1487, %v1486
  %v1525 = vpack.c.b16 %v1489, %v1488
  %vm1562 = vcmask 523264
  %v1564 = vsel %vm1562, %v1062, 0
  %v1567 = vsel %vm1562, %v1067, 0
  %v1570 = vsel %vm1562, %v1072, 0
  %v1573 = vsel %vm1562, %v1077, 0
  %v1576 = vsel %vm1562, %v1082, 0
  %v1579 = vsel %vm1562, %v1087, 0
  %v1582 = vsel %vm1562, %v1092, 0
  %v1585 = vsel %vm1562, %v1097, 0
  %v1588 = vsel %vm1562, %v1102, 0
  %v1591 = vsel %vm1562, %v1107, 0
  %v1594 = vsel %vm1562, %v1112, 0
  %v1597 = vsel %vm1562, %v1117, 0
  %v1600 = vsel %vm1562, %v1122, 0
  %v1603 = vsel %vm1562, %v1127, 0
  %v1606 = vsel %vm1562, %v1132, 0
  %v1609 = vsel %vm1562, %v1137, 0
  %v1612 = vsel %vm1562, %v1142, 0
  %v1615 = vsel %vm1562, %v1147, 0
  %v1618 = vsel %vm1562, %v1152, 0
  %v1621 = vsel %vm1562, %v1157, 0
  %v1624 = vsel %vm1562, %v1162, 0
  %v1627 = vsel %vm1562, %v1167, 0
  %v1630 = vsel %vm1562, %v1172, 0
  %v1633 = vsel %vm1562, %v1177, 0
  %v1636 = vsel %vm1562, %v1182, 0
  %v1639 = vsel %vm1562, %v1187, 0
  %v1642 = vsel %vm1562, %v1192, 0
  %v1645 = vsel %vm1562, %v1197, 0
  %v1648 = vsel %vm1562, %v1202, 0
  %v1651 = vsel %vm1562, %v1207, 0
  %v1654 = vsel %vm1562, %v1212, 0
  %v1657 = vsel %vm1562, %v1217, 0
  %1659 = vmatpush.bf16.msra.mxu0 %v1497
  %1660 = vmatpush.bf16.msra.mxu0 %v1496
  %1661 = vmatpush.bf16.msra.mxu0 %v1495
  %1662 = vmatpush.bf16.msra.mxu0 %v1494
  %1663 = vmatpush.bf16.msra.mxu0 %v1493
  %1664 = vmatpush.bf16.msra.mxu0 %v1492
  %1665 = vmatpush.bf16.msra.mxu0 %v1491
  %1666 = vmatpush.bf16.msra.mxu0 %v1490
  %1667 = vmatmul.bf16.gmra.mxu0 %v1058
  %v1668 = vpop.f32.mrf.mxu0
  %v1669 = vadd.f32 0.0, %v1668
  %v1670 = vpop.f32.mrf.mxu0
  %v1671 = vadd.f32 0.0, %v1670
  %1672 = vmatmul.bf16.gmra.mxu0 %v1063
  %v1673 = vpop.f32.mrf.mxu0
  %v1674 = vadd.f32 0.0, %v1673
  %v1675 = vpop.f32.mrf.mxu0
  %v1676 = vadd.f32 0.0, %v1675
  %1677 = vmatmul.bf16.gmra.mxu0 %v1068
  %v1678 = vpop.f32.mrf.mxu0
  %v1679 = vadd.f32 0.0, %v1678
  %v1680 = vpop.f32.mrf.mxu0
  %v1681 = vadd.f32 0.0, %v1680
  %1682 = vmatmul.bf16.gmra.mxu0 %v1073
  %v1683 = vpop.f32.mrf.mxu0
  %v1684 = vadd.f32 0.0, %v1683
  %v1685 = vpop.f32.mrf.mxu0
  %v1686 = vadd.f32 0.0, %v1685
  %1687 = vmatmul.bf16.gmra.mxu0 %v1078
  %v1688 = vpop.f32.mrf.mxu0
  %v1689 = vadd.f32 0.0, %v1688
  %v1690 = vpop.f32.mrf.mxu0
  %v1691 = vadd.f32 0.0, %v1690
  %1692 = vmatmul.bf16.gmra.mxu0 %v1083
  %v1693 = vpop.f32.mrf.mxu0
  %v1694 = vadd.f32 0.0, %v1693
  %v1695 = vpop.f32.mrf.mxu0
  %v1696 = vadd.f32 0.0, %v1695
  %1697 = vmatmul.bf16.gmra.mxu0 %v1088
  %v1698 = vpop.f32.mrf.mxu0
  %v1699 = vadd.f32 0.0, %v1698
  %v1700 = vpop.f32.mrf.mxu0
  %v1701 = vadd.f32 0.0, %v1700
  %1702 = vmatmul.bf16.gmra.mxu0 %v1093
  %v1703 = vpop.f32.mrf.mxu0
  %v1704 = vadd.f32 0.0, %v1703
  %v1705 = vpop.f32.mrf.mxu0
  %v1706 = vadd.f32 0.0, %v1705
  %1707 = vmatmul.bf16.gmra.mxu0 %v1098
  %v1708 = vpop.f32.mrf.mxu0
  %v1709 = vadd.f32 0.0, %v1708
  %v1710 = vpop.f32.mrf.mxu0
  %v1711 = vadd.f32 0.0, %v1710
  %1712 = vmatmul.bf16.gmra.mxu0 %v1103
  %v1713 = vpop.f32.mrf.mxu0
  %v1714 = vadd.f32 0.0, %v1713
  %v1715 = vpop.f32.mrf.mxu0
  %v1716 = vadd.f32 0.0, %v1715
  %1717 = vmatmul.bf16.gmra.mxu0 %v1108
  %v1718 = vpop.f32.mrf.mxu0
  %v1719 = vadd.f32 0.0, %v1718
  %v1720 = vpop.f32.mrf.mxu0
  %v1721 = vadd.f32 0.0, %v1720
  %1722 = vmatmul.bf16.gmra.mxu0 %v1113
  %v1723 = vpop.f32.mrf.mxu0
  %v1724 = vadd.f32 0.0, %v1723
  %v1725 = vpop.f32.mrf.mxu0
  %v1726 = vadd.f32 0.0, %v1725
  %1727 = vmatmul.bf16.gmra.mxu0 %v1118
  %v1728 = vpop.f32.mrf.mxu0
  %v1729 = vadd.f32 0.0, %v1728
  %v1730 = vpop.f32.mrf.mxu0
  %v1731 = vadd.f32 0.0, %v1730
  %1732 = vmatmul.bf16.gmra.mxu0 %v1123
  %v1733 = vpop.f32.mrf.mxu0
  %v1734 = vadd.f32 0.0, %v1733
  %v1735 = vpop.f32.mrf.mxu0
  %v1736 = vadd.f32 0.0, %v1735
  %1737 = vmatmul.bf16.gmra.mxu0 %v1128
  %v1738 = vpop.f32.mrf.mxu0
  %v1739 = vadd.f32 0.0, %v1738
  %v1740 = vpop.f32.mrf.mxu0
  %v1741 = vadd.f32 0.0, %v1740
  %1742 = vmatmul.bf16.gmra.mxu0 %v1133
  %v1743 = vpop.f32.mrf.mxu0
  %v1744 = vadd.f32 0.0, %v1743
  %v1745 = vpop.f32.mrf.mxu0
  %v1746 = vadd.f32 0.0, %v1745
  %1747 = vmatmul.bf16.gmra.mxu0 %v1138
  %v1748 = vpop.f32.mrf.mxu0
  %v1749 = vadd.f32 0.0, %v1748
  %v1750 = vpop.f32.mrf.mxu0
  %v1751 = vadd.f32 0.0, %v1750
  %1752 = vmatmul.bf16.gmra.mxu0 %v1143
  %v1753 = vpop.f32.mrf.mxu0
  %v1754 = vadd.f32 0.0, %v1753
  %v1755 = vpop.f32.mrf.mxu0
  %v1756 = vadd.f32 0.0, %v1755
  %1757 = vmatmul.bf16.gmra.mxu0 %v1148
  %v1758 = vpop.f32.mrf.mxu0
  %v1759 = vadd.f32 0.0, %v1758
  %v1760 = vpop.f32.mrf.mxu0
  %v1761 = vadd.f32 0.0, %v1760
  %1762 = vmatmul.bf16.gmra.mxu0 %v1153
  %v1763 = vpop.f32.mrf.mxu0
  %v1764 = vadd.f32 0.0, %v1763
  %v1765 = vpop.f32.mrf.mxu0
  %v1766 = vadd.f32 0.0, %v1765
  %1767 = vmatmul.bf16.gmra.mxu0 %v1158
  %v1768 = vpop.f32.mrf.mxu0
  %v1769 = vadd.f32 0.0, %v1768
  %v1770 = vpop.f32.mrf.mxu0
  %v1771 = vadd.f32 0.0, %v1770
  %1772 = vmatmul.bf16.gmra.mxu0 %v1163
  %v1773 = vpop.f32.mrf.mxu0
  %v1774 = vadd.f32 0.0, %v1773
  %v1775 = vpop.f32.mrf.mxu0
  %v1776 = vadd.f32 0.0, %v1775
  %1777 = vmatmul.bf16.gmra.mxu0 %v1168
  %v1778 = vpop.f32.mrf.mxu0
  %v1779 = vadd.f32 0.0, %v1778
  %v1780 = vpop.f32.mrf.mxu0
  %v1781 = vadd.f32 0.0, %v1780
  %1782 = vmatmul.bf16.gmra.mxu0 %v1173
  %v1783 = vpop.f32.mrf.mxu0
  %v1784 = vadd.f32 0.0, %v1783
  %v1785 = vpop.f32.mrf.mxu0
  %v1786 = vadd.f32 0.0, %v1785
  %1787 = vmatmul.bf16.gmra.mxu0 %v1178
  %v1788 = vpop.f32.mrf.mxu0
  %v1789 = vadd.f32 0.0, %v1788
  %v1790 = vpop.f32.mrf.mxu0
  %v1791 = vadd.f32 0.0, %v1790
  %1792 = vmatmul.bf16.gmra.mxu0 %v1183
  %v1793 = vpop.f32.mrf.mxu0
  %v1794 = vadd.f32 0.0, %v1793
  %v1795 = vpop.f32.mrf.mxu0
  %v1796 = vadd.f32 0.0, %v1795
  %1797 = vmatmul.bf16.gmra.mxu0 %v1188
  %v1798 = vpop.f32.mrf.mxu0
  %v1799 = vadd.f32 0.0, %v1798
  %v1800 = vpop.f32.mrf.mxu0
  %v1801 = vadd.f32 0.0, %v1800
  %1802 = vmatmul.bf16.gmra.mxu0 %v1193
  %v1803 = vpop.f32.mrf.mxu0
  %v1804 = vadd.f32 0.0, %v1803
  %v1805 = vpop.f32.mrf.mxu0
  %v1806 = vadd.f32 0.0, %v1805
  %1807 = vmatmul.bf16.gmra.mxu0 %v1198
  %v1808 = vpop.f32.mrf.mxu0
  %v1809 = vadd.f32 0.0, %v1808
  %v1810 = vpop.f32.mrf.mxu0
  %v1811 = vadd.f32 0.0, %v1810
  %1812 = vmatmul.bf16.gmra.mxu0 %v1203
  %v1813 = vpop.f32.mrf.mxu0
  %v1814 = vadd.f32 0.0, %v1813
  %v1815 = vpop.f32.mrf.mxu0
  %v1816 = vadd.f32 0.0, %v1815
  %1817 = vmatmul.bf16.gmra.mxu0 %v1208
  %v1818 = vpop.f32.mrf.mxu0
  %v1819 = vadd.f32 0.0, %v1818
  %v1820 = vpop.f32.mrf.mxu0
  %v1821 = vadd.f32 0.0, %v1820
  %1822 = vmatmul.bf16.gmra.mxu0 %v1213
  %v1823 = vpop.f32.mrf.mxu0
  %v1824 = vadd.f32 0.0, %v1823
  %v1825 = vpop.f32.mrf.mxu0
  %v1826 = vadd.f32 0.0, %v1825
  %1827 = vdwg.mxu0
  %1828 = vmatpush.bf16.msra.mxu0 %v1505
  %1829 = vmatpush.bf16.msra.mxu0 %v1504
  %1830 = vmatpush.bf16.msra.mxu0 %v1503
  %1831 = vmatpush.bf16.msra.mxu0 %v1502
  %1832 = vmatpush.bf16.msra.mxu0 %v1501
  %1833 = vmatpush.bf16.msra.mxu0 %v1500
  %1834 = vmatpush.bf16.msra.mxu0 %v1499
  %1835 = vmatpush.bf16.msra.mxu0 %v1498
  %1836 = vmatmul.bf16.gmra.mxu0 %v1059
  %v1837 = vpop.f32.mrf.mxu0
  %v1838 = vadd.f32 %v1669, %v1837
  %v1839 = vpop.f32.mrf.mxu0
  %v1840 = vadd.f32 %v1671, %v1839
  %1841 = vmatmul.bf16.gmra.mxu0 %v1064
  %v1842 = vpop.f32.mrf.mxu0
  %v1843 = vadd.f32 %v1674, %v1842
  %v1844 = vpop.f32.mrf.mxu0
  %v1845 = vadd.f32 %v1676, %v1844
  %1846 = vmatmul.bf16.gmra.mxu0 %v1069
  %v1847 = vpop.f32.mrf.mxu0
  %v1848 = vadd.f32 %v1679, %v1847
  %v1849 = vpop.f32.mrf.mxu0
  %v1850 = vadd.f32 %v1681, %v1849
  %1851 = vmatmul.bf16.gmra.mxu0 %v1074
  %v1852 = vpop.f32.mrf.mxu0
  %v1853 = vadd.f32 %v1684, %v1852
  %v1854 = vpop.f32.mrf.mxu0
  %v1855 = vadd.f32 %v1686, %v1854
  %1856 = vmatmul.bf16.gmra.mxu0 %v1079
  %v1857 = vpop.f32.mrf.mxu0
  %v1858 = vadd.f32 %v1689, %v1857
  %v1859 = vpop.f32.mrf.mxu0
  %v1860 = vadd.f32 %v1691, %v1859
  %1861 = vmatmul.bf16.gmra.mxu0 %v1084
  %v1862 = vpop.f32.mrf.mxu0
  %v1863 = vadd.f32 %v1694, %v1862
  %v1864 = vpop.f32.mrf.mxu0
  %v1865 = vadd.f32 %v1696, %v1864
  %1866 = vmatmul.bf16.gmra.mxu0 %v1089
  %v1867 = vpop.f32.mrf.mxu0
  %v1868 = vadd.f32 %v1699, %v1867
  %v1869 = vpop.f32.mrf.mxu0
  %v1870 = vadd.f32 %v1701, %v1869
  %1871 = vmatmul.bf16.gmra.mxu0 %v1094
  %v1872 = vpop.f32.mrf.mxu0
  %v1873 = vadd.f32 %v1704, %v1872
  %v1874 = vpop.f32.mrf.mxu0
  %v1875 = vadd.f32 %v1706, %v1874
  %1876 = vmatmul.bf16.gmra.mxu0 %v1099
  %v1877 = vpop.f32.mrf.mxu0
  %v1878 = vadd.f32 %v1709, %v1877
  %v1879 = vpop.f32.mrf.mxu0
  %v1880 = vadd.f32 %v1711, %v1879
  %1881 = vmatmul.bf16.gmra.mxu0 %v1104
  %v1882 = vpop.f32.mrf.mxu0
  %v1883 = vadd.f32 %v1714, %v1882
  %v1884 = vpop.f32.mrf.mxu0
  %v1885 = vadd.f32 %v1716, %v1884
  %1886 = vmatmul.bf16.gmra.mxu0 %v1109
  %v1887 = vpop.f32.mrf.mxu0
  %v1888 = vadd.f32 %v1719, %v1887
  %v1889 = vpop.f32.mrf.mxu0
  %v1890 = vadd.f32 %v1721, %v1889
  %1891 = vmatmul.bf16.gmra.mxu0 %v1114
  %v1892 = vpop.f32.mrf.mxu0
  %v1893 = vadd.f32 %v1724, %v1892
  %v1894 = vpop.f32.mrf.mxu0
  %v1895 = vadd.f32 %v1726, %v1894
  %1896 = vmatmul.bf16.gmra.mxu0 %v1119
  %v1897 = vpop.f32.mrf.mxu0
  %v1898 = vadd.f32 %v1729, %v1897
  %v1899 = vpop.f32.mrf.mxu0
  %v1900 = vadd.f32 %v1731, %v1899
  %1901 = vmatmul.bf16.gmra.mxu0 %v1124
  %v1902 = vpop.f32.mrf.mxu0
  %v1903 = vadd.f32 %v1734, %v1902
  %v1904 = vpop.f32.mrf.mxu0
  %v1905 = vadd.f32 %v1736, %v1904
  %1906 = vmatmul.bf16.gmra.mxu0 %v1129
  %v1907 = vpop.f32.mrf.mxu0
  %v1908 = vadd.f32 %v1739, %v1907
  %v1909 = vpop.f32.mrf.mxu0
  %v1910 = vadd.f32 %v1741, %v1909
  %1911 = vmatmul.bf16.gmra.mxu0 %v1134
  %v1912 = vpop.f32.mrf.mxu0
  %v1913 = vadd.f32 %v1744, %v1912
  %v1914 = vpop.f32.mrf.mxu0
  %v1915 = vadd.f32 %v1746, %v1914
  %1916 = vmatmul.bf16.gmra.mxu0 %v1139
  %v1917 = vpop.f32.mrf.mxu0
  %v1918 = vadd.f32 %v1749, %v1917
  %v1919 = vpop.f32.mrf.mxu0
  %v1920 = vadd.f32 %v1751, %v1919
  %1921 = vmatmul.bf16.gmra.mxu0 %v1144
  %v1922 = vpop.f32.mrf.mxu0
  %v1923 = vadd.f32 %v1754, %v1922
  %v1924 = vpop.f32.mrf.mxu0
  %v1925 = vadd.f32 %v1756, %v1924
  %1926 = vmatmul.bf16.gmra.mxu0 %v1149
  %v1927 = vpop.f32.mrf.mxu0
  %v1928 = vadd.f32 %v1759, %v1927
  %v1929 = vpop.f32.mrf.mxu0
  %v1930 = vadd.f32 %v1761, %v1929
  %1931 = vmatmul.bf16.gmra.mxu0 %v1154
  %v1932 = vpop.f32.mrf.mxu0
  %v1933 = vadd.f32 %v1764, %v1932
  %v1934 = vpop.f32.mrf.mxu0
  %v1935 = vadd.f32 %v1766, %v1934
  %1936 = vmatmul.bf16.gmra.mxu0 %v1159
  %v1937 = vpop.f32.mrf.mxu0
  %v1938 = vadd.f32 %v1769, %v1937
  %v1939 = vpop.f32.mrf.mxu0
  %v1940 = vadd.f32 %v1771, %v1939
  %1941 = vmatmul.bf16.gmra.mxu0 %v1164
  %v1942 = vpop.f32.mrf.mxu0
  %v1943 = vadd.f32 %v1774, %v1942
  %v1944 = vpop.f32.mrf.mxu0
  %v1945 = vadd.f32 %v1776, %v1944
  %1946 = vmatmul.bf16.gmra.mxu0 %v1169
  %v1947 = vpop.f32.mrf.mxu0
  %v1948 = vadd.f32 %v1779, %v1947
  %v1949 = vpop.f32.mrf.mxu0
  %v1950 = vadd.f32 %v1781, %v1949
  %1951 = vmatmul.bf16.gmra.mxu0 %v1174
  %v1952 = vpop.f32.mrf.mxu0
  %v1953 = vadd.f32 %v1784, %v1952
  %v1954 = vpop.f32.mrf.mxu0
  %v1955 = vadd.f32 %v1786, %v1954
  %1956 = vmatmul.bf16.gmra.mxu0 %v1179
  %v1957 = vpop.f32.mrf.mxu0
  %v1958 = vadd.f32 %v1789, %v1957
  %v1959 = vpop.f32.mrf.mxu0
  %v1960 = vadd.f32 %v1791, %v1959
  %1961 = vmatmul.bf16.gmra.mxu0 %v1184
  %v1962 = vpop.f32.mrf.mxu0
  %v1963 = vadd.f32 %v1794, %v1962
  %v1964 = vpop.f32.mrf.mxu0
  %v1965 = vadd.f32 %v1796, %v1964
  %1966 = vmatmul.bf16.gmra.mxu0 %v1189
  %v1967 = vpop.f32.mrf.mxu0
  %v1968 = vadd.f32 %v1799, %v1967
  %v1969 = vpop.f32.mrf.mxu0
  %v1970 = vadd.f32 %v1801, %v1969
  %1971 = vmatmul.bf16.gmra.mxu0 %v1194
  %v1972 = vpop.f32.mrf.mxu0
  %v1973 = vadd.f32 %v1804, %v1972
  %v1974 = vpop.f32.mrf.mxu0
  %v1975 = vadd.f32 %v1806, %v1974
  %1976 = vmatmul.bf16.gmra.mxu0 %v1199
  %v1977 = vpop.f32.mrf.mxu0
  %v1978 = vadd.f32 %v1809, %v1977
  %v1979 = vpop.f32.mrf.mxu0
  %v1980 = vadd.f32 %v1811, %v1979
  %1981 = vmatmul.bf16.gmra.mxu0 %v1204
  %v1982 = vpop.f32.mrf.mxu0
  %v1983 = vadd.f32 %v1814, %v1982
  %v1984 = vpop.f32.mrf.mxu0
  %v1985 = vadd.f32 %v1816, %v1984
  %1986 = vmatmul.bf16.gmra.mxu0 %v1209
  %v1987 = vpop.f32.mrf.mxu0
  %v1988 = vadd.f32 %v1819, %v1987
  %v1989 = vpop.f32.mrf.mxu0
  %v1990 = vadd.f32 %v1821, %v1989
  %1991 = vmatmul.bf16.gmra.mxu0 %v1214
  %v1992 = vpop.f32.mrf.mxu0
  %v1993 = vadd.f32 %v1824, %v1992
  %v1994 = vpop.f32.mrf.mxu0
  %v1995 = vadd.f32 %v1826, %v1994
  %1996 = vdwg.mxu0
  %1997 = vmatpush.bf16.msra.mxu0 %v1513
  %1998 = vmatpush.bf16.msra.mxu0 %v1512
  %1999 = vmatpush.bf16.msra.mxu0 %v1511
  %2000 = vmatpush.bf16.msra.mxu0 %v1510
  %2001 = vmatpush.bf16.msra.mxu0 %v1509
  %2002 = vmatpush.bf16.msra.mxu0 %v1508
  %2003 = vmatpush.bf16.msra.mxu0 %v1507
  %2004 = vmatpush.bf16.msra.mxu0 %v1506
  %2005 = vmatmul.bf16.gmra.mxu0 %v1060
  %v2006 = vpop.f32.mrf.mxu0
  %v2007 = vadd.f32 %v1838, %v2006
  %v2008 = vpop.f32.mrf.mxu0
  %v2009 = vadd.f32 %v1840, %v2008
  %2010 = vmatmul.bf16.gmra.mxu0 %v1065
  %v2011 = vpop.f32.mrf.mxu0
  %v2012 = vadd.f32 %v1843, %v2011
  %v2013 = vpop.f32.mrf.mxu0
  %v2014 = vadd.f32 %v1845, %v2013
  %2015 = vmatmul.bf16.gmra.mxu0 %v1070
  %v2016 = vpop.f32.mrf.mxu0
  %v2017 = vadd.f32 %v1848, %v2016
  %v2018 = vpop.f32.mrf.mxu0
  %v2019 = vadd.f32 %v1850, %v2018
  %2020 = vmatmul.bf16.gmra.mxu0 %v1075
  %v2021 = vpop.f32.mrf.mxu0
  %v2022 = vadd.f32 %v1853, %v2021
  %v2023 = vpop.f32.mrf.mxu0
  %v2024 = vadd.f32 %v1855, %v2023
  %2025 = vmatmul.bf16.gmra.mxu0 %v1080
  %v2026 = vpop.f32.mrf.mxu0
  %v2027 = vadd.f32 %v1858, %v2026
  %v2028 = vpop.f32.mrf.mxu0
  %v2029 = vadd.f32 %v1860, %v2028
  %2030 = vmatmul.bf16.gmra.mxu0 %v1085
  %v2031 = vpop.f32.mrf.mxu0
  %v2032 = vadd.f32 %v1863, %v2031
  %v2033 = vpop.f32.mrf.mxu0
  %v2034 = vadd.f32 %v1865, %v2033
  %2035 = vmatmul.bf16.gmra.mxu0 %v1090
  %v2036 = vpop.f32.mrf.mxu0
  %v2037 = vadd.f32 %v1868, %v2036
  %v2038 = vpop.f32.mrf.mxu0
  %v2039 = vadd.f32 %v1870, %v2038
  %2040 = vmatmul.bf16.gmra.mxu0 %v1095
  %v2041 = vpop.f32.mrf.mxu0
  %v2042 = vadd.f32 %v1873, %v2041
  %v2043 = vpop.f32.mrf.mxu0
  %v2044 = vadd.f32 %v1875, %v2043
  %2045 = vmatmul.bf16.gmra.mxu0 %v1100
  %v2046 = vpop.f32.mrf.mxu0
  %v2047 = vadd.f32 %v1878, %v2046
  %v2048 = vpop.f32.mrf.mxu0
  %v2049 = vadd.f32 %v1880, %v2048
  %2050 = vmatmul.bf16.gmra.mxu0 %v1105
  %v2051 = vpop.f32.mrf.mxu0
  %v2052 = vadd.f32 %v1883, %v2051
  %v2053 = vpop.f32.mrf.mxu0
  %v2054 = vadd.f32 %v1885, %v2053
  %2055 = vmatmul.bf16.gmra.mxu0 %v1110
  %v2056 = vpop.f32.mrf.mxu0
  %v2057 = vadd.f32 %v1888, %v2056
  %v2058 = vpop.f32.mrf.mxu0
  %v2059 = vadd.f32 %v1890, %v2058
  %2060 = vmatmul.bf16.gmra.mxu0 %v1115
  %v2061 = vpop.f32.mrf.mxu0
  %v2062 = vadd.f32 %v1893, %v2061
  %v2063 = vpop.f32.mrf.mxu0
  %v2064 = vadd.f32 %v1895, %v2063
  %2065 = vmatmul.bf16.gmra.mxu0 %v1120
  %v2066 = vpop.f32.mrf.mxu0
  %v2067 = vadd.f32 %v1898, %v2066
  %v2068 = vpop.f32.mrf.mxu0
  %v2069 = vadd.f32 %v1900, %v2068
  %2070 = vmatmul.bf16.gmra.mxu0 %v1125
  %v2071 = vpop.f32.mrf.mxu0
  %v2072 = vadd.f32 %v1903, %v2071
  %v2073 = vpop.f32.mrf.mxu0
  %v2074 = vadd.f32 %v1905, %v2073
  %2075 = vmatmul.bf16.gmra.mxu0 %v1130
  %v2076 = vpop.f32.mrf.mxu0
  %v2077 = vadd.f32 %v1908, %v2076
  %v2078 = vpop.f32.mrf.mxu0
  %v2079 = vadd.f32 %v1910, %v2078
  %2080 = vmatmul.bf16.gmra.mxu0 %v1135
  %v2081 = vpop.f32.mrf.mxu0
  %v2082 = vadd.f32 %v1913, %v2081
  %v2083 = vpop.f32.mrf.mxu0
  %v2084 = vadd.f32 %v1915, %v2083
  %2085 = vmatmul.bf16.gmra.mxu0 %v1140
  %v2086 = vpop.f32.mrf.mxu0
  %v2087 = vadd.f32 %v1918, %v2086
  %v2088 = vpop.f32.mrf.mxu0
  %v2089 = vadd.f32 %v1920, %v2088
  %2090 = vmatmul.bf16.gmra.mxu0 %v1145
  %v2091 = vpop.f32.mrf.mxu0
  %v2092 = vadd.f32 %v1923, %v2091
  %v2093 = vpop.f32.mrf.mxu0
  %v2094 = vadd.f32 %v1925, %v2093
  %2095 = vmatmul.bf16.gmra.mxu0 %v1150
  %v2096 = vpop.f32.mrf.mxu0
  %v2097 = vadd.f32 %v1928, %v2096
  %v2098 = vpop.f32.mrf.mxu0
  %v2099 = vadd.f32 %v1930, %v2098
  %2100 = vmatmul.bf16.gmra.mxu0 %v1155
  %v2101 = vpop.f32.mrf.mxu0
  %v2102 = vadd.f32 %v1933, %v2101
  %v2103 = vpop.f32.mrf.mxu0
  %v2104 = vadd.f32 %v1935, %v2103
  %2105 = vmatmul.bf16.gmra.mxu0 %v1160
  %v2106 = vpop.f32.mrf.mxu0
  %v2107 = vadd.f32 %v1938, %v2106
  %v2108 = vpop.f32.mrf.mxu0
  %v2109 = vadd.f32 %v1940, %v2108
  %2110 = vmatmul.bf16.gmra.mxu0 %v1165
  %v2111 = vpop.f32.mrf.mxu0
  %v2112 = vadd.f32 %v1943, %v2111
  %v2113 = vpop.f32.mrf.mxu0
  %v2114 = vadd.f32 %v1945, %v2113
  %2115 = vmatmul.bf16.gmra.mxu0 %v1170
  %v2116 = vpop.f32.mrf.mxu0
  %v2117 = vadd.f32 %v1948, %v2116
  %v2118 = vpop.f32.mrf.mxu0
  %v2119 = vadd.f32 %v1950, %v2118
  %2120 = vmatmul.bf16.gmra.mxu0 %v1175
  %v2121 = vpop.f32.mrf.mxu0
  %v2122 = vadd.f32 %v1953, %v2121
  %v2123 = vpop.f32.mrf.mxu0
  %v2124 = vadd.f32 %v1955, %v2123
  %2125 = vmatmul.bf16.gmra.mxu0 %v1180
  %v2126 = vpop.f32.mrf.mxu0
  %v2127 = vadd.f32 %v1958, %v2126
  %v2128 = vpop.f32.mrf.mxu0
  %v2129 = vadd.f32 %v1960, %v2128
  %2130 = vmatmul.bf16.gmra.mxu0 %v1185
  %v2131 = vpop.f32.mrf.mxu0
  %v2132 = vadd.f32 %v1963, %v2131
  %v2133 = vpop.f32.mrf.mxu0
  %v2134 = vadd.f32 %v1965, %v2133
  %2135 = vmatmul.bf16.gmra.mxu0 %v1190
  %v2136 = vpop.f32.mrf.mxu0
  %v2137 = vadd.f32 %v1968, %v2136
  %v2138 = vpop.f32.mrf.mxu0
  %v2139 = vadd.f32 %v1970, %v2138
  %2140 = vmatmul.bf16.gmra.mxu0 %v1195
  %v2141 = vpop.f32.mrf.mxu0
  %v2142 = vadd.f32 %v1973, %v2141
  %v2143 = vpop.f32.mrf.mxu0
  %v2144 = vadd.f32 %v1975, %v2143
  %2145 = vmatmul.bf16.gmra.mxu0 %v1200
  %v2146 = vpop.f32.mrf.mxu0
  %v2147 = vadd.f32 %v1978, %v2146
  %v2148 = vpop.f32.mrf.mxu0
  %v2149 = vadd.f32 %v1980, %v2148
  %2150 = vmatmul.bf16.gmra.mxu0 %v1205
  %v2151 = vpop.f32.mrf.mxu0
  %v2152 = vadd.f32 %v1983, %v2151
  %v2153 = vpop.f32.mrf.mxu0
  %v2154 = vadd.f32 %v1985, %v2153
  %2155 = vmatmul.bf16.gmra.mxu0 %v1210
  %v2156 = vpop.f32.mrf.mxu0
  %v2157 = vadd.f32 %v1988, %v2156
  %v2158 = vpop.f32.mrf.mxu0
  %v2159 = vadd.f32 %v1990, %v2158
  %2160 = vmatmul.bf16.gmra.mxu0 %v1215
  %v2161 = vpop.f32.mrf.mxu0
  %v2162 = vadd.f32 %v1993, %v2161
  %v2163 = vpop.f32.mrf.mxu0
  %v2164 = vadd.f32 %v1995, %v2163
  %2165 = vdwg.mxu0
  %2166 = vmatpush.bf16.msra.mxu0 %v1521
  %2167 = vmatpush.bf16.msra.mxu0 %v1520
  %2168 = vmatpush.bf16.msra.mxu0 %v1519
  %2169 = vmatpush.bf16.msra.mxu0 %v1518
  %2170 = vmatpush.bf16.msra.mxu0 %v1517
  %2171 = vmatpush.bf16.msra.mxu0 %v1516
  %2172 = vmatpush.bf16.msra.mxu0 %v1515
  %2173 = vmatpush.bf16.msra.mxu0 %v1514
  %2174 = vmatmul.bf16.gmra.mxu0 %v1061
  %v2175 = vpop.f32.mrf.mxu0
  %v2176 = vadd.f32 %v2007, %v2175
  %v2177 = vpop.f32.mrf.mxu0
  %v2178 = vadd.f32 %v2009, %v2177
  %2179 = vmatmul.bf16.gmra.mxu0 %v1066
  %v2180 = vpop.f32.mrf.mxu0
  %v2181 = vadd.f32 %v2012, %v2180
  %v2182 = vpop.f32.mrf.mxu0
  %v2183 = vadd.f32 %v2014, %v2182
  %2184 = vmatmul.bf16.gmra.mxu0 %v1071
  %v2185 = vpop.f32.mrf.mxu0
  %v2186 = vadd.f32 %v2017, %v2185
  %v2187 = vpop.f32.mrf.mxu0
  %v2188 = vadd.f32 %v2019, %v2187
  %2189 = vmatmul.bf16.gmra.mxu0 %v1076
  %v2190 = vpop.f32.mrf.mxu0
  %v2191 = vadd.f32 %v2022, %v2190
  %v2192 = vpop.f32.mrf.mxu0
  %v2193 = vadd.f32 %v2024, %v2192
  %2194 = vmatmul.bf16.gmra.mxu0 %v1081
  %v2195 = vpop.f32.mrf.mxu0
  %v2196 = vadd.f32 %v2027, %v2195
  %v2197 = vpop.f32.mrf.mxu0
  %v2198 = vadd.f32 %v2029, %v2197
  %2199 = vmatmul.bf16.gmra.mxu0 %v1086
  %v2200 = vpop.f32.mrf.mxu0
  %v2201 = vadd.f32 %v2032, %v2200
  %v2202 = vpop.f32.mrf.mxu0
  %v2203 = vadd.f32 %v2034, %v2202
  %2204 = vmatmul.bf16.gmra.mxu0 %v1091
  %v2205 = vpop.f32.mrf.mxu0
  %v2206 = vadd.f32 %v2037, %v2205
  %v2207 = vpop.f32.mrf.mxu0
  %v2208 = vadd.f32 %v2039, %v2207
  %2209 = vmatmul.bf16.gmra.mxu0 %v1096
  %v2210 = vpop.f32.mrf.mxu0
  %v2211 = vadd.f32 %v2042, %v2210
  %v2212 = vpop.f32.mrf.mxu0
  %v2213 = vadd.f32 %v2044, %v2212
  %2214 = vmatmul.bf16.gmra.mxu0 %v1101
  %v2215 = vpop.f32.mrf.mxu0
  %v2216 = vadd.f32 %v2047, %v2215
  %v2217 = vpop.f32.mrf.mxu0
  %v2218 = vadd.f32 %v2049, %v2217
  %2219 = vmatmul.bf16.gmra.mxu0 %v1106
  %v2220 = vpop.f32.mrf.mxu0
  %v2221 = vadd.f32 %v2052, %v2220
  %v2222 = vpop.f32.mrf.mxu0
  %v2223 = vadd.f32 %v2054, %v2222
  %2224 = vmatmul.bf16.gmra.mxu0 %v1111
  %v2225 = vpop.f32.mrf.mxu0
  %v2226 = vadd.f32 %v2057, %v2225
  %v2227 = vpop.f32.mrf.mxu0
  %v2228 = vadd.f32 %v2059, %v2227
  %2229 = vmatmul.bf16.gmra.mxu0 %v1116
  %v2230 = vpop.f32.mrf.mxu0
  %v2231 = vadd.f32 %v2062, %v2230
  %v2232 = vpop.f32.mrf.mxu0
  %v2233 = vadd.f32 %v2064, %v2232
  %2234 = vmatmul.bf16.gmra.mxu0 %v1121
  %v2235 = vpop.f32.mrf.mxu0
  %v2236 = vadd.f32 %v2067, %v2235
  %v2237 = vpop.f32.mrf.mxu0
  %v2238 = vadd.f32 %v2069, %v2237
  %2239 = vmatmul.bf16.gmra.mxu0 %v1126
  %v2240 = vpop.f32.mrf.mxu0
  %v2241 = vadd.f32 %v2072, %v2240
  %v2242 = vpop.f32.mrf.mxu0
  %v2243 = vadd.f32 %v2074, %v2242
  %2244 = vmatmul.bf16.gmra.mxu0 %v1131
  %v2245 = vpop.f32.mrf.mxu0
  %v2246 = vadd.f32 %v2077, %v2245
  %v2247 = vpop.f32.mrf.mxu0
  %v2248 = vadd.f32 %v2079, %v2247
  %2249 = vmatmul.bf16.gmra.mxu0 %v1136
  %v2250 = vpop.f32.mrf.mxu0
  %v2251 = vadd.f32 %v2082, %v2250
  %v2252 = vpop.f32.mrf.mxu0
  %v2253 = vadd.f32 %v2084, %v2252
  %2254 = vmatmul.bf16.gmra.mxu0 %v1141
  %v2255 = vpop.f32.mrf.mxu0
  %v2256 = vadd.f32 %v2087, %v2255
  %v2257 = vpop.f32.mrf.mxu0
  %v2258 = vadd.f32 %v2089, %v2257
  %2259 = vmatmul.bf16.gmra.mxu0 %v1146
  %v2260 = vpop.f32.mrf.mxu0
  %v2261 = vadd.f32 %v2092, %v2260
  %v2262 = vpop.f32.mrf.mxu0
  %v2263 = vadd.f32 %v2094, %v2262
  %2264 = vmatmul.bf16.gmra.mxu0 %v1151
  %v2265 = vpop.f32.mrf.mxu0
  %v2266 = vadd.f32 %v2097, %v2265
  %v2267 = vpop.f32.mrf.mxu0
  %v2268 = vadd.f32 %v2099, %v2267
  %2269 = vmatmul.bf16.gmra.mxu0 %v1156
  %v2270 = vpop.f32.mrf.mxu0
  %v2271 = vadd.f32 %v2102, %v2270
  %v2272 = vpop.f32.mrf.mxu0
  %v2273 = vadd.f32 %v2104, %v2272
  %2274 = vmatmul.bf16.gmra.mxu0 %v1161
  %v2275 = vpop.f32.mrf.mxu0
  %v2276 = vadd.f32 %v2107, %v2275
  %v2277 = vpop.f32.mrf.mxu0
  %v2278 = vadd.f32 %v2109, %v2277
  %2279 = vmatmul.bf16.gmra.mxu0 %v1166
  %v2280 = vpop.f32.mrf.mxu0
  %v2281 = vadd.f32 %v2112, %v2280
  %v2282 = vpop.f32.mrf.mxu0
  %v2283 = vadd.f32 %v2114, %v2282
  %2284 = vmatmul.bf16.gmra.mxu0 %v1171
  %v2285 = vpop.f32.mrf.mxu0
  %v2286 = vadd.f32 %v2117, %v2285
  %v2287 = vpop.f32.mrf.mxu0
  %v2288 = vadd.f32 %v2119, %v2287
  %2289 = vmatmul.bf16.gmra.mxu0 %v1176
  %v2290 = vpop.f32.mrf.mxu0
  %v2291 = vadd.f32 %v2122, %v2290
  %v2292 = vpop.f32.mrf.mxu0
  %v2293 = vadd.f32 %v2124, %v2292
  %2294 = vmatmul.bf16.gmra.mxu0 %v1181
  %v2295 = vpop.f32.mrf.mxu0
  %v2296 = vadd.f32 %v2127, %v2295
  %v2297 = vpop.f32.mrf.mxu0
  %v2298 = vadd.f32 %v2129, %v2297
  %2299 = vmatmul.bf16.gmra.mxu0 %v1186
  %v2300 = vpop.f32.mrf.mxu0
  %v2301 = vadd.f32 %v2132, %v2300
  %v2302 = vpop.f32.mrf.mxu0
  %v2303 = vadd.f32 %v2134, %v2302
  %2304 = vmatmul.bf16.gmra.mxu0 %v1191
  %v2305 = vpop.f32.mrf.mxu0
  %v2306 = vadd.f32 %v2137, %v2305
  %v2307 = vpop.f32.mrf.mxu0
  %v2308 = vadd.f32 %v2139, %v2307
  %2309 = vmatmul.bf16.gmra.mxu0 %v1196
  %v2310 = vpop.f32.mrf.mxu0
  %v2311 = vadd.f32 %v2142, %v2310
  %v2312 = vpop.f32.mrf.mxu0
  %v2313 = vadd.f32 %v2144, %v2312
  %2314 = vmatmul.bf16.gmra.mxu0 %v1201
  %v2315 = vpop.f32.mrf.mxu0
  %v2316 = vadd.f32 %v2147, %v2315
  %v2317 = vpop.f32.mrf.mxu0
  %v2318 = vadd.f32 %v2149, %v2317
  %2319 = vmatmul.bf16.gmra.mxu0 %v1206
  %v2320 = vpop.f32.mrf.mxu0
  %v2321 = vadd.f32 %v2152, %v2320
  %v2322 = vpop.f32.mrf.mxu0
  %v2323 = vadd.f32 %v2154, %v2322
  %2324 = vmatmul.bf16.gmra.mxu0 %v1211
  %v2325 = vpop.f32.mrf.mxu0
  %v2326 = vadd.f32 %v2157, %v2325
  %v2327 = vpop.f32.mrf.mxu0
  %v2328 = vadd.f32 %v2159, %v2327
  %2329 = vmatmul.bf16.gmra.mxu0 %v1216
  %v2330 = vpop.f32.mrf.mxu0
  %v2331 = vadd.f32 %v2162, %v2330
  %v2332 = vpop.f32.mrf.mxu0
  %v2333 = vadd.f32 %v2164, %v2332
  %2334 = vdwg.mxu0
  %2335 = vmatpush.bf16.msra.mxu0 0
  %2336 = vmatpush.bf16.msra.mxu0 0
  %2337 = vmatpush.bf16.msra.mxu0 0
  %2338 = vmatpush.bf16.msra.mxu0 0
  %2339 = vmatpush.bf16.msra.mxu0 %v1525
  %2340 = vmatpush.bf16.msra.mxu0 %v1524
  %2341 = vmatpush.bf16.msra.mxu0 %v1523
  %2342 = vmatpush.bf16.msra.mxu0 %v1522
  %2343 = vmatmul.bf16.gmra.mxu0 %v1564
  %v2344 = vpop.f32.mrf.mxu0
  %v2345 = vadd.f32 %v2176, %v2344
  %v2346 = vpop.f32.mrf.mxu0
  %v2347 = vadd.f32 %v2178, %v2346
  %2348 = vmatmul.bf16.gmra.mxu0 %v1567
  %v2349 = vpop.f32.mrf.mxu0
  %v2350 = vadd.f32 %v2181, %v2349
  %v2351 = vpop.f32.mrf.mxu0
  %v2352 = vadd.f32 %v2183, %v2351
  %2353 = vmatmul.bf16.gmra.mxu0 %v1570
  %v2354 = vpop.f32.mrf.mxu0
  %v2355 = vadd.f32 %v2186, %v2354
  %v2356 = vpop.f32.mrf.mxu0
  %v2357 = vadd.f32 %v2188, %v2356
  %2358 = vmatmul.bf16.gmra.mxu0 %v1573
  %v2359 = vpop.f32.mrf.mxu0
  %v2360 = vadd.f32 %v2191, %v2359
  %v2361 = vpop.f32.mrf.mxu0
  %v2362 = vadd.f32 %v2193, %v2361
  %2363 = vmatmul.bf16.gmra.mxu0 %v1576
  %v2364 = vpop.f32.mrf.mxu0
  %v2365 = vadd.f32 %v2196, %v2364
  %v2366 = vpop.f32.mrf.mxu0
  %v2367 = vadd.f32 %v2198, %v2366
  %2368 = vmatmul.bf16.gmra.mxu0 %v1579
  %v2369 = vpop.f32.mrf.mxu0
  %v2370 = vadd.f32 %v2201, %v2369
  %v2371 = vpop.f32.mrf.mxu0
  %v2372 = vadd.f32 %v2203, %v2371
  %2373 = vmatmul.bf16.gmra.mxu0 %v1582
  %v2374 = vpop.f32.mrf.mxu0
  %v2375 = vadd.f32 %v2206, %v2374
  %v2376 = vpop.f32.mrf.mxu0
  %v2377 = vadd.f32 %v2208, %v2376
  %2378 = vmatmul.bf16.gmra.mxu0 %v1585
  %v2379 = vpop.f32.mrf.mxu0
  %v2380 = vadd.f32 %v2211, %v2379
  %v2381 = vpop.f32.mrf.mxu0
  %v2382 = vadd.f32 %v2213, %v2381
  %2383 = vmatmul.bf16.gmra.mxu0 %v1588
  %v2384 = vpop.f32.mrf.mxu0
  %v2385 = vadd.f32 %v2216, %v2384
  %v2386 = vpop.f32.mrf.mxu0
  %v2387 = vadd.f32 %v2218, %v2386
  %2388 = vmatmul.bf16.gmra.mxu0 %v1591
  %v2389 = vpop.f32.mrf.mxu0
  %v2390 = vadd.f32 %v2221, %v2389
  %v2391 = vpop.f32.mrf.mxu0
  %v2392 = vadd.f32 %v2223, %v2391
  %2393 = vmatmul.bf16.gmra.mxu0 %v1594
  %v2394 = vpop.f32.mrf.mxu0
  %v2395 = vadd.f32 %v2226, %v2394
  %v2396 = vpop.f32.mrf.mxu0
  %v2397 = vadd.f32 %v2228, %v2396
  %2398 = vmatmul.bf16.gmra.mxu0 %v1597
  %v2399 = vpop.f32.mrf.mxu0
  %v2400 = vadd.f32 %v2231, %v2399
  %v2401 = vpop.f32.mrf.mxu0
  %v2402 = vadd.f32 %v2233, %v2401
  %2403 = vmatmul.bf16.gmra.mxu0 %v1600
  %v2404 = vpop.f32.mrf.mxu0
  %v2405 = vadd.f32 %v2236, %v2404
  %v2406 = vpop.f32.mrf.mxu0
  %v2407 = vadd.f32 %v2238, %v2406
  %2408 = vmatmul.bf16.gmra.mxu0 %v1603
  %v2409 = vpop.f32.mrf.mxu0
  %v2410 = vadd.f32 %v2241, %v2409
  %v2411 = vpop.f32.mrf.mxu0
  %v2412 = vadd.f32 %v2243, %v2411
  %2413 = vmatmul.bf16.gmra.mxu0 %v1606
  %v2414 = vpop.f32.mrf.mxu0
  %v2415 = vadd.f32 %v2246, %v2414
  %v2416 = vpop.f32.mrf.mxu0
  %v2417 = vadd.f32 %v2248, %v2416
  %2418 = vmatmul.bf16.gmra.mxu0 %v1609
  %v2419 = vpop.f32.mrf.mxu0
  %v2420 = vadd.f32 %v2251, %v2419
  %v2421 = vpop.f32.mrf.mxu0
  %v2422 = vadd.f32 %v2253, %v2421
  %2423 = vmatmul.bf16.gmra.mxu0 %v1612
  %v2424 = vpop.f32.mrf.mxu0
  %v2425 = vadd.f32 %v2256, %v2424
  %v2426 = vpop.f32.mrf.mxu0
  %v2427 = vadd.f32 %v2258, %v2426
  %2428 = vmatmul.bf16.gmra.mxu0 %v1615
  %v2429 = vpop.f32.mrf.mxu0
  %v2430 = vadd.f32 %v2261, %v2429
  %v2431 = vpop.f32.mrf.mxu0
  %v2432 = vadd.f32 %v2263, %v2431
  %2433 = vmatmul.bf16.gmra.mxu0 %v1618
  %v2434 = vpop.f32.mrf.mxu0
  %v2435 = vadd.f32 %v2266, %v2434
  %v2436 = vpop.f32.mrf.mxu0
  %v2437 = vadd.f32 %v2268, %v2436
  %2438 = vmatmul.bf16.gmra.mxu0 %v1621
  %v2439 = vpop.f32.mrf.mxu0
  %v2440 = vadd.f32 %v2271, %v2439
  %v2441 = vpop.f32.mrf.mxu0
  %v2442 = vadd.f32 %v2273, %v2441
  %2443 = vmatmul.bf16.gmra.mxu0 %v1624
  %v2444 = vpop.f32.mrf.mxu0
  %v2445 = vadd.f32 %v2276, %v2444
  %v2446 = vpop.f32.mrf.mxu0
  %v2447 = vadd.f32 %v2278, %v2446
  %2448 = vmatmul.bf16.gmra.mxu0 %v1627
  %v2449 = vpop.f32.mrf.mxu0
  %v2450 = vadd.f32 %v2281, %v2449
  %v2451 = vpop.f32.mrf.mxu0
  %v2452 = vadd.f32 %v2283, %v2451
  %2453 = vmatmul.bf16.gmra.mxu0 %v1630
  %v2454 = vpop.f32.mrf.mxu0
  %v2455 = vadd.f32 %v2286, %v2454
  %v2456 = vpop.f32.mrf.mxu0
  %v2457 = vadd.f32 %v2288, %v2456
  %2458 = vmatmul.bf16.gmra.mxu0 %v1633
  %v2459 = vpop.f32.mrf.mxu0
  %v2460 = vadd.f32 %v2291, %v2459
  %v2461 = vpop.f32.mrf.mxu0
  %v2462 = vadd.f32 %v2293, %v2461
  %2463 = vmatmul.bf16.gmra.mxu0 %v1636
  %v2464 = vpop.f32.mrf.mxu0
  %v2465 = vadd.f32 %v2296, %v2464
  %v2466 = vpop.f32.mrf.mxu0
  %v2467 = vadd.f32 %v2298, %v2466
  %2468 = vmatmul.bf16.gmra.mxu0 %v1639
  %v2469 = vpop.f32.mrf.mxu0
  %v2470 = vadd.f32 %v2301, %v2469
  %v2471 = vpop.f32.mrf.mxu0
  %v2472 = vadd.f32 %v2303, %v2471
  %2473 = vmatmul.bf16.gmra.mxu0 %v1642
  %v2474 = vpop.f32.mrf.mxu0
  %v2475 = vadd.f32 %v2306, %v2474
  %v2476 = vpop.f32.mrf.mxu0
  %v2477 = vadd.f32 %v2308, %v2476
  %2478 = vmatmul.bf16.gmra.mxu0 %v1645
  %v2479 = vpop.f32.mrf.mxu0
  %v2480 = vadd.f32 %v2311, %v2479
  %v2481 = vpop.f32.mrf.mxu0
  %v2482 = vadd.f32 %v2313, %v2481
  %2483 = vmatmul.bf16.gmra.mxu0 %v1648
  %v2484 = vpop.f32.mrf.mxu0
  %v2485 = vadd.f32 %v2316, %v2484
  %v2486 = vpop.f32.mrf.mxu0
  %v2487 = vadd.f32 %v2318, %v2486
  %2488 = vmatmul.bf16.gmra.mxu0 %v1651
  %v2489 = vpop.f32.mrf.mxu0
  %v2490 = vadd.f32 %v2321, %v2489
  %v2491 = vpop.f32.mrf.mxu0
  %v2492 = vadd.f32 %v2323, %v2491
  %2493 = vmatmul.bf16.gmra.mxu0 %v1654
  %v2494 = vpop.f32.mrf.mxu0
  %v2495 = vadd.f32 %v2326, %v2494
  %v2496 = vpop.f32.mrf.mxu0
  %v2497 = vadd.f32 %v2328, %v2496
  %2498 = vmatmul.bf16.gmra.mxu0 %v1657
  %v2499 = vpop.f32.mrf.mxu0
  %v2500 = vadd.f32 %v2331, %v2499
  %v2501 = vpop.f32.mrf.mxu0
  %v2502 = vadd.f32 %v2333, %v2501
  %2503 = vdwg.mxu0
  %v2696 = vunpack.c.l.b16 %v18
  %v2697 = vunpack.c.h.b16 %v18
  %v2698 = vunpack.c.l.b16 %v19
  %v2699 = vunpack.c.h.b16 %v19
  %v2700 = vunpack.c.l.b16 %v20
  %v2701 = vunpack.c.l.b16 %v21
  %v2702 = vunpack.c.h.b16 %v21
  %v2703 = vunpack.c.l.b16 %v22
  %v2704 = vunpack.c.h.b16 %v22
  %v2705 = vunpack.c.l.b16 %v23
  %v2706 = vunpack.c.l.b16 %v24
  %v2707 = vunpack.c.h.b16 %v24
  %v2708 = vunpack.c.l.b16 %v25
  %v2709 = vunpack.c.h.b16 %v25
  %v2710 = vunpack.c.l.b16 %v26
  %v2711 = vunpack.c.l.b16 %v27
  %v2712 = vunpack.c.h.b16 %v27
  %v2713 = vunpack.c.l.b16 %v28
  %v2714 = vunpack.c.h.b16 %v28
  %v2715 = vunpack.c.l.b16 %v29
  %v2716 = vunpack.c.l.b16 %v30
  %v2717 = vunpack.c.h.b16 %v30
  %v2718 = vunpack.c.l.b16 %v31
  %v2719 = vunpack.c.h.b16 %v31
  %v2720 = vunpack.c.l.b16 %v32
  %v2721 = vunpack.c.l.b16 %v33
  %v2722 = vunpack.c.h.b16 %v33
  %v2723 = vunpack.c.l.b16 %v34
  %v2724 = vunpack.c.h.b16 %v34
  %v2725 = vunpack.c.l.b16 %v35
  %v2726 = vunpack.c.l.b16 %v36
  %v2727 = vunpack.c.h.b16 %v36
  %v2728 = vunpack.c.l.b16 %v37
  %v2729 = vunpack.c.h.b16 %v37
  %v2730 = vunpack.c.l.b16 %v38
  %v2731 = vunpack.c.l.b16 %v39
  %v2732 = vunpack.c.h.b16 %v39
  %v2733 = vunpack.c.l.b16 %v40
  %v2734 = vunpack.c.h.b16 %v40
  %v2735 = vunpack.c.l.b16 %v41
  %v2736 = vunpack.c.l.b16 %v42
  %v2737 = vunpack.c.h.b16 %v42
  %v2738 = vunpack.c.l.b16 %v43
  %v2739 = vunpack.c.h.b16 %v43
  %v2740 = vunpack.c.l.b16 %v44
  %v2741 = vunpack.c.l.b16 %v45
  %v2742 = vunpack.c.h.b16 %v45
  %v2743 = vunpack.c.l.b16 %v46
  %v2744 = vunpack.c.h.b16 %v46
  %v2745 = vunpack.c.l.b16 %v47
  %v2746 = vunpack.c.l.b16 %v48
  %v2747 = vunpack.c.h.b16 %v48
  %v2748 = vunpack.c.l.b16 %v49
  %v2749 = vunpack.c.h.b16 %v49
  %v2750 = vunpack.c.l.b16 %v50
  %v2751 = vunpack.c.l.b16 %v51
  %v2752 = vunpack.c.h.b16 %v51
  %v2753 = vunpack.c.l.b16 %v52
  %v2754 = vunpack.c.h.b16 %v52
  %v2755 = vunpack.c.l.b16 %v53
  %v2756 = vunpack.c.l.b16 %v54
  %v2757 = vunpack.c.h.b16 %v54
  %v2758 = vunpack.c.l.b16 %v55
  %v2759 = vunpack.c.h.b16 %v55
  %v2760 = vunpack.c.l.b16 %v56
  %v2761 = vunpack.c.l.b16 %v57
  %v2762 = vunpack.c.h.b16 %v57
  %v2763 = vunpack.c.l.b16 %v58
  %v2764 = vunpack.c.h.b16 %v58
  %v2765 = vunpack.c.l.b16 %v59
  %v2766 = vunpack.c.l.b16 %v60
  %v2767 = vunpack.c.h.b16 %v60
  %v2768 = vunpack.c.l.b16 %v61
  %v2769 = vunpack.c.h.b16 %v61
  %v2770 = vunpack.c.l.b16 %v62
  %v2771 = vunpack.c.l.b16 %v63
  %v2772 = vunpack.c.h.b16 %v63
  %v2773 = vunpack.c.l.b16 %v64
  %v2774 = vunpack.c.h.b16 %v64
  %v2775 = vunpack.c.l.b16 %v65
  %v2776 = vunpack.c.l.b16 %v66
  %v2777 = vunpack.c.h.b16 %v66
  %v2778 = vunpack.c.l.b16 %v67
  %v2779 = vunpack.c.h.b16 %v67
  %v2780 = vunpack.c.l.b16 %v68
  %v2781 = vunpack.c.l.b16 %v69
  %v2782 = vunpack.c.h.b16 %v69
  %v2783 = vunpack.c.l.b16 %v70
  %v2784 = vunpack.c.h.b16 %v70
  %v2785 = vunpack.c.l.b16 %v71
  %v2786 = vunpack.c.l.b16 %v72
  %v2787 = vunpack.c.h.b16 %v72
  %v2788 = vunpack.c.l.b16 %v73
  %v2789 = vunpack.c.h.b16 %v73
  %v2790 = vunpack.c.l.b16 %v74
  %v2791 = vunpack.c.l.b16 %v75
  %v2792 = vunpack.c.h.b16 %v75
  %v2793 = vunpack.c.l.b16 %v76
  %v2794 = vunpack.c.h.b16 %v76
  %v2795 = vunpack.c.l.b16 %v77
  %v2796 = vunpack.c.l.b16 %v78
  %v2797 = vunpack.c.h.b16 %v78
  %v2798 = vunpack.c.l.b16 %v79
  %v2799 = vunpack.c.h.b16 %v79
  %v2800 = vunpack.c.l.b16 %v80
  %v2801 = vunpack.c.l.b16 %v81
  %v2802 = vunpack.c.h.b16 %v81
  %v2803 = vunpack.c.l.b16 %v82
  %v2804 = vunpack.c.h.b16 %v82
  %v2805 = vunpack.c.l.b16 %v83
  %v2806 = vunpack.c.l.b16 %v84
  %v2807 = vunpack.c.h.b16 %v84
  %v2808 = vunpack.c.l.b16 %v85
  %v2809 = vunpack.c.h.b16 %v85
  %v2810 = vunpack.c.l.b16 %v86
  %v2811 = vunpack.c.l.b16 %v87
  %v2812 = vunpack.c.h.b16 %v87
  %v2813 = vunpack.c.l.b16 %v88
  %v2814 = vunpack.c.h.b16 %v88
  %v2815 = vunpack.c.l.b16 %v89
  %v2816 = vunpack.c.l.b16 %v90
  %v2817 = vunpack.c.h.b16 %v90
  %v2818 = vunpack.c.l.b16 %v91
  %v2819 = vunpack.c.h.b16 %v91
  %v2820 = vunpack.c.l.b16 %v92
  %v2821 = vunpack.c.l.b16 %v93
  %v2822 = vunpack.c.h.b16 %v93
  %v2823 = vunpack.c.l.b16 %v94
  %v2824 = vunpack.c.h.b16 %v94
  %v2825 = vunpack.c.l.b16 %v95
  %v2826 = vunpack.c.l.b16 %v96
  %v2827 = vunpack.c.h.b16 %v96
  %v2828 = vunpack.c.l.b16 %v97
  %v2829 = vunpack.c.h.b16 %v97
  %v2830 = vunpack.c.l.b16 %v98
  %v2831 = vunpack.c.l.b16 %v99
  %v2832 = vunpack.c.h.b16 %v99
  %v2833 = vunpack.c.l.b16 %v100
  %v2834 = vunpack.c.h.b16 %v100
  %v2835 = vunpack.c.l.b16 %v101
  %v2836 = vunpack.c.l.b16 %v102
  %v2837 = vunpack.c.h.b16 %v102
  %v2838 = vunpack.c.l.b16 %v103
  %v2839 = vunpack.c.h.b16 %v103
  %v2840 = vunpack.c.l.b16 %v104
  %v2841 = vunpack.c.l.b16 %v105
  %v2842 = vunpack.c.h.b16 %v105
  %v2843 = vunpack.c.l.b16 %v106
  %v2844 = vunpack.c.h.b16 %v106
  %v2845 = vunpack.c.l.b16 %v107
  %v2846 = vunpack.c.l.b16 %v108
  %v2847 = vunpack.c.h.b16 %v108
  %v2848 = vunpack.c.l.b16 %v109
  %v2849 = vunpack.c.h.b16 %v109
  %v2850 = vunpack.c.l.b16 %v110
  %v2851 = vunpack.c.l.b16 %v111
  %v2852 = vunpack.c.h.b16 %v111
  %v2853 = vunpack.c.l.b16 %v112
  %v2854 = vunpack.c.h.b16 %v112
  %v2855 = vunpack.c.l.b16 %v113
  %v2856 = vunpack.c.l.b16 %v114
  %v2857 = vunpack.c.h.b16 %v114
  %v2858 = vunpack.c.l.b16 %v115
  %v2859 = vunpack.c.h.b16 %v115
  %v2860 = vunpack.c.l.b16 %v116
  %v2861 = vunpack.c.l.b16 %v117
  %v2862 = vunpack.c.h.b16 %v117
  %v2863 = vunpack.c.l.b16 %v118
  %v2864 = vunpack.c.h.b16 %v118
  %v2865 = vunpack.c.l.b16 %v119
  %v2866 = vunpack.c.l.b16 %v120
  %v2867 = vunpack.c.h.b16 %v120
  %v2868 = vunpack.c.l.b16 %v121
  %v2869 = vunpack.c.h.b16 %v121
  %v2870 = vunpack.c.l.b16 %v122
  %v2871 = vunpack.c.l.b16 %v123
  %v2872 = vunpack.c.h.b16 %v123
  %v2873 = vunpack.c.l.b16 %v124
  %v2874 = vunpack.c.h.b16 %v124
  %v2875 = vunpack.c.l.b16 %v125
  %v2876 = vunpack.c.l.b16 %v126
  %v2877 = vunpack.c.h.b16 %v126
  %v2878 = vunpack.c.l.b16 %v127
  %v2879 = vunpack.c.h.b16 %v127
  %v2880 = vunpack.c.l.b16 %v128
  %v2881 = vunpack.c.l.b16 %v129
  %v2882 = vunpack.c.h.b16 %v129
  %v2883 = vunpack.c.l.b16 %v130
  %v2884 = vunpack.c.h.b16 %v130
  %v2885 = vunpack.c.l.b16 %v131
  %v2886 = vunpack.c.l.b16 %v132
  %v2887 = vunpack.c.h.b16 %v132
  %v2888 = vunpack.c.l.b16 %v133
  %v2889 = vunpack.c.h.b16 %v133
  %v2890 = vunpack.c.l.b16 %v134
  %v2891 = vunpack.c.l.b16 %v135
  %v2892 = vunpack.c.h.b16 %v135
  %v2893 = vunpack.c.l.b16 %v136
  %v2894 = vunpack.c.h.b16 %v136
  %v2895 = vunpack.c.l.b16 %v137
  %v2896 = vunpack.c.l.b16 %v138
  %v2897 = vunpack.c.h.b16 %v138
  %v2898 = vunpack.c.l.b16 %v139
  %v2899 = vunpack.c.h.b16 %v139
  %v2900 = vunpack.c.l.b16 %v140
  %v2901 = vunpack.c.l.b16 %v141
  %v2902 = vunpack.c.h.b16 %v141
  %v2903 = vunpack.c.l.b16 %v142
  %v2904 = vunpack.c.h.b16 %v142
  %v2905 = vunpack.c.l.b16 %v143
  %v2906 = vunpack.c.l.b16 %v144
  %v2907 = vunpack.c.h.b16 %v144
  %v2908 = vunpack.c.l.b16 %v145
  %v2909 = vunpack.c.h.b16 %v145
  %v2910 = vunpack.c.l.b16 %v146
  %v2911 = vunpack.c.l.b16 %v147
  %v2912 = vunpack.c.h.b16 %v147
  %v2913 = vunpack.c.l.b16 %v148
  %v2914 = vunpack.c.h.b16 %v148
  %v2915 = vunpack.c.l.b16 %v149
  %v2916 = vunpack.c.l.b16 %v150
  %v2917 = vunpack.c.h.b16 %v150
  %v2918 = vunpack.c.l.b16 %v151
  %v2919 = vunpack.c.h.b16 %v151
  %v2920 = vunpack.c.l.b16 %v152
  %v2921 = vunpack.c.l.b16 %v153
  %v2922 = vunpack.c.h.b16 %v153
  %v2923 = vunpack.c.l.b16 %v154
  %v2924 = vunpack.c.h.b16 %v154
  %v2925 = vunpack.c.l.b16 %v155
  %v2926 = vunpack.c.l.b16 %v156
  %v2927 = vunpack.c.h.b16 %v156
  %v2928 = vunpack.c.l.b16 %v157
  %v2929 = vunpack.c.h.b16 %v157
  %v2930 = vunpack.c.l.b16 %v158
  %v2931 = vunpack.c.l.b16 %v159
  %v2932 = vunpack.c.h.b16 %v159
  %v2933 = vunpack.c.l.b16 %v160
  %v2934 = vunpack.c.h.b16 %v160
  %v2935 = vunpack.c.l.b16 %v161
  %v2936 = vunpack.c.l.b16 %v162
  %v2937 = vunpack.c.h.b16 %v162
  %v2938 = vunpack.c.l.b16 %v163
  %v2939 = vunpack.c.h.b16 %v163
  %v2940 = vunpack.c.l.b16 %v164
  %v2941 = vunpack.c.l.b16 %v165
  %v2942 = vunpack.c.h.b16 %v165
  %v2943 = vunpack.c.l.b16 %v166
  %v2944 = vunpack.c.h.b16 %v166
  %v2945 = vunpack.c.l.b16 %v167
  %v2946 = vunpack.c.l.b16 %v168
  %v2947 = vunpack.c.h.b16 %v168
  %v2948 = vunpack.c.l.b16 %v169
  %v2949 = vunpack.c.h.b16 %v169
  %v2950 = vunpack.c.l.b16 %v170
  %v2951 = vunpack.c.l.b16 %v171
  %v2952 = vunpack.c.h.b16 %v171
  %v2953 = vunpack.c.l.b16 %v172
  %v2954 = vunpack.c.h.b16 %v172
  %v2955 = vunpack.c.l.b16 %v173
  %v2956 = vunpack.c.l.b16 %v174
  %v2957 = vunpack.c.h.b16 %v174
  %v2958 = vunpack.c.l.b16 %v175
  %v2959 = vunpack.c.h.b16 %v175
  %v2960 = vunpack.c.l.b16 %v176
  %v2961 = vunpack.c.l.b16 %v177
  %v2962 = vunpack.c.h.b16 %v177
  %v2963 = vunpack.c.l.b16 %v178
  %v2964 = vunpack.c.h.b16 %v178
  %v2965 = vunpack.c.l.b16 %v179
  %v2966 = vunpack.c.l.b16 %v180
  %v2967 = vunpack.c.h.b16 %v180
  %v2968 = vunpack.c.l.b16 %v181
  %v2969 = vunpack.c.h.b16 %v181
  %v2970 = vunpack.c.l.b16 %v182
  %v2971 = vunpack.c.l.b16 %v183
  %v2972 = vunpack.c.h.b16 %v183
  %v2973 = vunpack.c.l.b16 %v184
  %v2974 = vunpack.c.h.b16 %v184
  %v2975 = vunpack.c.l.b16 %v185
  %v2976 = vunpack.c.l.b16 %v186
  %v2977 = vunpack.c.h.b16 %v186
  %v2978 = vunpack.c.l.b16 %v187
  %v2979 = vunpack.c.h.b16 %v187
  %v2980 = vunpack.c.l.b16 %v188
  %v2981 = vunpack.c.l.b16 %v189
  %v2982 = vunpack.c.h.b16 %v189
  %v2983 = vunpack.c.l.b16 %v190
  %v2984 = vunpack.c.h.b16 %v190
  %v2985 = vunpack.c.l.b16 %v191
  %v2986 = vunpack.c.l.b16 %v192
  %v2987 = vunpack.c.h.b16 %v192
  %v2988 = vunpack.c.l.b16 %v193
  %v2989 = vunpack.c.h.b16 %v193
  %v2990 = vunpack.c.l.b16 %v194
  %v2991 = vunpack.c.l.b16 %v195
  %v2992 = vunpack.c.h.b16 %v195
  %v2993 = vunpack.c.l.b16 %v196
  %v2994 = vunpack.c.h.b16 %v196
  %v2995 = vunpack.c.l.b16 %v197
  %v2996 = vunpack.c.l.b16 %v198
  %v2997 = vunpack.c.h.b16 %v198
  %v2998 = vunpack.c.l.b16 %v199
  %v2999 = vunpack.c.h.b16 %v199
  %v3000 = vunpack.c.l.b16 %v200
  %v3001 = vunpack.c.l.b16 %v201
  %v3002 = vunpack.c.h.b16 %v201
  %v3003 = vunpack.c.l.b16 %v202
  %v3004 = vunpack.c.h.b16 %v202
  %v3005 = vunpack.c.l.b16 %v203
  %v3006 = vunpack.c.l.b16 %v204
  %v3007 = vunpack.c.h.b16 %v204
  %v3008 = vunpack.c.l.b16 %v205
  %v3009 = vunpack.c.h.b16 %v205
  %v3010 = vunpack.c.l.b16 %v206
  %v3011 = vunpack.c.l.b16 %v207
  %v3012 = vunpack.c.h.b16 %v207
  %v3013 = vunpack.c.l.b16 %v208
  %v3014 = vunpack.c.h.b16 %v208
  %v3015 = vunpack.c.l.b16 %v209
  %v3016 = vpack.c.b16 %v2701, %v2696
  %v3017 = vpack.c.b16 %v2702, %v2697
  %v3018 = vpack.c.b16 %v2703, %v2698
  %v3019 = vpack.c.b16 %v2704, %v2699
  %v3020 = vpack.c.b16 %v2705, %v2700
  %v3021 = vpack.c.b16 %v2711, %v2706
  %v3022 = vpack.c.b16 %v2712, %v2707
  %v3023 = vpack.c.b16 %v2713, %v2708
  %v3024 = vpack.c.b16 %v2714, %v2709
  %v3025 = vpack.c.b16 %v2715, %v2710
  %v3026 = vpack.c.b16 %v2721, %v2716
  %v3027 = vpack.c.b16 %v2722, %v2717
  %v3028 = vpack.c.b16 %v2723, %v2718
  %v3029 = vpack.c.b16 %v2724, %v2719
  %v3030 = vpack.c.b16 %v2725, %v2720
  %v3031 = vpack.c.b16 %v2731, %v2726
  %v3032 = vpack.c.b16 %v2732, %v2727
  %v3033 = vpack.c.b16 %v2733, %v2728
  %v3034 = vpack.c.b16 %v2734, %v2729
  %v3035 = vpack.c.b16 %v2735, %v2730
  %v3036 = vpack.c.b16 %v2741, %v2736
  %v3037 = vpack.c.b16 %v2742, %v2737
  %v3038 = vpack.c.b16 %v2743, %v2738
  %v3039 = vpack.c.b16 %v2744, %v2739
  %v3040 = vpack.c.b16 %v2745, %v2740
  %v3041 = vpack.c.b16 %v2751, %v2746
  %v3042 = vpack.c.b16 %v2752, %v2747
  %v3043 = vpack.c.b16 %v2753, %v2748
  %v3044 = vpack.c.b16 %v2754, %v2749
  %v3045 = vpack.c.b16 %v2755, %v2750
  %v3046 = vpack.c.b16 %v2761, %v2756
  %v3047 = vpack.c.b16 %v2762, %v2757
  %v3048 = vpack.c.b16 %v2763, %v2758
  %v3049 = vpack.c.b16 %v2764, %v2759
  %v3050 = vpack.c.b16 %v2765, %v2760
  %v3051 = vpack.c.b16 %v2771, %v2766
  %v3052 = vpack.c.b16 %v2772, %v2767
  %v3053 = vpack.c.b16 %v2773, %v2768
  %v3054 = vpack.c.b16 %v2774, %v2769
  %v3055 = vpack.c.b16 %v2775, %v2770
  %v3056 = vpack.c.b16 %v2781, %v2776
  %v3057 = vpack.c.b16 %v2782, %v2777
  %v3058 = vpack.c.b16 %v2783, %v2778
  %v3059 = vpack.c.b16 %v2784, %v2779
  %v3060 = vpack.c.b16 %v2785, %v2780
  %v3061 = vpack.c.b16 %v2791, %v2786
  %v3062 = vpack.c.b16 %v2792, %v2787
  %v3063 = vpack.c.b16 %v2793, %v2788
  %v3064 = vpack.c.b16 %v2794, %v2789
  %v3065 = vpack.c.b16 %v2795, %v2790
  %v3066 = vpack.c.b16 %v2801, %v2796
  %v3067 = vpack.c.b16 %v2802, %v2797
  %v3068 = vpack.c.b16 %v2803, %v2798
  %v3069 = vpack.c.b16 %v2804, %v2799
  %v3070 = vpack.c.b16 %v2805, %v2800
  %v3071 = vpack.c.b16 %v2811, %v2806
  %v3072 = vpack.c.b16 %v2812, %v2807
  %v3073 = vpack.c.b16 %v2813, %v2808
  %v3074 = vpack.c.b16 %v2814, %v2809
  %v3075 = vpack.c.b16 %v2815, %v2810
  %v3076 = vpack.c.b16 %v2821, %v2816
  %v3077 = vpack.c.b16 %v2822, %v2817
  %v3078 = vpack.c.b16 %v2823, %v2818
  %v3079 = vpack.c.b16 %v2824, %v2819
  %v3080 = vpack.c.b16 %v2825, %v2820
  %v3081 = vpack.c.b16 %v2831, %v2826
  %v3082 = vpack.c.b16 %v2832, %v2827
  %v3083 = vpack.c.b16 %v2833, %v2828
  %v3084 = vpack.c.b16 %v2834, %v2829
  %v3085 = vpack.c.b16 %v2835, %v2830
  %v3086 = vpack.c.b16 %v2841, %v2836
  %v3087 = vpack.c.b16 %v2842, %v2837
  %v3088 = vpack.c.b16 %v2843, %v2838
  %v3089 = vpack.c.b16 %v2844, %v2839
  %v3090 = vpack.c.b16 %v2845, %v2840
  %v3091 = vpack.c.b16 %v2851, %v2846
  %v3092 = vpack.c.b16 %v2852, %v2847
  %v3093 = vpack.c.b16 %v2853, %v2848
  %v3094 = vpack.c.b16 %v2854, %v2849
  %v3095 = vpack.c.b16 %v2855, %v2850
  %v3096 = vpack.c.b16 %v2861, %v2856
  %v3097 = vpack.c.b16 %v2862, %v2857
  %v3098 = vpack.c.b16 %v2863, %v2858
  %v3099 = vpack.c.b16 %v2864, %v2859
  %v3100 = vpack.c.b16 %v2865, %v2860
  %v3101 = vpack.c.b16 %v2871, %v2866
  %v3102 = vpack.c.b16 %v2872, %v2867
  %v3103 = vpack.c.b16 %v2873, %v2868
  %v3104 = vpack.c.b16 %v2874, %v2869
  %v3105 = vpack.c.b16 %v2875, %v2870
  %v3106 = vpack.c.b16 %v2881, %v2876
  %v3107 = vpack.c.b16 %v2882, %v2877
  %v3108 = vpack.c.b16 %v2883, %v2878
  %v3109 = vpack.c.b16 %v2884, %v2879
  %v3110 = vpack.c.b16 %v2885, %v2880
  %v3111 = vpack.c.b16 %v2891, %v2886
  %v3112 = vpack.c.b16 %v2892, %v2887
  %v3113 = vpack.c.b16 %v2893, %v2888
  %v3114 = vpack.c.b16 %v2894, %v2889
  %v3115 = vpack.c.b16 %v2895, %v2890
  %v3116 = vpack.c.b16 %v2901, %v2896
  %v3117 = vpack.c.b16 %v2902, %v2897
  %v3118 = vpack.c.b16 %v2903, %v2898
  %v3119 = vpack.c.b16 %v2904, %v2899
  %v3120 = vpack.c.b16 %v2905, %v2900
  %v3121 = vpack.c.b16 %v2911, %v2906
  %v3122 = vpack.c.b16 %v2912, %v2907
  %v3123 = vpack.c.b16 %v2913, %v2908
  %v3124 = vpack.c.b16 %v2914, %v2909
  %v3125 = vpack.c.b16 %v2915, %v2910
  %v3126 = vpack.c.b16 %v2921, %v2916
  %v3127 = vpack.c.b16 %v2922, %v2917
  %v3128 = vpack.c.b16 %v2923, %v2918
  %v3129 = vpack.c.b16 %v2924, %v2919
  %v3130 = vpack.c.b16 %v2925, %v2920
  %v3131 = vpack.c.b16 %v2931, %v2926
  %v3132 = vpack.c.b16 %v2932, %v2927
  %v3133 = vpack.c.b16 %v2933, %v2928
  %v3134 = vpack.c.b16 %v2934, %v2929
  %v3135 = vpack.c.b16 %v2935, %v2930
  %v3136 = vpack.c.b16 %v2941, %v2936
  %v3137 = vpack.c.b16 %v2942, %v2937
  %v3138 = vpack.c.b16 %v2943, %v2938
  %v3139 = vpack.c.b16 %v2944, %v2939
  %v3140 = vpack.c.b16 %v2945, %v2940
  %v3141 = vpack.c.b16 %v2951, %v2946
  %v3142 = vpack.c.b16 %v2952, %v2947
  %v3143 = vpack.c.b16 %v2953, %v2948
  %v3144 = vpack.c.b16 %v2954, %v2949
  %v3145 = vpack.c.b16 %v2955, %v2950
  %v3146 = vpack.c.b16 %v2961, %v2956
  %v3147 = vpack.c.b16 %v2962, %v2957
  %v3148 = vpack.c.b16 %v2963, %v2958
  %v3149 = vpack.c.b16 %v2964, %v2959
  %v3150 = vpack.c.b16 %v2965, %v2960
  %v3151 = vpack.c.b16 %v2971, %v2966
  %v3152 = vpack.c.b16 %v2972, %v2967
  %v3153 = vpack.c.b16 %v2973, %v2968
  %v3154 = vpack.c.b16 %v2974, %v2969
  %v3155 = vpack.c.b16 %v2975, %v2970
  %v3156 = vpack.c.b16 %v2981, %v2976
  %v3157 = vpack.c.b16 %v2982, %v2977
  %v3158 = vpack.c.b16 %v2983, %v2978
  %v3159 = vpack.c.b16 %v2984, %v2979
  %v3160 = vpack.c.b16 %v2985, %v2980
  %v3161 = vpack.c.b16 %v2991, %v2986
  %v3162 = vpack.c.b16 %v2992, %v2987
  %v3163 = vpack.c.b16 %v2993, %v2988
  %v3164 = vpack.c.b16 %v2994, %v2989
  %v3165 = vpack.c.b16 %v2995, %v2990
  %v3166 = vpack.c.b16 %v3001, %v2996
  %v3167 = vpack.c.b16 %v3002, %v2997
  %v3168 = vpack.c.b16 %v3003, %v2998
  %v3169 = vpack.c.b16 %v3004, %v2999
  %v3170 = vpack.c.b16 %v3005, %v3000
  %v3171 = vpack.c.b16 %v3011, %v3006
  %v3172 = vpack.c.b16 %v3012, %v3007
  %v3173 = vpack.c.b16 %v3013, %v3008
  %v3174 = vpack.c.b16 %v3014, %v3009
  %v3175 = vpack.c.b16 %v3015, %v3010
  %v3376 = vunpack.c.l.b16 %v210
  %v3377 = vunpack.c.l.b16 %v211
  %v3378 = vunpack.c.l.b16 %v212
  %v3379 = vunpack.c.l.b16 %v213
  %v3380 = vunpack.c.l.b16 %v214
  %v3381 = vunpack.c.l.b16 %v215
  %v3382 = vunpack.c.l.b16 %v216
  %v3383 = vunpack.c.l.b16 %v217
  %v3384 = vunpack.c.l.b16 %v218
  %v3385 = vunpack.c.l.b16 %v219
  %v3386 = vunpack.c.l.b16 %v220
  %v3387 = vunpack.c.l.b16 %v221
  %v3388 = vunpack.c.l.b16 %v222
  %v3389 = vunpack.c.l.b16 %v223
  %v3390 = vunpack.c.l.b16 %v224
  %v3391 = vunpack.c.l.b16 %v225
  %v3392 = vunpack.c.l.b16 %v226
  %v3393 = vunpack.c.l.b16 %v227
  %v3394 = vunpack.c.l.b16 %v228
  %v3395 = vunpack.c.l.b16 %v229
  %v3396 = vunpack.c.l.b16 %v230
  %v3397 = vunpack.c.l.b16 %v231
  %v3398 = vunpack.c.l.b16 %v232
  %v3399 = vunpack.c.l.b16 %v233
  %v3400 = vunpack.c.l.b16 %v234
  %v3401 = vunpack.c.l.b16 %v235
  %v3402 = vunpack.c.l.b16 %v236
  %v3403 = vunpack.c.l.b16 %v237
  %v3404 = vunpack.c.l.b16 %v238
  %v3405 = vunpack.c.l.b16 %v239
  %v3406 = vunpack.c.l.b16 %v240
  %v3407 = vunpack.c.l.b16 %v241
  %v3408 = vunpack.c.l.b16 %v242
  %v3409 = vunpack.c.l.b16 %v243
  %v3410 = vunpack.c.l.b16 %v244
  %v3411 = vunpack.c.l.b16 %v245
  %v3412 = vunpack.c.l.b16 %v246
  %v3413 = vunpack.c.l.b16 %v247
  %v3414 = vunpack.c.l.b16 %v248
  %v3415 = vunpack.c.l.b16 %v249
  %v3416 = vunpack.c.l.b16 %v250
  %v3417 = vunpack.c.l.b16 %v251
  %v3418 = vunpack.c.l.b16 %v252
  %v3419 = vunpack.c.l.b16 %v253
  %v3420 = vunpack.c.l.b16 %v254
  %v3421 = vunpack.c.l.b16 %v255
  %v3422 = vunpack.c.l.b16 %v256
  %v3423 = vunpack.c.l.b16 %v257
  %v3424 = vunpack.c.l.b16 %v258
  %v3425 = vunpack.c.l.b16 %v259
  %v3426 = vunpack.c.l.b16 %v260
  %v3427 = vunpack.c.l.b16 %v261
  %v3428 = vunpack.c.l.b16 %v262
  %v3429 = vunpack.c.l.b16 %v263
  %v3430 = vunpack.c.l.b16 %v264
  %v3431 = vunpack.c.l.b16 %v265
  %v3432 = vunpack.c.l.b16 %v266
  %v3433 = vunpack.c.l.b16 %v267
  %v3434 = vunpack.c.l.b16 %v268
  %v3435 = vunpack.c.l.b16 %v269
  %v3436 = vunpack.c.l.b16 %v270
  %v3437 = vunpack.c.l.b16 %v271
  %v3438 = vunpack.c.l.b16 %v272
  %v3439 = vunpack.c.l.b16 %v273
  %v3440 = vunpack.c.l.b16 %v274
  %v3441 = vunpack.c.l.b16 %v275
  %v3442 = vunpack.c.l.b16 %v276
  %v3443 = vunpack.c.l.b16 %v277
  %v3444 = vunpack.c.l.b16 %v278
  %v3445 = vunpack.c.l.b16 %v279
  %v3446 = vunpack.c.l.b16 %v280
  %v3447 = vunpack.c.l.b16 %v281
  %v3448 = vpack.c.b16 %v3377, %v3376
  %v3449 = vpack.c.b16 %v3379, %v3378
  %v3450 = vpack.c.b16 %v3381, %v3380
  %v3451 = vpack.c.b16 %v3383, %v3382
  %v3452 = vpack.c.b16 %v3385, %v3384
  %v3453 = vpack.c.b16 %v3387, %v3386
  %v3454 = vpack.c.b16 %v3389, %v3388
  %v3455 = vpack.c.b16 %v3391, %v3390
  %v3456 = vpack.c.b16 %v3393, %v3392
  %v3457 = vpack.c.b16 %v3395, %v3394
  %v3458 = vpack.c.b16 %v3397, %v3396
  %v3459 = vpack.c.b16 %v3399, %v3398
  %v3460 = vpack.c.b16 %v3401, %v3400
  %v3461 = vpack.c.b16 %v3403, %v3402
  %v3462 = vpack.c.b16 %v3405, %v3404
  %v3463 = vpack.c.b16 %v3407, %v3406
  %v3464 = vpack.c.b16 %v3409, %v3408
  %v3465 = vpack.c.b16 %v3411, %v3410
  %v3466 = vpack.c.b16 %v3413, %v3412
  %v3467 = vpack.c.b16 %v3415, %v3414
  %v3468 = vpack.c.b16 %v3417, %v3416
  %v3469 = vpack.c.b16 %v3419, %v3418
  %v3470 = vpack.c.b16 %v3421, %v3420
  %v3471 = vpack.c.b16 %v3423, %v3422
  %v3472 = vpack.c.b16 %v3425, %v3424
  %v3473 = vpack.c.b16 %v3427, %v3426
  %v3474 = vpack.c.b16 %v3429, %v3428
  %v3475 = vpack.c.b16 %v3431, %v3430
  %v3476 = vpack.c.b16 %v3433, %v3432
  %v3477 = vpack.c.b16 %v3435, %v3434
  %v3478 = vpack.c.b16 %v3437, %v3436
  %v3479 = vpack.c.b16 %v3439, %v3438
  %v3480 = vpack.c.b16 %v3441, %v3440
  %v3481 = vpack.c.b16 %v3443, %v3442
  %v3482 = vpack.c.b16 %v3445, %v3444
  %v3483 = vpack.c.b16 %v3447, %v3446
  %v3521 = vsel %vm1562, %v3020, 0
  %v3524 = vsel %vm1562, %v3025, 0
  %v3527 = vsel %vm1562, %v3030, 0
  %v3530 = vsel %vm1562, %v3035, 0
  %v3533 = vsel %vm1562, %v3040, 0
  %v3536 = vsel %vm1562, %v3045, 0
  %v3539 = vsel %vm1562, %v3050, 0
  %v3542 = vsel %vm1562, %v3055, 0
  %v3545 = vsel %vm1562, %v3060, 0
  %v3548 = vsel %vm1562, %v3065, 0
  %v3551 = vsel %vm1562, %v3070, 0
  %v3554 = vsel %vm1562, %v3075, 0
  %v3557 = vsel %vm1562, %v3080, 0
  %v3560 = vsel %vm1562, %v3085, 0
  %v3563 = vsel %vm1562, %v3090, 0
  %v3566 = vsel %vm1562, %v3095, 0
  %v3569 = vsel %vm1562, %v3100, 0
  %v3572 = vsel %vm1562, %v3105, 0
  %v3575 = vsel %vm1562, %v3110, 0
  %v3578 = vsel %vm1562, %v3115, 0
  %v3581 = vsel %vm1562, %v3120, 0
  %v3584 = vsel %vm1562, %v3125, 0
  %v3587 = vsel %vm1562, %v3130, 0
  %v3590 = vsel %vm1562, %v3135, 0
  %v3593 = vsel %vm1562, %v3140, 0
  %v3596 = vsel %vm1562, %v3145, 0
  %v3599 = vsel %vm1562, %v3150, 0
  %v3602 = vsel %vm1562, %v3155, 0
  %v3605 = vsel %vm1562, %v3160, 0
  %v3608 = vsel %vm1562, %v3165, 0
  %v3611 = vsel %vm1562, %v3170, 0
  %v3614 = vsel %vm1562, %v3175, 0
  %3616 = vmatpush.bf16.msra.mxu0 %v3455
  %3617 = vmatpush.bf16.msra.mxu0 %v3454
  %3618 = vmatpush.bf16.msra.mxu0 %v3453
  %3619 = vmatpush.bf16.msra.mxu0 %v3452
  %3620 = vmatpush.bf16.msra.mxu0 %v3451
  %3621 = vmatpush.bf16.msra.mxu0 %v3450
  %3622 = vmatpush.bf16.msra.mxu0 %v3449
  %3623 = vmatpush.bf16.msra.mxu0 %v3448
  %3624 = vmatmul.bf16.gmra.mxu0 %v3016
  %v3625 = vpop.f32.mrf.mxu0
  %v3626 = vadd.f32 %v2345, %v3625
  %v3627 = vpop.f32.mrf.mxu0
  %v3628 = vadd.f32 %v2347, %v3627
  %3629 = vmatmul.bf16.gmra.mxu0 %v3021
  %v3630 = vpop.f32.mrf.mxu0
  %v3631 = vadd.f32 %v2350, %v3630
  %v3632 = vpop.f32.mrf.mxu0
  %v3633 = vadd.f32 %v2352, %v3632
  %3634 = vmatmul.bf16.gmra.mxu0 %v3026
  %v3635 = vpop.f32.mrf.mxu0
  %v3636 = vadd.f32 %v2355, %v3635
  %v3637 = vpop.f32.mrf.mxu0
  %v3638 = vadd.f32 %v2357, %v3637
  %3639 = vmatmul.bf16.gmra.mxu0 %v3031
  %v3640 = vpop.f32.mrf.mxu0
  %v3641 = vadd.f32 %v2360, %v3640
  %v3642 = vpop.f32.mrf.mxu0
  %v3643 = vadd.f32 %v2362, %v3642
  %3644 = vmatmul.bf16.gmra.mxu0 %v3036
  %v3645 = vpop.f32.mrf.mxu0
  %v3646 = vadd.f32 %v2365, %v3645
  %v3647 = vpop.f32.mrf.mxu0
  %v3648 = vadd.f32 %v2367, %v3647
  %3649 = vmatmul.bf16.gmra.mxu0 %v3041
  %v3650 = vpop.f32.mrf.mxu0
  %v3651 = vadd.f32 %v2370, %v3650
  %v3652 = vpop.f32.mrf.mxu0
  %v3653 = vadd.f32 %v2372, %v3652
  %3654 = vmatmul.bf16.gmra.mxu0 %v3046
  %v3655 = vpop.f32.mrf.mxu0
  %v3656 = vadd.f32 %v2375, %v3655
  %v3657 = vpop.f32.mrf.mxu0
  %v3658 = vadd.f32 %v2377, %v3657
  %3659 = vmatmul.bf16.gmra.mxu0 %v3051
  %v3660 = vpop.f32.mrf.mxu0
  %v3661 = vadd.f32 %v2380, %v3660
  %v3662 = vpop.f32.mrf.mxu0
  %v3663 = vadd.f32 %v2382, %v3662
  %3664 = vmatmul.bf16.gmra.mxu0 %v3056
  %v3665 = vpop.f32.mrf.mxu0
  %v3666 = vadd.f32 %v2385, %v3665
  %v3667 = vpop.f32.mrf.mxu0
  %v3668 = vadd.f32 %v2387, %v3667
  %3669 = vmatmul.bf16.gmra.mxu0 %v3061
  %v3670 = vpop.f32.mrf.mxu0
  %v3671 = vadd.f32 %v2390, %v3670
  %v3672 = vpop.f32.mrf.mxu0
  %v3673 = vadd.f32 %v2392, %v3672
  %3674 = vmatmul.bf16.gmra.mxu0 %v3066
  %v3675 = vpop.f32.mrf.mxu0
  %v3676 = vadd.f32 %v2395, %v3675
  %v3677 = vpop.f32.mrf.mxu0
  %v3678 = vadd.f32 %v2397, %v3677
  %3679 = vmatmul.bf16.gmra.mxu0 %v3071
  %v3680 = vpop.f32.mrf.mxu0
  %v3681 = vadd.f32 %v2400, %v3680
  %v3682 = vpop.f32.mrf.mxu0
  %v3683 = vadd.f32 %v2402, %v3682
  %3684 = vmatmul.bf16.gmra.mxu0 %v3076
  %v3685 = vpop.f32.mrf.mxu0
  %v3686 = vadd.f32 %v2405, %v3685
  %v3687 = vpop.f32.mrf.mxu0
  %v3688 = vadd.f32 %v2407, %v3687
  %3689 = vmatmul.bf16.gmra.mxu0 %v3081
  %v3690 = vpop.f32.mrf.mxu0
  %v3691 = vadd.f32 %v2410, %v3690
  %v3692 = vpop.f32.mrf.mxu0
  %v3693 = vadd.f32 %v2412, %v3692
  %3694 = vmatmul.bf16.gmra.mxu0 %v3086
  %v3695 = vpop.f32.mrf.mxu0
  %v3696 = vadd.f32 %v2415, %v3695
  %v3697 = vpop.f32.mrf.mxu0
  %v3698 = vadd.f32 %v2417, %v3697
  %3699 = vmatmul.bf16.gmra.mxu0 %v3091
  %v3700 = vpop.f32.mrf.mxu0
  %v3701 = vadd.f32 %v2420, %v3700
  %v3702 = vpop.f32.mrf.mxu0
  %v3703 = vadd.f32 %v2422, %v3702
  %3704 = vmatmul.bf16.gmra.mxu0 %v3096
  %v3705 = vpop.f32.mrf.mxu0
  %v3706 = vadd.f32 %v2425, %v3705
  %v3707 = vpop.f32.mrf.mxu0
  %v3708 = vadd.f32 %v2427, %v3707
  %3709 = vmatmul.bf16.gmra.mxu0 %v3101
  %v3710 = vpop.f32.mrf.mxu0
  %v3711 = vadd.f32 %v2430, %v3710
  %v3712 = vpop.f32.mrf.mxu0
  %v3713 = vadd.f32 %v2432, %v3712
  %3714 = vmatmul.bf16.gmra.mxu0 %v3106
  %v3715 = vpop.f32.mrf.mxu0
  %v3716 = vadd.f32 %v2435, %v3715
  %v3717 = vpop.f32.mrf.mxu0
  %v3718 = vadd.f32 %v2437, %v3717
  %3719 = vmatmul.bf16.gmra.mxu0 %v3111
  %v3720 = vpop.f32.mrf.mxu0
  %v3721 = vadd.f32 %v2440, %v3720
  %v3722 = vpop.f32.mrf.mxu0
  %v3723 = vadd.f32 %v2442, %v3722
  %3724 = vmatmul.bf16.gmra.mxu0 %v3116
  %v3725 = vpop.f32.mrf.mxu0
  %v3726 = vadd.f32 %v2445, %v3725
  %v3727 = vpop.f32.mrf.mxu0
  %v3728 = vadd.f32 %v2447, %v3727
  %3729 = vmatmul.bf16.gmra.mxu0 %v3121
  %v3730 = vpop.f32.mrf.mxu0
  %v3731 = vadd.f32 %v2450, %v3730
  %v3732 = vpop.f32.mrf.mxu0
  %v3733 = vadd.f32 %v2452, %v3732
  %3734 = vmatmul.bf16.gmra.mxu0 %v3126
  %v3735 = vpop.f32.mrf.mxu0
  %v3736 = vadd.f32 %v2455, %v3735
  %v3737 = vpop.f32.mrf.mxu0
  %v3738 = vadd.f32 %v2457, %v3737
  %3739 = vmatmul.bf16.gmra.mxu0 %v3131
  %v3740 = vpop.f32.mrf.mxu0
  %v3741 = vadd.f32 %v2460, %v3740
  %v3742 = vpop.f32.mrf.mxu0
  %v3743 = vadd.f32 %v2462, %v3742
  %3744 = vmatmul.bf16.gmra.mxu0 %v3136
  %v3745 = vpop.f32.mrf.mxu0
  %v3746 = vadd.f32 %v2465, %v3745
  %v3747 = vpop.f32.mrf.mxu0
  %v3748 = vadd.f32 %v2467, %v3747
  %3749 = vmatmul.bf16.gmra.mxu0 %v3141
  %v3750 = vpop.f32.mrf.mxu0
  %v3751 = vadd.f32 %v2470, %v3750
  %v3752 = vpop.f32.mrf.mxu0
  %v3753 = vadd.f32 %v2472, %v3752
  %3754 = vmatmul.bf16.gmra.mxu0 %v3146
  %v3755 = vpop.f32.mrf.mxu0
  %v3756 = vadd.f32 %v2475, %v3755
  %v3757 = vpop.f32.mrf.mxu0
  %v3758 = vadd.f32 %v2477, %v3757
  %3759 = vmatmul.bf16.gmra.mxu0 %v3151
  %v3760 = vpop.f32.mrf.mxu0
  %v3761 = vadd.f32 %v2480, %v3760
  %v3762 = vpop.f32.mrf.mxu0
  %v3763 = vadd.f32 %v2482, %v3762
  %3764 = vmatmul.bf16.gmra.mxu0 %v3156
  %v3765 = vpop.f32.mrf.mxu0
  %v3766 = vadd.f32 %v2485, %v3765
  %v3767 = vpop.f32.mrf.mxu0
  %v3768 = vadd.f32 %v2487, %v3767
  %3769 = vmatmul.bf16.gmra.mxu0 %v3161
  %v3770 = vpop.f32.mrf.mxu0
  %v3771 = vadd.f32 %v2490, %v3770
  %v3772 = vpop.f32.mrf.mxu0
  %v3773 = vadd.f32 %v2492, %v3772
  %3774 = vmatmul.bf16.gmra.mxu0 %v3166
  %v3775 = vpop.f32.mrf.mxu0
  %v3776 = vadd.f32 %v2495, %v3775
  %v3777 = vpop.f32.mrf.mxu0
  %v3778 = vadd.f32 %v2497, %v3777
  %3779 = vmatmul.bf16.gmra.mxu0 %v3171
  %v3780 = vpop.f32.mrf.mxu0
  %v3781 = vadd.f32 %v2500, %v3780
  %v3782 = vpop.f32.mrf.mxu0
  %v3783 = vadd.f32 %v2502, %v3782
  %3784 = vdwg.mxu0
  %3785 = vmatpush.bf16.msra.mxu0 %v3463
  %3786 = vmatpush.bf16.msra.mxu0 %v3462
  %3787 = vmatpush.bf16.msra.mxu0 %v3461
  %3788 = vmatpush.bf16.msra.mxu0 %v3460
  %3789 = vmatpush.bf16.msra.mxu0 %v3459
  %3790 = vmatpush.bf16.msra.mxu0 %v3458
  %3791 = vmatpush.bf16.msra.mxu0 %v3457
  %3792 = vmatpush.bf16.msra.mxu0 %v3456
  %3793 = vmatmul.bf16.gmra.mxu0 %v3017
  %v3794 = vpop.f32.mrf.mxu0
  %v3795 = vadd.f32 %v3626, %v3794
  %v3796 = vpop.f32.mrf.mxu0
  %v3797 = vadd.f32 %v3628, %v3796
  %3798 = vmatmul.bf16.gmra.mxu0 %v3022
  %v3799 = vpop.f32.mrf.mxu0
  %v3800 = vadd.f32 %v3631, %v3799
  %v3801 = vpop.f32.mrf.mxu0
  %v3802 = vadd.f32 %v3633, %v3801
  %3803 = vmatmul.bf16.gmra.mxu0 %v3027
  %v3804 = vpop.f32.mrf.mxu0
  %v3805 = vadd.f32 %v3636, %v3804
  %v3806 = vpop.f32.mrf.mxu0
  %v3807 = vadd.f32 %v3638, %v3806
  %3808 = vmatmul.bf16.gmra.mxu0 %v3032
  %v3809 = vpop.f32.mrf.mxu0
  %v3810 = vadd.f32 %v3641, %v3809
  %v3811 = vpop.f32.mrf.mxu0
  %v3812 = vadd.f32 %v3643, %v3811
  %3813 = vmatmul.bf16.gmra.mxu0 %v3037
  %v3814 = vpop.f32.mrf.mxu0
  %v3815 = vadd.f32 %v3646, %v3814
  %v3816 = vpop.f32.mrf.mxu0
  %v3817 = vadd.f32 %v3648, %v3816
  %3818 = vmatmul.bf16.gmra.mxu0 %v3042
  %v3819 = vpop.f32.mrf.mxu0
  %v3820 = vadd.f32 %v3651, %v3819
  %v3821 = vpop.f32.mrf.mxu0
  %v3822 = vadd.f32 %v3653, %v3821
  %3823 = vmatmul.bf16.gmra.mxu0 %v3047
  %v3824 = vpop.f32.mrf.mxu0
  %v3825 = vadd.f32 %v3656, %v3824
  %v3826 = vpop.f32.mrf.mxu0
  %v3827 = vadd.f32 %v3658, %v3826
  %3828 = vmatmul.bf16.gmra.mxu0 %v3052
  %v3829 = vpop.f32.mrf.mxu0
  %v3830 = vadd.f32 %v3661, %v3829
  %v3831 = vpop.f32.mrf.mxu0
  %v3832 = vadd.f32 %v3663, %v3831
  %3833 = vmatmul.bf16.gmra.mxu0 %v3057
  %v3834 = vpop.f32.mrf.mxu0
  %v3835 = vadd.f32 %v3666, %v3834
  %v3836 = vpop.f32.mrf.mxu0
  %v3837 = vadd.f32 %v3668, %v3836
  %3838 = vmatmul.bf16.gmra.mxu0 %v3062
  %v3839 = vpop.f32.mrf.mxu0
  %v3840 = vadd.f32 %v3671, %v3839
  %v3841 = vpop.f32.mrf.mxu0
  %v3842 = vadd.f32 %v3673, %v3841
  %3843 = vmatmul.bf16.gmra.mxu0 %v3067
  %v3844 = vpop.f32.mrf.mxu0
  %v3845 = vadd.f32 %v3676, %v3844
  %v3846 = vpop.f32.mrf.mxu0
  %v3847 = vadd.f32 %v3678, %v3846
  %3848 = vmatmul.bf16.gmra.mxu0 %v3072
  %v3849 = vpop.f32.mrf.mxu0
  %v3850 = vadd.f32 %v3681, %v3849
  %v3851 = vpop.f32.mrf.mxu0
  %v3852 = vadd.f32 %v3683, %v3851
  %3853 = vmatmul.bf16.gmra.mxu0 %v3077
  %v3854 = vpop.f32.mrf.mxu0
  %v3855 = vadd.f32 %v3686, %v3854
  %v3856 = vpop.f32.mrf.mxu0
  %v3857 = vadd.f32 %v3688, %v3856
  %3858 = vmatmul.bf16.gmra.mxu0 %v3082
  %v3859 = vpop.f32.mrf.mxu0
  %v3860 = vadd.f32 %v3691, %v3859
  %v3861 = vpop.f32.mrf.mxu0
  %v3862 = vadd.f32 %v3693, %v3861
  %3863 = vmatmul.bf16.gmra.mxu0 %v3087
  %v3864 = vpop.f32.mrf.mxu0
  %v3865 = vadd.f32 %v3696, %v3864
  %v3866 = vpop.f32.mrf.mxu0
  %v3867 = vadd.f32 %v3698, %v3866
  %3868 = vmatmul.bf16.gmra.mxu0 %v3092
  %v3869 = vpop.f32.mrf.mxu0
  %v3870 = vadd.f32 %v3701, %v3869
  %v3871 = vpop.f32.mrf.mxu0
  %v3872 = vadd.f32 %v3703, %v3871
  %3873 = vmatmul.bf16.gmra.mxu0 %v3097
  %v3874 = vpop.f32.mrf.mxu0
  %v3875 = vadd.f32 %v3706, %v3874
  %v3876 = vpop.f32.mrf.mxu0
  %v3877 = vadd.f32 %v3708, %v3876
  %3878 = vmatmul.bf16.gmra.mxu0 %v3102
  %v3879 = vpop.f32.mrf.mxu0
  %v3880 = vadd.f32 %v3711, %v3879
  %v3881 = vpop.f32.mrf.mxu0
  %v3882 = vadd.f32 %v3713, %v3881
  %3883 = vmatmul.bf16.gmra.mxu0 %v3107
  %v3884 = vpop.f32.mrf.mxu0
  %v3885 = vadd.f32 %v3716, %v3884
  %v3886 = vpop.f32.mrf.mxu0
  %v3887 = vadd.f32 %v3718, %v3886
  %3888 = vmatmul.bf16.gmra.mxu0 %v3112
  %v3889 = vpop.f32.mrf.mxu0
  %v3890 = vadd.f32 %v3721, %v3889
  %v3891 = vpop.f32.mrf.mxu0
  %v3892 = vadd.f32 %v3723, %v3891
  %3893 = vmatmul.bf16.gmra.mxu0 %v3117
  %v3894 = vpop.f32.mrf.mxu0
  %v3895 = vadd.f32 %v3726, %v3894
  %v3896 = vpop.f32.mrf.mxu0
  %v3897 = vadd.f32 %v3728, %v3896
  %3898 = vmatmul.bf16.gmra.mxu0 %v3122
  %v3899 = vpop.f32.mrf.mxu0
  %v3900 = vadd.f32 %v3731, %v3899
  %v3901 = vpop.f32.mrf.mxu0
  %v3902 = vadd.f32 %v3733, %v3901
  %3903 = vmatmul.bf16.gmra.mxu0 %v3127
  %v3904 = vpop.f32.mrf.mxu0
  %v3905 = vadd.f32 %v3736, %v3904
  %v3906 = vpop.f32.mrf.mxu0
  %v3907 = vadd.f32 %v3738, %v3906
  %3908 = vmatmul.bf16.gmra.mxu0 %v3132
  %v3909 = vpop.f32.mrf.mxu0
  %v3910 = vadd.f32 %v3741, %v3909
  %v3911 = vpop.f32.mrf.mxu0
  %v3912 = vadd.f32 %v3743, %v3911
  %3913 = vmatmul.bf16.gmra.mxu0 %v3137
  %v3914 = vpop.f32.mrf.mxu0
  %v3915 = vadd.f32 %v3746, %v3914
  %v3916 = vpop.f32.mrf.mxu0
  %v3917 = vadd.f32 %v3748, %v3916
  %3918 = vmatmul.bf16.gmra.mxu0 %v3142
  %v3919 = vpop.f32.mrf.mxu0
  %v3920 = vadd.f32 %v3751, %v3919
  %v3921 = vpop.f32.mrf.mxu0
  %v3922 = vadd.f32 %v3753, %v3921
  %3923 = vmatmul.bf16.gmra.mxu0 %v3147
  %v3924 = vpop.f32.mrf.mxu0
  %v3925 = vadd.f32 %v3756, %v3924
  %v3926 = vpop.f32.mrf.mxu0
  %v3927 = vadd.f32 %v3758, %v3926
  %3928 = vmatmul.bf16.gmra.mxu0 %v3152
  %v3929 = vpop.f32.mrf.mxu0
  %v3930 = vadd.f32 %v3761, %v3929
  %v3931 = vpop.f32.mrf.mxu0
  %v3932 = vadd.f32 %v3763, %v3931
  %3933 = vmatmul.bf16.gmra.mxu0 %v3157
  %v3934 = vpop.f32.mrf.mxu0
  %v3935 = vadd.f32 %v3766, %v3934
  %v3936 = vpop.f32.mrf.mxu0
  %v3937 = vadd.f32 %v3768, %v3936
  %3938 = vmatmul.bf16.gmra.mxu0 %v3162
  %v3939 = vpop.f32.mrf.mxu0
  %v3940 = vadd.f32 %v3771, %v3939
  %v3941 = vpop.f32.mrf.mxu0
  %v3942 = vadd.f32 %v3773, %v3941
  %3943 = vmatmul.bf16.gmra.mxu0 %v3167
  %v3944 = vpop.f32.mrf.mxu0
  %v3945 = vadd.f32 %v3776, %v3944
  %v3946 = vpop.f32.mrf.mxu0
  %v3947 = vadd.f32 %v3778, %v3946
  %3948 = vmatmul.bf16.gmra.mxu0 %v3172
  %v3949 = vpop.f32.mrf.mxu0
  %v3950 = vadd.f32 %v3781, %v3949
  %v3951 = vpop.f32.mrf.mxu0
  %v3952 = vadd.f32 %v3783, %v3951
  %3953 = vdwg.mxu0
  %3954 = vmatpush.bf16.msra.mxu0 %v3471
  %3955 = vmatpush.bf16.msra.mxu0 %v3470
  %3956 = vmatpush.bf16.msra.mxu0 %v3469
  %3957 = vmatpush.bf16.msra.mxu0 %v3468
  %3958 = vmatpush.bf16.msra.mxu0 %v3467
  %3959 = vmatpush.bf16.msra.mxu0 %v3466
  %3960 = vmatpush.bf16.msra.mxu0 %v3465
  %3961 = vmatpush.bf16.msra.mxu0 %v3464
  %3962 = vmatmul.bf16.gmra.mxu0 %v3018
  %v3963 = vpop.f32.mrf.mxu0
  %v3964 = vadd.f32 %v3795, %v3963
  %v3965 = vpop.f32.mrf.mxu0
  %v3966 = vadd.f32 %v3797, %v3965
  %3967 = vmatmul.bf16.gmra.mxu0 %v3023
  %v3968 = vpop.f32.mrf.mxu0
  %v3969 = vadd.f32 %v3800, %v3968
  %v3970 = vpop.f32.mrf.mxu0
  %v3971 = vadd.f32 %v3802, %v3970
  %3972 = vmatmul.bf16.gmra.mxu0 %v3028
  %v3973 = vpop.f32.mrf.mxu0
  %v3974 = vadd.f32 %v3805, %v3973
  %v3975 = vpop.f32.mrf.mxu0
  %v3976 = vadd.f32 %v3807, %v3975
  %3977 = vmatmul.bf16.gmra.mxu0 %v3033
  %v3978 = vpop.f32.mrf.mxu0
  %v3979 = vadd.f32 %v3810, %v3978
  %v3980 = vpop.f32.mrf.mxu0
  %v3981 = vadd.f32 %v3812, %v3980
  %3982 = vmatmul.bf16.gmra.mxu0 %v3038
  %v3983 = vpop.f32.mrf.mxu0
  %v3984 = vadd.f32 %v3815, %v3983
  %v3985 = vpop.f32.mrf.mxu0
  %v3986 = vadd.f32 %v3817, %v3985
  %3987 = vmatmul.bf16.gmra.mxu0 %v3043
  %v3988 = vpop.f32.mrf.mxu0
  %v3989 = vadd.f32 %v3820, %v3988
  %v3990 = vpop.f32.mrf.mxu0
  %v3991 = vadd.f32 %v3822, %v3990
  %3992 = vmatmul.bf16.gmra.mxu0 %v3048
  %v3993 = vpop.f32.mrf.mxu0
  %v3994 = vadd.f32 %v3825, %v3993
  %v3995 = vpop.f32.mrf.mxu0
  %v3996 = vadd.f32 %v3827, %v3995
  %3997 = vmatmul.bf16.gmra.mxu0 %v3053
  %v3998 = vpop.f32.mrf.mxu0
  %v3999 = vadd.f32 %v3830, %v3998
  %v4000 = vpop.f32.mrf.mxu0
  %v4001 = vadd.f32 %v3832, %v4000
  %4002 = vmatmul.bf16.gmra.mxu0 %v3058
  %v4003 = vpop.f32.mrf.mxu0
  %v4004 = vadd.f32 %v3835, %v4003
  %v4005 = vpop.f32.mrf.mxu0
  %v4006 = vadd.f32 %v3837, %v4005
  %4007 = vmatmul.bf16.gmra.mxu0 %v3063
  %v4008 = vpop.f32.mrf.mxu0
  %v4009 = vadd.f32 %v3840, %v4008
  %v4010 = vpop.f32.mrf.mxu0
  %v4011 = vadd.f32 %v3842, %v4010
  %4012 = vmatmul.bf16.gmra.mxu0 %v3068
  %v4013 = vpop.f32.mrf.mxu0
  %v4014 = vadd.f32 %v3845, %v4013
  %v4015 = vpop.f32.mrf.mxu0
  %v4016 = vadd.f32 %v3847, %v4015
  %4017 = vmatmul.bf16.gmra.mxu0 %v3073
  %v4018 = vpop.f32.mrf.mxu0
  %v4019 = vadd.f32 %v3850, %v4018
  %v4020 = vpop.f32.mrf.mxu0
  %v4021 = vadd.f32 %v3852, %v4020
  %4022 = vmatmul.bf16.gmra.mxu0 %v3078
  %v4023 = vpop.f32.mrf.mxu0
  %v4024 = vadd.f32 %v3855, %v4023
  %v4025 = vpop.f32.mrf.mxu0
  %v4026 = vadd.f32 %v3857, %v4025
  %4027 = vmatmul.bf16.gmra.mxu0 %v3083
  %v4028 = vpop.f32.mrf.mxu0
  %v4029 = vadd.f32 %v3860, %v4028
  %v4030 = vpop.f32.mrf.mxu0
  %v4031 = vadd.f32 %v3862, %v4030
  %4032 = vmatmul.bf16.gmra.mxu0 %v3088
  %v4033 = vpop.f32.mrf.mxu0
  %v4034 = vadd.f32 %v3865, %v4033
  %v4035 = vpop.f32.mrf.mxu0
  %v4036 = vadd.f32 %v3867, %v4035
  %4037 = vmatmul.bf16.gmra.mxu0 %v3093
  %v4038 = vpop.f32.mrf.mxu0
  %v4039 = vadd.f32 %v3870, %v4038
  %v4040 = vpop.f32.mrf.mxu0
  %v4041 = vadd.f32 %v3872, %v4040
  %4042 = vmatmul.bf16.gmra.mxu0 %v3098
  %v4043 = vpop.f32.mrf.mxu0
  %v4044 = vadd.f32 %v3875, %v4043
  %v4045 = vpop.f32.mrf.mxu0
  %v4046 = vadd.f32 %v3877, %v4045
  %4047 = vmatmul.bf16.gmra.mxu0 %v3103
  %v4048 = vpop.f32.mrf.mxu0
  %v4049 = vadd.f32 %v3880, %v4048
  %v4050 = vpop.f32.mrf.mxu0
  %v4051 = vadd.f32 %v3882, %v4050
  %4052 = vmatmul.bf16.gmra.mxu0 %v3108
  %v4053 = vpop.f32.mrf.mxu0
  %v4054 = vadd.f32 %v3885, %v4053
  %v4055 = vpop.f32.mrf.mxu0
  %v4056 = vadd.f32 %v3887, %v4055
  %4057 = vmatmul.bf16.gmra.mxu0 %v3113
  %v4058 = vpop.f32.mrf.mxu0
  %v4059 = vadd.f32 %v3890, %v4058
  %v4060 = vpop.f32.mrf.mxu0
  %v4061 = vadd.f32 %v3892, %v4060
  %4062 = vmatmul.bf16.gmra.mxu0 %v3118
  %v4063 = vpop.f32.mrf.mxu0
  %v4064 = vadd.f32 %v3895, %v4063
  %v4065 = vpop.f32.mrf.mxu0
  %v4066 = vadd.f32 %v3897, %v4065
  %4067 = vmatmul.bf16.gmra.mxu0 %v3123
  %v4068 = vpop.f32.mrf.mxu0
  %v4069 = vadd.f32 %v3900, %v4068
  %v4070 = vpop.f32.mrf.mxu0
  %v4071 = vadd.f32 %v3902, %v4070
  %4072 = vmatmul.bf16.gmra.mxu0 %v3128
  %v4073 = vpop.f32.mrf.mxu0
  %v4074 = vadd.f32 %v3905, %v4073
  %v4075 = vpop.f32.mrf.mxu0
  %v4076 = vadd.f32 %v3907, %v4075
  %4077 = vmatmul.bf16.gmra.mxu0 %v3133
  %v4078 = vpop.f32.mrf.mxu0
  %v4079 = vadd.f32 %v3910, %v4078
  %v4080 = vpop.f32.mrf.mxu0
  %v4081 = vadd.f32 %v3912, %v4080
  %4082 = vmatmul.bf16.gmra.mxu0 %v3138
  %v4083 = vpop.f32.mrf.mxu0
  %v4084 = vadd.f32 %v3915, %v4083
  %v4085 = vpop.f32.mrf.mxu0
  %v4086 = vadd.f32 %v3917, %v4085
  %4087 = vmatmul.bf16.gmra.mxu0 %v3143
  %v4088 = vpop.f32.mrf.mxu0
  %v4089 = vadd.f32 %v3920, %v4088
  %v4090 = vpop.f32.mrf.mxu0
  %v4091 = vadd.f32 %v3922, %v4090
  %4092 = vmatmul.bf16.gmra.mxu0 %v3148
  %v4093 = vpop.f32.mrf.mxu0
  %v4094 = vadd.f32 %v3925, %v4093
  %v4095 = vpop.f32.mrf.mxu0
  %v4096 = vadd.f32 %v3927, %v4095
  %4097 = vmatmul.bf16.gmra.mxu0 %v3153
  %v4098 = vpop.f32.mrf.mxu0
  %v4099 = vadd.f32 %v3930, %v4098
  %v4100 = vpop.f32.mrf.mxu0
  %v4101 = vadd.f32 %v3932, %v4100
  %4102 = vmatmul.bf16.gmra.mxu0 %v3158
  %v4103 = vpop.f32.mrf.mxu0
  %v4104 = vadd.f32 %v3935, %v4103
  %v4105 = vpop.f32.mrf.mxu0
  %v4106 = vadd.f32 %v3937, %v4105
  %4107 = vmatmul.bf16.gmra.mxu0 %v3163
  %v4108 = vpop.f32.mrf.mxu0
  %v4109 = vadd.f32 %v3940, %v4108
  %v4110 = vpop.f32.mrf.mxu0
  %v4111 = vadd.f32 %v3942, %v4110
  %4112 = vmatmul.bf16.gmra.mxu0 %v3168
  %v4113 = vpop.f32.mrf.mxu0
  %v4114 = vadd.f32 %v3945, %v4113
  %v4115 = vpop.f32.mrf.mxu0
  %v4116 = vadd.f32 %v3947, %v4115
  %4117 = vmatmul.bf16.gmra.mxu0 %v3173
  %v4118 = vpop.f32.mrf.mxu0
  %v4119 = vadd.f32 %v3950, %v4118
  %v4120 = vpop.f32.mrf.mxu0
  %v4121 = vadd.f32 %v3952, %v4120
  %4122 = vdwg.mxu0
  %4123 = vmatpush.bf16.msra.mxu0 %v3479
  %4124 = vmatpush.bf16.msra.mxu0 %v3478
  %4125 = vmatpush.bf16.msra.mxu0 %v3477
  %4126 = vmatpush.bf16.msra.mxu0 %v3476
  %4127 = vmatpush.bf16.msra.mxu0 %v3475
  %4128 = vmatpush.bf16.msra.mxu0 %v3474
  %4129 = vmatpush.bf16.msra.mxu0 %v3473
  %4130 = vmatpush.bf16.msra.mxu0 %v3472
  %4131 = vmatmul.bf16.gmra.mxu0 %v3019
  %v4132 = vpop.f32.mrf.mxu0
  %v4133 = vadd.f32 %v3964, %v4132
  %v4134 = vpop.f32.mrf.mxu0
  %v4135 = vadd.f32 %v3966, %v4134
  %4136 = vmatmul.bf16.gmra.mxu0 %v3024
  %v4137 = vpop.f32.mrf.mxu0
  %v4138 = vadd.f32 %v3969, %v4137
  %v4139 = vpop.f32.mrf.mxu0
  %v4140 = vadd.f32 %v3971, %v4139
  %4141 = vmatmul.bf16.gmra.mxu0 %v3029
  %v4142 = vpop.f32.mrf.mxu0
  %v4143 = vadd.f32 %v3974, %v4142
  %v4144 = vpop.f32.mrf.mxu0
  %v4145 = vadd.f32 %v3976, %v4144
  %4146 = vmatmul.bf16.gmra.mxu0 %v3034
  %v4147 = vpop.f32.mrf.mxu0
  %v4148 = vadd.f32 %v3979, %v4147
  %v4149 = vpop.f32.mrf.mxu0
  %v4150 = vadd.f32 %v3981, %v4149
  %4151 = vmatmul.bf16.gmra.mxu0 %v3039
  %v4152 = vpop.f32.mrf.mxu0
  %v4153 = vadd.f32 %v3984, %v4152
  %v4154 = vpop.f32.mrf.mxu0
  %v4155 = vadd.f32 %v3986, %v4154
  %4156 = vmatmul.bf16.gmra.mxu0 %v3044
  %v4157 = vpop.f32.mrf.mxu0
  %v4158 = vadd.f32 %v3989, %v4157
  %v4159 = vpop.f32.mrf.mxu0
  %v4160 = vadd.f32 %v3991, %v4159
  %4161 = vmatmul.bf16.gmra.mxu0 %v3049
  %v4162 = vpop.f32.mrf.mxu0
  %v4163 = vadd.f32 %v3994, %v4162
  %v4164 = vpop.f32.mrf.mxu0
  %v4165 = vadd.f32 %v3996, %v4164
  %4166 = vmatmul.bf16.gmra.mxu0 %v3054
  %v4167 = vpop.f32.mrf.mxu0
  %v4168 = vadd.f32 %v3999, %v4167
  %v4169 = vpop.f32.mrf.mxu0
  %v4170 = vadd.f32 %v4001, %v4169
  %4171 = vmatmul.bf16.gmra.mxu0 %v3059
  %v4172 = vpop.f32.mrf.mxu0
  %v4173 = vadd.f32 %v4004, %v4172
  %v4174 = vpop.f32.mrf.mxu0
  %v4175 = vadd.f32 %v4006, %v4174
  %4176 = vmatmul.bf16.gmra.mxu0 %v3064
  %v4177 = vpop.f32.mrf.mxu0
  %v4178 = vadd.f32 %v4009, %v4177
  %v4179 = vpop.f32.mrf.mxu0
  %v4180 = vadd.f32 %v4011, %v4179
  %4181 = vmatmul.bf16.gmra.mxu0 %v3069
  %v4182 = vpop.f32.mrf.mxu0
  %v4183 = vadd.f32 %v4014, %v4182
  %v4184 = vpop.f32.mrf.mxu0
  %v4185 = vadd.f32 %v4016, %v4184
  %4186 = vmatmul.bf16.gmra.mxu0 %v3074
  %v4187 = vpop.f32.mrf.mxu0
  %v4188 = vadd.f32 %v4019, %v4187
  %v4189 = vpop.f32.mrf.mxu0
  %v4190 = vadd.f32 %v4021, %v4189
  %4191 = vmatmul.bf16.gmra.mxu0 %v3079
  %v4192 = vpop.f32.mrf.mxu0
  %v4193 = vadd.f32 %v4024, %v4192
  %v4194 = vpop.f32.mrf.mxu0
  %v4195 = vadd.f32 %v4026, %v4194
  %4196 = vmatmul.bf16.gmra.mxu0 %v3084
  %v4197 = vpop.f32.mrf.mxu0
  %v4198 = vadd.f32 %v4029, %v4197
  %v4199 = vpop.f32.mrf.mxu0
  %v4200 = vadd.f32 %v4031, %v4199
  %4201 = vmatmul.bf16.gmra.mxu0 %v3089
  %v4202 = vpop.f32.mrf.mxu0
  %v4203 = vadd.f32 %v4034, %v4202
  %v4204 = vpop.f32.mrf.mxu0
  %v4205 = vadd.f32 %v4036, %v4204
  %4206 = vmatmul.bf16.gmra.mxu0 %v3094
  %v4207 = vpop.f32.mrf.mxu0
  %v4208 = vadd.f32 %v4039, %v4207
  %v4209 = vpop.f32.mrf.mxu0
  %v4210 = vadd.f32 %v4041, %v4209
  %4211 = vmatmul.bf16.gmra.mxu0 %v3099
  %v4212 = vpop.f32.mrf.mxu0
  %v4213 = vadd.f32 %v4044, %v4212
  %v4214 = vpop.f32.mrf.mxu0
  %v4215 = vadd.f32 %v4046, %v4214
  %4216 = vmatmul.bf16.gmra.mxu0 %v3104
  %v4217 = vpop.f32.mrf.mxu0
  %v4218 = vadd.f32 %v4049, %v4217
  %v4219 = vpop.f32.mrf.mxu0
  %v4220 = vadd.f32 %v4051, %v4219
  %4221 = vmatmul.bf16.gmra.mxu0 %v3109
  %v4222 = vpop.f32.mrf.mxu0
  %v4223 = vadd.f32 %v4054, %v4222
  %v4224 = vpop.f32.mrf.mxu0
  %v4225 = vadd.f32 %v4056, %v4224
  %4226 = vmatmul.bf16.gmra.mxu0 %v3114
  %v4227 = vpop.f32.mrf.mxu0
  %v4228 = vadd.f32 %v4059, %v4227
  %v4229 = vpop.f32.mrf.mxu0
  %v4230 = vadd.f32 %v4061, %v4229
  %4231 = vmatmul.bf16.gmra.mxu0 %v3119
  %v4232 = vpop.f32.mrf.mxu0
  %v4233 = vadd.f32 %v4064, %v4232
  %v4234 = vpop.f32.mrf.mxu0
  %v4235 = vadd.f32 %v4066, %v4234
  %4236 = vmatmul.bf16.gmra.mxu0 %v3124
  %v4237 = vpop.f32.mrf.mxu0
  %v4238 = vadd.f32 %v4069, %v4237
  %v4239 = vpop.f32.mrf.mxu0
  %v4240 = vadd.f32 %v4071, %v4239
  %4241 = vmatmul.bf16.gmra.mxu0 %v3129
  %v4242 = vpop.f32.mrf.mxu0
  %v4243 = vadd.f32 %v4074, %v4242
  %v4244 = vpop.f32.mrf.mxu0
  %v4245 = vadd.f32 %v4076, %v4244
  %4246 = vmatmul.bf16.gmra.mxu0 %v3134
  %v4247 = vpop.f32.mrf.mxu0
  %v4248 = vadd.f32 %v4079, %v4247
  %v4249 = vpop.f32.mrf.mxu0
  %v4250 = vadd.f32 %v4081, %v4249
  %4251 = vmatmul.bf16.gmra.mxu0 %v3139
  %v4252 = vpop.f32.mrf.mxu0
  %v4253 = vadd.f32 %v4084, %v4252
  %v4254 = vpop.f32.mrf.mxu0
  %v4255 = vadd.f32 %v4086, %v4254
  %4256 = vmatmul.bf16.gmra.mxu0 %v3144
  %v4257 = vpop.f32.mrf.mxu0
  %v4258 = vadd.f32 %v4089, %v4257
  %v4259 = vpop.f32.mrf.mxu0
  %v4260 = vadd.f32 %v4091, %v4259
  %4261 = vmatmul.bf16.gmra.mxu0 %v3149
  %v4262 = vpop.f32.mrf.mxu0
  %v4263 = vadd.f32 %v4094, %v4262
  %v4264 = vpop.f32.mrf.mxu0
  %v4265 = vadd.f32 %v4096, %v4264
  %4266 = vmatmul.bf16.gmra.mxu0 %v3154
  %v4267 = vpop.f32.mrf.mxu0
  %v4268 = vadd.f32 %v4099, %v4267
  %v4269 = vpop.f32.mrf.mxu0
  %v4270 = vadd.f32 %v4101, %v4269
  %4271 = vmatmul.bf16.gmra.mxu0 %v3159
  %v4272 = vpop.f32.mrf.mxu0
  %v4273 = vadd.f32 %v4104, %v4272
  %v4274 = vpop.f32.mrf.mxu0
  %v4275 = vadd.f32 %v4106, %v4274
  %4276 = vmatmul.bf16.gmra.mxu0 %v3164
  %v4277 = vpop.f32.mrf.mxu0
  %v4278 = vadd.f32 %v4109, %v4277
  %v4279 = vpop.f32.mrf.mxu0
  %v4280 = vadd.f32 %v4111, %v4279
  %4281 = vmatmul.bf16.gmra.mxu0 %v3169
  %v4282 = vpop.f32.mrf.mxu0
  %v4283 = vadd.f32 %v4114, %v4282
  %v4284 = vpop.f32.mrf.mxu0
  %v4285 = vadd.f32 %v4116, %v4284
  %4286 = vmatmul.bf16.gmra.mxu0 %v3174
  %v4287 = vpop.f32.mrf.mxu0
  %v4288 = vadd.f32 %v4119, %v4287
  %v4289 = vpop.f32.mrf.mxu0
  %v4290 = vadd.f32 %v4121, %v4289
  %4291 = vdwg.mxu0
  %4292 = vmatpush.bf16.msra.mxu0 0
  %4293 = vmatpush.bf16.msra.mxu0 0
  %4294 = vmatpush.bf16.msra.mxu0 0
  %4295 = vmatpush.bf16.msra.mxu0 0
  %4296 = vmatpush.bf16.msra.mxu0 %v3483
  %4297 = vmatpush.bf16.msra.mxu0 %v3482
  %4298 = vmatpush.bf16.msra.mxu0 %v3481
  %4299 = vmatpush.bf16.msra.mxu0 %v3480
  %4300 = vmatmul.bf16.gmra.mxu0 %v3521
  %v4301 = vpop.f32.mrf.mxu0
  %v4302 = vadd.f32 %v4133, %v4301
  %v4303 = vpop.f32.mrf.mxu0
  %v4304 = vadd.f32 %v4135, %v4303
  %4305 = vmatmul.bf16.gmra.mxu0 %v3524
  %v4306 = vpop.f32.mrf.mxu0
  %v4307 = vadd.f32 %v4138, %v4306
  %v4308 = vpop.f32.mrf.mxu0
  %v4309 = vadd.f32 %v4140, %v4308
  %4310 = vmatmul.bf16.gmra.mxu0 %v3527
  %v4311 = vpop.f32.mrf.mxu0
  %v4312 = vadd.f32 %v4143, %v4311
  %v4313 = vpop.f32.mrf.mxu0
  %v4314 = vadd.f32 %v4145, %v4313
  %4315 = vmatmul.bf16.gmra.mxu0 %v3530
  %v4316 = vpop.f32.mrf.mxu0
  %v4317 = vadd.f32 %v4148, %v4316
  %v4318 = vpop.f32.mrf.mxu0
  %v4319 = vadd.f32 %v4150, %v4318
  %4320 = vmatmul.bf16.gmra.mxu0 %v3533
  %v4321 = vpop.f32.mrf.mxu0
  %v4322 = vadd.f32 %v4153, %v4321
  %v4323 = vpop.f32.mrf.mxu0
  %v4324 = vadd.f32 %v4155, %v4323
  %4325 = vmatmul.bf16.gmra.mxu0 %v3536
  %v4326 = vpop.f32.mrf.mxu0
  %v4327 = vadd.f32 %v4158, %v4326
  %v4328 = vpop.f32.mrf.mxu0
  %v4329 = vadd.f32 %v4160, %v4328
  %4330 = vmatmul.bf16.gmra.mxu0 %v3539
  %v4331 = vpop.f32.mrf.mxu0
  %v4332 = vadd.f32 %v4163, %v4331
  %v4333 = vpop.f32.mrf.mxu0
  %v4334 = vadd.f32 %v4165, %v4333
  %4335 = vmatmul.bf16.gmra.mxu0 %v3542
  %v4336 = vpop.f32.mrf.mxu0
  %v4337 = vadd.f32 %v4168, %v4336
  %v4338 = vpop.f32.mrf.mxu0
  %v4339 = vadd.f32 %v4170, %v4338
  %4340 = vmatmul.bf16.gmra.mxu0 %v3545
  %v4341 = vpop.f32.mrf.mxu0
  %v4342 = vadd.f32 %v4173, %v4341
  %v4343 = vpop.f32.mrf.mxu0
  %v4344 = vadd.f32 %v4175, %v4343
  %4345 = vmatmul.bf16.gmra.mxu0 %v3548
  %v4346 = vpop.f32.mrf.mxu0
  %v4347 = vadd.f32 %v4178, %v4346
  %v4348 = vpop.f32.mrf.mxu0
  %v4349 = vadd.f32 %v4180, %v4348
  %4350 = vmatmul.bf16.gmra.mxu0 %v3551
  %v4351 = vpop.f32.mrf.mxu0
  %v4352 = vadd.f32 %v4183, %v4351
  %v4353 = vpop.f32.mrf.mxu0
  %v4354 = vadd.f32 %v4185, %v4353
  %4355 = vmatmul.bf16.gmra.mxu0 %v3554
  %v4356 = vpop.f32.mrf.mxu0
  %v4357 = vadd.f32 %v4188, %v4356
  %v4358 = vpop.f32.mrf.mxu0
  %v4359 = vadd.f32 %v4190, %v4358
  %4360 = vmatmul.bf16.gmra.mxu0 %v3557
  %v4361 = vpop.f32.mrf.mxu0
  %v4362 = vadd.f32 %v4193, %v4361
  %v4363 = vpop.f32.mrf.mxu0
  %v4364 = vadd.f32 %v4195, %v4363
  %4365 = vmatmul.bf16.gmra.mxu0 %v3560
  %v4366 = vpop.f32.mrf.mxu0
  %v4367 = vadd.f32 %v4198, %v4366
  %v4368 = vpop.f32.mrf.mxu0
  %v4369 = vadd.f32 %v4200, %v4368
  %4370 = vmatmul.bf16.gmra.mxu0 %v3563
  %v4371 = vpop.f32.mrf.mxu0
  %v4372 = vadd.f32 %v4203, %v4371
  %v4373 = vpop.f32.mrf.mxu0
  %v4374 = vadd.f32 %v4205, %v4373
  %4375 = vmatmul.bf16.gmra.mxu0 %v3566
  %v4376 = vpop.f32.mrf.mxu0
  %v4377 = vadd.f32 %v4208, %v4376
  %v4378 = vpop.f32.mrf.mxu0
  %v4379 = vadd.f32 %v4210, %v4378
  %4380 = vmatmul.bf16.gmra.mxu0 %v3569
  %v4381 = vpop.f32.mrf.mxu0
  %v4382 = vadd.f32 %v4213, %v4381
  %v4383 = vpop.f32.mrf.mxu0
  %v4384 = vadd.f32 %v4215, %v4383
  %4385 = vmatmul.bf16.gmra.mxu0 %v3572
  %v4386 = vpop.f32.mrf.mxu0
  %v4387 = vadd.f32 %v4218, %v4386
  %v4388 = vpop.f32.mrf.mxu0
  %v4389 = vadd.f32 %v4220, %v4388
  %4390 = vmatmul.bf16.gmra.mxu0 %v3575
  %v4391 = vpop.f32.mrf.mxu0
  %v4392 = vadd.f32 %v4223, %v4391
  %v4393 = vpop.f32.mrf.mxu0
  %v4394 = vadd.f32 %v4225, %v4393
  %4395 = vmatmul.bf16.gmra.mxu0 %v3578
  %v4396 = vpop.f32.mrf.mxu0
  %v4397 = vadd.f32 %v4228, %v4396
  %v4398 = vpop.f32.mrf.mxu0
  %v4399 = vadd.f32 %v4230, %v4398
  %4400 = vmatmul.bf16.gmra.mxu0 %v3581
  %v4401 = vpop.f32.mrf.mxu0
  %v4402 = vadd.f32 %v4233, %v4401
  %v4403 = vpop.f32.mrf.mxu0
  %v4404 = vadd.f32 %v4235, %v4403
  %4405 = vmatmul.bf16.gmra.mxu0 %v3584
  %v4406 = vpop.f32.mrf.mxu0
  %v4407 = vadd.f32 %v4238, %v4406
  %v4408 = vpop.f32.mrf.mxu0
  %v4409 = vadd.f32 %v4240, %v4408
  %4410 = vmatmul.bf16.gmra.mxu0 %v3587
  %v4411 = vpop.f32.mrf.mxu0
  %v4412 = vadd.f32 %v4243, %v4411
  %v4413 = vpop.f32.mrf.mxu0
  %v4414 = vadd.f32 %v4245, %v4413
  %4415 = vmatmul.bf16.gmra.mxu0 %v3590
  %v4416 = vpop.f32.mrf.mxu0
  %v4417 = vadd.f32 %v4248, %v4416
  %v4418 = vpop.f32.mrf.mxu0
  %v4419 = vadd.f32 %v4250, %v4418
  %4420 = vmatmul.bf16.gmra.mxu0 %v3593
  %v4421 = vpop.f32.mrf.mxu0
  %v4422 = vadd.f32 %v4253, %v4421
  %v4423 = vpop.f32.mrf.mxu0
  %v4424 = vadd.f32 %v4255, %v4423
  %4425 = vmatmul.bf16.gmra.mxu0 %v3596
  %v4426 = vpop.f32.mrf.mxu0
  %v4427 = vadd.f32 %v4258, %v4426
  %v4428 = vpop.f32.mrf.mxu0
  %v4429 = vadd.f32 %v4260, %v4428
  %4430 = vmatmul.bf16.gmra.mxu0 %v3599
  %v4431 = vpop.f32.mrf.mxu0
  %v4432 = vadd.f32 %v4263, %v4431
  %v4433 = vpop.f32.mrf.mxu0
  %v4434 = vadd.f32 %v4265, %v4433
  %4435 = vmatmul.bf16.gmra.mxu0 %v3602
  %v4436 = vpop.f32.mrf.mxu0
  %v4437 = vadd.f32 %v4268, %v4436
  %v4438 = vpop.f32.mrf.mxu0
  %v4439 = vadd.f32 %v4270, %v4438
  %4440 = vmatmul.bf16.gmra.mxu0 %v3605
  %v4441 = vpop.f32.mrf.mxu0
  %v4442 = vadd.f32 %v4273, %v4441
  %v4443 = vpop.f32.mrf.mxu0
  %v4444 = vadd.f32 %v4275, %v4443
  %4445 = vmatmul.bf16.gmra.mxu0 %v3608
  %v4446 = vpop.f32.mrf.mxu0
  %v4447 = vadd.f32 %v4278, %v4446
  %v4448 = vpop.f32.mrf.mxu0
  %v4449 = vadd.f32 %v4280, %v4448
  %4450 = vmatmul.bf16.gmra.mxu0 %v3611
  %v4451 = vpop.f32.mrf.mxu0
  %v4452 = vadd.f32 %v4283, %v4451
  %v4453 = vpop.f32.mrf.mxu0
  %v4454 = vadd.f32 %v4285, %v4453
  %4455 = vmatmul.bf16.gmra.mxu0 %v3614
  %v4456 = vpop.f32.mrf.mxu0
  %v4457 = vadd.f32 %v4288, %v4456
  %v4458 = vpop.f32.mrf.mxu0
  %v4459 = vadd.f32 %v4290, %v4458
  %4460 = vdwg.mxu0
  %vm4461 = vcmask 64512
  %4462 = vst.msk [vmem:[%s4] sm:$0xff] %vm4461, %v4302
  %4463 = vst.msk [vmem:[%s4 + $0x8] sm:$0xff] %vm4461, %v4304
  %4464 = vst.msk [vmem:[%s4 + $0x10] sm:$0xff] %vm4461, %v4307
  %4465 = vst.msk [vmem:[%s4 + $0x18] sm:$0xff] %vm4461, %v4309
  %4466 = vst.msk [vmem:[%s4 + $0x20] sm:$0xff] %vm4461, %v4312
  %4467 = vst.msk [vmem:[%s4 + $0x28] sm:$0xff] %vm4461, %v4314
  %4468 = vst.msk [vmem:[%s4 + $0x30] sm:$0xff] %vm4461, %v4317
  %4469 = vst.msk [vmem:[%s4 + $0x38] sm:$0xff] %vm4461, %v4319
  %4470 = vst.msk [vmem:[%s4 + $0x40] sm:$0xff] %vm4461, %v4322
  %4471 = vst.msk [vmem:[%s4 + $0x48] sm:$0xff] %vm4461, %v4324
  %4472 = vst.msk [vmem:[%s4 + $0x50] sm:$0xff] %vm4461, %v4327
  %4473 = vst.msk [vmem:[%s4 + $0x58] sm:$0xff] %vm4461, %v4329
  %4474 = vst.msk [vmem:[%s4 + $0x60] sm:$0xff] %vm4461, %v4332
  %4475 = vst.msk [vmem:[%s4 + $0x68] sm:$0xff] %vm4461, %v4334
  %4476 = vst.msk [vmem:[%s4 + $0x70] sm:$0xff] %vm4461, %v4337
  %4477 = vst.msk [vmem:[%s4 + $0x78] sm:$0xff] %vm4461, %v4339
  %4478 = vst.msk [vmem:[%s4 + $0x80] sm:$0xff] %vm4461, %v4342
  %4479 = vst.msk [vmem:[%s4 + $0x88] sm:$0xff] %vm4461, %v4344
  %4480 = vst.msk [vmem:[%s4 + $0x90] sm:$0xff] %vm4461, %v4347
  %4481 = vst.msk [vmem:[%s4 + $0x98] sm:$0xff] %vm4461, %v4349
  %4482 = vst.msk [vmem:[%s4 + $0xa0] sm:$0xff] %vm4461, %v4352
  %4483 = vst.msk [vmem:[%s4 + $0xa8] sm:$0xff] %vm4461, %v4354
  %4484 = vst.msk [vmem:[%s4 + $0xb0] sm:$0xff] %vm4461, %v4357
  %4485 = vst.msk [vmem:[%s4 + $0xb8] sm:$0xff] %vm4461, %v4359
  %4486 = vst.msk [vmem:[%s4 + $0xc0] sm:$0xff] %vm4461, %v4362
  %4487 = vst.msk [vmem:[%s4 + $0xc8] sm:$0xff] %vm4461, %v4364
  %4488 = vst.msk [vmem:[%s4 + $0xd0] sm:$0xff] %vm4461, %v4367
  %4489 = vst.msk [vmem:[%s4 + $0xd8] sm:$0xff] %vm4461, %v4369
  %4490 = vst.msk [vmem:[%s4 + $0xe0] sm:$0xff] %vm4461, %v4372
  %4491 = vst.msk [vmem:[%s4 + $0xe8] sm:$0xff] %vm4461, %v4374
  %4492 = vst.msk [vmem:[%s4 + $0xf0] sm:$0xff] %vm4461, %v4377
  %4493 = vst.msk [vmem:[%s4 + $0xf8] sm:$0xff] %vm4461, %v4379
  %4494 = vst.msk [vmem:[%s4 + $0x100] sm:$0xff] %vm4461, %v4382
  %4495 = vst.msk [vmem:[%s4 + $0x108] sm:$0xff] %vm4461, %v4384
  %4496 = vst.msk [vmem:[%s4 + $0x110] sm:$0xff] %vm4461, %v4387
  %4497 = vst.msk [vmem:[%s4 + $0x118] sm:$0xff] %vm4461, %v4389
  %4498 = vst.msk [vmem:[%s4 + $0x120] sm:$0xff] %vm4461, %v4392
  %4499 = vst.msk [vmem:[%s4 + $0x128] sm:$0xff] %vm4461, %v4394
  %4500 = vst.msk [vmem:[%s4 + $0x130] sm:$0xff] %vm4461, %v4397
  %4501 = vst.msk [vmem:[%s4 + $0x138] sm:$0xff] %vm4461, %v4399
  %4502 = vst.msk [vmem:[%s4 + $0x140] sm:$0xff] %vm4461, %v4402
  %4503 = vst.msk [vmem:[%s4 + $0x148] sm:$0xff] %vm4461, %v4404
  %4504 = vst.msk [vmem:[%s4 + $0x150] sm:$0xff] %vm4461, %v4407
  %4505 = vst.msk [vmem:[%s4 + $0x158] sm:$0xff] %vm4461, %v4409
  %4506 = vst.msk [vmem:[%s4 + $0x160] sm:$0xff] %vm4461, %v4412
  %4507 = vst.msk [vmem:[%s4 + $0x168] sm:$0xff] %vm4461, %v4414
  %4508 = vst.msk [vmem:[%s4 + $0x170] sm:$0xff] %vm4461, %v4417
  %4509 = vst.msk [vmem:[%s4 + $0x178] sm:$0xff] %vm4461, %v4419
  %4510 = vst.msk [vmem:[%s4 + $0x180] sm:$0xff] %vm4461, %v4422
  %4511 = vst.msk [vmem:[%s4 + $0x188] sm:$0xff] %vm4461, %v4424
  %4512 = vst.msk [vmem:[%s4 + $0x190] sm:$0xff] %vm4461, %v4427
  %4513 = vst.msk [vmem:[%s4 + $0x198] sm:$0xff] %vm4461, %v4429
  %4514 = vst.msk [vmem:[%s4 + $0x1a0] sm:$0xff] %vm4461, %v4432
  %4515 = vst.msk [vmem:[%s4 + $0x1a8] sm:$0xff] %vm4461, %v4434
  %4516 = vst.msk [vmem:[%s4 + $0x1b0] sm:$0xff] %vm4461, %v4437
  %4517 = vst.msk [vmem:[%s4 + $0x1b8] sm:$0xff] %vm4461, %v4439
  %4518 = vst.msk [vmem:[%s4 + $0x1c0] sm:$0xff] %vm4461, %v4442
  %4519 = vst.msk [vmem:[%s4 + $0x1c8] sm:$0xff] %vm4461, %v4444
  %4520 = vst.msk [vmem:[%s4 + $0x1d0] sm:$0xff] %vm4461, %v4447
  %4521 = vst.msk [vmem:[%s4 + $0x1d8] sm:$0xff] %vm4461, %v4449
  %4522 = vst.msk [vmem:[%s4 + $0x1e0] sm:$0xff] %vm4461, %v4452
  %4523 = vst.msk [vmem:[%s4 + $0x1e8] sm:$0xff] %vm4461, %v4454
  %4524 = vst.msk [vmem:[%s4 + $0x1f0] sm:$0xff] %vm4461, %v4457
  %4525 = vst.msk [vmem:[%s4 + $0x1f8] sm:$0xff] %vm4461, %v4459
  // Predicated region
  $region18: #{mynet_forward.25} parent=0 // pred_check
    _
  $region19: #{mynet_forward.25} parent=0 // pred_check_branch
    %4527 = sbr.rel (0) target = $region21
  $region20: #{mynet_forward.25} parent=0 // pred_region
    _
  $region21: #{mynet_forward.25} parent=0 // pred_fallthru
    _
  // Predicated region
  $region22: #{mynet_forward.25} parent=0 // pred_check
    _
  $region23: #{mynet_forward.25} parent=0 // pred_check_branch
    %4529 = sbr.rel (0) target = $region25
  $region24: #{mynet_forward.25} parent=0 // pred_region
    _
  $region25: #{mynet_forward.25} parent=0 // pred_fallthru
    _

// kernel: mynet_forward.26
$region0: #{mynet_forward.26}
  #allocation0 [shape = 'u32[]', space=smem, size = 0x4, offset = 0x4, fixed_abs, tag = 'smem constant byte address 0x4 - core index']
  #allocation1 [shape = 'u32[72,128]{1,0:T(1,128)}', space=vmem, size = 0x9000, scoped, tag = 'internal scratch']
  %s0 = inlined_call_operand.vmem [shape: bf16[2,256,256], index: 0, kind: input, shape index: {}]
  %s1 = inlined_call_operand.vmem [shape: bf16[2,256,64], index: 1, kind: input, shape index: {}]
  %s2 = inlined_call_operand.vmem [shape: bf16[2,256,256], index: 2, kind: input, shape index: {}]
  %s3 = inlined_call_operand.vmem [shape: bf16[2,256,64], index: 3, kind: input, shape index: {}]
  %s4 = inlined_call_operand.vmem [shape: bf16[2,256,64], index: 4, kind: output, shape index: {}]
  %s5 = sld [smem:[#allocation0]]
  $region49: #{mynet_forward.26} parent=0
    _
  %s7 = ssub.s32 1, %s5
  %s8 = scalar_select 0, %s7, %s5
  loop: start=0, step=1, limit=4
  $region2: #{mynet_forward.26} parent=0 // loop_pre_header
    _
  $region3: #{mynet_forward.26} parent=0 // loop_header
    %s10 = sphi 0, %s14
    %p11 = scmp.ge.s32.totalorder %s10, 4
    %s20 = sphi 0, %s22
    %s23 = sphi 0, %s20
    %s24 = sphi 0, %s23
    %s40 = sphi 0, %s24
    %s46 = sphi 0, %s48
    %s49 = sphi 0, %s46
    %s50 = sphi 0, %s49
    %s66 = sphi 0, %s50
    %s72 = sphi 0, %s74
    %s75 = sphi 0, %s72
    %s76 = sphi 0, %s75
    %s92 = sphi 0, %s76
    %s98 = sphi 0, %s100
    %s101 = sphi 0, %s98
    %s102 = sphi 0, %s101
    %s118 = sphi 0, %s102
    %s124 = sphi 0, %s126
    %s127 = sphi 0, %s124
    %s128 = sphi 0, %s127
    %s144 = sphi 0, %s128
  $region4: #{mynet_forward.26} parent=0 // loop_header_branch
    %13 = sbr.rel (%p11) target = $region8
  $region5: #{mynet_forward.26} parent=0 // loop_body
    %s15 = ssub.s32 %s10, 1
    %s16 = ssub.s32 %s10, 2
    %s17 = sadd.s32 %s10, 1
    %s18 = ssub.s32 %s10, %s17
    %p19 = scmp.eq.s32.totalorder %s18, 0
    %s21 = sadd.s32 %s20, 1
    %s22 = scalar_select %p19, %s20, %s21
    %p25 = pneg %p19
    %p26 = scmp.eq.s32.totalorder %s10, 1
    %p27 = por %p25, %p26
    %p28 = scmp.ne.s32.totalorder %s20, %s23
    %p29 = scmp.eq.s32.totalorder %s10, 0
    %p30 = por %p28, %p29
    %p31 = scmp.ne.s32.totalorder %s20, %s23
    %p32 = scmp.eq.s32.totalorder %s15, 1
    %p33 = por %p31, %p32
    %p34 = scmp.ne.s32.totalorder %s23, %s24
    %p35 = scmp.eq.s32.totalorder %s15, 0
    %p36 = por %p34, %p35
    %p37 = scmp.ne.s32.totalorder %s23, %s24
    %p38 = scmp.eq.s32.totalorder %s16, 1
    %p39 = por %p37, %p38
    %p41 = scmp.ne.s32.totalorder %s24, %s40
    %p42 = scmp.eq.s32.totalorder %s16, 0
    %p43 = por %p41, %p42
    %s44 = ssub.s32 %s10, %s17
    %p45 = scmp.eq.s32.totalorder %s44, 0
    %s47 = sadd.s32 %s46, 1
    %s48 = scalar_select %p45, %s46, %s47
    %p51 = pneg %p45
    %p52 = scmp.eq.s32.totalorder %s10, 1
    %p53 = por %p51, %p52
    %p54 = scmp.ne.s32.totalorder %s46, %s49
    %p55 = scmp.eq.s32.totalorder %s10, 0
    %p56 = por %p54, %p55
    %p57 = scmp.ne.s32.totalorder %s46, %s49
    %p58 = scmp.eq.s32.totalorder %s15, 1
    %p59 = por %p57, %p58
    %p60 = scmp.ne.s32.totalorder %s49, %s50
    %p61 = scmp.eq.s32.totalorder %s15, 0
    %p62 = por %p60, %p61
    %p63 = scmp.ne.s32.totalorder %s49, %s50
    %p64 = scmp.eq.s32.totalorder %s16, 1
    %p65 = por %p63, %p64
    %p67 = scmp.ne.s32.totalorder %s50, %s66
    %p68 = scmp.eq.s32.totalorder %s16, 0
    %p69 = por %p67, %p68
    %s70 = ssub.s32 %s10, %s17
    %p71 = scmp.eq.s32.totalorder %s70, 0
    %s73 = sadd.s32 %s72, 1
    %s74 = scalar_select %p71, %s72, %s73
    %p77 = pneg %p71
    %p78 = scmp.eq.s32.totalorder %s10, 1
    %p79 = por %p77, %p78
    %p80 = scmp.ne.s32.totalorder %s72, %s75
    %p81 = scmp.eq.s32.totalorder %s10, 0
    %p82 = por %p80, %p81
    %p83 = scmp.ne.s32.totalorder %s72, %s75
    %p84 = scmp.eq.s32.totalorder %s15, 1
    %p85 = por %p83, %p84
    %p86 = scmp.ne.s32.totalorder %s75, %s76
    %p87 = scmp.eq.s32.totalorder %s15, 0
    %p88 = por %p86, %p87
    %p89 = scmp.ne.s32.totalorder %s75, %s76
    %p90 = scmp.eq.s32.totalorder %s16, 1
    %p91 = por %p89, %p90
    %p93 = scmp.ne.s32.totalorder %s76, %s92
    %p94 = scmp.eq.s32.totalorder %s16, 0
    %p95 = por %p93, %p94
    %s96 = ssub.s32 %s10, %s17
    %p97 = scmp.eq.s32.totalorder %s96, 0
    %s99 = sadd.s32 %s98, 1
    %s100 = scalar_select %p97, %s98, %s99
    %p103 = pneg %p97
    %p104 = scmp.eq.s32.totalorder %s10, 1
    %p105 = por %p103, %p104
    %p106 = scmp.ne.s32.totalorder %s98, %s101
    %p107 = scmp.eq.s32.totalorder %s10, 0
    %p108 = por %p106, %p107
    %p109 = scmp.ne.s32.totalorder %s98, %s101
    %p110 = scmp.eq.s32.totalorder %s15, 1
    %p111 = por %p109, %p110
    %p112 = scmp.ne.s32.totalorder %s101, %s102
    %p113 = scmp.eq.s32.totalorder %s15, 0
    %p114 = por %p112, %p113
    %p115 = scmp.ne.s32.totalorder %s101, %s102
    %p116 = scmp.eq.s32.totalorder %s16, 1
    %p117 = por %p115, %p116
    %p119 = scmp.ne.s32.totalorder %s102, %s118
    %p120 = scmp.eq.s32.totalorder %s16, 0
    %p121 = por %p119, %p120
    %s122 = ssub.s32 %s10, %s17
    %p123 = scmp.eq.s32.totalorder %s122, 0
    %s125 = sadd.s32 %s124, 1
    %s126 = scalar_select %p123, %s124, %s125
    %p129 = pneg %p123
    %p130 = scmp.eq.s32.totalorder %s10, 1
    %p131 = por %p129, %p130
    %p132 = scmp.ne.s32.totalorder %s124, %s127
    %p133 = scmp.eq.s32.totalorder %s10, 0
    %p134 = por %p132, %p133
    %p135 = scmp.ne.s32.totalorder %s124, %s127
    %p136 = scmp.eq.s32.totalorder %s15, 1
    %p137 = por %p135, %p136
    %p138 = scmp.ne.s32.totalorder %s127, %s128
    %p139 = scmp.eq.s32.totalorder %s15, 0
    %p140 = por %p138, %p139
    %p141 = scmp.ne.s32.totalorder %s127, %s128
    %p142 = scmp.eq.s32.totalorder %s16, 1
    %p143 = por %p141, %p142
    %p145 = scmp.ne.s32.totalorder %s128, %s144
    %p146 = scmp.eq.s32.totalorder %s16, 0
    %p147 = por %p145, %p146
    %p148 = scmp.le.s32.totalorder 1, %s10
    %p149 = scmp.lt.s32.totalorder %s10, 3
    %p150 = pnand %p148, %p149
    %p151 = pneg %p150
    // Predicated region
    $region9: #{mynet_forward.26} parent=5 // pred_check
      _
    $region10: #{mynet_forward.26} parent=5 // pred_check_branch
      %153 = sbr.rel (%p150) target = $region12
    $region11: #{mynet_forward.26} parent=5 // pred_region
      %s154 = ssub.s32 %s10, 1
    $region12: #{mynet_forward.26} parent=5 // pred_fallthru
      _
    %p155 = scmp.lt.s32.totalorder %s10, 2
    // Predicated region
    $region13: #{mynet_forward.26} parent=5 // pred_check
      %p156 = pneg %p155
    $region14: #{mynet_forward.26} parent=5 // pred_check_branch
      %158 = sbr.rel (%p156) target = $region16
    $region15: #{mynet_forward.26} parent=5 // pred_region
      // Predicated region
      $region17: #{mynet_forward.26} parent=15 // pred_check
        %p159 = pneg %p30
      $region18: #{mynet_forward.26} parent=15 // pred_check_branch
        %161 = sbr.rel (%p159) target = $region20
      $region19: #{mynet_forward.26} parent=15 // pred_region
        %p162 = scmp.lt.s32.totalorder %s10, 1
        %s163 = scalar_select %p162, %s10, 1
        %s164 = smul.addr %s163, 64
        %s165 = smul.addr %s164, 4
        %s166 = scalar_lea.vmem %s0, %s165
      $region20: #{mynet_forward.26} parent=15 // pred_fallthru
        _
      // Predicated region
      $region21: #{mynet_forward.26} parent=15 // pred_check
        %p167 = pneg %p56
      $region22: #{mynet_forward.26} parent=15 // pred_check_branch
        %169 = sbr.rel (%p167) target = $region24
      $region23: #{mynet_forward.26} parent=15 // pred_region
        %p170 = scmp.lt.s32.totalorder %s10, 1
        %s171 = scalar_select %p170, %s10, 1
        %s172 = smul.addr %s171, 32
        %s173 = smul.addr %s172, 4
        %s174 = scalar_lea.vmem %s1, %s173
      $region24: #{mynet_forward.26} parent=15 // pred_fallthru
        _
      // Predicated region
      $region25: #{mynet_forward.26} parent=15 // pred_check
        %p175 = pneg %p82
      $region26: #{mynet_forward.26} parent=15 // pred_check_branch
        %177 = sbr.rel (%p175) target = $region28
      $region27: #{mynet_forward.26} parent=15 // pred_region
        %p178 = scmp.lt.s32.totalorder %s10, 1
        %s179 = scalar_select %p178, %s10, 1
        %s180 = smul.addr %s179, 64
        %s181 = smul.addr %s180, 4
        %s182 = scalar_lea.vmem %s2, %s181
      $region28: #{mynet_forward.26} parent=15 // pred_fallthru
        _
      // Predicated region
      $region29: #{mynet_forward.26} parent=15 // pred_check
        %p183 = pneg %p108
      $region30: #{mynet_forward.26} parent=15 // pred_check_branch
        %185 = sbr.rel (%p183) target = $region32
      $region31: #{mynet_forward.26} parent=15 // pred_region
        %p186 = scmp.lt.s32.totalorder %s10, 1
        %s187 = scalar_select %p186, %s10, 1
        %s188 = smul.addr %s187, 32
        %s189 = smul.addr %s188, 4
        %s190 = scalar_lea.vmem %s3, %s189
      $region32: #{mynet_forward.26} parent=15 // pred_fallthru
        _
    $region16: #{mynet_forward.26} parent=5 // pred_fallthru
      _
    %p191 = scmp.le.s32.totalorder 1, %s10
    %p192 = scmp.lt.s32.totalorder %s10, 3
    %p193 = pnand %p191, %p192
    %p194 = pneg %p193
    // Predicated region
    $region33: #{mynet_forward.26} parent=5 // pred_check
      _
    $region34: #{mynet_forward.26} parent=5 // pred_check_branch
      %196 = sbr.rel (%p193) target = $region36
    $region35: #{mynet_forward.26} parent=5 // pred_region
      %s197 = ssub.s32 %s10, 1
      %p198 = scmp.lt.s32.totalorder %s15, 1
      %s199 = scalar_select %p198, %s15, 1
      %s200 = smul.addr %s199, 64
      %s201 = smul.addr %s200, 4
      %s202 = scalar_lea.vmem %s0, %s201
      %p203 = pneg %p36
      %p204 = pneg %p33
      %p205 = scmp.lt.s32.totalorder %s15, 1
      %s206 = scalar_select %p205, %s15, 1
      %s207 = smul.addr %s206, 32
      %s208 = smul.addr %s207, 4
      %s209 = scalar_lea.vmem %s1, %s208
      %p210 = pneg %p62
      %p211 = pneg %p59
      %p212 = scmp.lt.s32.totalorder %s15, 1
      %s213 = scalar_select %p212, %s15, 1
      %s214 = smul.addr %s213, 64
      %s215 = smul.addr %s214, 4
      %s216 = scalar_lea.vmem %s2, %s215
      %p217 = pneg %p88
      %p218 = pneg %p85
      %p219 = scmp.lt.s32.totalorder %s15, 1
      %s220 = scalar_select %p219, %s15, 1
      %s221 = smul.addr %s220, 32
      %s222 = smul.addr %s221, 4
      %s223 = scalar_lea.vmem %s3, %s222
      %p224 = pneg %p114
      %p225 = pneg %p111
      %p226 = pneg %p140
      %p227 = pneg %p137
      %p228 = scmp.lt.s32.totalorder %s15, 1
      %s229 = scalar_select %p228, %s15, 1
      %s230 = smul.addr %s229, 32
      %s231 = smul.addr %s230, 4
      %s232 = scalar_lea.vmem %s4, %s231
      %p233 = scmp.lt.s32.totalorder %s15, 1
      %s234 = scalar_select %p233, %s15, 1
      %s235 = smul.addr %s234, 64
      %s236 = smul.addr %s235, 4
      %s237 = scalar_lea.vmem %s0, %s236
      %p238 = scmp.lt.s32.totalorder %s15, 1
      %s239 = scalar_select %p238, %s15, 1
      %s240 = smul.addr %s239, 32
      %s241 = smul.addr %s240, 4
      %s242 = scalar_lea.vmem %s1, %s241
      %p243 = scmp.lt.s32.totalorder %s15, 1
      %s244 = scalar_select %p243, %s15, 1
      %s245 = smul.addr %s244, 64
      %s246 = smul.addr %s245, 4
      %s247 = scalar_lea.vmem %s2, %s246
      %p248 = scmp.lt.s32.totalorder %s15, 1
      %s249 = scalar_select %p248, %s15, 1
      %s250 = smul.addr %s249, 32
      %s251 = smul.addr %s250, 4
      %s252 = scalar_lea.vmem %s3, %s251
      %p253 = scmp.lt.s32.totalorder %s15, 1
      %s254 = scalar_select %p253, %s15, 1
      %s255 = smul.addr %s254, 32
      %s256 = smul.addr %s255, 4
      %s257 = scalar_lea.vmem %s4, %s256
      %v258 = vld [vmem:[%s237] sm:$0xff]
      %v259 = vld [vmem:[%s237 + $0x8] sm:$0xff]
      %v260 = vld [vmem:[%s237 + $0x10] sm:$0xff]
      %v261 = vld [vmem:[%s237 + $0x18] sm:$0xff]
      %v262 = vld [vmem:[%s237 + $0x20] sm:$0xff]
      %v263 = vld [vmem:[%s237 + $0x28] sm:$0xff]
      %v264 = vld [vmem:[%s237 + $0x30] sm:$0xff]
      %v265 = vld [vmem:[%s237 + $0x38] sm:$0xff]
      %v266 = vld [vmem:[%s237 + $0x40] sm:$0xff]
      %v267 = vld [vmem:[%s237 + $0x48] sm:$0xff]
      %v268 = vld [vmem:[%s237 + $0x50] sm:$0xff]
      %v269 = vld [vmem:[%s237 + $0x58] sm:$0xff]
      %v270 = vld [vmem:[%s237 + $0x60] sm:$0xff]
      %v271 = vld [vmem:[%s237 + $0x68] sm:$0xff]
      %v272 = vld [vmem:[%s237 + $0x70] sm:$0xff]
      %v273 = vld [vmem:[%s237 + $0x78] sm:$0xff]
      %v274 = vld [vmem:[%s237 + $0x80] sm:$0xff]
      %v275 = vld [vmem:[%s237 + $0x88] sm:$0xff]
      %v276 = vld [vmem:[%s237 + $0x90] sm:$0xff]
      %v277 = vld [vmem:[%s237 + $0x98] sm:$0xff]
      %v278 = vld [vmem:[%s237 + $0xa0] sm:$0xff]
      %v279 = vld [vmem:[%s237 + $0xa8] sm:$0xff]
      %v280 = vld [vmem:[%s237 + $0xb0] sm:$0xff]
      %v281 = vld [vmem:[%s237 + $0xb8] sm:$0xff]
      %v282 = vld [vmem:[%s237 + $0xc0] sm:$0xff]
      %v283 = vld [vmem:[%s237 + $0xc8] sm:$0xff]
      %v284 = vld [vmem:[%s237 + $0xd0] sm:$0xff]
      %v285 = vld [vmem:[%s237 + $0xd8] sm:$0xff]
      %v286 = vld [vmem:[%s237 + $0xe0] sm:$0xff]
      %v287 = vld [vmem:[%s237 + $0xe8] sm:$0xff]
      %v288 = vld [vmem:[%s237 + $0xf0] sm:$0xff]
      %v289 = vld [vmem:[%s237 + $0xf8] sm:$0xff]
      %v290 = vld [vmem:[%s242] sm:$0xf]
      %v291 = vld [vmem:[%s242 + $0x4] sm:$0xf]
      %v292 = vld [vmem:[%s242 + $0x8] sm:$0xf]
      %v293 = vld [vmem:[%s242 + $0xc] sm:$0xf]
      %v294 = vld [vmem:[%s242 + $0x10] sm:$0xf]
      %v295 = vld [vmem:[%s242 + $0x14] sm:$0xf]
      %v296 = vld [vmem:[%s242 + $0x18] sm:$0xf]
      %v297 = vld [vmem:[%s242 + $0x1c] sm:$0xf]
      %v298 = vld [vmem:[%s242 + $0x20] sm:$0xf]
      %v299 = vld [vmem:[%s242 + $0x24] sm:$0xf]
      %v300 = vld [vmem:[%s242 + $0x28] sm:$0xf]
      %v301 = vld [vmem:[%s242 + $0x2c] sm:$0xf]
      %v302 = vld [vmem:[%s242 + $0x30] sm:$0xf]
      %v303 = vld [vmem:[%s242 + $0x34] sm:$0xf]
      %v304 = vld [vmem:[%s242 + $0x38] sm:$0xf]
      %v305 = vld [vmem:[%s242 + $0x3c] sm:$0xf]
      %v306 = vld [vmem:[%s242 + $0x40] sm:$0xf]
      %v307 = vld [vmem:[%s242 + $0x44] sm:$0xf]
      %v308 = vld [vmem:[%s242 + $0x48] sm:$0xf]
      %v309 = vld [vmem:[%s242 + $0x4c] sm:$0xf]
      %v310 = vld [vmem:[%s242 + $0x50] sm:$0xf]
      %v311 = vld [vmem:[%s242 + $0x54] sm:$0xf]
      %v312 = vld [vmem:[%s242 + $0x58] sm:$0xf]
      %v313 = vld [vmem:[%s242 + $0x5c] sm:$0xf]
      %v314 = vld [vmem:[%s242 + $0x60] sm:$0xf]
      %v315 = vld [vmem:[%s242 + $0x64] sm:$0xf]
      %v316 = vld [vmem:[%s242 + $0x68] sm:$0xf]
      %v317 = vld [vmem:[%s242 + $0x6c] sm:$0xf]
      %v318 = vld [vmem:[%s242 + $0x70] sm:$0xf]
      %v319 = vld [vmem:[%s242 + $0x74] sm:$0xf]
      %v320 = vld [vmem:[%s242 + $0x78] sm:$0xf]
      %v321 = vld [vmem:[%s242 + $0x7c] sm:$0xf]
      %v322 = vld [vmem:[%s247] sm:$0xff]
      %v323 = vld [vmem:[%s247 + $0x8] sm:$0xff]
      %v324 = vld [vmem:[%s247 + $0x10] sm:$0xff]
      %v325 = vld [vmem:[%s247 + $0x18] sm:$0xff]
      %v326 = vld [vmem:[%s247 + $0x20] sm:$0xff]
      %v327 = vld [vmem:[%s247 + $0x28] sm:$0xff]
      %v328 = vld [vmem:[%s247 + $0x30] sm:$0xff]
      %v329 = vld [vmem:[%s247 + $0x38] sm:$0xff]
      %v330 = vld [vmem:[%s247 + $0x40] sm:$0xff]
      %v331 = vld [vmem:[%s247 + $0x48] sm:$0xff]
      %v332 = vld [vmem:[%s247 + $0x50] sm:$0xff]
      %v333 = vld [vmem:[%s247 + $0x58] sm:$0xff]
      %v334 = vld [vmem:[%s247 + $0x60] sm:$0xff]
      %v335 = vld [vmem:[%s247 + $0x68] sm:$0xff]
      %v336 = vld [vmem:[%s247 + $0x70] sm:$0xff]
      %v337 = vld [vmem:[%s247 + $0x78] sm:$0xff]
      %v338 = vld [vmem:[%s247 + $0x80] sm:$0xff]
      %v339 = vld [vmem:[%s247 + $0x88] sm:$0xff]
      %v340 = vld [vmem:[%s247 + $0x90] sm:$0xff]
      %v341 = vld [vmem:[%s247 + $0x98] sm:$0xff]
      %v342 = vld [vmem:[%s247 + $0xa0] sm:$0xff]
      %v343 = vld [vmem:[%s247 + $0xa8] sm:$0xff]
      %v344 = vld [vmem:[%s247 + $0xb0] sm:$0xff]
      %v345 = vld [vmem:[%s247 + $0xb8] sm:$0xff]
      %v346 = vld [vmem:[%s247 + $0xc0] sm:$0xff]
      %v347 = vld [vmem:[%s247 + $0xc8] sm:$0xff]
      %v348 = vld [vmem:[%s247 + $0xd0] sm:$0xff]
      %v349 = vld [vmem:[%s247 + $0xd8] sm:$0xff]
      %v350 = vld [vmem:[%s247 + $0xe0] sm:$0xff]
      %v351 = vld [vmem:[%s247 + $0xe8] sm:$0xff]
      %v352 = vld [vmem:[%s247 + $0xf0] sm:$0xff]
      %v353 = vld [vmem:[%s247 + $0xf8] sm:$0xff]
      %v354 = vld [vmem:[%s252] sm:$0xf]
      %v355 = vld [vmem:[%s252 + $0x4] sm:$0xf]
      %v356 = vld [vmem:[%s252 + $0x8] sm:$0xf]
      %v357 = vld [vmem:[%s252 + $0xc] sm:$0xf]
      %v358 = vld [vmem:[%s252 + $0x10] sm:$0xf]
      %v359 = vld [vmem:[%s252 + $0x14] sm:$0xf]
      %v360 = vld [vmem:[%s252 + $0x18] sm:$0xf]
      %v361 = vld [vmem:[%s252 + $0x1c] sm:$0xf]
      %v362 = vld [vmem:[%s252 + $0x20] sm:$0xf]
      %v363 = vld [vmem:[%s252 + $0x24] sm:$0xf]
      %v364 = vld [vmem:[%s252 + $0x28] sm:$0xf]
      %v365 = vld [vmem:[%s252 + $0x2c] sm:$0xf]
      %v366 = vld [vmem:[%s252 + $0x30] sm:$0xf]
      %v367 = vld [vmem:[%s252 + $0x34] sm:$0xf]
      %v368 = vld [vmem:[%s252 + $0x38] sm:$0xf]
      %v369 = vld [vmem:[%s252 + $0x3c] sm:$0xf]
      %v370 = vld [vmem:[%s252 + $0x40] sm:$0xf]
      %v371 = vld [vmem:[%s252 + $0x44] sm:$0xf]
      %v372 = vld [vmem:[%s252 + $0x48] sm:$0xf]
      %v373 = vld [vmem:[%s252 + $0x4c] sm:$0xf]
      %v374 = vld [vmem:[%s252 + $0x50] sm:$0xf]
      %v375 = vld [vmem:[%s252 + $0x54] sm:$0xf]
      %v376 = vld [vmem:[%s252 + $0x58] sm:$0xf]
      %v377 = vld [vmem:[%s252 + $0x5c] sm:$0xf]
      %v378 = vld [vmem:[%s252 + $0x60] sm:$0xf]
      %v379 = vld [vmem:[%s252 + $0x64] sm:$0xf]
      %v380 = vld [vmem:[%s252 + $0x68] sm:$0xf]
      %v381 = vld [vmem:[%s252 + $0x6c] sm:$0xf]
      %v382 = vld [vmem:[%s252 + $0x70] sm:$0xf]
      %v383 = vld [vmem:[%s252 + $0x74] sm:$0xf]
      %v384 = vld [vmem:[%s252 + $0x78] sm:$0xf]
      %v385 = vld [vmem:[%s252 + $0x7c] sm:$0xf]
      %v418 = vunpack.c.l.b16 %v322
      %v419 = vunpack.c.h.b16 %v322
      %v420 = vunpack.c.l.b16 %v323
      %v421 = vunpack.c.h.b16 %v323
      %v422 = vunpack.c.l.b16 %v324
      %v423 = vunpack.c.h.b16 %v324
      %v424 = vunpack.c.l.b16 %v325
      %v425 = vunpack.c.h.b16 %v325
      %v426 = vunpack.c.l.b16 %v326
      %v427 = vunpack.c.h.b16 %v326
      %v428 = vunpack.c.l.b16 %v327
      %v429 = vunpack.c.h.b16 %v327
      %v430 = vunpack.c.l.b16 %v328
      %v431 = vunpack.c.h.b16 %v328
      %v432 = vunpack.c.l.b16 %v329
      %v433 = vunpack.c.h.b16 %v329
      %v434 = vunpack.c.l.b16 %v330
      %v435 = vunpack.c.h.b16 %v330
      %v436 = vunpack.c.l.b16 %v331
      %v437 = vunpack.c.h.b16 %v331
      %v438 = vunpack.c.l.b16 %v332
      %v439 = vunpack.c.h.b16 %v332
      %v440 = vunpack.c.l.b16 %v333
      %v441 = vunpack.c.h.b16 %v333
      %v442 = vunpack.c.l.b16 %v334
      %v443 = vunpack.c.h.b16 %v334
      %v444 = vunpack.c.l.b16 %v335
      %v445 = vunpack.c.h.b16 %v335
      %v446 = vunpack.c.l.b16 %v336
      %v447 = vunpack.c.h.b16 %v336
      %v448 = vunpack.c.l.b16 %v337
      %v449 = vunpack.c.h.b16 %v337
      %v450 = vunpack.c.l.b16 %v338
      %v451 = vunpack.c.h.b16 %v338
      %v452 = vunpack.c.l.b16 %v339
      %v453 = vunpack.c.h.b16 %v339
      %v454 = vunpack.c.l.b16 %v340
      %v455 = vunpack.c.h.b16 %v340
      %v456 = vunpack.c.l.b16 %v341
      %v457 = vunpack.c.h.b16 %v341
      %v458 = vunpack.c.l.b16 %v342
      %v459 = vunpack.c.h.b16 %v342
      %v460 = vunpack.c.l.b16 %v343
      %v461 = vunpack.c.h.b16 %v343
      %v462 = vunpack.c.l.b16 %v344
      %v463 = vunpack.c.h.b16 %v344
      %v464 = vunpack.c.l.b16 %v345
      %v465 = vunpack.c.h.b16 %v345
      %v466 = vunpack.c.l.b16 %v346
      %v467 = vunpack.c.h.b16 %v346
      %v468 = vunpack.c.l.b16 %v347
      %v469 = vunpack.c.h.b16 %v347
      %v470 = vunpack.c.l.b16 %v348
      %v471 = vunpack.c.h.b16 %v348
      %v472 = vunpack.c.l.b16 %v349
      %v473 = vunpack.c.h.b16 %v349
      %v474 = vunpack.c.l.b16 %v350
      %v475 = vunpack.c.h.b16 %v350
      %v476 = vunpack.c.l.b16 %v351
      %v477 = vunpack.c.h.b16 %v351
      %v478 = vunpack.c.l.b16 %v352
      %v479 = vunpack.c.h.b16 %v352
      %v480 = vunpack.c.l.b16 %v353
      %v481 = vunpack.c.h.b16 %v353
      %v482 = vpack.c.b16 %v420, %v418
      %v483 = vpack.c.b16 %v421, %v419
      %v484 = vpack.c.b16 %v424, %v422
      %v485 = vpack.c.b16 %v425, %v423
      %v486 = vpack.c.b16 %v428, %v426
      %v487 = vpack.c.b16 %v429, %v427
      %v488 = vpack.c.b16 %v432, %v430
      %v489 = vpack.c.b16 %v433, %v431
      %v490 = vpack.c.b16 %v436, %v434
      %v491 = vpack.c.b16 %v437, %v435
      %v492 = vpack.c.b16 %v440, %v438
      %v493 = vpack.c.b16 %v441, %v439
      %v494 = vpack.c.b16 %v444, %v442
      %v495 = vpack.c.b16 %v445, %v443
      %v496 = vpack.c.b16 %v448, %v446
      %v497 = vpack.c.b16 %v449, %v447
      %v498 = vpack.c.b16 %v452, %v450
      %v499 = vpack.c.b16 %v453, %v451
      %v500 = vpack.c.b16 %v456, %v454
      %v501 = vpack.c.b16 %v457, %v455
      %v502 = vpack.c.b16 %v460, %v458
      %v503 = vpack.c.b16 %v461, %v459
      %v504 = vpack.c.b16 %v464, %v462
      %v505 = vpack.c.b16 %v465, %v463
      %v506 = vpack.c.b16 %v468, %v466
      %v507 = vpack.c.b16 %v469, %v467
      %v508 = vpack.c.b16 %v472, %v470
      %v509 = vpack.c.b16 %v473, %v471
      %v510 = vpack.c.b16 %v476, %v474
      %v511 = vpack.c.b16 %v477, %v475
      %v512 = vpack.c.b16 %v480, %v478
      %v513 = vpack.c.b16 %v481, %v479
      %v578 = vunpack.c.l.b16 %v354
      %v579 = vunpack.c.l.b16 %v355
      %v580 = vunpack.c.l.b16 %v356
      %v581 = vunpack.c.l.b16 %v357
      %v582 = vunpack.c.l.b16 %v358
      %v583 = vunpack.c.l.b16 %v359
      %v584 = vunpack.c.l.b16 %v360
      %v585 = vunpack.c.l.b16 %v361
      %v586 = vunpack.c.l.b16 %v362
      %v587 = vunpack.c.l.b16 %v363
      %v588 = vunpack.c.l.b16 %v364
      %v589 = vunpack.c.l.b16 %v365
      %v590 = vunpack.c.l.b16 %v366
      %v591 = vunpack.c.l.b16 %v367
      %v592 = vunpack.c.l.b16 %v368
      %v593 = vunpack.c.l.b16 %v369
      %v594 = vunpack.c.l.b16 %v370
      %v595 = vunpack.c.l.b16 %v371
      %v596 = vunpack.c.l.b16 %v372
      %v597 = vunpack.c.l.b16 %v373
      %v598 = vunpack.c.l.b16 %v374
      %v599 = vunpack.c.l.b16 %v375
      %v600 = vunpack.c.l.b16 %v376
      %v601 = vunpack.c.l.b16 %v377
      %v602 = vunpack.c.l.b16 %v378
      %v603 = vunpack.c.l.b16 %v379
      %v604 = vunpack.c.l.b16 %v380
      %v605 = vunpack.c.l.b16 %v381
      %v606 = vunpack.c.l.b16 %v382
      %v607 = vunpack.c.l.b16 %v383
      %v608 = vunpack.c.l.b16 %v384
      %v609 = vunpack.c.l.b16 %v385
      %v610 = vpack.c.b16 %v579, %v578
      %v611 = vpack.c.b16 %v581, %v580
      %v612 = vpack.c.b16 %v583, %v582
      %v613 = vpack.c.b16 %v585, %v584
      %v614 = vpack.c.b16 %v587, %v586
      %v615 = vpack.c.b16 %v589, %v588
      %v616 = vpack.c.b16 %v591, %v590
      %v617 = vpack.c.b16 %v593, %v592
      %v618 = vpack.c.b16 %v595, %v594
      %v619 = vpack.c.b16 %v597, %v596
      %v620 = vpack.c.b16 %v599, %v598
      %v621 = vpack.c.b16 %v601, %v600
      %v622 = vpack.c.b16 %v603, %v602
      %v623 = vpack.c.b16 %v605, %v604
      %v624 = vpack.c.b16 %v607, %v606
      %v625 = vpack.c.b16 %v609, %v608
      %642 = vmatpush.bf16.msra.mxu0 %v617
      %643 = vmatpush.bf16.msra.mxu0 %v616
      %644 = vmatpush.bf16.msra.mxu0 %v615
      %645 = vmatpush.bf16.msra.mxu0 %v614
      %646 = vmatpush.bf16.msra.mxu0 %v613
      %647 = vmatpush.bf16.msra.mxu0 %v612
      %648 = vmatpush.bf16.msra.mxu0 %v611
      %649 = vmatpush.bf16.msra.mxu0 %v610
      %650 = vmatmul.bf16.gmra.mxu0 %v482
      %v651 = vpop.f32.mrf.mxu0
      %v652 = vadd.f32 0.0, %v651
      %v653 = vpop.f32.mrf.mxu0
      %v654 = vadd.f32 0.0, %v653
      %655 = vmatmul.bf16.gmra.mxu0 %v484
      %v656 = vpop.f32.mrf.mxu0
      %v657 = vadd.f32 0.0, %v656
      %v658 = vpop.f32.mrf.mxu0
      %v659 = vadd.f32 0.0, %v658
      %660 = vmatmul.bf16.gmra.mxu0 %v486
      %v661 = vpop.f32.mrf.mxu0
      %v662 = vadd.f32 0.0, %v661
      %v663 = vpop.f32.mrf.mxu0
      %v664 = vadd.f32 0.0, %v663
      %665 = vmatmul.bf16.gmra.mxu0 %v488
      %v666 = vpop.f32.mrf.mxu0
      %v667 = vadd.f32 0.0, %v666
      %v668 = vpop.f32.mrf.mxu0
      %v669 = vadd.f32 0.0, %v668
      %670 = vmatmul.bf16.gmra.mxu0 %v490
      %v671 = vpop.f32.mrf.mxu0
      %v672 = vadd.f32 0.0, %v671
      %v673 = vpop.f32.mrf.mxu0
      %v674 = vadd.f32 0.0, %v673
      %675 = vmatmul.bf16.gmra.mxu0 %v492
      %v676 = vpop.f32.mrf.mxu0
      %v677 = vadd.f32 0.0, %v676
      %v678 = vpop.f32.mrf.mxu0
      %v679 = vadd.f32 0.0, %v678
      %680 = vmatmul.bf16.gmra.mxu0 %v494
      %v681 = vpop.f32.mrf.mxu0
      %v682 = vadd.f32 0.0, %v681
      %v683 = vpop.f32.mrf.mxu0
      %v684 = vadd.f32 0.0, %v683
      %685 = vmatmul.bf16.gmra.mxu0 %v496
      %v686 = vpop.f32.mrf.mxu0
      %v687 = vadd.f32 0.0, %v686
      %v688 = vpop.f32.mrf.mxu0
      %v689 = vadd.f32 0.0, %v688
      %690 = vmatmul.bf16.gmra.mxu0 %v498
      %v691 = vpop.f32.mrf.mxu0
      %v692 = vadd.f32 0.0, %v691
      %v693 = vpop.f32.mrf.mxu0
      %v694 = vadd.f32 0.0, %v693
      %695 = vmatmul.bf16.gmra.mxu0 %v500
      %v696 = vpop.f32.mrf.mxu0
      %v697 = vadd.f32 0.0, %v696
      %v698 = vpop.f32.mrf.mxu0
      %v699 = vadd.f32 0.0, %v698
      %700 = vmatmul.bf16.gmra.mxu0 %v502
      %v701 = vpop.f32.mrf.mxu0
      %v702 = vadd.f32 0.0, %v701
      %v703 = vpop.f32.mrf.mxu0
      %v704 = vadd.f32 0.0, %v703
      %705 = vmatmul.bf16.gmra.mxu0 %v504
      %v706 = vpop.f32.mrf.mxu0
      %v707 = vadd.f32 0.0, %v706
      %v708 = vpop.f32.mrf.mxu0
      %v709 = vadd.f32 0.0, %v708
      %710 = vmatmul.bf16.gmra.mxu0 %v506
      %v711 = vpop.f32.mrf.mxu0
      %v712 = vadd.f32 0.0, %v711
      %v713 = vpop.f32.mrf.mxu0
      %v714 = vadd.f32 0.0, %v713
      %715 = vmatmul.bf16.gmra.mxu0 %v508
      %v716 = vpop.f32.mrf.mxu0
      %v717 = vadd.f32 0.0, %v716
      %v718 = vpop.f32.mrf.mxu0
      %v719 = vadd.f32 0.0, %v718
      %720 = vmatmul.bf16.gmra.mxu0 %v510
      %v721 = vpop.f32.mrf.mxu0
      %v722 = vadd.f32 0.0, %v721
      %v723 = vpop.f32.mrf.mxu0
      %v724 = vadd.f32 0.0, %v723
      %725 = vmatmul.bf16.gmra.mxu0 %v512
      %v726 = vpop.f32.mrf.mxu0
      %v727 = vadd.f32 0.0, %v726
      %v728 = vpop.f32.mrf.mxu0
      %v729 = vadd.f32 0.0, %v728
      %730 = vdwg.mxu0
      %731 = vmatpush.bf16.msra.mxu0 %v625
      %732 = vmatpush.bf16.msra.mxu0 %v624
      %733 = vmatpush.bf16.msra.mxu0 %v623
      %734 = vmatpush.bf16.msra.mxu0 %v622
      %735 = vmatpush.bf16.msra.mxu0 %v621
      %736 = vmatpush.bf16.msra.mxu0 %v620
      %737 = vmatpush.bf16.msra.mxu0 %v619
      %738 = vmatpush.bf16.msra.mxu0 %v618
      %739 = vmatmul.bf16.gmra.mxu0 %v483
      %v740 = vpop.f32.mrf.mxu0
      %v741 = vadd.f32 %v652, %v740
      %v742 = vpop.f32.mrf.mxu0
      %v743 = vadd.f32 %v654, %v742
      %744 = vmatmul.bf16.gmra.mxu0 %v485
      %v745 = vpop.f32.mrf.mxu0
      %v746 = vadd.f32 %v657, %v745
      %v747 = vpop.f32.mrf.mxu0
      %v748 = vadd.f32 %v659, %v747
      %749 = vmatmul.bf16.gmra.mxu0 %v487
      %v750 = vpop.f32.mrf.mxu0
      %v751 = vadd.f32 %v662, %v750
      %v752 = vpop.f32.mrf.mxu0
      %v753 = vadd.f32 %v664, %v752
      %754 = vmatmul.bf16.gmra.mxu0 %v489
      %v755 = vpop.f32.mrf.mxu0
      %v756 = vadd.f32 %v667, %v755
      %v757 = vpop.f32.mrf.mxu0
      %v758 = vadd.f32 %v669, %v757
      %759 = vmatmul.bf16.gmra.mxu0 %v491
      %v760 = vpop.f32.mrf.mxu0
      %v761 = vadd.f32 %v672, %v760
      %v762 = vpop.f32.mrf.mxu0
      %v763 = vadd.f32 %v674, %v762
      %764 = vmatmul.bf16.gmra.mxu0 %v493
      %v765 = vpop.f32.mrf.mxu0
      %v766 = vadd.f32 %v677, %v765
      %v767 = vpop.f32.mrf.mxu0
      %v768 = vadd.f32 %v679, %v767
      %769 = vmatmul.bf16.gmra.mxu0 %v495
      %v770 = vpop.f32.mrf.mxu0
      %v771 = vadd.f32 %v682, %v770
      %v772 = vpop.f32.mrf.mxu0
      %v773 = vadd.f32 %v684, %v772
      %774 = vmatmul.bf16.gmra.mxu0 %v497
      %v775 = vpop.f32.mrf.mxu0
      %v776 = vadd.f32 %v687, %v775
      %v777 = vpop.f32.mrf.mxu0
      %v778 = vadd.f32 %v689, %v777
      %779 = vmatmul.bf16.gmra.mxu0 %v499
      %v780 = vpop.f32.mrf.mxu0
      %v781 = vadd.f32 %v692, %v780
      %v782 = vpop.f32.mrf.mxu0
      %v783 = vadd.f32 %v694, %v782
      %784 = vmatmul.bf16.gmra.mxu0 %v501
      %v785 = vpop.f32.mrf.mxu0
      %v786 = vadd.f32 %v697, %v785
      %v787 = vpop.f32.mrf.mxu0
      %v788 = vadd.f32 %v699, %v787
      %789 = vmatmul.bf16.gmra.mxu0 %v503
      %v790 = vpop.f32.mrf.mxu0
      %v791 = vadd.f32 %v702, %v790
      %v792 = vpop.f32.mrf.mxu0
      %v793 = vadd.f32 %v704, %v792
      %794 = vmatmul.bf16.gmra.mxu0 %v505
      %v795 = vpop.f32.mrf.mxu0
      %v796 = vadd.f32 %v707, %v795
      %v797 = vpop.f32.mrf.mxu0
      %v798 = vadd.f32 %v709, %v797
      %799 = vmatmul.bf16.gmra.mxu0 %v507
      %v800 = vpop.f32.mrf.mxu0
      %v801 = vadd.f32 %v712, %v800
      %v802 = vpop.f32.mrf.mxu0
      %v803 = vadd.f32 %v714, %v802
      %804 = vmatmul.bf16.gmra.mxu0 %v509
      %v805 = vpop.f32.mrf.mxu0
      %v806 = vadd.f32 %v717, %v805
      %v807 = vpop.f32.mrf.mxu0
      %v808 = vadd.f32 %v719, %v807
      %809 = vmatmul.bf16.gmra.mxu0 %v511
      %v810 = vpop.f32.mrf.mxu0
      %v811 = vadd.f32 %v722, %v810
      %v812 = vpop.f32.mrf.mxu0
      %v813 = vadd.f32 %v724, %v812
      %814 = vmatmul.bf16.gmra.mxu0 %v513
      %v815 = vpop.f32.mrf.mxu0
      %v816 = vadd.f32 %v727, %v815
      %v817 = vpop.f32.mrf.mxu0
      %v818 = vadd.f32 %v729, %v817
      %819 = vdwg.mxu0
      %v852 = vunpack.c.l.b16 %v258
      %v853 = vunpack.c.h.b16 %v258
      %v854 = vunpack.c.l.b16 %v259
      %v855 = vunpack.c.h.b16 %v259
      %v856 = vunpack.c.l.b16 %v260
      %v857 = vunpack.c.h.b16 %v260
      %v858 = vunpack.c.l.b16 %v261
      %v859 = vunpack.c.h.b16 %v261
      %v860 = vunpack.c.l.b16 %v262
      %v861 = vunpack.c.h.b16 %v262
      %v862 = vunpack.c.l.b16 %v263
      %v863 = vunpack.c.h.b16 %v263
      %v864 = vunpack.c.l.b16 %v264
      %v865 = vunpack.c.h.b16 %v264
      %v866 = vunpack.c.l.b16 %v265
      %v867 = vunpack.c.h.b16 %v265
      %v868 = vunpack.c.l.b16 %v266
      %v869 = vunpack.c.h.b16 %v266
      %v870 = vunpack.c.l.b16 %v267
      %v871 = vunpack.c.h.b16 %v267
      %v872 = vunpack.c.l.b16 %v268
      %v873 = vunpack.c.h.b16 %v268
      %v874 = vunpack.c.l.b16 %v269
      %v875 = vunpack.c.h.b16 %v269
      %v876 = vunpack.c.l.b16 %v270
      %v877 = vunpack.c.h.b16 %v270
      %v878 = vunpack.c.l.b16 %v271
      %v879 = vunpack.c.h.b16 %v271
      %v880 = vunpack.c.l.b16 %v272
      %v881 = vunpack.c.h.b16 %v272
      %v882 = vunpack.c.l.b16 %v273
      %v883 = vunpack.c.h.b16 %v273
      %v884 = vunpack.c.l.b16 %v274
      %v885 = vunpack.c.h.b16 %v274
      %v886 = vunpack.c.l.b16 %v275
      %v887 = vunpack.c.h.b16 %v275
      %v888 = vunpack.c.l.b16 %v276
      %v889 = vunpack.c.h.b16 %v276
      %v890 = vunpack.c.l.b16 %v277
      %v891 = vunpack.c.h.b16 %v277
      %v892 = vunpack.c.l.b16 %v278
      %v893 = vunpack.c.h.b16 %v278
      %v894 = vunpack.c.l.b16 %v279
      %v895 = vunpack.c.h.b16 %v279
      %v896 = vunpack.c.l.b16 %v280
      %v897 = vunpack.c.h.b16 %v280
      %v898 = vunpack.c.l.b16 %v281
      %v899 = vunpack.c.h.b16 %v281
      %v900 = vunpack.c.l.b16 %v282
      %v901 = vunpack.c.h.b16 %v282
      %v902 = vunpack.c.l.b16 %v283
      %v903 = vunpack.c.h.b16 %v283
      %v904 = vunpack.c.l.b16 %v284
      %v905 = vunpack.c.h.b16 %v284
      %v906 = vunpack.c.l.b16 %v285
      %v907 = vunpack.c.h.b16 %v285
      %v908 = vunpack.c.l.b16 %v286
      %v909 = vunpack.c.h.b16 %v286
      %v910 = vunpack.c.l.b16 %v287
      %v911 = vunpack.c.h.b16 %v287
      %v912 = vunpack.c.l.b16 %v288
      %v913 = vunpack.c.h.b16 %v288
      %v914 = vunpack.c.l.b16 %v289
      %v915 = vunpack.c.h.b16 %v289
      %v916 = vpack.c.b16 %v854, %v852
      %v917 = vpack.c.b16 %v855, %v853
      %v918 = vpack.c.b16 %v858, %v856
      %v919 = vpack.c.b16 %v859, %v857
      %v920 = vpack.c.b16 %v862, %v860
      %v921 = vpack.c.b16 %v863, %v861
      %v922 = vpack.c.b16 %v866, %v864
      %v923 = vpack.c.b16 %v867, %v865
      %v924 = vpack.c.b16 %v870, %v868
      %v925 = vpack.c.b16 %v871, %v869
      %v926 = vpack.c.b16 %v874, %v872
      %v927 = vpack.c.b16 %v875, %v873
      %v928 = vpack.c.b16 %v878, %v876
      %v929 = vpack.c.b16 %v879, %v877
      %v930 = vpack.c.b16 %v882, %v880
      %v931 = vpack.c.b16 %v883, %v881
      %v932 = vpack.c.b16 %v886, %v884
      %v933 = vpack.c.b16 %v887, %v885
      %v934 = vpack.c.b16 %v890, %v888
      %v935 = vpack.c.b16 %v891, %v889
      %v936 = vpack.c.b16 %v894, %v892
      %v937 = vpack.c.b16 %v895, %v893
      %v938 = vpack.c.b16 %v898, %v896
      %v939 = vpack.c.b16 %v899, %v897
      %v940 = vpack.c.b16 %v902, %v900
      %v941 = vpack.c.b16 %v903, %v901
      %v942 = vpack.c.b16 %v906, %v904
      %v943 = vpack.c.b16 %v907, %v905
      %v944 = vpack.c.b16 %v910, %v908
      %v945 = vpack.c.b16 %v911, %v909
      %v946 = vpack.c.b16 %v914, %v912
      %v947 = vpack.c.b16 %v915, %v913
      %v1012 = vunpack.c.l.b16 %v290
      %v1013 = vunpack.c.l.b16 %v291
      %v1014 = vunpack.c.l.b16 %v292
      %v1015 = vunpack.c.l.b16 %v293
      %v1016 = vunpack.c.l.b16 %v294
      %v1017 = vunpack.c.l.b16 %v295
      %v1018 = vunpack.c.l.b16 %v296
      %v1019 = vunpack.c.l.b16 %v297
      %v1020 = vunpack.c.l.b16 %v298
      %v1021 = vunpack.c.l.b16 %v299
      %v1022 = vunpack.c.l.b16 %v300
      %v1023 = vunpack.c.l.b16 %v301
      %v1024 = vunpack.c.l.b16 %v302
      %v1025 = vunpack.c.l.b16 %v303
      %v1026 = vunpack.c.l.b16 %v304
      %v1027 = vunpack.c.l.b16 %v305
      %v1028 = vunpack.c.l.b16 %v306
      %v1029 = vunpack.c.l.b16 %v307
      %v1030 = vunpack.c.l.b16 %v308
      %v1031 = vunpack.c.l.b16 %v309
      %v1032 = vunpack.c.l.b16 %v310
      %v1033 = vunpack.c.l.b16 %v311
      %v1034 = vunpack.c.l.b16 %v312
      %v1035 = vunpack.c.l.b16 %v313
      %v1036 = vunpack.c.l.b16 %v314
      %v1037 = vunpack.c.l.b16 %v315
      %v1038 = vunpack.c.l.b16 %v316
      %v1039 = vunpack.c.l.b16 %v317
      %v1040 = vunpack.c.l.b16 %v318
      %v1041 = vunpack.c.l.b16 %v319
      %v1042 = vunpack.c.l.b16 %v320
      %v1043 = vunpack.c.l.b16 %v321
      %v1044 = vpack.c.b16 %v1013, %v1012
      %v1045 = vpack.c.b16 %v1015, %v1014
      %v1046 = vpack.c.b16 %v1017, %v1016
      %v1047 = vpack.c.b16 %v1019, %v1018
      %v1048 = vpack.c.b16 %v1021, %v1020
      %v1049 = vpack.c.b16 %v1023, %v1022
      %v1050 = vpack.c.b16 %v1025, %v1024
      %v1051 = vpack.c.b16 %v1027, %v1026
      %v1052 = vpack.c.b16 %v1029, %v1028
      %v1053 = vpack.c.b16 %v1031, %v1030
      %v1054 = vpack.c.b16 %v1033, %v1032
      %v1055 = vpack.c.b16 %v1035, %v1034
      %v1056 = vpack.c.b16 %v1037, %v1036
      %v1057 = vpack.c.b16 %v1039, %v1038
      %v1058 = vpack.c.b16 %v1041, %v1040
      %v1059 = vpack.c.b16 %v1043, %v1042
      %1076 = vmatpush.bf16.msra.mxu0 %v1051
      %1077 = vmatpush.bf16.msra.mxu0 %v1050
      %1078 = vmatpush.bf16.msra.mxu0 %v1049
      %1079 = vmatpush.bf16.msra.mxu0 %v1048
      %1080 = vmatpush.bf16.msra.mxu0 %v1047
      %1081 = vmatpush.bf16.msra.mxu0 %v1046
      %1082 = vmatpush.bf16.msra.mxu0 %v1045
      %1083 = vmatpush.bf16.msra.mxu0 %v1044
      %1084 = vmatmul.bf16.gmra.mxu0 %v916
      %v1085 = vpop.f32.mrf.mxu0
      %v1086 = vadd.f32 %v741, %v1085
      %v1087 = vpop.f32.mrf.mxu0
      %v1088 = vadd.f32 %v743, %v1087
      %1089 = vmatmul.bf16.gmra.mxu0 %v918
      %v1090 = vpop.f32.mrf.mxu0
      %v1091 = vadd.f32 %v746, %v1090
      %v1092 = vpop.f32.mrf.mxu0
      %v1093 = vadd.f32 %v748, %v1092
      %1094 = vmatmul.bf16.gmra.mxu0 %v920
      %v1095 = vpop.f32.mrf.mxu0
      %v1096 = vadd.f32 %v751, %v1095
      %v1097 = vpop.f32.mrf.mxu0
      %v1098 = vadd.f32 %v753, %v1097
      %1099 = vmatmul.bf16.gmra.mxu0 %v922
      %v1100 = vpop.f32.mrf.mxu0
      %v1101 = vadd.f32 %v756, %v1100
      %v1102 = vpop.f32.mrf.mxu0
      %v1103 = vadd.f32 %v758, %v1102
      %1104 = vmatmul.bf16.gmra.mxu0 %v924
      %v1105 = vpop.f32.mrf.mxu0
      %v1106 = vadd.f32 %v761, %v1105
      %v1107 = vpop.f32.mrf.mxu0
      %v1108 = vadd.f32 %v763, %v1107
      %1109 = vmatmul.bf16.gmra.mxu0 %v926
      %v1110 = vpop.f32.mrf.mxu0
      %v1111 = vadd.f32 %v766, %v1110
      %v1112 = vpop.f32.mrf.mxu0
      %v1113 = vadd.f32 %v768, %v1112
      %1114 = vmatmul.bf16.gmra.mxu0 %v928
      %v1115 = vpop.f32.mrf.mxu0
      %v1116 = vadd.f32 %v771, %v1115
      %v1117 = vpop.f32.mrf.mxu0
      %v1118 = vadd.f32 %v773, %v1117
      %1119 = vmatmul.bf16.gmra.mxu0 %v930
      %v1120 = vpop.f32.mrf.mxu0
      %v1121 = vadd.f32 %v776, %v1120
      %v1122 = vpop.f32.mrf.mxu0
      %v1123 = vadd.f32 %v778, %v1122
      %1124 = vmatmul.bf16.gmra.mxu0 %v932
      %v1125 = vpop.f32.mrf.mxu0
      %v1126 = vadd.f32 %v781, %v1125
      %v1127 = vpop.f32.mrf.mxu0
      %v1128 = vadd.f32 %v783, %v1127
      %1129 = vmatmul.bf16.gmra.mxu0 %v934
      %v1130 = vpop.f32.mrf.mxu0
      %v1131 = vadd.f32 %v786, %v1130
      %v1132 = vpop.f32.mrf.mxu0
      %v1133 = vadd.f32 %v788, %v1132
      %1134 = vmatmul.bf16.gmra.mxu0 %v936
      %v1135 = vpop.f32.mrf.mxu0
      %v1136 = vadd.f32 %v791, %v1135
      %v1137 = vpop.f32.mrf.mxu0
      %v1138 = vadd.f32 %v793, %v1137
      %1139 = vmatmul.bf16.gmra.mxu0 %v938
      %v1140 = vpop.f32.mrf.mxu0
      %v1141 = vadd.f32 %v796, %v1140
      %v1142 = vpop.f32.mrf.mxu0
      %v1143 = vadd.f32 %v798, %v1142
      %1144 = vmatmul.bf16.gmra.mxu0 %v940
      %v1145 = vpop.f32.mrf.mxu0
      %v1146 = vadd.f32 %v801, %v1145
      %v1147 = vpop.f32.mrf.mxu0
      %v1148 = vadd.f32 %v803, %v1147
      %1149 = vmatmul.bf16.gmra.mxu0 %v942
      %v1150 = vpop.f32.mrf.mxu0
      %v1151 = vadd.f32 %v806, %v1150
      %v1152 = vpop.f32.mrf.mxu0
      %v1153 = vadd.f32 %v808, %v1152
      %1154 = vmatmul.bf16.gmra.mxu0 %v944
      %v1155 = vpop.f32.mrf.mxu0
      %v1156 = vadd.f32 %v811, %v1155
      %v1157 = vpop.f32.mrf.mxu0
      %v1158 = vadd.f32 %v813, %v1157
      %1159 = vmatmul.bf16.gmra.mxu0 %v946
      %v1160 = vpop.f32.mrf.mxu0
      %v1161 = vadd.f32 %v816, %v1160
      %v1162 = vpop.f32.mrf.mxu0
      %v1163 = vadd.f32 %v818, %v1162
      %1164 = vdwg.mxu0
      %1165 = vmatpush.bf16.msra.mxu0 %v1059
      %1166 = vmatpush.bf16.msra.mxu0 %v1058
      %1167 = vmatpush.bf16.msra.mxu0 %v1057
      %1168 = vmatpush.bf16.msra.mxu0 %v1056
      %1169 = vmatpush.bf16.msra.mxu0 %v1055
      %1170 = vmatpush.bf16.msra.mxu0 %v1054
      %1171 = vmatpush.bf16.msra.mxu0 %v1053
      %1172 = vmatpush.bf16.msra.mxu0 %v1052
      %1173 = vmatmul.bf16.gmra.mxu0 %v917
      %v1174 = vpop.f32.mrf.mxu0
      %v1175 = vadd.f32 %v1086, %v1174
      %v1176 = vpop.f32.mrf.mxu0
      %v1177 = vadd.f32 %v1088, %v1176
      %1178 = vmatmul.bf16.gmra.mxu0 %v919
      %v1179 = vpop.f32.mrf.mxu0
      %v1180 = vadd.f32 %v1091, %v1179
      %v1181 = vpop.f32.mrf.mxu0
      %v1182 = vadd.f32 %v1093, %v1181
      %1183 = vmatmul.bf16.gmra.mxu0 %v921
      %v1184 = vpop.f32.mrf.mxu0
      %v1185 = vadd.f32 %v1096, %v1184
      %v1186 = vpop.f32.mrf.mxu0
      %v1187 = vadd.f32 %v1098, %v1186
      %1188 = vmatmul.bf16.gmra.mxu0 %v923
      %v1189 = vpop.f32.mrf.mxu0
      %v1190 = vadd.f32 %v1101, %v1189
      %v1191 = vpop.f32.mrf.mxu0
      %v1192 = vadd.f32 %v1103, %v1191
      %1193 = vmatmul.bf16.gmra.mxu0 %v925
      %v1194 = vpop.f32.mrf.mxu0
      %v1195 = vadd.f32 %v1106, %v1194
      %v1196 = vpop.f32.mrf.mxu0
      %v1197 = vadd.f32 %v1108, %v1196
      %1198 = vmatmul.bf16.gmra.mxu0 %v927
      %v1199 = vpop.f32.mrf.mxu0
      %v1200 = vadd.f32 %v1111, %v1199
      %v1201 = vpop.f32.mrf.mxu0
      %v1202 = vadd.f32 %v1113, %v1201
      %1203 = vmatmul.bf16.gmra.mxu0 %v929
      %v1204 = vpop.f32.mrf.mxu0
      %v1205 = vadd.f32 %v1116, %v1204
      %v1206 = vpop.f32.mrf.mxu0
      %v1207 = vadd.f32 %v1118, %v1206
      %1208 = vmatmul.bf16.gmra.mxu0 %v931
      %v1209 = vpop.f32.mrf.mxu0
      %v1210 = vadd.f32 %v1121, %v1209
      %v1211 = vpop.f32.mrf.mxu0
      %v1212 = vadd.f32 %v1123, %v1211
      %1213 = vmatmul.bf16.gmra.mxu0 %v933
      %v1214 = vpop.f32.mrf.mxu0
      %v1215 = vadd.f32 %v1126, %v1214
      %v1216 = vpop.f32.mrf.mxu0
      %v1217 = vadd.f32 %v1128, %v1216
      %1218 = vmatmul.bf16.gmra.mxu0 %v935
      %v1219 = vpop.f32.mrf.mxu0
      %v1220 = vadd.f32 %v1131, %v1219
      %v1221 = vpop.f32.mrf.mxu0
      %v1222 = vadd.f32 %v1133, %v1221
      %1223 = vmatmul.bf16.gmra.mxu0 %v937
      %v1224 = vpop.f32.mrf.mxu0
      %v1225 = vadd.f32 %v1136, %v1224
      %v1226 = vpop.f32.mrf.mxu0
      %v1227 = vadd.f32 %v1138, %v1226
      %1228 = vmatmul.bf16.gmra.mxu0 %v939
      %v1229 = vpop.f32.mrf.mxu0
      %v1230 = vadd.f32 %v1141, %v1229
      %v1231 = vpop.f32.mrf.mxu0
      %v1232 = vadd.f32 %v1143, %v1231
      %1233 = vmatmul.bf16.gmra.mxu0 %v941
      %v1234 = vpop.f32.mrf.mxu0
      %v1235 = vadd.f32 %v1146, %v1234
      %v1236 = vpop.f32.mrf.mxu0
      %v1237 = vadd.f32 %v1148, %v1236
      %1238 = vmatmul.bf16.gmra.mxu0 %v943
      %v1239 = vpop.f32.mrf.mxu0
      %v1240 = vadd.f32 %v1151, %v1239
      %v1241 = vpop.f32.mrf.mxu0
      %v1242 = vadd.f32 %v1153, %v1241
      %1243 = vmatmul.bf16.gmra.mxu0 %v945
      %v1244 = vpop.f32.mrf.mxu0
      %v1245 = vadd.f32 %v1156, %v1244
      %v1246 = vpop.f32.mrf.mxu0
      %v1247 = vadd.f32 %v1158, %v1246
      %1248 = vmatmul.bf16.gmra.mxu0 %v947
      %v1249 = vpop.f32.mrf.mxu0
      %v1250 = vadd.f32 %v1161, %v1249
      %v1251 = vpop.f32.mrf.mxu0
      %v1252 = vadd.f32 %v1163, %v1251
      %1253 = vdwg.mxu0
      %v1254 = vpack.c.bf16 %v1175, %v1175
      %v1255 = vpack.c.bf16 %v1177, %v1177
      %v1256 = vpack.c.bf16 %v1180, %v1180
      %v1257 = vpack.c.bf16 %v1182, %v1182
      %v1258 = vpack.c.bf16 %v1185, %v1185
      %v1259 = vpack.c.bf16 %v1187, %v1187
      %v1260 = vpack.c.bf16 %v1190, %v1190
      %v1261 = vpack.c.bf16 %v1192, %v1192
      %v1262 = vpack.c.bf16 %v1195, %v1195
      %v1263 = vpack.c.bf16 %v1197, %v1197
      %v1264 = vpack.c.bf16 %v1200, %v1200
      %v1265 = vpack.c.bf16 %v1202, %v1202
      %v1266 = vpack.c.bf16 %v1205, %v1205
      %v1267 = vpack.c.bf16 %v1207, %v1207
      %v1268 = vpack.c.bf16 %v1210, %v1210
      %v1269 = vpack.c.bf16 %v1212, %v1212
      %v1270 = vpack.c.bf16 %v1215, %v1215
      %v1271 = vpack.c.bf16 %v1217, %v1217
      %v1272 = vpack.c.bf16 %v1220, %v1220
      %v1273 = vpack.c.bf16 %v1222, %v1222
      %v1274 = vpack.c.bf16 %v1225, %v1225
      %v1275 = vpack.c.bf16 %v1227, %v1227
      %v1276 = vpack.c.bf16 %v1230, %v1230
      %v1277 = vpack.c.bf16 %v1232, %v1232
      %v1278 = vpack.c.bf16 %v1235, %v1235
      %v1279 = vpack.c.bf16 %v1237, %v1237
      %v1280 = vpack.c.bf16 %v1240, %v1240
      %v1281 = vpack.c.bf16 %v1242, %v1242
      %v1282 = vpack.c.bf16 %v1245, %v1245
      %v1283 = vpack.c.bf16 %v1247, %v1247
      %v1284 = vpack.c.bf16 %v1250, %v1250
      %v1285 = vpack.c.bf16 %v1252, %v1252
      %vm1286 = vcmask 519168
      %1287 = vst.msk [vmem:[%s257] sm:$0xf] %vm1286, %v1254
      %1288 = vst.msk [vmem:[%s257 + $0x4] sm:$0xf] %vm1286, %v1255
      %1289 = vst.msk [vmem:[%s257 + $0x8] sm:$0xf] %vm1286, %v1256
      %1290 = vst.msk [vmem:[%s257 + $0xc] sm:$0xf] %vm1286, %v1257
      %1291 = vst.msk [vmem:[%s257 + $0x10] sm:$0xf] %vm1286, %v1258
      %1292 = vst.msk [vmem:[%s257 + $0x14] sm:$0xf] %vm1286, %v1259
      %1293 = vst.msk [vmem:[%s257 + $0x18] sm:$0xf] %vm1286, %v1260
      %1294 = vst.msk [vmem:[%s257 + $0x1c] sm:$0xf] %vm1286, %v1261
      %1295 = vst.msk [vmem:[%s257 + $0x20] sm:$0xf] %vm1286, %v1262
      %1296 = vst.msk [vmem:[%s257 + $0x24] sm:$0xf] %vm1286, %v1263
      %1297 = vst.msk [vmem:[%s257 + $0x28] sm:$0xf] %vm1286, %v1264
      %1298 = vst.msk [vmem:[%s257 + $0x2c] sm:$0xf] %vm1286, %v1265
      %1299 = vst.msk [vmem:[%s257 + $0x30] sm:$0xf] %vm1286, %v1266
      %1300 = vst.msk [vmem:[%s257 + $0x34] sm:$0xf] %vm1286, %v1267
      %1301 = vst.msk [vmem:[%s257 + $0x38] sm:$0xf] %vm1286, %v1268
      %1302 = vst.msk [vmem:[%s257 + $0x3c] sm:$0xf] %vm1286, %v1269
      %1303 = vst.msk [vmem:[%s257 + $0x40] sm:$0xf] %vm1286, %v1270
      %1304 = vst.msk [vmem:[%s257 + $0x44] sm:$0xf] %vm1286, %v1271
      %1305 = vst.msk [vmem:[%s257 + $0x48] sm:$0xf] %vm1286, %v1272
      %1306 = vst.msk [vmem:[%s257 + $0x4c] sm:$0xf] %vm1286, %v1273
      %1307 = vst.msk [vmem:[%s257 + $0x50] sm:$0xf] %vm1286, %v1274
      %1308 = vst.msk [vmem:[%s257 + $0x54] sm:$0xf] %vm1286, %v1275
      %1309 = vst.msk [vmem:[%s257 + $0x58] sm:$0xf] %vm1286, %v1276
      %1310 = vst.msk [vmem:[%s257 + $0x5c] sm:$0xf] %vm1286, %v1277
      %1311 = vst.msk [vmem:[%s257 + $0x60] sm:$0xf] %vm1286, %v1278
      %1312 = vst.msk [vmem:[%s257 + $0x64] sm:$0xf] %vm1286, %v1279
      %1313 = vst.msk [vmem:[%s257 + $0x68] sm:$0xf] %vm1286, %v1280
      %1314 = vst.msk [vmem:[%s257 + $0x6c] sm:$0xf] %vm1286, %v1281
      %1315 = vst.msk [vmem:[%s257 + $0x70] sm:$0xf] %vm1286, %v1282
      %1316 = vst.msk [vmem:[%s257 + $0x74] sm:$0xf] %vm1286, %v1283
      %1317 = vst.msk [vmem:[%s257 + $0x78] sm:$0xf] %vm1286, %v1284
      %1318 = vst.msk [vmem:[%s257 + $0x7c] sm:$0xf] %vm1286, %v1285
      %p1319 = scmp.lt.s32.totalorder %s15, 1
      %s1320 = scalar_select %p1319, %s15, 1
      %s1321 = smul.addr %s1320, 32
      %s1322 = smul.addr %s1321, 4
      %s1323 = scalar_lea.vmem %s4, %s1322
      // Predicated region
      $region37: #{mynet_forward.26} parent=35 // pred_check
        %p1324 = pneg %p137
      $region38: #{mynet_forward.26} parent=35 // pred_check_branch
        %1326 = sbr.rel (%p1324) target = $region40
      $region39: #{mynet_forward.26} parent=35 // pred_region
        _
      $region40: #{mynet_forward.26} parent=35 // pred_fallthru
        _
    $region36: #{mynet_forward.26} parent=5 // pred_fallthru
      _
    %p1327 = scmp.le.s32.totalorder 2, %s10
    // Predicated region
    $region41: #{mynet_forward.26} parent=5 // pred_check
      %p1328 = pneg %p1327
    $region42: #{mynet_forward.26} parent=5 // pred_check_branch
      %1330 = sbr.rel (%p1328) target = $region44
    $region43: #{mynet_forward.26} parent=5 // pred_region
      %s1331 = ssub.s32 %s10, 2
      // Predicated region
      $region45: #{mynet_forward.26} parent=43 // pred_check
        %p1332 = pneg %p143
      $region46: #{mynet_forward.26} parent=43 // pred_check_branch
        %1334 = sbr.rel (%p1332) target = $region48
      $region47: #{mynet_forward.26} parent=43 // pred_region
        %p1335 = scmp.lt.s32.totalorder %s16, 1
        %s1336 = scalar_select %p1335, %s16, 1
        %s1337 = smul.addr %s1336, 32
        %s1338 = smul.addr %s1337, 4
        %s1339 = scalar_lea.vmem %s4, %s1338
      $region48: #{mynet_forward.26} parent=43 // pred_fallthru
        _
    $region44: #{mynet_forward.26} parent=5 // pred_fallthru
      _
  $region6: #{mynet_forward.26} parent=0 // loop_footer
    %s14 = sadd.s32 1, %s10
  $region7: #{mynet_forward.26} parent=0 // loop_footer_branch
    %9 = sbr.rel target = $region3
  $region8: #{mynet_forward.26} parent=0 // loop_exit
    _

// kernel: mynet_forward.27
$region0: #{mynet_forward.27}
  #allocation0 [shape = 'u32[]', space=smem, size = 0x4, offset = 0x4, fixed_abs, tag = 'smem constant byte address 0x4 - core index']
  #allocation1 [shape = 'u32[72,128]{1,0:T(1,128)}', space=vmem, size = 0x9000, scoped, tag = 'internal scratch']
  %s0 = inlined_call_operand.vmem [shape: bf16[512,576], index: 0, kind: input, shape index: {}]
  %s1 = inlined_call_operand.vmem [shape: bf16[576,8], index: 1, kind: input, shape index: {}]
  %s2 = inlined_call_operand.vmem [shape: f32[1,8], index: 2, kind: input, shape index: {}]
  %s3 = inlined_call_operand.vmem [shape: f32[512,8], index: 3, kind: output, shape index: {}]
  %s4 = sld [smem:[#allocation0]]
  $region22: #{mynet_forward.27} parent=0
    _
  %s6 = ssub.s32 1, %s4
  %s7 = scalar_select 0, %s6, %s4
  // Predicated region
  $region2: #{mynet_forward.27} parent=0 // pred_check
    _
  $region3: #{mynet_forward.27} parent=0 // pred_check_branch
    %9 = sbr.rel (0) target = $region5
  $region4: #{mynet_forward.27} parent=0 // pred_region
    _
  $region5: #{mynet_forward.27} parent=0 // pred_fallthru
    _
  // Predicated region
  $region6: #{mynet_forward.27} parent=0 // pred_check
    _
  $region7: #{mynet_forward.27} parent=0 // pred_check_branch
    %11 = sbr.rel (0) target = $region9
  $region8: #{mynet_forward.27} parent=0 // pred_region
    _
  $region9: #{mynet_forward.27} parent=0 // pred_fallthru
    _
  // Predicated region
  $region10: #{mynet_forward.27} parent=0 // pred_check
    _
  $region11: #{mynet_forward.27} parent=0 // pred_check_branch
    %13 = sbr.rel (0) target = $region13
  $region12: #{mynet_forward.27} parent=0 // pred_region
    _
  $region13: #{mynet_forward.27} parent=0 // pred_fallthru
    _
  %v15 = vld [vmem:[%s0] sm:$0xff]
  %v16 = vld [vmem:[%s0 + $0x8] sm:$0xff]
  %v17 = vld [vmem:[%s0 + $0x10] sm:$0xf]
  %v18 = vld [vmem:[%s0 + $0x14] sm:$0xff]
  %v19 = vld [vmem:[%s0 + $0x1c] sm:$0xff]
  %v20 = vld [vmem:[%s0 + $0x24] sm:$0xf]
  %v21 = vld [vmem:[%s0 + $0x28] sm:$0xff]
  %v22 = vld [vmem:[%s0 + $0x30] sm:$0xff]
  %v23 = vld [vmem:[%s0 + $0x38] sm:$0xf]
  %v24 = vld [vmem:[%s0 + $0x3c] sm:$0xff]
  %v25 = vld [vmem:[%s0 + $0x44] sm:$0xff]
  %v26 = vld [vmem:[%s0 + $0x4c] sm:$0xf]
  %v27 = vld [vmem:[%s0 + $0x50] sm:$0xff]
  %v28 = vld [vmem:[%s0 + $0x58] sm:$0xff]
  %v29 = vld [vmem:[%s0 + $0x60] sm:$0xf]
  %v30 = vld [vmem:[%s0 + $0x64] sm:$0xff]
  %v31 = vld [vmem:[%s0 + $0x6c] sm:$0xff]
  %v32 = vld [vmem:[%s0 + $0x74] sm:$0xf]
  %v33 = vld [vmem:[%s0 + $0x78] sm:$0xff]
  %v34 = vld [vmem:[%s0 + $0x80] sm:$0xff]
  %v35 = vld [vmem:[%s0 + $0x88] sm:$0xf]
  %v36 = vld [vmem:[%s0 + $0x8c] sm:$0xff]
  %v37 = vld [vmem:[%s0 + $0x94] sm:$0xff]
  %v38 = vld [vmem:[%s0 + $0x9c] sm:$0xf]
  %v39 = vld [vmem:[%s0 + $0xa0] sm:$0xff]
  %v40 = vld [vmem:[%s0 + $0xa8] sm:$0xff]
  %v41 = vld [vmem:[%s0 + $0xb0] sm:$0xf]
  %v42 = vld [vmem:[%s0 + $0xb4] sm:$0xff]
  %v43 = vld [vmem:[%s0 + $0xbc] sm:$0xff]
  %v44 = vld [vmem:[%s0 + $0xc4] sm:$0xf]
  %v45 = vld [vmem:[%s0 + $0xc8] sm:$0xff]
  %v46 = vld [vmem:[%s0 + $0xd0] sm:$0xff]
  %v47 = vld [vmem:[%s0 + $0xd8] sm:$0xf]
  %v48 = vld [vmem:[%s0 + $0xdc] sm:$0xff]
  %v49 = vld [vmem:[%s0 + $0xe4] sm:$0xff]
  %v50 = vld [vmem:[%s0 + $0xec] sm:$0xf]
  %v51 = vld [vmem:[%s0 + $0xf0] sm:$0xff]
  %v52 = vld [vmem:[%s0 + $0xf8] sm:$0xff]
  %v53 = vld [vmem:[%s0 + $0x100] sm:$0xf]
  %v54 = vld [vmem:[%s0 + $0x104] sm:$0xff]
  %v55 = vld [vmem:[%s0 + $0x10c] sm:$0xff]
  %v56 = vld [vmem:[%s0 + $0x114] sm:$0xf]
  %v57 = vld [vmem:[%s0 + $0x118] sm:$0xff]
  %v58 = vld [vmem:[%s0 + $0x120] sm:$0xff]
  %v59 = vld [vmem:[%s0 + $0x128] sm:$0xf]
  %v60 = vld [vmem:[%s0 + $0x12c] sm:$0xff]
  %v61 = vld [vmem:[%s0 + $0x134] sm:$0xff]
  %v62 = vld [vmem:[%s0 + $0x13c] sm:$0xf]
  %v63 = vld [vmem:[%s0 + $0x140] sm:$0xff]
  %v64 = vld [vmem:[%s0 + $0x148] sm:$0xff]
  %v65 = vld [vmem:[%s0 + $0x150] sm:$0xf]
  %v66 = vld [vmem:[%s0 + $0x154] sm:$0xff]
  %v67 = vld [vmem:[%s0 + $0x15c] sm:$0xff]
  %v68 = vld [vmem:[%s0 + $0x164] sm:$0xf]
  %v69 = vld [vmem:[%s0 + $0x168] sm:$0xff]
  %v70 = vld [vmem:[%s0 + $0x170] sm:$0xff]
  %v71 = vld [vmem:[%s0 + $0x178] sm:$0xf]
  %v72 = vld [vmem:[%s0 + $0x17c] sm:$0xff]
  %v73 = vld [vmem:[%s0 + $0x184] sm:$0xff]
  %v74 = vld [vmem:[%s0 + $0x18c] sm:$0xf]
  %v75 = vld [vmem:[%s0 + $0x190] sm:$0xff]
  %v76 = vld [vmem:[%s0 + $0x198] sm:$0xff]
  %v77 = vld [vmem:[%s0 + $0x1a0] sm:$0xf]
  %v78 = vld [vmem:[%s0 + $0x1a4] sm:$0xff]
  %v79 = vld [vmem:[%s0 + $0x1ac] sm:$0xff]
  %v80 = vld [vmem:[%s0 + $0x1b4] sm:$0xf]
  %v81 = vld [vmem:[%s0 + $0x1b8] sm:$0xff]
  %v82 = vld [vmem:[%s0 + $0x1c0] sm:$0xff]
  %v83 = vld [vmem:[%s0 + $0x1c8] sm:$0xf]
  %v84 = vld [vmem:[%s0 + $0x1cc] sm:$0xff]
  %v85 = vld [vmem:[%s0 + $0x1d4] sm:$0xff]
  %v86 = vld [vmem:[%s0 + $0x1dc] sm:$0xf]
  %v87 = vld [vmem:[%s0 + $0x1e0] sm:$0xff]
  %v88 = vld [vmem:[%s0 + $0x1e8] sm:$0xff]
  %v89 = vld [vmem:[%s0 + $0x1f0] sm:$0xf]
  %v90 = vld [vmem:[%s0 + $0x1f4] sm:$0xff]
  %v91 = vld [vmem:[%s0 + $0x1fc] sm:$0xff]
  %v92 = vld [vmem:[%s0 + $0x204] sm:$0xf]
  %v93 = vld [vmem:[%s0 + $0x208] sm:$0xff]
  %v94 = vld [vmem:[%s0 + $0x210] sm:$0xff]
  %v95 = vld [vmem:[%s0 + $0x218] sm:$0xf]
  %v96 = vld [vmem:[%s0 + $0x21c] sm:$0xff]
  %v97 = vld [vmem:[%s0 + $0x224] sm:$0xff]
  %v98 = vld [vmem:[%s0 + $0x22c] sm:$0xf]
  %v99 = vld [vmem:[%s0 + $0x230] sm:$0xff]
  %v100 = vld [vmem:[%s0 + $0x238] sm:$0xff]
  %v101 = vld [vmem:[%s0 + $0x240] sm:$0xf]
  %v102 = vld [vmem:[%s0 + $0x244] sm:$0xff]
  %v103 = vld [vmem:[%s0 + $0x24c] sm:$0xff]
  %v104 = vld [vmem:[%s0 + $0x254] sm:$0xf]
  %v105 = vld [vmem:[%s0 + $0x258] sm:$0xff]
  %v106 = vld [vmem:[%s0 + $0x260] sm:$0xff]
  %v107 = vld [vmem:[%s0 + $0x268] sm:$0xf]
  %v108 = vld [vmem:[%s0 + $0x26c] sm:$0xff]
  %v109 = vld [vmem:[%s0 + $0x274] sm:$0xff]
  %v110 = vld [vmem:[%s0 + $0x27c] sm:$0xf]
  %v111 = vld [vmem:[%s0 + $0x280] sm:$0xff]
  %v112 = vld [vmem:[%s0 + $0x288] sm:$0xff]
  %v113 = vld [vmem:[%s0 + $0x290] sm:$0xf]
  %v114 = vld [vmem:[%s0 + $0x294] sm:$0xff]
  %v115 = vld [vmem:[%s0 + $0x29c] sm:$0xff]
  %v116 = vld [vmem:[%s0 + $0x2a4] sm:$0xf]
  %v117 = vld [vmem:[%s0 + $0x2a8] sm:$0xff]
  %v118 = vld [vmem:[%s0 + $0x2b0] sm:$0xff]
  %v119 = vld [vmem:[%s0 + $0x2b8] sm:$0xf]
  %v120 = vld [vmem:[%s0 + $0x2bc] sm:$0xff]
  %v121 = vld [vmem:[%s0 + $0x2c4] sm:$0xff]
  %v122 = vld [vmem:[%s0 + $0x2cc] sm:$0xf]
  %v123 = vld [vmem:[%s0 + $0x2d0] sm:$0xff]
  %v124 = vld [vmem:[%s0 + $0x2d8] sm:$0xff]
  %v125 = vld [vmem:[%s0 + $0x2e0] sm:$0xf]
  %v126 = vld [vmem:[%s0 + $0x2e4] sm:$0xff]
  %v127 = vld [vmem:[%s0 + $0x2ec] sm:$0xff]
  %v128 = vld [vmem:[%s0 + $0x2f4] sm:$0xf]
  %v129 = vld [vmem:[%s0 + $0x2f8] sm:$0xff]
  %v130 = vld [vmem:[%s0 + $0x300] sm:$0xff]
  %v131 = vld [vmem:[%s0 + $0x308] sm:$0xf]
  %v132 = vld [vmem:[%s0 + $0x30c] sm:$0xff]
  %v133 = vld [vmem:[%s0 + $0x314] sm:$0xff]
  %v134 = vld [vmem:[%s0 + $0x31c] sm:$0xf]
  %v135 = vld [vmem:[%s0 + $0x320] sm:$0xff]
  %v136 = vld [vmem:[%s0 + $0x328] sm:$0xff]
  %v137 = vld [vmem:[%s0 + $0x330] sm:$0xf]
  %v138 = vld [vmem:[%s0 + $0x334] sm:$0xff]
  %v139 = vld [vmem:[%s0 + $0x33c] sm:$0xff]
  %v140 = vld [vmem:[%s0 + $0x344] sm:$0xf]
  %v141 = vld [vmem:[%s0 + $0x348] sm:$0xff]
  %v142 = vld [vmem:[%s0 + $0x350] sm:$0xff]
  %v143 = vld [vmem:[%s0 + $0x358] sm:$0xf]
  %v144 = vld [vmem:[%s0 + $0x35c] sm:$0xff]
  %v145 = vld [vmem:[%s0 + $0x364] sm:$0xff]
  %v146 = vld [vmem:[%s0 + $0x36c] sm:$0xf]
  %v147 = vld [vmem:[%s0 + $0x370] sm:$0xff]
  %v148 = vld [vmem:[%s0 + $0x378] sm:$0xff]
  %v149 = vld [vmem:[%s0 + $0x380] sm:$0xf]
  %v150 = vld [vmem:[%s0 + $0x384] sm:$0xff]
  %v151 = vld [vmem:[%s0 + $0x38c] sm:$0xff]
  %v152 = vld [vmem:[%s0 + $0x394] sm:$0xf]
  %v153 = vld [vmem:[%s0 + $0x398] sm:$0xff]
  %v154 = vld [vmem:[%s0 + $0x3a0] sm:$0xff]
  %v155 = vld [vmem:[%s0 + $0x3a8] sm:$0xf]
  %v156 = vld [vmem:[%s0 + $0x3ac] sm:$0xff]
  %v157 = vld [vmem:[%s0 + $0x3b4] sm:$0xff]
  %v158 = vld [vmem:[%s0 + $0x3bc] sm:$0xf]
  %v159 = vld [vmem:[%s0 + $0x3c0] sm:$0xff]
  %v160 = vld [vmem:[%s0 + $0x3c8] sm:$0xff]
  %v161 = vld [vmem:[%s0 + $0x3d0] sm:$0xf]
  %v162 = vld [vmem:[%s0 + $0x3d4] sm:$0xff]
  %v163 = vld [vmem:[%s0 + $0x3dc] sm:$0xff]
  %v164 = vld [vmem:[%s0 + $0x3e4] sm:$0xf]
  %v165 = vld [vmem:[%s0 + $0x3e8] sm:$0xff]
  %v166 = vld [vmem:[%s0 + $0x3f0] sm:$0xff]
  %v167 = vld [vmem:[%s0 + $0x3f8] sm:$0xf]
  %v168 = vld [vmem:[%s0 + $0x3fc] sm:$0xff]
  %v169 = vld [vmem:[%s0 + $0x404] sm:$0xff]
  %v170 = vld [vmem:[%s0 + $0x40c] sm:$0xf]
  %v171 = vld [vmem:[%s0 + $0x410] sm:$0xff]
  %v172 = vld [vmem:[%s0 + $0x418] sm:$0xff]
  %v173 = vld [vmem:[%s0 + $0x420] sm:$0xf]
  %v174 = vld [vmem:[%s0 + $0x424] sm:$0xff]
  %v175 = vld [vmem:[%s0 + $0x42c] sm:$0xff]
  %v176 = vld [vmem:[%s0 + $0x434] sm:$0xf]
  %v177 = vld [vmem:[%s0 + $0x438] sm:$0xff]
  %v178 = vld [vmem:[%s0 + $0x440] sm:$0xff]
  %v179 = vld [vmem:[%s0 + $0x448] sm:$0xf]
  %v180 = vld [vmem:[%s0 + $0x44c] sm:$0xff]
  %v181 = vld [vmem:[%s0 + $0x454] sm:$0xff]
  %v182 = vld [vmem:[%s0 + $0x45c] sm:$0xf]
  %v183 = vld [vmem:[%s0 + $0x460] sm:$0xff]
  %v184 = vld [vmem:[%s0 + $0x468] sm:$0xff]
  %v185 = vld [vmem:[%s0 + $0x470] sm:$0xf]
  %v186 = vld [vmem:[%s0 + $0x474] sm:$0xff]
  %v187 = vld [vmem:[%s0 + $0x47c] sm:$0xff]
  %v188 = vld [vmem:[%s0 + $0x484] sm:$0xf]
  %v189 = vld [vmem:[%s0 + $0x488] sm:$0xff]
  %v190 = vld [vmem:[%s0 + $0x490] sm:$0xff]
  %v191 = vld [vmem:[%s0 + $0x498] sm:$0xf]
  %v192 = vld [vmem:[%s0 + $0x49c] sm:$0xff]
  %v193 = vld [vmem:[%s0 + $0x4a4] sm:$0xff]
  %v194 = vld [vmem:[%s0 + $0x4ac] sm:$0xf]
  %v195 = vld [vmem:[%s0 + $0x4b0] sm:$0xff]
  %v196 = vld [vmem:[%s0 + $0x4b8] sm:$0xff]
  %v197 = vld [vmem:[%s0 + $0x4c0] sm:$0xf]
  %v198 = vld [vmem:[%s0 + $0x4c4] sm:$0xff]
  %v199 = vld [vmem:[%s0 + $0x4cc] sm:$0xff]
  %v200 = vld [vmem:[%s0 + $0x4d4] sm:$0xf]
  %v201 = vld [vmem:[%s0 + $0x4d8] sm:$0xff]
  %v202 = vld [vmem:[%s0 + $0x4e0] sm:$0xff]
  %v203 = vld [vmem:[%s0 + $0x4e8] sm:$0xf]
  %v204 = vld [vmem:[%s0 + $0x4ec] sm:$0xff]
  %v205 = vld [vmem:[%s0 + $0x4f4] sm:$0xff]
  %v206 = vld [vmem:[%s0 + $0x4fc] sm:$0xf]
  %v207 = vld [vmem:[%s1] sm:$0xf]
  %v208 = vld [vmem:[%s1 + $0x4] sm:$0xf]
  %v209 = vld [vmem:[%s1 + $0x8] sm:$0xf]
  %v210 = vld [vmem:[%s1 + $0xc] sm:$0xf]
  %v211 = vld [vmem:[%s1 + $0x10] sm:$0xf]
  %v212 = vld [vmem:[%s1 + $0x14] sm:$0xf]
  %v213 = vld [vmem:[%s1 + $0x18] sm:$0xf]
  %v214 = vld [vmem:[%s1 + $0x1c] sm:$0xf]
  %v215 = vld [vmem:[%s1 + $0x20] sm:$0xf]
  %v216 = vld [vmem:[%s1 + $0x24] sm:$0xf]
  %v217 = vld [vmem:[%s1 + $0x28] sm:$0xf]
  %v218 = vld [vmem:[%s1 + $0x2c] sm:$0xf]
  %v219 = vld [vmem:[%s1 + $0x30] sm:$0xf]
  %v220 = vld [vmem:[%s1 + $0x34] sm:$0xf]
  %v221 = vld [vmem:[%s1 + $0x38] sm:$0xf]
  %v222 = vld [vmem:[%s1 + $0x3c] sm:$0xf]
  %v223 = vld [vmem:[%s1 + $0x40] sm:$0xf]
  %v224 = vld [vmem:[%s1 + $0x44] sm:$0xf]
  %v225 = vld [vmem:[%s1 + $0x48] sm:$0xf]
  %v226 = vld [vmem:[%s1 + $0x4c] sm:$0xf]
  %v227 = vld [vmem:[%s1 + $0x50] sm:$0xf]
  %v228 = vld [vmem:[%s1 + $0x54] sm:$0xf]
  %v229 = vld [vmem:[%s1 + $0x58] sm:$0xf]
  %v230 = vld [vmem:[%s1 + $0x5c] sm:$0xf]
  %v231 = vld [vmem:[%s1 + $0x60] sm:$0xf]
  %v232 = vld [vmem:[%s1 + $0x64] sm:$0xf]
  %v233 = vld [vmem:[%s1 + $0x68] sm:$0xf]
  %v234 = vld [vmem:[%s1 + $0x6c] sm:$0xf]
  %v235 = vld [vmem:[%s1 + $0x70] sm:$0xf]
  %v236 = vld [vmem:[%s1 + $0x74] sm:$0xf]
  %v237 = vld [vmem:[%s1 + $0x78] sm:$0xf]
  %v238 = vld [vmem:[%s1 + $0x7c] sm:$0xf]
  %v239 = vld [vmem:[%s1 + $0x80] sm:$0xf]
  %v240 = vld [vmem:[%s1 + $0x84] sm:$0xf]
  %v241 = vld [vmem:[%s1 + $0x88] sm:$0xf]
  %v242 = vld [vmem:[%s1 + $0x8c] sm:$0xf]
  %v243 = vld [vmem:[%s1 + $0x90] sm:$0xf]
  %v244 = vld [vmem:[%s1 + $0x94] sm:$0xf]
  %v245 = vld [vmem:[%s1 + $0x98] sm:$0xf]
  %v246 = vld [vmem:[%s1 + $0x9c] sm:$0xf]
  %v247 = vld [vmem:[%s1 + $0xa0] sm:$0xf]
  %v248 = vld [vmem:[%s1 + $0xa4] sm:$0xf]
  %v249 = vld [vmem:[%s1 + $0xa8] sm:$0xf]
  %v250 = vld [vmem:[%s1 + $0xac] sm:$0xf]
  %v251 = vld [vmem:[%s1 + $0xb0] sm:$0xf]
  %v252 = vld [vmem:[%s1 + $0xb4] sm:$0xf]
  %v253 = vld [vmem:[%s1 + $0xb8] sm:$0xf]
  %v254 = vld [vmem:[%s1 + $0xbc] sm:$0xf]
  %v255 = vld [vmem:[%s1 + $0xc0] sm:$0xf]
  %v256 = vld [vmem:[%s1 + $0xc4] sm:$0xf]
  %v257 = vld [vmem:[%s1 + $0xc8] sm:$0xf]
  %v258 = vld [vmem:[%s1 + $0xcc] sm:$0xf]
  %v259 = vld [vmem:[%s1 + $0xd0] sm:$0xf]
  %v260 = vld [vmem:[%s1 + $0xd4] sm:$0xf]
  %v261 = vld [vmem:[%s1 + $0xd8] sm:$0xf]
  %v262 = vld [vmem:[%s1 + $0xdc] sm:$0xf]
  %v263 = vld [vmem:[%s1 + $0xe0] sm:$0xf]
  %v264 = vld [vmem:[%s1 + $0xe4] sm:$0xf]
  %v265 = vld [vmem:[%s1 + $0xe8] sm:$0xf]
  %v266 = vld [vmem:[%s1 + $0xec] sm:$0xf]
  %v267 = vld [vmem:[%s1 + $0xf0] sm:$0xf]
  %v268 = vld [vmem:[%s1 + $0xf4] sm:$0xf]
  %v269 = vld [vmem:[%s1 + $0xf8] sm:$0xf]
  %v270 = vld [vmem:[%s1 + $0xfc] sm:$0xf]
  %v271 = vld [vmem:[%s1 + $0x100] sm:$0xf]
  %v272 = vld [vmem:[%s1 + $0x104] sm:$0xf]
  %v273 = vld [vmem:[%s1 + $0x108] sm:$0xf]
  %v274 = vld [vmem:[%s1 + $0x10c] sm:$0xf]
  %v275 = vld [vmem:[%s1 + $0x110] sm:$0xf]
  %v276 = vld [vmem:[%s1 + $0x114] sm:$0xf]
  %v277 = vld [vmem:[%s1 + $0x118] sm:$0xf]
  %v278 = vld [vmem:[%s1 + $0x11c] sm:$0xf]
  %v279 = vld [vmem:[%s2] sm:$0x1]
  %v281 = vperm.slane %v279, 0
  %v475 = vunpack.c.l.b16 %v15
  %v476 = vunpack.c.h.b16 %v15
  %v477 = vunpack.c.l.b16 %v16
  %v478 = vunpack.c.h.b16 %v16
  %v479 = vunpack.c.l.b16 %v17
  %v480 = vunpack.c.l.b16 %v18
  %v481 = vunpack.c.h.b16 %v18
  %v482 = vunpack.c.l.b16 %v19
  %v483 = vunpack.c.h.b16 %v19
  %v484 = vunpack.c.l.b16 %v20
  %v485 = vunpack.c.l.b16 %v21
  %v486 = vunpack.c.h.b16 %v21
  %v487 = vunpack.c.l.b16 %v22
  %v488 = vunpack.c.h.b16 %v22
  %v489 = vunpack.c.l.b16 %v23
  %v490 = vunpack.c.l.b16 %v24
  %v491 = vunpack.c.h.b16 %v24
  %v492 = vunpack.c.l.b16 %v25
  %v493 = vunpack.c.h.b16 %v25
  %v494 = vunpack.c.l.b16 %v26
  %v495 = vunpack.c.l.b16 %v27
  %v496 = vunpack.c.h.b16 %v27
  %v497 = vunpack.c.l.b16 %v28
  %v498 = vunpack.c.h.b16 %v28
  %v499 = vunpack.c.l.b16 %v29
  %v500 = vunpack.c.l.b16 %v30
  %v501 = vunpack.c.h.b16 %v30
  %v502 = vunpack.c.l.b16 %v31
  %v503 = vunpack.c.h.b16 %v31
  %v504 = vunpack.c.l.b16 %v32
  %v505 = vunpack.c.l.b16 %v33
  %v506 = vunpack.c.h.b16 %v33
  %v507 = vunpack.c.l.b16 %v34
  %v508 = vunpack.c.h.b16 %v34
  %v509 = vunpack.c.l.b16 %v35
  %v510 = vunpack.c.l.b16 %v36
  %v511 = vunpack.c.h.b16 %v36
  %v512 = vunpack.c.l.b16 %v37
  %v513 = vunpack.c.h.b16 %v37
  %v514 = vunpack.c.l.b16 %v38
  %v515 = vunpack.c.l.b16 %v39
  %v516 = vunpack.c.h.b16 %v39
  %v517 = vunpack.c.l.b16 %v40
  %v518 = vunpack.c.h.b16 %v40
  %v519 = vunpack.c.l.b16 %v41
  %v520 = vunpack.c.l.b16 %v42
  %v521 = vunpack.c.h.b16 %v42
  %v522 = vunpack.c.l.b16 %v43
  %v523 = vunpack.c.h.b16 %v43
  %v524 = vunpack.c.l.b16 %v44
  %v525 = vunpack.c.l.b16 %v45
  %v526 = vunpack.c.h.b16 %v45
  %v527 = vunpack.c.l.b16 %v46
  %v528 = vunpack.c.h.b16 %v46
  %v529 = vunpack.c.l.b16 %v47
  %v530 = vunpack.c.l.b16 %v48
  %v531 = vunpack.c.h.b16 %v48
  %v532 = vunpack.c.l.b16 %v49
  %v533 = vunpack.c.h.b16 %v49
  %v534 = vunpack.c.l.b16 %v50
  %v535 = vunpack.c.l.b16 %v51
  %v536 = vunpack.c.h.b16 %v51
  %v537 = vunpack.c.l.b16 %v52
  %v538 = vunpack.c.h.b16 %v52
  %v539 = vunpack.c.l.b16 %v53
  %v540 = vunpack.c.l.b16 %v54
  %v541 = vunpack.c.h.b16 %v54
  %v542 = vunpack.c.l.b16 %v55
  %v543 = vunpack.c.h.b16 %v55
  %v544 = vunpack.c.l.b16 %v56
  %v545 = vunpack.c.l.b16 %v57
  %v546 = vunpack.c.h.b16 %v57
  %v547 = vunpack.c.l.b16 %v58
  %v548 = vunpack.c.h.b16 %v58
  %v549 = vunpack.c.l.b16 %v59
  %v550 = vunpack.c.l.b16 %v60
  %v551 = vunpack.c.h.b16 %v60
  %v552 = vunpack.c.l.b16 %v61
  %v553 = vunpack.c.h.b16 %v61
  %v554 = vunpack.c.l.b16 %v62
  %v555 = vunpack.c.l.b16 %v63
  %v556 = vunpack.c.h.b16 %v63
  %v557 = vunpack.c.l.b16 %v64
  %v558 = vunpack.c.h.b16 %v64
  %v559 = vunpack.c.l.b16 %v65
  %v560 = vunpack.c.l.b16 %v66
  %v561 = vunpack.c.h.b16 %v66
  %v562 = vunpack.c.l.b16 %v67
  %v563 = vunpack.c.h.b16 %v67
  %v564 = vunpack.c.l.b16 %v68
  %v565 = vunpack.c.l.b16 %v69
  %v566 = vunpack.c.h.b16 %v69
  %v567 = vunpack.c.l.b16 %v70
  %v568 = vunpack.c.h.b16 %v70
  %v569 = vunpack.c.l.b16 %v71
  %v570 = vunpack.c.l.b16 %v72
  %v571 = vunpack.c.h.b16 %v72
  %v572 = vunpack.c.l.b16 %v73
  %v573 = vunpack.c.h.b16 %v73
  %v574 = vunpack.c.l.b16 %v74
  %v575 = vunpack.c.l.b16 %v75
  %v576 = vunpack.c.h.b16 %v75
  %v577 = vunpack.c.l.b16 %v76
  %v578 = vunpack.c.h.b16 %v76
  %v579 = vunpack.c.l.b16 %v77
  %v580 = vunpack.c.l.b16 %v78
  %v581 = vunpack.c.h.b16 %v78
  %v582 = vunpack.c.l.b16 %v79
  %v583 = vunpack.c.h.b16 %v79
  %v584 = vunpack.c.l.b16 %v80
  %v585 = vunpack.c.l.b16 %v81
  %v586 = vunpack.c.h.b16 %v81
  %v587 = vunpack.c.l.b16 %v82
  %v588 = vunpack.c.h.b16 %v82
  %v589 = vunpack.c.l.b16 %v83
  %v590 = vunpack.c.l.b16 %v84
  %v591 = vunpack.c.h.b16 %v84
  %v592 = vunpack.c.l.b16 %v85
  %v593 = vunpack.c.h.b16 %v85
  %v594 = vunpack.c.l.b16 %v86
  %v595 = vunpack.c.l.b16 %v87
  %v596 = vunpack.c.h.b16 %v87
  %v597 = vunpack.c.l.b16 %v88
  %v598 = vunpack.c.h.b16 %v88
  %v599 = vunpack.c.l.b16 %v89
  %v600 = vunpack.c.l.b16 %v90
  %v601 = vunpack.c.h.b16 %v90
  %v602 = vunpack.c.l.b16 %v91
  %v603 = vunpack.c.h.b16 %v91
  %v604 = vunpack.c.l.b16 %v92
  %v605 = vunpack.c.l.b16 %v93
  %v606 = vunpack.c.h.b16 %v93
  %v607 = vunpack.c.l.b16 %v94
  %v608 = vunpack.c.h.b16 %v94
  %v609 = vunpack.c.l.b16 %v95
  %v610 = vunpack.c.l.b16 %v96
  %v611 = vunpack.c.h.b16 %v96
  %v612 = vunpack.c.l.b16 %v97
  %v613 = vunpack.c.h.b16 %v97
  %v614 = vunpack.c.l.b16 %v98
  %v615 = vunpack.c.l.b16 %v99
  %v616 = vunpack.c.h.b16 %v99
  %v617 = vunpack.c.l.b16 %v100
  %v618 = vunpack.c.h.b16 %v100
  %v619 = vunpack.c.l.b16 %v101
  %v620 = vunpack.c.l.b16 %v102
  %v621 = vunpack.c.h.b16 %v102
  %v622 = vunpack.c.l.b16 %v103
  %v623 = vunpack.c.h.b16 %v103
  %v624 = vunpack.c.l.b16 %v104
  %v625 = vunpack.c.l.b16 %v105
  %v626 = vunpack.c.h.b16 %v105
  %v627 = vunpack.c.l.b16 %v106
  %v628 = vunpack.c.h.b16 %v106
  %v629 = vunpack.c.l.b16 %v107
  %v630 = vunpack.c.l.b16 %v108
  %v631 = vunpack.c.h.b16 %v108
  %v632 = vunpack.c.l.b16 %v109
  %v633 = vunpack.c.h.b16 %v109
  %v634 = vunpack.c.l.b16 %v110
  %v635 = vunpack.c.l.b16 %v111
  %v636 = vunpack.c.h.b16 %v111
  %v637 = vunpack.c.l.b16 %v112
  %v638 = vunpack.c.h.b16 %v112
  %v639 = vunpack.c.l.b16 %v113
  %v640 = vunpack.c.l.b16 %v114
  %v641 = vunpack.c.h.b16 %v114
  %v642 = vunpack.c.l.b16 %v115
  %v643 = vunpack.c.h.b16 %v115
  %v644 = vunpack.c.l.b16 %v116
  %v645 = vunpack.c.l.b16 %v117
  %v646 = vunpack.c.h.b16 %v117
  %v647 = vunpack.c.l.b16 %v118
  %v648 = vunpack.c.h.b16 %v118
  %v649 = vunpack.c.l.b16 %v119
  %v650 = vunpack.c.l.b16 %v120
  %v651 = vunpack.c.h.b16 %v120
  %v652 = vunpack.c.l.b16 %v121
  %v653 = vunpack.c.h.b16 %v121
  %v654 = vunpack.c.l.b16 %v122
  %v655 = vunpack.c.l.b16 %v123
  %v656 = vunpack.c.h.b16 %v123
  %v657 = vunpack.c.l.b16 %v124
  %v658 = vunpack.c.h.b16 %v124
  %v659 = vunpack.c.l.b16 %v125
  %v660 = vunpack.c.l.b16 %v126
  %v661 = vunpack.c.h.b16 %v126
  %v662 = vunpack.c.l.b16 %v127
  %v663 = vunpack.c.h.b16 %v127
  %v664 = vunpack.c.l.b16 %v128
  %v665 = vunpack.c.l.b16 %v129
  %v666 = vunpack.c.h.b16 %v129
  %v667 = vunpack.c.l.b16 %v130
  %v668 = vunpack.c.h.b16 %v130
  %v669 = vunpack.c.l.b16 %v131
  %v670 = vunpack.c.l.b16 %v132
  %v671 = vunpack.c.h.b16 %v132
  %v672 = vunpack.c.l.b16 %v133
  %v673 = vunpack.c.h.b16 %v133
  %v674 = vunpack.c.l.b16 %v134
  %v675 = vunpack.c.l.b16 %v135
  %v676 = vunpack.c.h.b16 %v135
  %v677 = vunpack.c.l.b16 %v136
  %v678 = vunpack.c.h.b16 %v136
  %v679 = vunpack.c.l.b16 %v137
  %v680 = vunpack.c.l.b16 %v138
  %v681 = vunpack.c.h.b16 %v138
  %v682 = vunpack.c.l.b16 %v139
  %v683 = vunpack.c.h.b16 %v139
  %v684 = vunpack.c.l.b16 %v140
  %v685 = vunpack.c.l.b16 %v141
  %v686 = vunpack.c.h.b16 %v141
  %v687 = vunpack.c.l.b16 %v142
  %v688 = vunpack.c.h.b16 %v142
  %v689 = vunpack.c.l.b16 %v143
  %v690 = vunpack.c.l.b16 %v144
  %v691 = vunpack.c.h.b16 %v144
  %v692 = vunpack.c.l.b16 %v145
  %v693 = vunpack.c.h.b16 %v145
  %v694 = vunpack.c.l.b16 %v146
  %v695 = vunpack.c.l.b16 %v147
  %v696 = vunpack.c.h.b16 %v147
  %v697 = vunpack.c.l.b16 %v148
  %v698 = vunpack.c.h.b16 %v148
  %v699 = vunpack.c.l.b16 %v149
  %v700 = vunpack.c.l.b16 %v150
  %v701 = vunpack.c.h.b16 %v150
  %v702 = vunpack.c.l.b16 %v151
  %v703 = vunpack.c.h.b16 %v151
  %v704 = vunpack.c.l.b16 %v152
  %v705 = vunpack.c.l.b16 %v153
  %v706 = vunpack.c.h.b16 %v153
  %v707 = vunpack.c.l.b16 %v154
  %v708 = vunpack.c.h.b16 %v154
  %v709 = vunpack.c.l.b16 %v155
  %v710 = vunpack.c.l.b16 %v156
  %v711 = vunpack.c.h.b16 %v156
  %v712 = vunpack.c.l.b16 %v157
  %v713 = vunpack.c.h.b16 %v157
  %v714 = vunpack.c.l.b16 %v158
  %v715 = vunpack.c.l.b16 %v159
  %v716 = vunpack.c.h.b16 %v159
  %v717 = vunpack.c.l.b16 %v160
  %v718 = vunpack.c.h.b16 %v160
  %v719 = vunpack.c.l.b16 %v161
  %v720 = vunpack.c.l.b16 %v162
  %v721 = vunpack.c.h.b16 %v162
  %v722 = vunpack.c.l.b16 %v163
  %v723 = vunpack.c.h.b16 %v163
  %v724 = vunpack.c.l.b16 %v164
  %v725 = vunpack.c.l.b16 %v165
  %v726 = vunpack.c.h.b16 %v165
  %v727 = vunpack.c.l.b16 %v166
  %v728 = vunpack.c.h.b16 %v166
  %v729 = vunpack.c.l.b16 %v167
  %v730 = vunpack.c.l.b16 %v168
  %v731 = vunpack.c.h.b16 %v168
  %v732 = vunpack.c.l.b16 %v169
  %v733 = vunpack.c.h.b16 %v169
  %v734 = vunpack.c.l.b16 %v170
  %v735 = vunpack.c.l.b16 %v171
  %v736 = vunpack.c.h.b16 %v171
  %v737 = vunpack.c.l.b16 %v172
  %v738 = vunpack.c.h.b16 %v172
  %v739 = vunpack.c.l.b16 %v173
  %v740 = vunpack.c.l.b16 %v174
  %v741 = vunpack.c.h.b16 %v174
  %v742 = vunpack.c.l.b16 %v175
  %v743 = vunpack.c.h.b16 %v175
  %v744 = vunpack.c.l.b16 %v176
  %v745 = vunpack.c.l.b16 %v177
  %v746 = vunpack.c.h.b16 %v177
  %v747 = vunpack.c.l.b16 %v178
  %v748 = vunpack.c.h.b16 %v178
  %v749 = vunpack.c.l.b16 %v179
  %v750 = vunpack.c.l.b16 %v180
  %v751 = vunpack.c.h.b16 %v180
  %v752 = vunpack.c.l.b16 %v181
  %v753 = vunpack.c.h.b16 %v181
  %v754 = vunpack.c.l.b16 %v182
  %v755 = vunpack.c.l.b16 %v183
  %v756 = vunpack.c.h.b16 %v183
  %v757 = vunpack.c.l.b16 %v184
  %v758 = vunpack.c.h.b16 %v184
  %v759 = vunpack.c.l.b16 %v185
  %v760 = vunpack.c.l.b16 %v186
  %v761 = vunpack.c.h.b16 %v186
  %v762 = vunpack.c.l.b16 %v187
  %v763 = vunpack.c.h.b16 %v187
  %v764 = vunpack.c.l.b16 %v188
  %v765 = vunpack.c.l.b16 %v189
  %v766 = vunpack.c.h.b16 %v189
  %v767 = vunpack.c.l.b16 %v190
  %v768 = vunpack.c.h.b16 %v190
  %v769 = vunpack.c.l.b16 %v191
  %v770 = vunpack.c.l.b16 %v192
  %v771 = vunpack.c.h.b16 %v192
  %v772 = vunpack.c.l.b16 %v193
  %v773 = vunpack.c.h.b16 %v193
  %v774 = vunpack.c.l.b16 %v194
  %v775 = vunpack.c.l.b16 %v195
  %v776 = vunpack.c.h.b16 %v195
  %v777 = vunpack.c.l.b16 %v196
  %v778 = vunpack.c.h.b16 %v196
  %v779 = vunpack.c.l.b16 %v197
  %v780 = vunpack.c.l.b16 %v198
  %v781 = vunpack.c.h.b16 %v198
  %v782 = vunpack.c.l.b16 %v199
  %v783 = vunpack.c.h.b16 %v199
  %v784 = vunpack.c.l.b16 %v200
  %v785 = vunpack.c.l.b16 %v201
  %v786 = vunpack.c.h.b16 %v201
  %v787 = vunpack.c.l.b16 %v202
  %v788 = vunpack.c.h.b16 %v202
  %v789 = vunpack.c.l.b16 %v203
  %v790 = vunpack.c.l.b16 %v204
  %v791 = vunpack.c.h.b16 %v204
  %v792 = vunpack.c.l.b16 %v205
  %v793 = vunpack.c.h.b16 %v205
  %v794 = vunpack.c.l.b16 %v206
  %v795 = vpack.c.b16 %v480, %v475
  %v796 = vpack.c.b16 %v481, %v476
  %v797 = vpack.c.b16 %v482, %v477
  %v798 = vpack.c.b16 %v483, %v478
  %v799 = vpack.c.b16 %v484, %v479
  %v800 = vpack.c.b16 %v490, %v485
  %v801 = vpack.c.b16 %v491, %v486
  %v802 = vpack.c.b16 %v492, %v487
  %v803 = vpack.c.b16 %v493, %v488
  %v804 = vpack.c.b16 %v494, %v489
  %v805 = vpack.c.b16 %v500, %v495
  %v806 = vpack.c.b16 %v501, %v496
  %v807 = vpack.c.b16 %v502, %v497
  %v808 = vpack.c.b16 %v503, %v498
  %v809 = vpack.c.b16 %v504, %v499
  %v810 = vpack.c.b16 %v510, %v505
  %v811 = vpack.c.b16 %v511, %v506
  %v812 = vpack.c.b16 %v512, %v507
  %v813 = vpack.c.b16 %v513, %v508
  %v814 = vpack.c.b16 %v514, %v509
  %v815 = vpack.c.b16 %v520, %v515
  %v816 = vpack.c.b16 %v521, %v516
  %v817 = vpack.c.b16 %v522, %v517
  %v818 = vpack.c.b16 %v523, %v518
  %v819 = vpack.c.b16 %v524, %v519
  %v820 = vpack.c.b16 %v530, %v525
  %v821 = vpack.c.b16 %v531, %v526
  %v822 = vpack.c.b16 %v532, %v527
  %v823 = vpack.c.b16 %v533, %v528
  %v824 = vpack.c.b16 %v534, %v529
  %v825 = vpack.c.b16 %v540, %v535
  %v826 = vpack.c.b16 %v541, %v536
  %v827 = vpack.c.b16 %v542, %v537
  %v828 = vpack.c.b16 %v543, %v538
  %v829 = vpack.c.b16 %v544, %v539
  %v830 = vpack.c.b16 %v550, %v545
  %v831 = vpack.c.b16 %v551, %v546
  %v832 = vpack.c.b16 %v552, %v547
  %v833 = vpack.c.b16 %v553, %v548
  %v834 = vpack.c.b16 %v554, %v549
  %v835 = vpack.c.b16 %v560, %v555
  %v836 = vpack.c.b16 %v561, %v556
  %v837 = vpack.c.b16 %v562, %v557
  %v838 = vpack.c.b16 %v563, %v558
  %v839 = vpack.c.b16 %v564, %v559
  %v840 = vpack.c.b16 %v570, %v565
  %v841 = vpack.c.b16 %v571, %v566
  %v842 = vpack.c.b16 %v572, %v567
  %v843 = vpack.c.b16 %v573, %v568
  %v844 = vpack.c.b16 %v574, %v569
  %v845 = vpack.c.b16 %v580, %v575
  %v846 = vpack.c.b16 %v581, %v576
  %v847 = vpack.c.b16 %v582, %v577
  %v848 = vpack.c.b16 %v583, %v578
  %v849 = vpack.c.b16 %v584, %v579
  %v850 = vpack.c.b16 %v590, %v585
  %v851 = vpack.c.b16 %v591, %v586
  %v852 = vpack.c.b16 %v592, %v587
  %v853 = vpack.c.b16 %v593, %v588
  %v854 = vpack.c.b16 %v594, %v589
  %v855 = vpack.c.b16 %v600, %v595
  %v856 = vpack.c.b16 %v601, %v596
  %v857 = vpack.c.b16 %v602, %v597
  %v858 = vpack.c.b16 %v603, %v598
  %v859 = vpack.c.b16 %v604, %v599
  %v860 = vpack.c.b16 %v610, %v605
  %v861 = vpack.c.b16 %v611, %v606
  %v862 = vpack.c.b16 %v612, %v607
  %v863 = vpack.c.b16 %v613, %v608
  %v864 = vpack.c.b16 %v614, %v609
  %v865 = vpack.c.b16 %v620, %v615
  %v866 = vpack.c.b16 %v621, %v616
  %v867 = vpack.c.b16 %v622, %v617
  %v868 = vpack.c.b16 %v623, %v618
  %v869 = vpack.c.b16 %v624, %v619
  %v870 = vpack.c.b16 %v630, %v625
  %v871 = vpack.c.b16 %v631, %v626
  %v872 = vpack.c.b16 %v632, %v627
  %v873 = vpack.c.b16 %v633, %v628
  %v874 = vpack.c.b16 %v634, %v629
  %v875 = vpack.c.b16 %v640, %v635
  %v876 = vpack.c.b16 %v641, %v636
  %v877 = vpack.c.b16 %v642, %v637
  %v878 = vpack.c.b16 %v643, %v638
  %v879 = vpack.c.b16 %v644, %v639
  %v880 = vpack.c.b16 %v650, %v645
  %v881 = vpack.c.b16 %v651, %v646
  %v882 = vpack.c.b16 %v652, %v647
  %v883 = vpack.c.b16 %v653, %v648
  %v884 = vpack.c.b16 %v654, %v649
  %v885 = vpack.c.b16 %v660, %v655
  %v886 = vpack.c.b16 %v661, %v656
  %v887 = vpack.c.b16 %v662, %v657
  %v888 = vpack.c.b16 %v663, %v658
  %v889 = vpack.c.b16 %v664, %v659
  %v890 = vpack.c.b16 %v670, %v665
  %v891 = vpack.c.b16 %v671, %v666
  %v892 = vpack.c.b16 %v672, %v667
  %v893 = vpack.c.b16 %v673, %v668
  %v894 = vpack.c.b16 %v674, %v669
  %v895 = vpack.c.b16 %v680, %v675
  %v896 = vpack.c.b16 %v681, %v676
  %v897 = vpack.c.b16 %v682, %v677
  %v898 = vpack.c.b16 %v683, %v678
  %v899 = vpack.c.b16 %v684, %v679
  %v900 = vpack.c.b16 %v690, %v685
  %v901 = vpack.c.b16 %v691, %v686
  %v902 = vpack.c.b16 %v692, %v687
  %v903 = vpack.c.b16 %v693, %v688
  %v904 = vpack.c.b16 %v694, %v689
  %v905 = vpack.c.b16 %v700, %v695
  %v906 = vpack.c.b16 %v701, %v696
  %v907 = vpack.c.b16 %v702, %v697
  %v908 = vpack.c.b16 %v703, %v698
  %v909 = vpack.c.b16 %v704, %v699
  %v910 = vpack.c.b16 %v710, %v705
  %v911 = vpack.c.b16 %v711, %v706
  %v912 = vpack.c.b16 %v712, %v707
  %v913 = vpack.c.b16 %v713, %v708
  %v914 = vpack.c.b16 %v714, %v709
  %v915 = vpack.c.b16 %v720, %v715
  %v916 = vpack.c.b16 %v721, %v716
  %v917 = vpack.c.b16 %v722, %v717
  %v918 = vpack.c.b16 %v723, %v718
  %v919 = vpack.c.b16 %v724, %v719
  %v920 = vpack.c.b16 %v730, %v725
  %v921 = vpack.c.b16 %v731, %v726
  %v922 = vpack.c.b16 %v732, %v727
  %v923 = vpack.c.b16 %v733, %v728
  %v924 = vpack.c.b16 %v734, %v729
  %v925 = vpack.c.b16 %v740, %v735
  %v926 = vpack.c.b16 %v741, %v736
  %v927 = vpack.c.b16 %v742, %v737
  %v928 = vpack.c.b16 %v743, %v738
  %v929 = vpack.c.b16 %v744, %v739
  %v930 = vpack.c.b16 %v750, %v745
  %v931 = vpack.c.b16 %v751, %v746
  %v932 = vpack.c.b16 %v752, %v747
  %v933 = vpack.c.b16 %v753, %v748
  %v934 = vpack.c.b16 %v754, %v749
  %v935 = vpack.c.b16 %v760, %v755
  %v936 = vpack.c.b16 %v761, %v756
  %v937 = vpack.c.b16 %v762, %v757
  %v938 = vpack.c.b16 %v763, %v758
  %v939 = vpack.c.b16 %v764, %v759
  %v940 = vpack.c.b16 %v770, %v765
  %v941 = vpack.c.b16 %v771, %v766
  %v942 = vpack.c.b16 %v772, %v767
  %v943 = vpack.c.b16 %v773, %v768
  %v944 = vpack.c.b16 %v774, %v769
  %v945 = vpack.c.b16 %v780, %v775
  %v946 = vpack.c.b16 %v781, %v776
  %v947 = vpack.c.b16 %v782, %v777
  %v948 = vpack.c.b16 %v783, %v778
  %v949 = vpack.c.b16 %v784, %v779
  %v950 = vpack.c.b16 %v790, %v785
  %v951 = vpack.c.b16 %v791, %v786
  %v952 = vpack.c.b16 %v792, %v787
  %v953 = vpack.c.b16 %v793, %v788
  %v954 = vpack.c.b16 %v794, %v789
  %v1155 = vunpack.c.l.b16 %v207
  %v1156 = vunpack.c.l.b16 %v208
  %v1157 = vunpack.c.l.b16 %v209
  %v1158 = vunpack.c.l.b16 %v210
  %v1159 = vunpack.c.l.b16 %v211
  %v1160 = vunpack.c.l.b16 %v212
  %v1161 = vunpack.c.l.b16 %v213
  %v1162 = vunpack.c.l.b16 %v214
  %v1163 = vunpack.c.l.b16 %v215
  %v1164 = vunpack.c.l.b16 %v216
  %v1165 = vunpack.c.l.b16 %v217
  %v1166 = vunpack.c.l.b16 %v218
  %v1167 = vunpack.c.l.b16 %v219
  %v1168 = vunpack.c.l.b16 %v220
  %v1169 = vunpack.c.l.b16 %v221
  %v1170 = vunpack.c.l.b16 %v222
  %v1171 = vunpack.c.l.b16 %v223
  %v1172 = vunpack.c.l.b16 %v224
  %v1173 = vunpack.c.l.b16 %v225
  %v1174 = vunpack.c.l.b16 %v226
  %v1175 = vunpack.c.l.b16 %v227
  %v1176 = vunpack.c.l.b16 %v228
  %v1177 = vunpack.c.l.b16 %v229
  %v1178 = vunpack.c.l.b16 %v230
  %v1179 = vunpack.c.l.b16 %v231
  %v1180 = vunpack.c.l.b16 %v232
  %v1181 = vunpack.c.l.b16 %v233
  %v1182 = vunpack.c.l.b16 %v234
  %v1183 = vunpack.c.l.b16 %v235
  %v1184 = vunpack.c.l.b16 %v236
  %v1185 = vunpack.c.l.b16 %v237
  %v1186 = vunpack.c.l.b16 %v238
  %v1187 = vunpack.c.l.b16 %v239
  %v1188 = vunpack.c.l.b16 %v240
  %v1189 = vunpack.c.l.b16 %v241
  %v1190 = vunpack.c.l.b16 %v242
  %v1191 = vunpack.c.l.b16 %v243
  %v1192 = vunpack.c.l.b16 %v244
  %v1193 = vunpack.c.l.b16 %v245
  %v1194 = vunpack.c.l.b16 %v246
  %v1195 = vunpack.c.l.b16 %v247
  %v1196 = vunpack.c.l.b16 %v248
  %v1197 = vunpack.c.l.b16 %v249
  %v1198 = vunpack.c.l.b16 %v250
  %v1199 = vunpack.c.l.b16 %v251
  %v1200 = vunpack.c.l.b16 %v252
  %v1201 = vunpack.c.l.b16 %v253
  %v1202 = vunpack.c.l.b16 %v254
  %v1203 = vunpack.c.l.b16 %v255
  %v1204 = vunpack.c.l.b16 %v256
  %v1205 = vunpack.c.l.b16 %v257
  %v1206 = vunpack.c.l.b16 %v258
  %v1207 = vunpack.c.l.b16 %v259
  %v1208 = vunpack.c.l.b16 %v260
  %v1209 = vunpack.c.l.b16 %v261
  %v1210 = vunpack.c.l.b16 %v262
  %v1211 = vunpack.c.l.b16 %v263
  %v1212 = vunpack.c.l.b16 %v264
  %v1213 = vunpack.c.l.b16 %v265
  %v1214 = vunpack.c.l.b16 %v266
  %v1215 = vunpack.c.l.b16 %v267
  %v1216 = vunpack.c.l.b16 %v268
  %v1217 = vunpack.c.l.b16 %v269
  %v1218 = vunpack.c.l.b16 %v270
  %v1219 = vunpack.c.l.b16 %v271
  %v1220 = vunpack.c.l.b16 %v272
  %v1221 = vunpack.c.l.b16 %v273
  %v1222 = vunpack.c.l.b16 %v274
  %v1223 = vunpack.c.l.b16 %v275
  %v1224 = vunpack.c.l.b16 %v276
  %v1225 = vunpack.c.l.b16 %v277
  %v1226 = vunpack.c.l.b16 %v278
  %v1227 = vpack.c.b16 %v1156, %v1155
  %v1228 = vpack.c.b16 %v1158, %v1157
  %v1229 = vpack.c.b16 %v1160, %v1159
  %v1230 = vpack.c.b16 %v1162, %v1161
  %v1231 = vpack.c.b16 %v1164, %v1163
  %v1232 = vpack.c.b16 %v1166, %v1165
  %v1233 = vpack.c.b16 %v1168, %v1167
  %v1234 = vpack.c.b16 %v1170, %v1169
  %v1235 = vpack.c.b16 %v1172, %v1171
  %v1236 = vpack.c.b16 %v1174, %v1173
  %v1237 = vpack.c.b16 %v1176, %v1175
  %v1238 = vpack.c.b16 %v1178, %v1177
  %v1239 = vpack.c.b16 %v1180, %v1179
  %v1240 = vpack.c.b16 %v1182, %v1181
  %v1241 = vpack.c.b16 %v1184, %v1183
  %v1242 = vpack.c.b16 %v1186, %v1185
  %v1243 = vpack.c.b16 %v1188, %v1187
  %v1244 = vpack.c.b16 %v1190, %v1189
  %v1245 = vpack.c.b16 %v1192, %v1191
  %v1246 = vpack.c.b16 %v1194, %v1193
  %v1247 = vpack.c.b16 %v1196, %v1195
  %v1248 = vpack.c.b16 %v1198, %v1197
  %v1249 = vpack.c.b16 %v1200, %v1199
  %v1250 = vpack.c.b16 %v1202, %v1201
  %v1251 = vpack.c.b16 %v1204, %v1203
  %v1252 = vpack.c.b16 %v1206, %v1205
  %v1253 = vpack.c.b16 %v1208, %v1207
  %v1254 = vpack.c.b16 %v1210, %v1209
  %v1255 = vpack.c.b16 %v1212, %v1211
  %v1256 = vpack.c.b16 %v1214, %v1213
  %v1257 = vpack.c.b16 %v1216, %v1215
  %v1258 = vpack.c.b16 %v1218, %v1217
  %v1259 = vpack.c.b16 %v1220, %v1219
  %v1260 = vpack.c.b16 %v1222, %v1221
  %v1261 = vpack.c.b16 %v1224, %v1223
  %v1262 = vpack.c.b16 %v1226, %v1225
  %vm1299 = vcmask 523264
  %v1301 = vsel %vm1299, %v799, 0
  %v1304 = vsel %vm1299, %v804, 0
  %v1307 = vsel %vm1299, %v809, 0
  %v1310 = vsel %vm1299, %v814, 0
  %v1313 = vsel %vm1299, %v819, 0
  %v1316 = vsel %vm1299, %v824, 0
  %v1319 = vsel %vm1299, %v829, 0
  %v1322 = vsel %vm1299, %v834, 0
  %v1325 = vsel %vm1299, %v839, 0
  %v1328 = vsel %vm1299, %v844, 0
  %v1331 = vsel %vm1299, %v849, 0
  %v1334 = vsel %vm1299, %v854, 0
  %v1337 = vsel %vm1299, %v859, 0
  %v1340 = vsel %vm1299, %v864, 0
  %v1343 = vsel %vm1299, %v869, 0
  %v1346 = vsel %vm1299, %v874, 0
  %v1349 = vsel %vm1299, %v879, 0
  %v1352 = vsel %vm1299, %v884, 0
  %v1355 = vsel %vm1299, %v889, 0
  %v1358 = vsel %vm1299, %v894, 0
  %v1361 = vsel %vm1299, %v899, 0
  %v1364 = vsel %vm1299, %v904, 0
  %v1367 = vsel %vm1299, %v909, 0
  %v1370 = vsel %vm1299, %v914, 0
  %v1373 = vsel %vm1299, %v919, 0
  %v1376 = vsel %vm1299, %v924, 0
  %v1379 = vsel %vm1299, %v929, 0
  %v1382 = vsel %vm1299, %v934, 0
  %v1385 = vsel %vm1299, %v939, 0
  %v1388 = vsel %vm1299, %v944, 0
  %v1391 = vsel %vm1299, %v949, 0
  %v1394 = vsel %vm1299, %v954, 0
  %1396 = vmatpush.bf16.msra.mxu0 %v1234
  %1397 = vmatpush.bf16.msra.mxu0 %v1233
  %1398 = vmatpush.bf16.msra.mxu0 %v1232
  %1399 = vmatpush.bf16.msra.mxu0 %v1231
  %1400 = vmatpush.bf16.msra.mxu0 %v1230
  %1401 = vmatpush.bf16.msra.mxu0 %v1229
  %1402 = vmatpush.bf16.msra.mxu0 %v1228
  %1403 = vmatpush.bf16.msra.mxu0 %v1227
  %1404 = vmatmul.bf16.gmra.mxu0 %v795
  %v1405 = vpop.f32.mrf.mxu0
  %v1406 = vadd.f32 %v281, %v1405
  %v1407 = vpop.f32.mrf.mxu0
  %v1408 = vadd.f32 %v281, %v1407
  %1409 = vmatmul.bf16.gmra.mxu0 %v800
  %v1410 = vpop.f32.mrf.mxu0
  %v1411 = vadd.f32 %v281, %v1410
  %v1412 = vpop.f32.mrf.mxu0
  %v1413 = vadd.f32 %v281, %v1412
  %1414 = vmatmul.bf16.gmra.mxu0 %v805
  %v1415 = vpop.f32.mrf.mxu0
  %v1416 = vadd.f32 %v281, %v1415
  %v1417 = vpop.f32.mrf.mxu0
  %v1418 = vadd.f32 %v281, %v1417
  %1419 = vmatmul.bf16.gmra.mxu0 %v810
  %v1420 = vpop.f32.mrf.mxu0
  %v1421 = vadd.f32 %v281, %v1420
  %v1422 = vpop.f32.mrf.mxu0
  %v1423 = vadd.f32 %v281, %v1422
  %1424 = vmatmul.bf16.gmra.mxu0 %v815
  %v1425 = vpop.f32.mrf.mxu0
  %v1426 = vadd.f32 %v281, %v1425
  %v1427 = vpop.f32.mrf.mxu0
  %v1428 = vadd.f32 %v281, %v1427
  %1429 = vmatmul.bf16.gmra.mxu0 %v820
  %v1430 = vpop.f32.mrf.mxu0
  %v1431 = vadd.f32 %v281, %v1430
  %v1432 = vpop.f32.mrf.mxu0
  %v1433 = vadd.f32 %v281, %v1432
  %1434 = vmatmul.bf16.gmra.mxu0 %v825
  %v1435 = vpop.f32.mrf.mxu0
  %v1436 = vadd.f32 %v281, %v1435
  %v1437 = vpop.f32.mrf.mxu0
  %v1438 = vadd.f32 %v281, %v1437
  %1439 = vmatmul.bf16.gmra.mxu0 %v830
  %v1440 = vpop.f32.mrf.mxu0
  %v1441 = vadd.f32 %v281, %v1440
  %v1442 = vpop.f32.mrf.mxu0
  %v1443 = vadd.f32 %v281, %v1442
  %1444 = vmatmul.bf16.gmra.mxu0 %v835
  %v1445 = vpop.f32.mrf.mxu0
  %v1446 = vadd.f32 %v281, %v1445
  %v1447 = vpop.f32.mrf.mxu0
  %v1448 = vadd.f32 %v281, %v1447
  %1449 = vmatmul.bf16.gmra.mxu0 %v840
  %v1450 = vpop.f32.mrf.mxu0
  %v1451 = vadd.f32 %v281, %v1450
  %v1452 = vpop.f32.mrf.mxu0
  %v1453 = vadd.f32 %v281, %v1452
  %1454 = vmatmul.bf16.gmra.mxu0 %v845
  %v1455 = vpop.f32.mrf.mxu0
  %v1456 = vadd.f32 %v281, %v1455
  %v1457 = vpop.f32.mrf.mxu0
  %v1458 = vadd.f32 %v281, %v1457
  %1459 = vmatmul.bf16.gmra.mxu0 %v850
  %v1460 = vpop.f32.mrf.mxu0
  %v1461 = vadd.f32 %v281, %v1460
  %v1462 = vpop.f32.mrf.mxu0
  %v1463 = vadd.f32 %v281, %v1462
  %1464 = vmatmul.bf16.gmra.mxu0 %v855
  %v1465 = vpop.f32.mrf.mxu0
  %v1466 = vadd.f32 %v281, %v1465
  %v1467 = vpop.f32.mrf.mxu0
  %v1468 = vadd.f32 %v281, %v1467
  %1469 = vmatmul.bf16.gmra.mxu0 %v860
  %v1470 = vpop.f32.mrf.mxu0
  %v1471 = vadd.f32 %v281, %v1470
  %v1472 = vpop.f32.mrf.mxu0
  %v1473 = vadd.f32 %v281, %v1472
  %1474 = vmatmul.bf16.gmra.mxu0 %v865
  %v1475 = vpop.f32.mrf.mxu0
  %v1476 = vadd.f32 %v281, %v1475
  %v1477 = vpop.f32.mrf.mxu0
  %v1478 = vadd.f32 %v281, %v1477
  %1479 = vmatmul.bf16.gmra.mxu0 %v870
  %v1480 = vpop.f32.mrf.mxu0
  %v1481 = vadd.f32 %v281, %v1480
  %v1482 = vpop.f32.mrf.mxu0
  %v1483 = vadd.f32 %v281, %v1482
  %1484 = vmatmul.bf16.gmra.mxu0 %v875
  %v1485 = vpop.f32.mrf.mxu0
  %v1486 = vadd.f32 %v281, %v1485
  %v1487 = vpop.f32.mrf.mxu0
  %v1488 = vadd.f32 %v281, %v1487
  %1489 = vmatmul.bf16.gmra.mxu0 %v880
  %v1490 = vpop.f32.mrf.mxu0
  %v1491 = vadd.f32 %v281, %v1490
  %v1492 = vpop.f32.mrf.mxu0
  %v1493 = vadd.f32 %v281, %v1492
  %1494 = vmatmul.bf16.gmra.mxu0 %v885
  %v1495 = vpop.f32.mrf.mxu0
  %v1496 = vadd.f32 %v281, %v1495
  %v1497 = vpop.f32.mrf.mxu0
  %v1498 = vadd.f32 %v281, %v1497
  %1499 = vmatmul.bf16.gmra.mxu0 %v890
  %v1500 = vpop.f32.mrf.mxu0
  %v1501 = vadd.f32 %v281, %v1500
  %v1502 = vpop.f32.mrf.mxu0
  %v1503 = vadd.f32 %v281, %v1502
  %1504 = vmatmul.bf16.gmra.mxu0 %v895
  %v1505 = vpop.f32.mrf.mxu0
  %v1506 = vadd.f32 %v281, %v1505
  %v1507 = vpop.f32.mrf.mxu0
  %v1508 = vadd.f32 %v281, %v1507
  %1509 = vmatmul.bf16.gmra.mxu0 %v900
  %v1510 = vpop.f32.mrf.mxu0
  %v1511 = vadd.f32 %v281, %v1510
  %v1512 = vpop.f32.mrf.mxu0
  %v1513 = vadd.f32 %v281, %v1512
  %1514 = vmatmul.bf16.gmra.mxu0 %v905
  %v1515 = vpop.f32.mrf.mxu0
  %v1516 = vadd.f32 %v281, %v1515
  %v1517 = vpop.f32.mrf.mxu0
  %v1518 = vadd.f32 %v281, %v1517
  %1519 = vmatmul.bf16.gmra.mxu0 %v910
  %v1520 = vpop.f32.mrf.mxu0
  %v1521 = vadd.f32 %v281, %v1520
  %v1522 = vpop.f32.mrf.mxu0
  %v1523 = vadd.f32 %v281, %v1522
  %1524 = vmatmul.bf16.gmra.mxu0 %v915
  %v1525 = vpop.f32.mrf.mxu0
  %v1526 = vadd.f32 %v281, %v1525
  %v1527 = vpop.f32.mrf.mxu0
  %v1528 = vadd.f32 %v281, %v1527
  %1529 = vmatmul.bf16.gmra.mxu0 %v920
  %v1530 = vpop.f32.mrf.mxu0
  %v1531 = vadd.f32 %v281, %v1530
  %v1532 = vpop.f32.mrf.mxu0
  %v1533 = vadd.f32 %v281, %v1532
  %1534 = vmatmul.bf16.gmra.mxu0 %v925
  %v1535 = vpop.f32.mrf.mxu0
  %v1536 = vadd.f32 %v281, %v1535
  %v1537 = vpop.f32.mrf.mxu0
  %v1538 = vadd.f32 %v281, %v1537
  %1539 = vmatmul.bf16.gmra.mxu0 %v930
  %v1540 = vpop.f32.mrf.mxu0
  %v1541 = vadd.f32 %v281, %v1540
  %v1542 = vpop.f32.mrf.mxu0
  %v1543 = vadd.f32 %v281, %v1542
  %1544 = vmatmul.bf16.gmra.mxu0 %v935
  %v1545 = vpop.f32.mrf.mxu0
  %v1546 = vadd.f32 %v281, %v1545
  %v1547 = vpop.f32.mrf.mxu0
  %v1548 = vadd.f32 %v281, %v1547
  %1549 = vmatmul.bf16.gmra.mxu0 %v940
  %v1550 = vpop.f32.mrf.mxu0
  %v1551 = vadd.f32 %v281, %v1550
  %v1552 = vpop.f32.mrf.mxu0
  %v1553 = vadd.f32 %v281, %v1552
  %1554 = vmatmul.bf16.gmra.mxu0 %v945
  %v1555 = vpop.f32.mrf.mxu0
  %v1556 = vadd.f32 %v281, %v1555
  %v1557 = vpop.f32.mrf.mxu0
  %v1558 = vadd.f32 %v281, %v1557
  %1559 = vmatmul.bf16.gmra.mxu0 %v950
  %v1560 = vpop.f32.mrf.mxu0
  %v1561 = vadd.f32 %v281, %v1560
  %v1562 = vpop.f32.mrf.mxu0
  %v1563 = vadd.f32 %v281, %v1562
  %1564 = vdwg.mxu0
  %1565 = vmatpush.bf16.msra.mxu0 %v1242
  %1566 = vmatpush.bf16.msra.mxu0 %v1241
  %1567 = vmatpush.bf16.msra.mxu0 %v1240
  %1568 = vmatpush.bf16.msra.mxu0 %v1239
  %1569 = vmatpush.bf16.msra.mxu0 %v1238
  %1570 = vmatpush.bf16.msra.mxu0 %v1237
  %1571 = vmatpush.bf16.msra.mxu0 %v1236
  %1572 = vmatpush.bf16.msra.mxu0 %v1235
  %1573 = vmatmul.bf16.gmra.mxu0 %v796
  %v1574 = vpop.f32.mrf.mxu0
  %v1575 = vadd.f32 %v1406, %v1574
  %v1576 = vpop.f32.mrf.mxu0
  %v1577 = vadd.f32 %v1408, %v1576
  %1578 = vmatmul.bf16.gmra.mxu0 %v801
  %v1579 = vpop.f32.mrf.mxu0
  %v1580 = vadd.f32 %v1411, %v1579
  %v1581 = vpop.f32.mrf.mxu0
  %v1582 = vadd.f32 %v1413, %v1581
  %1583 = vmatmul.bf16.gmra.mxu0 %v806
  %v1584 = vpop.f32.mrf.mxu0
  %v1585 = vadd.f32 %v1416, %v1584
  %v1586 = vpop.f32.mrf.mxu0
  %v1587 = vadd.f32 %v1418, %v1586
  %1588 = vmatmul.bf16.gmra.mxu0 %v811
  %v1589 = vpop.f32.mrf.mxu0
  %v1590 = vadd.f32 %v1421, %v1589
  %v1591 = vpop.f32.mrf.mxu0
  %v1592 = vadd.f32 %v1423, %v1591
  %1593 = vmatmul.bf16.gmra.mxu0 %v816
  %v1594 = vpop.f32.mrf.mxu0
  %v1595 = vadd.f32 %v1426, %v1594
  %v1596 = vpop.f32.mrf.mxu0
  %v1597 = vadd.f32 %v1428, %v1596
  %1598 = vmatmul.bf16.gmra.mxu0 %v821
  %v1599 = vpop.f32.mrf.mxu0
  %v1600 = vadd.f32 %v1431, %v1599
  %v1601 = vpop.f32.mrf.mxu0
  %v1602 = vadd.f32 %v1433, %v1601
  %1603 = vmatmul.bf16.gmra.mxu0 %v826
  %v1604 = vpop.f32.mrf.mxu0
  %v1605 = vadd.f32 %v1436, %v1604
  %v1606 = vpop.f32.mrf.mxu0
  %v1607 = vadd.f32 %v1438, %v1606
  %1608 = vmatmul.bf16.gmra.mxu0 %v831
  %v1609 = vpop.f32.mrf.mxu0
  %v1610 = vadd.f32 %v1441, %v1609
  %v1611 = vpop.f32.mrf.mxu0
  %v1612 = vadd.f32 %v1443, %v1611
  %1613 = vmatmul.bf16.gmra.mxu0 %v836
  %v1614 = vpop.f32.mrf.mxu0
  %v1615 = vadd.f32 %v1446, %v1614
  %v1616 = vpop.f32.mrf.mxu0
  %v1617 = vadd.f32 %v1448, %v1616
  %1618 = vmatmul.bf16.gmra.mxu0 %v841
  %v1619 = vpop.f32.mrf.mxu0
  %v1620 = vadd.f32 %v1451, %v1619
  %v1621 = vpop.f32.mrf.mxu0
  %v1622 = vadd.f32 %v1453, %v1621
  %1623 = vmatmul.bf16.gmra.mxu0 %v846
  %v1624 = vpop.f32.mrf.mxu0
  %v1625 = vadd.f32 %v1456, %v1624
  %v1626 = vpop.f32.mrf.mxu0
  %v1627 = vadd.f32 %v1458, %v1626
  %1628 = vmatmul.bf16.gmra.mxu0 %v851
  %v1629 = vpop.f32.mrf.mxu0
  %v1630 = vadd.f32 %v1461, %v1629
  %v1631 = vpop.f32.mrf.mxu0
  %v1632 = vadd.f32 %v1463, %v1631
  %1633 = vmatmul.bf16.gmra.mxu0 %v856
  %v1634 = vpop.f32.mrf.mxu0
  %v1635 = vadd.f32 %v1466, %v1634
  %v1636 = vpop.f32.mrf.mxu0
  %v1637 = vadd.f32 %v1468, %v1636
  %1638 = vmatmul.bf16.gmra.mxu0 %v861
  %v1639 = vpop.f32.mrf.mxu0
  %v1640 = vadd.f32 %v1471, %v1639
  %v1641 = vpop.f32.mrf.mxu0
  %v1642 = vadd.f32 %v1473, %v1641
  %1643 = vmatmul.bf16.gmra.mxu0 %v866
  %v1644 = vpop.f32.mrf.mxu0
  %v1645 = vadd.f32 %v1476, %v1644
  %v1646 = vpop.f32.mrf.mxu0
  %v1647 = vadd.f32 %v1478, %v1646
  %1648 = vmatmul.bf16.gmra.mxu0 %v871
  %v1649 = vpop.f32.mrf.mxu0
  %v1650 = vadd.f32 %v1481, %v1649
  %v1651 = vpop.f32.mrf.mxu0
  %v1652 = vadd.f32 %v1483, %v1651
  %1653 = vmatmul.bf16.gmra.mxu0 %v876
  %v1654 = vpop.f32.mrf.mxu0
  %v1655 = vadd.f32 %v1486, %v1654
  %v1656 = vpop.f32.mrf.mxu0
  %v1657 = vadd.f32 %v1488, %v1656
  %1658 = vmatmul.bf16.gmra.mxu0 %v881
  %v1659 = vpop.f32.mrf.mxu0
  %v1660 = vadd.f32 %v1491, %v1659
  %v1661 = vpop.f32.mrf.mxu0
  %v1662 = vadd.f32 %v1493, %v1661
  %1663 = vmatmul.bf16.gmra.mxu0 %v886
  %v1664 = vpop.f32.mrf.mxu0
  %v1665 = vadd.f32 %v1496, %v1664
  %v1666 = vpop.f32.mrf.mxu0
  %v1667 = vadd.f32 %v1498, %v1666
  %1668 = vmatmul.bf16.gmra.mxu0 %v891
  %v1669 = vpop.f32.mrf.mxu0
  %v1670 = vadd.f32 %v1501, %v1669
  %v1671 = vpop.f32.mrf.mxu0
  %v1672 = vadd.f32 %v1503, %v1671
  %1673 = vmatmul.bf16.gmra.mxu0 %v896
  %v1674 = vpop.f32.mrf.mxu0
  %v1675 = vadd.f32 %v1506, %v1674
  %v1676 = vpop.f32.mrf.mxu0
  %v1677 = vadd.f32 %v1508, %v1676
  %1678 = vmatmul.bf16.gmra.mxu0 %v901
  %v1679 = vpop.f32.mrf.mxu0
  %v1680 = vadd.f32 %v1511, %v1679
  %v1681 = vpop.f32.mrf.mxu0
  %v1682 = vadd.f32 %v1513, %v1681
  %1683 = vmatmul.bf16.gmra.mxu0 %v906
  %v1684 = vpop.f32.mrf.mxu0
  %v1685 = vadd.f32 %v1516, %v1684
  %v1686 = vpop.f32.mrf.mxu0
  %v1687 = vadd.f32 %v1518, %v1686
  %1688 = vmatmul.bf16.gmra.mxu0 %v911
  %v1689 = vpop.f32.mrf.mxu0
  %v1690 = vadd.f32 %v1521, %v1689
  %v1691 = vpop.f32.mrf.mxu0
  %v1692 = vadd.f32 %v1523, %v1691
  %1693 = vmatmul.bf16.gmra.mxu0 %v916
  %v1694 = vpop.f32.mrf.mxu0
  %v1695 = vadd.f32 %v1526, %v1694
  %v1696 = vpop.f32.mrf.mxu0
  %v1697 = vadd.f32 %v1528, %v1696
  %1698 = vmatmul.bf16.gmra.mxu0 %v921
  %v1699 = vpop.f32.mrf.mxu0
  %v1700 = vadd.f32 %v1531, %v1699
  %v1701 = vpop.f32.mrf.mxu0
  %v1702 = vadd.f32 %v1533, %v1701
  %1703 = vmatmul.bf16.gmra.mxu0 %v926
  %v1704 = vpop.f32.mrf.mxu0
  %v1705 = vadd.f32 %v1536, %v1704
  %v1706 = vpop.f32.mrf.mxu0
  %v1707 = vadd.f32 %v1538, %v1706
  %1708 = vmatmul.bf16.gmra.mxu0 %v931
  %v1709 = vpop.f32.mrf.mxu0
  %v1710 = vadd.f32 %v1541, %v1709
  %v1711 = vpop.f32.mrf.mxu0
  %v1712 = vadd.f32 %v1543, %v1711
  %1713 = vmatmul.bf16.gmra.mxu0 %v936
  %v1714 = vpop.f32.mrf.mxu0
  %v1715 = vadd.f32 %v1546, %v1714
  %v1716 = vpop.f32.mrf.mxu0
  %v1717 = vadd.f32 %v1548, %v1716
  %1718 = vmatmul.bf16.gmra.mxu0 %v941
  %v1719 = vpop.f32.mrf.mxu0
  %v1720 = vadd.f32 %v1551, %v1719
  %v1721 = vpop.f32.mrf.mxu0
  %v1722 = vadd.f32 %v1553, %v1721
  %1723 = vmatmul.bf16.gmra.mxu0 %v946
  %v1724 = vpop.f32.mrf.mxu0
  %v1725 = vadd.f32 %v1556, %v1724
  %v1726 = vpop.f32.mrf.mxu0
  %v1727 = vadd.f32 %v1558, %v1726
  %1728 = vmatmul.bf16.gmra.mxu0 %v951
  %v1729 = vpop.f32.mrf.mxu0
  %v1730 = vadd.f32 %v1561, %v1729
  %v1731 = vpop.f32.mrf.mxu0
  %v1732 = vadd.f32 %v1563, %v1731
  %1733 = vdwg.mxu0
  %1734 = vmatpush.bf16.msra.mxu0 %v1250
  %1735 = vmatpush.bf16.msra.mxu0 %v1249
  %1736 = vmatpush.bf16.msra.mxu0 %v1248
  %1737 = vmatpush.bf16.msra.mxu0 %v1247
  %1738 = vmatpush.bf16.msra.mxu0 %v1246
  %1739 = vmatpush.bf16.msra.mxu0 %v1245
  %1740 = vmatpush.bf16.msra.mxu0 %v1244
  %1741 = vmatpush.bf16.msra.mxu0 %v1243
  %1742 = vmatmul.bf16.gmra.mxu0 %v797
  %v1743 = vpop.f32.mrf.mxu0
  %v1744 = vadd.f32 %v1575, %v1743
  %v1745 = vpop.f32.mrf.mxu0
  %v1746 = vadd.f32 %v1577, %v1745
  %1747 = vmatmul.bf16.gmra.mxu0 %v802
  %v1748 = vpop.f32.mrf.mxu0
  %v1749 = vadd.f32 %v1580, %v1748
  %v1750 = vpop.f32.mrf.mxu0
  %v1751 = vadd.f32 %v1582, %v1750
  %1752 = vmatmul.bf16.gmra.mxu0 %v807
  %v1753 = vpop.f32.mrf.mxu0
  %v1754 = vadd.f32 %v1585, %v1753
  %v1755 = vpop.f32.mrf.mxu0
  %v1756 = vadd.f32 %v1587, %v1755
  %1757 = vmatmul.bf16.gmra.mxu0 %v812
  %v1758 = vpop.f32.mrf.mxu0
  %v1759 = vadd.f32 %v1590, %v1758
  %v1760 = vpop.f32.mrf.mxu0
  %v1761 = vadd.f32 %v1592, %v1760
  %1762 = vmatmul.bf16.gmra.mxu0 %v817
  %v1763 = vpop.f32.mrf.mxu0
  %v1764 = vadd.f32 %v1595, %v1763
  %v1765 = vpop.f32.mrf.mxu0
  %v1766 = vadd.f32 %v1597, %v1765
  %1767 = vmatmul.bf16.gmra.mxu0 %v822
  %v1768 = vpop.f32.mrf.mxu0
  %v1769 = vadd.f32 %v1600, %v1768
  %v1770 = vpop.f32.mrf.mxu0
  %v1771 = vadd.f32 %v1602, %v1770
  %1772 = vmatmul.bf16.gmra.mxu0 %v827
  %v1773 = vpop.f32.mrf.mxu0
  %v1774 = vadd.f32 %v1605, %v1773
  %v1775 = vpop.f32.mrf.mxu0
  %v1776 = vadd.f32 %v1607, %v1775
  %1777 = vmatmul.bf16.gmra.mxu0 %v832
  %v1778 = vpop.f32.mrf.mxu0
  %v1779 = vadd.f32 %v1610, %v1778
  %v1780 = vpop.f32.mrf.mxu0
  %v1781 = vadd.f32 %v1612, %v1780
  %1782 = vmatmul.bf16.gmra.mxu0 %v837
  %v1783 = vpop.f32.mrf.mxu0
  %v1784 = vadd.f32 %v1615, %v1783
  %v1785 = vpop.f32.mrf.mxu0
  %v1786 = vadd.f32 %v1617, %v1785
  %1787 = vmatmul.bf16.gmra.mxu0 %v842
  %v1788 = vpop.f32.mrf.mxu0
  %v1789 = vadd.f32 %v1620, %v1788
  %v1790 = vpop.f32.mrf.mxu0
  %v1791 = vadd.f32 %v1622, %v1790
  %1792 = vmatmul.bf16.gmra.mxu0 %v847
  %v1793 = vpop.f32.mrf.mxu0
  %v1794 = vadd.f32 %v1625, %v1793
  %v1795 = vpop.f32.mrf.mxu0
  %v1796 = vadd.f32 %v1627, %v1795
  %1797 = vmatmul.bf16.gmra.mxu0 %v852
  %v1798 = vpop.f32.mrf.mxu0
  %v1799 = vadd.f32 %v1630, %v1798
  %v1800 = vpop.f32.mrf.mxu0
  %v1801 = vadd.f32 %v1632, %v1800
  %1802 = vmatmul.bf16.gmra.mxu0 %v857
  %v1803 = vpop.f32.mrf.mxu0
  %v1804 = vadd.f32 %v1635, %v1803
  %v1805 = vpop.f32.mrf.mxu0
  %v1806 = vadd.f32 %v1637, %v1805
  %1807 = vmatmul.bf16.gmra.mxu0 %v862
  %v1808 = vpop.f32.mrf.mxu0
  %v1809 = vadd.f32 %v1640, %v1808
  %v1810 = vpop.f32.mrf.mxu0
  %v1811 = vadd.f32 %v1642, %v1810
  %1812 = vmatmul.bf16.gmra.mxu0 %v867
  %v1813 = vpop.f32.mrf.mxu0
  %v1814 = vadd.f32 %v1645, %v1813
  %v1815 = vpop.f32.mrf.mxu0
  %v1816 = vadd.f32 %v1647, %v1815
  %1817 = vmatmul.bf16.gmra.mxu0 %v872
  %v1818 = vpop.f32.mrf.mxu0
  %v1819 = vadd.f32 %v1650, %v1818
  %v1820 = vpop.f32.mrf.mxu0
  %v1821 = vadd.f32 %v1652, %v1820
  %1822 = vmatmul.bf16.gmra.mxu0 %v877
  %v1823 = vpop.f32.mrf.mxu0
  %v1824 = vadd.f32 %v1655, %v1823
  %v1825 = vpop.f32.mrf.mxu0
  %v1826 = vadd.f32 %v1657, %v1825
  %1827 = vmatmul.bf16.gmra.mxu0 %v882
  %v1828 = vpop.f32.mrf.mxu0
  %v1829 = vadd.f32 %v1660, %v1828
  %v1830 = vpop.f32.mrf.mxu0
  %v1831 = vadd.f32 %v1662, %v1830
  %1832 = vmatmul.bf16.gmra.mxu0 %v887
  %v1833 = vpop.f32.mrf.mxu0
  %v1834 = vadd.f32 %v1665, %v1833
  %v1835 = vpop.f32.mrf.mxu0
  %v1836 = vadd.f32 %v1667, %v1835
  %1837 = vmatmul.bf16.gmra.mxu0 %v892
  %v1838 = vpop.f32.mrf.mxu0
  %v1839 = vadd.f32 %v1670, %v1838
  %v1840 = vpop.f32.mrf.mxu0
  %v1841 = vadd.f32 %v1672, %v1840
  %1842 = vmatmul.bf16.gmra.mxu0 %v897
  %v1843 = vpop.f32.mrf.mxu0
  %v1844 = vadd.f32 %v1675, %v1843
  %v1845 = vpop.f32.mrf.mxu0
  %v1846 = vadd.f32 %v1677, %v1845
  %1847 = vmatmul.bf16.gmra.mxu0 %v902
  %v1848 = vpop.f32.mrf.mxu0
  %v1849 = vadd.f32 %v1680, %v1848
  %v1850 = vpop.f32.mrf.mxu0
  %v1851 = vadd.f32 %v1682, %v1850
  %1852 = vmatmul.bf16.gmra.mxu0 %v907
  %v1853 = vpop.f32.mrf.mxu0
  %v1854 = vadd.f32 %v1685, %v1853
  %v1855 = vpop.f32.mrf.mxu0
  %v1856 = vadd.f32 %v1687, %v1855
  %1857 = vmatmul.bf16.gmra.mxu0 %v912
  %v1858 = vpop.f32.mrf.mxu0
  %v1859 = vadd.f32 %v1690, %v1858
  %v1860 = vpop.f32.mrf.mxu0
  %v1861 = vadd.f32 %v1692, %v1860
  %1862 = vmatmul.bf16.gmra.mxu0 %v917
  %v1863 = vpop.f32.mrf.mxu0
  %v1864 = vadd.f32 %v1695, %v1863
  %v1865 = vpop.f32.mrf.mxu0
  %v1866 = vadd.f32 %v1697, %v1865
  %1867 = vmatmul.bf16.gmra.mxu0 %v922
  %v1868 = vpop.f32.mrf.mxu0
  %v1869 = vadd.f32 %v1700, %v1868
  %v1870 = vpop.f32.mrf.mxu0
  %v1871 = vadd.f32 %v1702, %v1870
  %1872 = vmatmul.bf16.gmra.mxu0 %v927
  %v1873 = vpop.f32.mrf.mxu0
  %v1874 = vadd.f32 %v1705, %v1873
  %v1875 = vpop.f32.mrf.mxu0
  %v1876 = vadd.f32 %v1707, %v1875
  %1877 = vmatmul.bf16.gmra.mxu0 %v932
  %v1878 = vpop.f32.mrf.mxu0
  %v1879 = vadd.f32 %v1710, %v1878
  %v1880 = vpop.f32.mrf.mxu0
  %v1881 = vadd.f32 %v1712, %v1880
  %1882 = vmatmul.bf16.gmra.mxu0 %v937
  %v1883 = vpop.f32.mrf.mxu0
  %v1884 = vadd.f32 %v1715, %v1883
  %v1885 = vpop.f32.mrf.mxu0
  %v1886 = vadd.f32 %v1717, %v1885
  %1887 = vmatmul.bf16.gmra.mxu0 %v942
  %v1888 = vpop.f32.mrf.mxu0
  %v1889 = vadd.f32 %v1720, %v1888
  %v1890 = vpop.f32.mrf.mxu0
  %v1891 = vadd.f32 %v1722, %v1890
  %1892 = vmatmul.bf16.gmra.mxu0 %v947
  %v1893 = vpop.f32.mrf.mxu0
  %v1894 = vadd.f32 %v1725, %v1893
  %v1895 = vpop.f32.mrf.mxu0
  %v1896 = vadd.f32 %v1727, %v1895
  %1897 = vmatmul.bf16.gmra.mxu0 %v952
  %v1898 = vpop.f32.mrf.mxu0
  %v1899 = vadd.f32 %v1730, %v1898
  %v1900 = vpop.f32.mrf.mxu0
  %v1901 = vadd.f32 %v1732, %v1900
  %1902 = vdwg.mxu0
  %1903 = vmatpush.bf16.msra.mxu0 %v1258
  %1904 = vmatpush.bf16.msra.mxu0 %v1257
  %1905 = vmatpush.bf16.msra.mxu0 %v1256
  %1906 = vmatpush.bf16.msra.mxu0 %v1255
  %1907 = vmatpush.bf16.msra.mxu0 %v1254
  %1908 = vmatpush.bf16.msra.mxu0 %v1253
  %1909 = vmatpush.bf16.msra.mxu0 %v1252
  %1910 = vmatpush.bf16.msra.mxu0 %v1251
  %1911 = vmatmul.bf16.gmra.mxu0 %v798
  %v1912 = vpop.f32.mrf.mxu0
  %v1913 = vadd.f32 %v1744, %v1912
  %v1914 = vpop.f32.mrf.mxu0
  %v1915 = vadd.f32 %v1746, %v1914
  %1916 = vmatmul.bf16.gmra.mxu0 %v803
  %v1917 = vpop.f32.mrf.mxu0
  %v1918 = vadd.f32 %v1749, %v1917
  %v1919 = vpop.f32.mrf.mxu0
  %v1920 = vadd.f32 %v1751, %v1919
  %1921 = vmatmul.bf16.gmra.mxu0 %v808
  %v1922 = vpop.f32.mrf.mxu0
  %v1923 = vadd.f32 %v1754, %v1922
  %v1924 = vpop.f32.mrf.mxu0
  %v1925 = vadd.f32 %v1756, %v1924
  %1926 = vmatmul.bf16.gmra.mxu0 %v813
  %v1927 = vpop.f32.mrf.mxu0
  %v1928 = vadd.f32 %v1759, %v1927
  %v1929 = vpop.f32.mrf.mxu0
  %v1930 = vadd.f32 %v1761, %v1929
  %1931 = vmatmul.bf16.gmra.mxu0 %v818
  %v1932 = vpop.f32.mrf.mxu0
  %v1933 = vadd.f32 %v1764, %v1932
  %v1934 = vpop.f32.mrf.mxu0
  %v1935 = vadd.f32 %v1766, %v1934
  %1936 = vmatmul.bf16.gmra.mxu0 %v823
  %v1937 = vpop.f32.mrf.mxu0
  %v1938 = vadd.f32 %v1769, %v1937
  %v1939 = vpop.f32.mrf.mxu0
  %v1940 = vadd.f32 %v1771, %v1939
  %1941 = vmatmul.bf16.gmra.mxu0 %v828
  %v1942 = vpop.f32.mrf.mxu0
  %v1943 = vadd.f32 %v1774, %v1942
  %v1944 = vpop.f32.mrf.mxu0
  %v1945 = vadd.f32 %v1776, %v1944
  %1946 = vmatmul.bf16.gmra.mxu0 %v833
  %v1947 = vpop.f32.mrf.mxu0
  %v1948 = vadd.f32 %v1779, %v1947
  %v1949 = vpop.f32.mrf.mxu0
  %v1950 = vadd.f32 %v1781, %v1949
  %1951 = vmatmul.bf16.gmra.mxu0 %v838
  %v1952 = vpop.f32.mrf.mxu0
  %v1953 = vadd.f32 %v1784, %v1952
  %v1954 = vpop.f32.mrf.mxu0
  %v1955 = vadd.f32 %v1786, %v1954
  %1956 = vmatmul.bf16.gmra.mxu0 %v843
  %v1957 = vpop.f32.mrf.mxu0
  %v1958 = vadd.f32 %v1789, %v1957
  %v1959 = vpop.f32.mrf.mxu0
  %v1960 = vadd.f32 %v1791, %v1959
  %1961 = vmatmul.bf16.gmra.mxu0 %v848
  %v1962 = vpop.f32.mrf.mxu0
  %v1963 = vadd.f32 %v1794, %v1962
  %v1964 = vpop.f32.mrf.mxu0
  %v1965 = vadd.f32 %v1796, %v1964
  %1966 = vmatmul.bf16.gmra.mxu0 %v853
  %v1967 = vpop.f32.mrf.mxu0
  %v1968 = vadd.f32 %v1799, %v1967
  %v1969 = vpop.f32.mrf.mxu0
  %v1970 = vadd.f32 %v1801, %v1969
  %1971 = vmatmul.bf16.gmra.mxu0 %v858
  %v1972 = vpop.f32.mrf.mxu0
  %v1973 = vadd.f32 %v1804, %v1972
  %v1974 = vpop.f32.mrf.mxu0
  %v1975 = vadd.f32 %v1806, %v1974
  %1976 = vmatmul.bf16.gmra.mxu0 %v863
  %v1977 = vpop.f32.mrf.mxu0
  %v1978 = vadd.f32 %v1809, %v1977
  %v1979 = vpop.f32.mrf.mxu0
  %v1980 = vadd.f32 %v1811, %v1979
  %1981 = vmatmul.bf16.gmra.mxu0 %v868
  %v1982 = vpop.f32.mrf.mxu0
  %v1983 = vadd.f32 %v1814, %v1982
  %v1984 = vpop.f32.mrf.mxu0
  %v1985 = vadd.f32 %v1816, %v1984
  %1986 = vmatmul.bf16.gmra.mxu0 %v873
  %v1987 = vpop.f32.mrf.mxu0
  %v1988 = vadd.f32 %v1819, %v1987
  %v1989 = vpop.f32.mrf.mxu0
  %v1990 = vadd.f32 %v1821, %v1989
  %1991 = vmatmul.bf16.gmra.mxu0 %v878
  %v1992 = vpop.f32.mrf.mxu0
  %v1993 = vadd.f32 %v1824, %v1992
  %v1994 = vpop.f32.mrf.mxu0
  %v1995 = vadd.f32 %v1826, %v1994
  %1996 = vmatmul.bf16.gmra.mxu0 %v883
  %v1997 = vpop.f32.mrf.mxu0
  %v1998 = vadd.f32 %v1829, %v1997
  %v1999 = vpop.f32.mrf.mxu0
  %v2000 = vadd.f32 %v1831, %v1999
  %2001 = vmatmul.bf16.gmra.mxu0 %v888
  %v2002 = vpop.f32.mrf.mxu0
  %v2003 = vadd.f32 %v1834, %v2002
  %v2004 = vpop.f32.mrf.mxu0
  %v2005 = vadd.f32 %v1836, %v2004
  %2006 = vmatmul.bf16.gmra.mxu0 %v893
  %v2007 = vpop.f32.mrf.mxu0
  %v2008 = vadd.f32 %v1839, %v2007
  %v2009 = vpop.f32.mrf.mxu0
  %v2010 = vadd.f32 %v1841, %v2009
  %2011 = vmatmul.bf16.gmra.mxu0 %v898
  %v2012 = vpop.f32.mrf.mxu0
  %v2013 = vadd.f32 %v1844, %v2012
  %v2014 = vpop.f32.mrf.mxu0
  %v2015 = vadd.f32 %v1846, %v2014
  %2016 = vmatmul.bf16.gmra.mxu0 %v903
  %v2017 = vpop.f32.mrf.mxu0
  %v2018 = vadd.f32 %v1849, %v2017
  %v2019 = vpop.f32.mrf.mxu0
  %v2020 = vadd.f32 %v1851, %v2019
  %2021 = vmatmul.bf16.gmra.mxu0 %v908
  %v2022 = vpop.f32.mrf.mxu0
  %v2023 = vadd.f32 %v1854, %v2022
  %v2024 = vpop.f32.mrf.mxu0
  %v2025 = vadd.f32 %v1856, %v2024
  %2026 = vmatmul.bf16.gmra.mxu0 %v913
  %v2027 = vpop.f32.mrf.mxu0
  %v2028 = vadd.f32 %v1859, %v2027
  %v2029 = vpop.f32.mrf.mxu0
  %v2030 = vadd.f32 %v1861, %v2029
  %2031 = vmatmul.bf16.gmra.mxu0 %v918
  %v2032 = vpop.f32.mrf.mxu0
  %v2033 = vadd.f32 %v1864, %v2032
  %v2034 = vpop.f32.mrf.mxu0
  %v2035 = vadd.f32 %v1866, %v2034
  %2036 = vmatmul.bf16.gmra.mxu0 %v923
  %v2037 = vpop.f32.mrf.mxu0
  %v2038 = vadd.f32 %v1869, %v2037
  %v2039 = vpop.f32.mrf.mxu0
  %v2040 = vadd.f32 %v1871, %v2039
  %2041 = vmatmul.bf16.gmra.mxu0 %v928
  %v2042 = vpop.f32.mrf.mxu0
  %v2043 = vadd.f32 %v1874, %v2042
  %v2044 = vpop.f32.mrf.mxu0
  %v2045 = vadd.f32 %v1876, %v2044
  %2046 = vmatmul.bf16.gmra.mxu0 %v933
  %v2047 = vpop.f32.mrf.mxu0
  %v2048 = vadd.f32 %v1879, %v2047
  %v2049 = vpop.f32.mrf.mxu0
  %v2050 = vadd.f32 %v1881, %v2049
  %2051 = vmatmul.bf16.gmra.mxu0 %v938
  %v2052 = vpop.f32.mrf.mxu0
  %v2053 = vadd.f32 %v1884, %v2052
  %v2054 = vpop.f32.mrf.mxu0
  %v2055 = vadd.f32 %v1886, %v2054
  %2056 = vmatmul.bf16.gmra.mxu0 %v943
  %v2057 = vpop.f32.mrf.mxu0
  %v2058 = vadd.f32 %v1889, %v2057
  %v2059 = vpop.f32.mrf.mxu0
  %v2060 = vadd.f32 %v1891, %v2059
  %2061 = vmatmul.bf16.gmra.mxu0 %v948
  %v2062 = vpop.f32.mrf.mxu0
  %v2063 = vadd.f32 %v1894, %v2062
  %v2064 = vpop.f32.mrf.mxu0
  %v2065 = vadd.f32 %v1896, %v2064
  %2066 = vmatmul.bf16.gmra.mxu0 %v953
  %v2067 = vpop.f32.mrf.mxu0
  %v2068 = vadd.f32 %v1899, %v2067
  %v2069 = vpop.f32.mrf.mxu0
  %v2070 = vadd.f32 %v1901, %v2069
  %2071 = vdwg.mxu0
  %2072 = vmatpush.bf16.msra.mxu0 0
  %2073 = vmatpush.bf16.msra.mxu0 0
  %2074 = vmatpush.bf16.msra.mxu0 0
  %2075 = vmatpush.bf16.msra.mxu0 0
  %2076 = vmatpush.bf16.msra.mxu0 %v1262
  %2077 = vmatpush.bf16.msra.mxu0 %v1261
  %2078 = vmatpush.bf16.msra.mxu0 %v1260
  %2079 = vmatpush.bf16.msra.mxu0 %v1259
  %2080 = vmatmul.bf16.gmra.mxu0 %v1301
  %v2081 = vpop.f32.mrf.mxu0
  %v2082 = vadd.f32 %v1913, %v2081
  %v2083 = vpop.f32.mrf.mxu0
  %v2084 = vadd.f32 %v1915, %v2083
  %2085 = vmatmul.bf16.gmra.mxu0 %v1304
  %v2086 = vpop.f32.mrf.mxu0
  %v2087 = vadd.f32 %v1918, %v2086
  %v2088 = vpop.f32.mrf.mxu0
  %v2089 = vadd.f32 %v1920, %v2088
  %2090 = vmatmul.bf16.gmra.mxu0 %v1307
  %v2091 = vpop.f32.mrf.mxu0
  %v2092 = vadd.f32 %v1923, %v2091
  %v2093 = vpop.f32.mrf.mxu0
  %v2094 = vadd.f32 %v1925, %v2093
  %2095 = vmatmul.bf16.gmra.mxu0 %v1310
  %v2096 = vpop.f32.mrf.mxu0
  %v2097 = vadd.f32 %v1928, %v2096
  %v2098 = vpop.f32.mrf.mxu0
  %v2099 = vadd.f32 %v1930, %v2098
  %2100 = vmatmul.bf16.gmra.mxu0 %v1313
  %v2101 = vpop.f32.mrf.mxu0
  %v2102 = vadd.f32 %v1933, %v2101
  %v2103 = vpop.f32.mrf.mxu0
  %v2104 = vadd.f32 %v1935, %v2103
  %2105 = vmatmul.bf16.gmra.mxu0 %v1316
  %v2106 = vpop.f32.mrf.mxu0
  %v2107 = vadd.f32 %v1938, %v2106
  %v2108 = vpop.f32.mrf.mxu0
  %v2109 = vadd.f32 %v1940, %v2108
  %2110 = vmatmul.bf16.gmra.mxu0 %v1319
  %v2111 = vpop.f32.mrf.mxu0
  %v2112 = vadd.f32 %v1943, %v2111
  %v2113 = vpop.f32.mrf.mxu0
  %v2114 = vadd.f32 %v1945, %v2113
  %2115 = vmatmul.bf16.gmra.mxu0 %v1322
  %v2116 = vpop.f32.mrf.mxu0
  %v2117 = vadd.f32 %v1948, %v2116
  %v2118 = vpop.f32.mrf.mxu0
  %v2119 = vadd.f32 %v1950, %v2118
  %2120 = vmatmul.bf16.gmra.mxu0 %v1325
  %v2121 = vpop.f32.mrf.mxu0
  %v2122 = vadd.f32 %v1953, %v2121
  %v2123 = vpop.f32.mrf.mxu0
  %v2124 = vadd.f32 %v1955, %v2123
  %2125 = vmatmul.bf16.gmra.mxu0 %v1328
  %v2126 = vpop.f32.mrf.mxu0
  %v2127 = vadd.f32 %v1958, %v2126
  %v2128 = vpop.f32.mrf.mxu0
  %v2129 = vadd.f32 %v1960, %v2128
  %2130 = vmatmul.bf16.gmra.mxu0 %v1331
  %v2131 = vpop.f32.mrf.mxu0
  %v2132 = vadd.f32 %v1963, %v2131
  %v2133 = vpop.f32.mrf.mxu0
  %v2134 = vadd.f32 %v1965, %v2133
  %2135 = vmatmul.bf16.gmra.mxu0 %v1334
  %v2136 = vpop.f32.mrf.mxu0
  %v2137 = vadd.f32 %v1968, %v2136
  %v2138 = vpop.f32.mrf.mxu0
  %v2139 = vadd.f32 %v1970, %v2138
  %2140 = vmatmul.bf16.gmra.mxu0 %v1337
  %v2141 = vpop.f32.mrf.mxu0
  %v2142 = vadd.f32 %v1973, %v2141
  %v2143 = vpop.f32.mrf.mxu0
  %v2144 = vadd.f32 %v1975, %v2143
  %2145 = vmatmul.bf16.gmra.mxu0 %v1340
  %v2146 = vpop.f32.mrf.mxu0
  %v2147 = vadd.f32 %v1978, %v2146
  %v2148 = vpop.f32.mrf.mxu0
  %v2149 = vadd.f32 %v1980, %v2148
  %2150 = vmatmul.bf16.gmra.mxu0 %v1343
  %v2151 = vpop.f32.mrf.mxu0
  %v2152 = vadd.f32 %v1983, %v2151
  %v2153 = vpop.f32.mrf.mxu0
  %v2154 = vadd.f32 %v1985, %v2153
  %2155 = vmatmul.bf16.gmra.mxu0 %v1346
  %v2156 = vpop.f32.mrf.mxu0
  %v2157 = vadd.f32 %v1988, %v2156
  %v2158 = vpop.f32.mrf.mxu0
  %v2159 = vadd.f32 %v1990, %v2158
  %2160 = vmatmul.bf16.gmra.mxu0 %v1349
  %v2161 = vpop.f32.mrf.mxu0
  %v2162 = vadd.f32 %v1993, %v2161
  %v2163 = vpop.f32.mrf.mxu0
  %v2164 = vadd.f32 %v1995, %v2163
  %2165 = vmatmul.bf16.gmra.mxu0 %v1352
  %v2166 = vpop.f32.mrf.mxu0
  %v2167 = vadd.f32 %v1998, %v2166
  %v2168 = vpop.f32.mrf.mxu0
  %v2169 = vadd.f32 %v2000, %v2168
  %2170 = vmatmul.bf16.gmra.mxu0 %v1355
  %v2171 = vpop.f32.mrf.mxu0
  %v2172 = vadd.f32 %v2003, %v2171
  %v2173 = vpop.f32.mrf.mxu0
  %v2174 = vadd.f32 %v2005, %v2173
  %2175 = vmatmul.bf16.gmra.mxu0 %v1358
  %v2176 = vpop.f32.mrf.mxu0
  %v2177 = vadd.f32 %v2008, %v2176
  %v2178 = vpop.f32.mrf.mxu0
  %v2179 = vadd.f32 %v2010, %v2178
  %2180 = vmatmul.bf16.gmra.mxu0 %v1361
  %v2181 = vpop.f32.mrf.mxu0
  %v2182 = vadd.f32 %v2013, %v2181
  %v2183 = vpop.f32.mrf.mxu0
  %v2184 = vadd.f32 %v2015, %v2183
  %2185 = vmatmul.bf16.gmra.mxu0 %v1364
  %v2186 = vpop.f32.mrf.mxu0
  %v2187 = vadd.f32 %v2018, %v2186
  %v2188 = vpop.f32.mrf.mxu0
  %v2189 = vadd.f32 %v2020, %v2188
  %2190 = vmatmul.bf16.gmra.mxu0 %v1367
  %v2191 = vpop.f32.mrf.mxu0
  %v2192 = vadd.f32 %v2023, %v2191
  %v2193 = vpop.f32.mrf.mxu0
  %v2194 = vadd.f32 %v2025, %v2193
  %2195 = vmatmul.bf16.gmra.mxu0 %v1370
  %v2196 = vpop.f32.mrf.mxu0
  %v2197 = vadd.f32 %v2028, %v2196
  %v2198 = vpop.f32.mrf.mxu0
  %v2199 = vadd.f32 %v2030, %v2198
  %2200 = vmatmul.bf16.gmra.mxu0 %v1373
  %v2201 = vpop.f32.mrf.mxu0
  %v2202 = vadd.f32 %v2033, %v2201
  %v2203 = vpop.f32.mrf.mxu0
  %v2204 = vadd.f32 %v2035, %v2203
  %2205 = vmatmul.bf16.gmra.mxu0 %v1376
  %v2206 = vpop.f32.mrf.mxu0
  %v2207 = vadd.f32 %v2038, %v2206
  %v2208 = vpop.f32.mrf.mxu0
  %v2209 = vadd.f32 %v2040, %v2208
  %2210 = vmatmul.bf16.gmra.mxu0 %v1379
  %v2211 = vpop.f32.mrf.mxu0
  %v2212 = vadd.f32 %v2043, %v2211
  %v2213 = vpop.f32.mrf.mxu0
  %v2214 = vadd.f32 %v2045, %v2213
  %2215 = vmatmul.bf16.gmra.mxu0 %v1382
  %v2216 = vpop.f32.mrf.mxu0
  %v2217 = vadd.f32 %v2048, %v2216
  %v2218 = vpop.f32.mrf.mxu0
  %v2219 = vadd.f32 %v2050, %v2218
  %2220 = vmatmul.bf16.gmra.mxu0 %v1385
  %v2221 = vpop.f32.mrf.mxu0
  %v2222 = vadd.f32 %v2053, %v2221
  %v2223 = vpop.f32.mrf.mxu0
  %v2224 = vadd.f32 %v2055, %v2223
  %2225 = vmatmul.bf16.gmra.mxu0 %v1388
  %v2226 = vpop.f32.mrf.mxu0
  %v2227 = vadd.f32 %v2058, %v2226
  %v2228 = vpop.f32.mrf.mxu0
  %v2229 = vadd.f32 %v2060, %v2228
  %2230 = vmatmul.bf16.gmra.mxu0 %v1391
  %v2231 = vpop.f32.mrf.mxu0
  %v2232 = vadd.f32 %v2063, %v2231
  %v2233 = vpop.f32.mrf.mxu0
  %v2234 = vadd.f32 %v2065, %v2233
  %2235 = vmatmul.bf16.gmra.mxu0 %v1394
  %v2236 = vpop.f32.mrf.mxu0
  %v2237 = vadd.f32 %v2068, %v2236
  %v2238 = vpop.f32.mrf.mxu0
  %v2239 = vadd.f32 %v2070, %v2238
  %2240 = vdwg.mxu0
  %vm2241 = vcmask 64512
  %2242 = vst.msk [vmem:[%s3] sm:$0xff] %vm2241, %v2082
  %2243 = vst.msk [vmem:[%s3 + $0x8] sm:$0xff] %vm2241, %v2084
  %2244 = vst.msk [vmem:[%s3 + $0x10] sm:$0xff] %vm2241, %v2087
  %2245 = vst.msk [vmem:[%s3 + $0x18] sm:$0xff] %vm2241, %v2089
  %2246 = vst.msk [vmem:[%s3 + $0x20] sm:$0xff] %vm2241, %v2092
  %2247 = vst.msk [vmem:[%s3 + $0x28] sm:$0xff] %vm2241, %v2094
  %2248 = vst.msk [vmem:[%s3 + $0x30] sm:$0xff] %vm2241, %v2097
  %2249 = vst.msk [vmem:[%s3 + $0x38] sm:$0xff] %vm2241, %v2099
  %2250 = vst.msk [vmem:[%s3 + $0x40] sm:$0xff] %vm2241, %v2102
  %2251 = vst.msk [vmem:[%s3 + $0x48] sm:$0xff] %vm2241, %v2104
  %2252 = vst.msk [vmem:[%s3 + $0x50] sm:$0xff] %vm2241, %v2107
  %2253 = vst.msk [vmem:[%s3 + $0x58] sm:$0xff] %vm2241, %v2109
  %2254 = vst.msk [vmem:[%s3 + $0x60] sm:$0xff] %vm2241, %v2112
  %2255 = vst.msk [vmem:[%s3 + $0x68] sm:$0xff] %vm2241, %v2114
  %2256 = vst.msk [vmem:[%s3 + $0x70] sm:$0xff] %vm2241, %v2117
  %2257 = vst.msk [vmem:[%s3 + $0x78] sm:$0xff] %vm2241, %v2119
  %2258 = vst.msk [vmem:[%s3 + $0x80] sm:$0xff] %vm2241, %v2122
  %2259 = vst.msk [vmem:[%s3 + $0x88] sm:$0xff] %vm2241, %v2124
  %2260 = vst.msk [vmem:[%s3 + $0x90] sm:$0xff] %vm2241, %v2127
  %2261 = vst.msk [vmem:[%s3 + $0x98] sm:$0xff] %vm2241, %v2129
  %2262 = vst.msk [vmem:[%s3 + $0xa0] sm:$0xff] %vm2241, %v2132
  %2263 = vst.msk [vmem:[%s3 + $0xa8] sm:$0xff] %vm2241, %v2134
  %2264 = vst.msk [vmem:[%s3 + $0xb0] sm:$0xff] %vm2241, %v2137
  %2265 = vst.msk [vmem:[%s3 + $0xb8] sm:$0xff] %vm2241, %v2139
  %2266 = vst.msk [vmem:[%s3 + $0xc0] sm:$0xff] %vm2241, %v2142
  %2267 = vst.msk [vmem:[%s3 + $0xc8] sm:$0xff] %vm2241, %v2144
  %2268 = vst.msk [vmem:[%s3 + $0xd0] sm:$0xff] %vm2241, %v2147
  %2269 = vst.msk [vmem:[%s3 + $0xd8] sm:$0xff] %vm2241, %v2149
  %2270 = vst.msk [vmem:[%s3 + $0xe0] sm:$0xff] %vm2241, %v2152
  %2271 = vst.msk [vmem:[%s3 + $0xe8] sm:$0xff] %vm2241, %v2154
  %2272 = vst.msk [vmem:[%s3 + $0xf0] sm:$0xff] %vm2241, %v2157
  %2273 = vst.msk [vmem:[%s3 + $0xf8] sm:$0xff] %vm2241, %v2159
  %2274 = vst.msk [vmem:[%s3 + $0x100] sm:$0xff] %vm2241, %v2162
  %2275 = vst.msk [vmem:[%s3 + $0x108] sm:$0xff] %vm2241, %v2164
  %2276 = vst.msk [vmem:[%s3 + $0x110] sm:$0xff] %vm2241, %v2167
  %2277 = vst.msk [vmem:[%s3 + $0x118] sm:$0xff] %vm2241, %v2169
  %2278 = vst.msk [vmem:[%s3 + $0x120] sm:$0xff] %vm2241, %v2172
  %2279 = vst.msk [vmem:[%s3 + $0x128] sm:$0xff] %vm2241, %v2174
  %2280 = vst.msk [vmem:[%s3 + $0x130] sm:$0xff] %vm2241, %v2177
  %2281 = vst.msk [vmem:[%s3 + $0x138] sm:$0xff] %vm2241, %v2179
  %2282 = vst.msk [vmem:[%s3 + $0x140] sm:$0xff] %vm2241, %v2182
  %2283 = vst.msk [vmem:[%s3 + $0x148] sm:$0xff] %vm2241, %v2184
  %2284 = vst.msk [vmem:[%s3 + $0x150] sm:$0xff] %vm2241, %v2187
  %2285 = vst.msk [vmem:[%s3 + $0x158] sm:$0xff] %vm2241, %v2189
  %2286 = vst.msk [vmem:[%s3 + $0x160] sm:$0xff] %vm2241, %v2192
  %2287 = vst.msk [vmem:[%s3 + $0x168] sm:$0xff] %vm2241, %v2194
  %2288 = vst.msk [vmem:[%s3 + $0x170] sm:$0xff] %vm2241, %v2197
  %2289 = vst.msk [vmem:[%s3 + $0x178] sm:$0xff] %vm2241, %v2199
  %2290 = vst.msk [vmem:[%s3 + $0x180] sm:$0xff] %vm2241, %v2202
  %2291 = vst.msk [vmem:[%s3 + $0x188] sm:$0xff] %vm2241, %v2204
  %2292 = vst.msk [vmem:[%s3 + $0x190] sm:$0xff] %vm2241, %v2207
  %2293 = vst.msk [vmem:[%s3 + $0x198] sm:$0xff] %vm2241, %v2209
  %2294 = vst.msk [vmem:[%s3 + $0x1a0] sm:$0xff] %vm2241, %v2212
  %2295 = vst.msk [vmem:[%s3 + $0x1a8] sm:$0xff] %vm2241, %v2214
  %2296 = vst.msk [vmem:[%s3 + $0x1b0] sm:$0xff] %vm2241, %v2217
  %2297 = vst.msk [vmem:[%s3 + $0x1b8] sm:$0xff] %vm2241, %v2219
  %2298 = vst.msk [vmem:[%s3 + $0x1c0] sm:$0xff] %vm2241, %v2222
  %2299 = vst.msk [vmem:[%s3 + $0x1c8] sm:$0xff] %vm2241, %v2224
  %2300 = vst.msk [vmem:[%s3 + $0x1d0] sm:$0xff] %vm2241, %v2227
  %2301 = vst.msk [vmem:[%s3 + $0x1d8] sm:$0xff] %vm2241, %v2229
  %2302 = vst.msk [vmem:[%s3 + $0x1e0] sm:$0xff] %vm2241, %v2232
  %2303 = vst.msk [vmem:[%s3 + $0x1e8] sm:$0xff] %vm2241, %v2234
  %2304 = vst.msk [vmem:[%s3 + $0x1f0] sm:$0xff] %vm2241, %v2237
  %2305 = vst.msk [vmem:[%s3 + $0x1f8] sm:$0xff] %vm2241, %v2239
  // Predicated region
  $region14: #{mynet_forward.27} parent=0 // pred_check
    _
  $region15: #{mynet_forward.27} parent=0 // pred_check_branch
    %2307 = sbr.rel (0) target = $region17
  $region16: #{mynet_forward.27} parent=0 // pred_region
    _
  $region17: #{mynet_forward.27} parent=0 // pred_fallthru
    _
  // Predicated region
  $region18: #{mynet_forward.27} parent=0 // pred_check
    _
  $region19: #{mynet_forward.27} parent=0 // pred_check_branch
    %2309 = sbr.rel (0) target = $region21
  $region20: #{mynet_forward.27} parent=0 // pred_region
    _
  $region21: #{mynet_forward.27} parent=0 // pred_fallthru
    _

</llo_original>
